<compile_context>
chip_gen: v7x
topology: tpu7x:2x2x1
jax: 0.10.0
libtpu: 0.0.40
codegen_flags: <defaults>
</compile_context>

<pallas_src>
import functools

import numpy as np

import jax
import jax.numpy as jnp
from jax import lax
from jax.experimental import pallas as pl
from jax.experimental.pallas import tpu as pltpu

NEG_SLOPE = 0.01        # nn.LeakyReLU default

# --------------------------------------------------------------------------
# Model geometry (from VAE.__init__): input (B, 8, 168), strides 2, k=5,
# dilations (1,2,4) in the encoder and (4,2,1) in the decoder, no padding.
# --------------------------------------------------------------------------
L_IN = 7 * 24           # 168
C_IN = 8
KSIZE = 5
EMB = 64
C_ENC = 64
L_ENC = 11
FC_IN = C_ENC * L_ENC   # 704

# (L_in, L_out, C_in, C_out, dilation)
ENC_CFG = ((168, 82, 8, 32, 1), (82, 37, 32, 64, 2), (37, 11, 64, 64, 4))
DEC_CFG = ((11, 37, 64, 64, 4), (37, 82, 64, 32, 2))    # dc1, dc2 (dc3 special-cased)

_FUSED_KEYS = ("ew1", "eb1", "ew2", "eb2", "ew3", "eb3",
               "w12", "b12", "w3fc", "b3fc",
               "dw1", "db1", "e1", "dw2", "db2", "e2",
               "dw3t", "db3", "e3t")


# --------------------------------------------------------------------------
# Host-side constant 0/1 scatter matrices (decoder overlap-add as matmuls).
# --------------------------------------------------------------------------
def _scatter_mats(l_out, l_in, k, stride, dil):
    m = np.zeros((k, l_out, l_in), np.float32)
    cols = np.arange(l_in)
    for t in range(k):
        rows = cols * stride + t * dil
        valid = rows < l_out
        m[t, rows[valid], cols[valid]] = 1.0
    return m


# --------------------------------------------------------------------------
# One-time repack of torch-layout parameters into kernel-friendly layouts.
# --------------------------------------------------------------------------
def prepare_fused_params(params):
    f = {}
    # Encoder Conv1d weight (C_out, C_in, K) -> im2col weight (K*C_in, C_out).
    for i, (li, lo, ci, co, dil) in enumerate(ENC_CFG, start=1):
        w = params[f"ec{i}_w"]
        f[f"ew{i}"] = jnp.transpose(w, (2, 1, 0)).reshape(KSIZE * ci, co)
        f[f"eb{i}"] = params[f"ec{i}_b"][None, :]

    # fc1|fc2 fused into one (704, 128) weight; rows reordered from torch's
    # (C, L) flatten (c*11 + l) to the kernel's channels-last flatten (l*64 + c).
    def reorder_enc_fc(w):
        return jnp.transpose(w.reshape(EMB, C_ENC, L_ENC), (2, 1, 0)).reshape(FC_IN, EMB)

    f["w12"] = jnp.concatenate([reorder_enc_fc(params["fc1_w"]),
                                reorder_enc_fc(params["fc2_w"])], axis=1)   # (704, 128)
    f["b12"] = jnp.concatenate([params["fc1_b"], params["fc2_b"]])[None, :]
    w3 = params["fc3_w"].reshape(C_ENC, L_ENC, EMB)                  # [c, l, e]
    f["w3fc"] = jnp.transpose(w3, (2, 1, 0)).reshape(EMB, FC_IN)     # [e, l*64+c]
    f["b3fc"] = params["fc3_b"].reshape(C_ENC, L_ENC).T.reshape(1, FC_IN)

    # Decoder ConvTranspose1d weight (C_in, C_out, K) -> (C_in, K*C_out),
    # plus bf16 0/1 scatter matrices (exact) for the overlap-add.
    for i, (li, lo, ci, co, dil) in enumerate(DEC_CFG, start=1):
        w = params[f"dc{i}_w"]
        f[f"dw{i}"] = jnp.transpose(w, (0, 2, 1)).reshape(ci, KSIZE * co)
        f[f"db{i}"] = params[f"dc{i}_b"][None, :]
        f[f"e{i}"] = jnp.asarray(_scatter_mats(lo, li, KSIZE, 2, dil), jnp.bfloat16)
    f["dw3t"] = jnp.transpose(params["dc3_w"][:, 0, :], (1, 0))      # (5, 32)
    f["db3"] = params["dc3_b"].reshape(1, 1)
    e3 = _scatter_mats(L_IN, 82, KSIZE, 2, 1)                        # (5, 168, 82)
    f["e3t"] = jnp.asarray(np.transpose(e3, (0, 2, 1)), jnp.bfloat16)  # (5, 82, 168)
    return f


# --------------------------------------------------------------------------
# The fused kernel: one grid step == one batch BLOCK, everything in VMEM.
# --------------------------------------------------------------------------
def _vae_fused_kernel(bblk,
                      x_ref, eps_ref,
                      ew1_ref, eb1_ref, ew2_ref, eb2_ref, ew3_ref, eb3_ref,
                      w12_ref, b12_ref, w3fc_ref, b3fc_ref,
                      dw1_ref, db1_ref, e1_ref,
                      dw2_ref, db2_ref, e2_ref,
                      dw3t_ref, db3_ref, e3t_ref,
                      out_ref, mlv_ref,
                      h1_ref, h2_ref):
    def leaky(v):
        return jnp.where(v > 0, v, NEG_SLOPE * v)

    def mm(a, b):
        return jnp.dot(a, b, preferred_element_type=jnp.float32)

    # ---------------- encoder: strided im2col -> one matmul per layer -------
    def enc_taps(src_ref, b, l_src, l_out, dil):
        # All tap windows share at most two stride-2 downsampled row streams.
        if dil % 2 == 0:
            n_ev = (l_src + 1) // 2
            ev = src_ref[pl.ds(b * l_src, n_ev, stride=2), :]
            return [ev[(t * dil) // 2:(t * dil) // 2 + l_out, :]
                    for t in range(KSIZE)]
        half = l_src // 2
        ev = src_ref[pl.ds(b * l_src, half, stride=2), :]
        od = src_ref[pl.ds(b * l_src + 1, half, stride=2), :]
        return [(ev if t % 2 == 0 else od)[t // 2:t // 2 + l_out, :]
                for t in range(KSIZE)]

    def enc_layer(src_ref, l_src, l_out, dil, w_ref, b_ref):
        rows = [jnp.concatenate(enc_taps(src_ref, b, l_src, l_out, dil), axis=1)
                for b in range(bblk)]
        patches = jnp.concatenate(rows, axis=0)          # (bblk*l_out, K*C_in)
        return leaky(mm(patches, w_ref[...]) + b_ref[...])

    h1_ref[...] = enc_layer(x_ref, 168, 82, 1, ew1_ref, eb1_ref)     # (bblk*82, 32)
    h2_ref[...] = enc_layer(h1_ref, 82, 37, 2, ew2_ref, eb2_ref)     # (bblk*37, 64)
    h3 = enc_layer(h2_ref, 37, 11, 4, ew3_ref, eb3_ref)              # (bblk*11, 64)

    # ------------- bottleneck: ONE fused fc1|fc2 matmul ---------------------
    h_flat = jnp.concatenate(
        [jnp.concatenate([h3[b * L_ENC + l:b * L_ENC + l + 1, :]
                          for l in range(L_ENC)], axis=1)
         for b in range(bblk)], axis=0)                              # (bblk, 704)
    ml = mm(h_flat, w12_ref[...]) + b12_ref[...]                     # (bblk, 128)
    mlv_ref[...] = ml                                                # lane-dense mu|logvar
    mu = ml[:, :EMB]
    logvar = ml[:, EMB:]
    z = mu + eps_ref[...] * jnp.exp(0.5 * logvar)                    # reparameterization

    # ------------- fc3: ONE matmul, re-tile to channels-last (bblk*11, 64) --
    d = mm(z, w3fc_ref[...]) + b3fc_ref[...]                         # (bblk, 704)
    g = jnp.concatenate(
        [jnp.concatenate([d[b:b + 1, l * C_ENC:(l + 1) * C_ENC]
                          for l in range(L_ENC)], axis=0)
         for b in range(bblk)], axis=0)                              # (bblk*11, 64)

    # ------------- decoder convT 1&2: big tap matmul + batched scatter ------
    def dec_layer(g, l_in_d, l_out_d, c_out, w_ref, b_ref, e_ref):
        y = mm(g, w_ref[...])                                        # (bblk*l_in, 5*c_out)
        acc = None
        for t in range(KSIZE):
            yt = jnp.concatenate(
                [y[b * l_in_d:(b + 1) * l_in_d, t * c_out:(t + 1) * c_out]
                 for b in range(bblk)], axis=1)                      # (l_in, bblk*c_out)
            term = mm(e_ref[t].astype(jnp.float32), yt)              # (l_out, bblk*c_out)
            acc = term if acc is None else acc + term
        o = jnp.concatenate([acc[:, b * c_out:(b + 1) * c_out]
                             for b in range(bblk)], axis=0)          # (bblk*l_out, c_out)
        return leaky(o + b_ref[...])

    g = dec_layer(g, 11, 37, 64, dw1_ref, db1_ref, e1_ref)           # (bblk*37, 64)
    g = dec_layer(g, 37, 82, 32, dw2_ref, db2_ref, e2_ref)           # (bblk*82, 32)

    # ------------- decoder convT 3 (32 -> 1): lane-dense (bblk, 168) rows ---
    r = lax.dot_general(dw3t_ref[...], g, (((1,), (1,)), ((), ())),
                        preferred_element_type=jnp.float32)          # (5, bblk*82)
    acc = None
    for t in range(KSIZE):
        rt = jnp.concatenate([r[t:t + 1, b * 82:(b + 1) * 82]
                              for b in range(bblk)], axis=0)         # (bblk, 82)
        term = mm(rt, e3t_ref[t].astype(jnp.float32))                # (bblk, 168)
        acc = term if acc is None else acc + term
    # NOTE: the torch model applies LeakyReLU after the final ConvTranspose1d
    # (dec_convs.relu3), so the activation on the reconstruction is intentional.
    out_ref[...] = leaky(acc + db3_ref[...])


# --------------------------------------------------------------------------
# Wrapper: a single pallas_call over grid=(B / bblk,).
# --------------------------------------------------------------------------
def vae_forward(fused, x, eps):
    B = x.shape[0]
    bblk = B if B <= 8 else 8
    pad = (-B) % bblk
    bp = B + pad
    if pad:
        x = jnp.concatenate([x, jnp.zeros((pad, C_IN, L_IN), x.dtype)], axis=0)
        eps = jnp.concatenate([eps, jnp.zeros((pad, EMB), eps.dtype)], axis=0)

    # Channels-last and flattened to 2D: each block is one contiguous HBM DMA
    # and the kernel can take strided row windows per sample with pl.ds.
    x2d = jnp.transpose(x, (0, 2, 1)).reshape(bp * L_IN, C_IN)
    consts = [fused[k] for k in _FUSED_KEYS]

    def const_spec(a):
        nd = a.ndim
        return pl.BlockSpec(a.shape, lambda i, nd=nd: (0,) * nd)

    in_specs = [
        pl.BlockSpec((bblk * L_IN, C_IN), lambda i: (i, 0)),   # x (channels-last rows)
        pl.BlockSpec((bblk, EMB), lambda i: (i, 0)),           # eps
    ] + [const_spec(a) for a in consts]

    out_specs = (
        pl.BlockSpec((bblk, L_IN), lambda i: (i, 0)),          # reconstruction rows
        pl.BlockSpec((bblk, 2 * EMB), lambda i: (i, 0)),       # mu | logvar (lane-dense)
    )
    out_shape = (
        jax.ShapeDtypeStruct((bp, L_IN), jnp.float32),
        jax.ShapeDtypeStruct((bp, 2 * EMB), jnp.float32),
    )

    bytes_accessed = sum(int(np.prod(a.shape)) * a.dtype.itemsize
                         for a in [x2d, eps] + consts)
    bytes_accessed += (bp * L_IN + bp * 2 * EMB) * 4
    cost = pl.CostEstimate(flops=int(4.4e6) * bp,              # ~2.2 MMACs/sample
                           transcendentals=bp * EMB,
                           bytes_accessed=int(bytes_accessed))

    out2d, mlv = pl.pallas_call(
        functools.partial(_vae_fused_kernel, bblk),
        grid=(bp // bblk,),
        in_specs=in_specs,
        out_specs=out_specs,
        out_shape=out_shape,
        scratch_shapes=[pltpu.VMEM((bblk * 82, 32), jnp.float32),   # encoder layer-1 act
                        pltpu.VMEM((bblk * 37, 64), jnp.float32)],  # encoder layer-2 act
        compiler_params=pltpu.CompilerParams(
            dimension_semantics=("parallel",),     # shards batch blocks across TCs on v7x
            vmem_limit_bytes=32 * 1024 * 1024,     # working set ~1 MB, ample headroom
        ),
        cost_estimate=cost,
    )(x2d, eps, *consts)

    out = out2d[:B].reshape(B, 1, L_IN)
    mu = mlv[:B, :EMB]
    logvar = mlv[:B, EMB:]
    return out, mu, logvar


# --------------------------------------------------------------------------
# Deterministic synthetic parameter init (shapes from VAE.__init__).
# --------------------------------------------------------------------------
def init_params(key):
    ks = jax.random.split(key, 9)

    def kaiming_conv(k, shape):          # Conv1d: kaiming_normal, fan_out, relu
        c_out, _, kk = shape
        std = (2.0 / (c_out * kk)) ** 0.5
        return std * jax.random.normal(k, shape, jnp.float32)

    def convt_default(k, shape):         # ConvTranspose1d: torch default uniform
        _, c_out, kk = shape
        bound = 1.0 / ((c_out * kk) ** 0.5)
        return jax.random.uniform(k, shape, jnp.float32, -bound, bound)

    return {
        "ec1_w": kaiming_conv(ks[0], (32, 8, 5)),  "ec1_b": jnp.zeros((32,), jnp.float32),
        "ec2_w": kaiming_conv(ks[1], (64, 32, 5)), "ec2_b": jnp.zeros((64,), jnp.float32),
        "ec3_w": kaiming_conv(ks[2], (64, 64, 5)), "ec3_b": jnp.zeros((64,), jnp.float32),
        "fc1_w": 0.01 * jax.random.normal(ks[3], (EMB, FC_IN), jnp.float32),
        "fc1_b": jnp.zeros((EMB,), jnp.float32),
        "fc2_w": 0.01 * jax.random.normal(ks[4], (EMB, FC_IN), jnp.float32),
        "fc2_b": jnp.zeros((EMB,), jnp.float32),
        "fc3_w": 0.01 * jax.random.normal(ks[5], (FC_IN, EMB), jnp.float32),
        "fc3_b": jnp.zeros((FC_IN,), jnp.float32),
        "dc1_w": convt_default(ks[6], (64, 64, 5)), "dc1_b": jnp.zeros((64,), jnp.float32),
        "dc2_w": convt_default(ks[7], (64, 32, 5)), "dc2_b": jnp.zeros((32,), jnp.float32),
        "dc3_w": convt_default(ks[8], (32, 1, 5)),  "dc3_b": jnp.zeros((1,), jnp.float32),
    }
    # TODO(synk): the PyTorch module also defines an unused `self.encoder`
    # Sequential (Conv1d(66, 32, ...)); it is never called in forward(), so it
    # is intentionally omitted here.


# --------------------------------------------------------------------------
# Pure-JAX/XLA reference (mirrors the torch module exactly) for a self-check.
# --------------------------------------------------------------------------
def _reference_forward(params, x, eps):
    def leaky(v):
        return jnp.where(v > 0, v, NEG_SLOPE * v)

    def conv1d(h, w, b, stride, dil):
        B, c_in, l_in = h.shape
        c_out, _, k = w.shape
        l_out = (l_in - dil * (k - 1) - 1) // stride + 1
        idx = jnp.arange(l_out)[:, None] * stride + jnp.arange(k)[None, :] * dil
        p = jnp.transpose(h[:, :, idx], (0, 2, 1, 3)).reshape(B * l_out, c_in * k)
        o = jnp.dot(p, w.reshape(c_out, c_in * k).T, precision="highest") + b
        return jnp.transpose(o.reshape(B, l_out, c_out), (0, 2, 1))

    def conv_t(h, w, b, stride, dil, opad):
        B, c_in, l_in = h.shape
        pad = dil * (KSIZE - 1)
        xu = jnp.zeros((B, c_in, (l_in - 1) * stride + 1), h.dtype).at[:, :, ::stride].set(h)
        xp = jnp.pad(xu, ((0, 0), (0, 0), (pad, pad + opad)))
        wf = jnp.transpose(w[:, :, ::-1], (1, 0, 2))
        return conv1d(xp, wf, b, 1, dil)

    B = x.shape[0]
    h = leaky(conv1d(x, params["ec1_w"], params["ec1_b"], 2, 1))
    h = leaky(conv1d(h, params["ec2_w"], params["ec2_b"], 2, 2))
    h = leaky(conv1d(h, params["ec3_w"], params["ec3_b"], 2, 4))
    h = h.reshape(B, FC_IN)
    mu = jnp.dot(h, params["fc1_w"].T, precision="highest") + params["fc1_b"]
    logvar = jnp.dot(h, params["fc2_w"].T, precision="highest") + params["fc2_b"]
    z = mu + eps * jnp.exp(0.5 * logvar)
    d = (jnp.dot(z, params["fc3_w"].T, precision="highest") + params["fc3_b"]).reshape(B, C_ENC, L_ENC)
    d = leaky(conv_t(d, params["dc1_w"], params["dc1_b"], 2, 4, 0))
    d = leaky(conv_t(d, params["dc2_w"], params["dc2_b"], 2, 2, 1))
    d = leaky(conv_t(d, params["dc3_w"], params["dc3_b"], 2, 1, 1))
    return d, mu, logvar


if __name__ == "__main__":
    key = jax.random.PRNGKey(0)
    k_param, k_x, k_eps = jax.random.split(key, 3)

    B = 2
    x = jax.random.normal(k_x, (B, C_IN, L_IN), jnp.float32)   # (2, 8, 168), NCL like torch
    eps = jax.random.normal(k_eps, (B, EMB), jnp.float32)      # explicit reparam noise
    params = init_params(k_param)

    fused = prepare_fused_params(params)                       # one-time layout repack
    fwd = jax.jit(vae_forward)
    out, mu, logvar = fwd(fused, x, eps)
    jax.block_until_ready((out, mu, logvar))

    assert out.shape == (B, 1, L_IN), out.shape
    assert mu.shape == (B, EMB) and logvar.shape == (B, EMB)

    # Numerical self-check against a plain XLA implementation of the module.
    # Tolerance tightened from 2e-2 to 1e-2: the kernel runs the default MXU
    # f32 path while the reference uses precision="highest"; structural bugs
    # would show up at >= 5e-2 relative error, far above this bound.
    ref_out, ref_mu, ref_lv = _reference_forward(params, x, eps)
    for got, ref in ((out, ref_out), (mu, ref_mu), (logvar, ref_lv)):
        rel = jnp.linalg.norm(got - ref) / (jnp.linalg.norm(ref) + 1e-6)
        assert float(rel) < 1e-2, f"relative error too large: {float(rel)}"

    print("KERNEL_OK")
</pallas_src>

<mosaic_0001>
module attributes {stable_mosaic.version = 11 : i64} {
  func.func @_vae_fused_kernel(%arg0: i32, %arg1: memref<336x8xf32, #tpu.memory_space<vmem>>, %arg2: memref<2x64xf32, #tpu.memory_space<vmem>>, %arg3: memref<40x32xf32, #tpu.memory_space<vmem>>, %arg4: memref<1x32xf32, #tpu.memory_space<vmem>>, %arg5: memref<160x64xf32, #tpu.memory_space<vmem>>, %arg6: memref<1x64xf32, #tpu.memory_space<vmem>>, %arg7: memref<320x64xf32, #tpu.memory_space<vmem>>, %arg8: memref<1x64xf32, #tpu.memory_space<vmem>>, %arg9: memref<704x128xf32, #tpu.memory_space<vmem>>, %arg10: memref<1x128xf32, #tpu.memory_space<vmem>>, %arg11: memref<64x704xf32, #tpu.memory_space<vmem>>, %arg12: memref<1x704xf32, #tpu.memory_space<vmem>>, %arg13: memref<64x320xf32, #tpu.memory_space<vmem>>, %arg14: memref<1x64xf32, #tpu.memory_space<vmem>>, %arg15: memref<5x37x11xbf16, #tpu.memory_space<vmem>>, %arg16: memref<64x160xf32, #tpu.memory_space<vmem>>, %arg17: memref<1x32xf32, #tpu.memory_space<vmem>>, %arg18: memref<5x82x37xbf16, #tpu.memory_space<vmem>>, %arg19: memref<5x32xf32, #tpu.memory_space<vmem>>, %arg20: memref<1x1xf32, #tpu.memory_space<vmem>>, %arg21: memref<5x82x168xbf16, #tpu.memory_space<vmem>>, %arg22: memref<2x168xf32, #tpu.memory_space<vmem>>, %arg23: memref<2x128xf32, #tpu.memory_space<vmem>>, %arg24: memref<164x32xf32, #tpu.memory_space<vmem>>, %arg25: memref<74x64xf32, #tpu.memory_space<vmem>>) attributes {dimension_semantics = [#tpu.dimension_semantics<parallel>], iteration_bounds = array<i64: 1>, scalar_prefetch = 0 : i64, scratch_operands = 2 : i64, tpu.core_type = #tpu.core_type<tc>, window_params = [{transform_indices = @transform_0, window_bounds = array<i64: 336, 8>}, {transform_indices = @transform_1, window_bounds = array<i64: 2, 64>}, {pipeline_mode = #tpu.pipeline_mode<synchronous>, transform_indices = @transform_2, window_bounds = array<i64: 40, 32>}, {pipeline_mode = #tpu.pipeline_mode<synchronous>, transform_indices = @transform_3, window_bounds = array<i64: 1, 32>}, {pipeline_mode = #tpu.pipeline_mode<synchronous>, transform_indices = @transform_4, window_bounds = array<i64: 160, 64>}, {pipeline_mode = #tpu.pipeline_mode<synchronous>, transform_indices = @transform_5, window_bounds = array<i64: 1, 64>}, {pipeline_mode = #tpu.pipeline_mode<synchronous>, transform_indices = @transform_6, window_bounds = array<i64: 320, 64>}, {pipeline_mode = #tpu.pipeline_mode<synchronous>, transform_indices = @transform_7, window_bounds = array<i64: 1, 64>}, {pipeline_mode = #tpu.pipeline_mode<synchronous>, transform_indices = @transform_8, window_bounds = array<i64: 704, 128>}, {pipeline_mode = #tpu.pipeline_mode<synchronous>, transform_indices = @transform_9, window_bounds = array<i64: 1, 128>}, {pipeline_mode = #tpu.pipeline_mode<synchronous>, transform_indices = @transform_10, window_bounds = array<i64: 64, 704>}, {pipeline_mode = #tpu.pipeline_mode<synchronous>, transform_indices = @transform_11, window_bounds = array<i64: 1, 704>}, {pipeline_mode = #tpu.pipeline_mode<synchronous>, transform_indices = @transform_12, window_bounds = array<i64: 64, 320>}, {pipeline_mode = #tpu.pipeline_mode<synchronous>, transform_indices = @transform_13, window_bounds = array<i64: 1, 64>}, {pipeline_mode = #tpu.pipeline_mode<synchronous>, transform_indices = @transform_14, window_bounds = array<i64: 5, 37, 11>}, {pipeline_mode = #tpu.pipeline_mode<synchronous>, transform_indices = @transform_15, window_bounds = array<i64: 64, 160>}, {pipeline_mode = #tpu.pipeline_mode<synchronous>, transform_indices = @transform_16, window_bounds = array<i64: 1, 32>}, {pipeline_mode = #tpu.pipeline_mode<synchronous>, transform_indices = @transform_17, window_bounds = array<i64: 5, 82, 37>}, {pipeline_mode = #tpu.pipeline_mode<synchronous>, transform_indices = @transform_18, window_bounds = array<i64: 5, 32>}, {pipeline_mode = #tpu.pipeline_mode<synchronous>, transform_indices = @transform_19, window_bounds = array<i64: 1, 1>}, {pipeline_mode = #tpu.pipeline_mode<synchronous>, transform_indices = @transform_20, window_bounds = array<i64: 5, 82, 168>}, {transform_indices = @transform_21, window_bounds = array<i64: 2, 168>}, {transform_indices = @transform_22, window_bounds = array<i64: 2, 128>}]} {
    %c0 = arith.constant 0 : index
    %c0_0 = arith.constant 0 : index
    %0 = tpu.strided_load %arg1[%c0, %c0_0] {strides = array<i32: 2, 1>} : memref<336x8xf32, #tpu.memory_space<vmem>>, vector<84x8xf32>
    %c1 = arith.constant 1 : index
    %c0_1 = arith.constant 0 : index
    %1 = tpu.strided_load %arg1[%c1, %c0_1] {strides = array<i32: 2, 1>} : memref<336x8xf32, #tpu.memory_space<vmem>>, vector<84x8xf32>
    %2 = vector.extract_strided_slice %0 {offsets = [0, 0], sizes = [82, 8], strides = [1, 1]} : vector<84x8xf32> to vector<82x8xf32>
    %3 = vector.extract_strided_slice %1 {offsets = [0, 0], sizes = [82, 8], strides = [1, 1]} : vector<84x8xf32> to vector<82x8xf32>
    %4 = vector.extract_strided_slice %0 {offsets = [1, 0], sizes = [82, 8], strides = [1, 1]} : vector<84x8xf32> to vector<82x8xf32>
    %5 = vector.extract_strided_slice %1 {offsets = [1, 0], sizes = [82, 8], strides = [1, 1]} : vector<84x8xf32> to vector<82x8xf32>
    %6 = vector.extract_strided_slice %0 {offsets = [2, 0], sizes = [82, 8], strides = [1, 1]} : vector<84x8xf32> to vector<82x8xf32>
    %7 = tpu.concatenate %2, %3, %4, %5, %6 in 1 : vector<82x8xf32>, vector<82x8xf32>, vector<82x8xf32>, vector<82x8xf32>, vector<82x8xf32> -> vector<82x40xf32>
    %c168 = arith.constant 168 : index
    %c0_2 = arith.constant 0 : index
    %8 = tpu.strided_load %arg1[%c168, %c0_2] {strides = array<i32: 2, 1>} : memref<336x8xf32, #tpu.memory_space<vmem>>, vector<84x8xf32>
    %c169 = arith.constant 169 : index
    %c0_3 = arith.constant 0 : index
    %9 = tpu.strided_load %arg1[%c169, %c0_3] {strides = array<i32: 2, 1>} : memref<336x8xf32, #tpu.memory_space<vmem>>, vector<84x8xf32>
    %10 = vector.extract_strided_slice %8 {offsets = [0, 0], sizes = [82, 8], strides = [1, 1]} : vector<84x8xf32> to vector<82x8xf32>
    %11 = vector.extract_strided_slice %9 {offsets = [0, 0], sizes = [82, 8], strides = [1, 1]} : vector<84x8xf32> to vector<82x8xf32>
    %12 = vector.extract_strided_slice %8 {offsets = [1, 0], sizes = [82, 8], strides = [1, 1]} : vector<84x8xf32> to vector<82x8xf32>
    %13 = vector.extract_strided_slice %9 {offsets = [1, 0], sizes = [82, 8], strides = [1, 1]} : vector<84x8xf32> to vector<82x8xf32>
    %14 = vector.extract_strided_slice %8 {offsets = [2, 0], sizes = [82, 8], strides = [1, 1]} : vector<84x8xf32> to vector<82x8xf32>
    %15 = tpu.concatenate %10, %11, %12, %13, %14 in 1 : vector<82x8xf32>, vector<82x8xf32>, vector<82x8xf32>, vector<82x8xf32>, vector<82x8xf32> -> vector<82x40xf32>
    %16 = tpu.concatenate %7, %15 in 0 : vector<82x40xf32>, vector<82x40xf32> -> vector<164x40xf32>
    %c0_4 = arith.constant 0 : index
    %c0_5 = arith.constant 0 : index
    %17 = vector.load %arg3[%c0_4, %c0_5] : memref<40x32xf32, #tpu.memory_space<vmem>>, vector<40x32xf32>
    %cst = arith.constant dense<0.000000e+00> : vector<164x32xf32>
    %18 = tpu.matmul %16, %17, %cst {dimension_numbers = #tpu.dot_dimension_numbers<[1], [0], [0], [1], [0, 0, 1, 1], [], []>} : vector<164x40xf32>, vector<40x32xf32>, vector<164x32xf32> -> vector<164x32xf32>
    %c0_6 = arith.constant 0 : index
    %c0_7 = arith.constant 0 : index
    %19 = vector.load %arg4[%c0_6, %c0_7] : memref<1x32xf32, #tpu.memory_space<vmem>>, vector<1x32xf32>
    %20 = vector.broadcast %19 : vector<1x32xf32> to vector<164x32xf32>
    %21 = arith.addf %18, %20 : vector<164x32xf32>
    %cst_8 = arith.constant 0.000000e+00 : f32
    %22 = vector.broadcast %cst_8 : f32 to vector<164x32xf32>
    %23 = arith.cmpf ogt, %21, %22 : vector<164x32xf32>
    %cst_9 = arith.constant 0.00999999977 : f32
    %24 = vector.broadcast %cst_9 : f32 to vector<164x32xf32>
    %25 = arith.mulf %24, %21 : vector<164x32xf32>
    %26 = arith.select %23, %21, %25 : vector<164x32xi1>, vector<164x32xf32>
    %c0_10 = arith.constant 0 : index
    %c0_11 = arith.constant 0 : index
    %27 = vector.load %arg24[%c0_10, %c0_11] : memref<164x32xf32, #tpu.memory_space<vmem>>, vector<164x32xf32>
    tpu.vector_store %arg24[%c0_10, %c0_11], %26 {strides = array<i32>} : memref<164x32xf32, #tpu.memory_space<vmem>>, vector<164x32xf32>,
    %c0_12 = arith.constant 0 : index
    %c0_13 = arith.constant 0 : index
    %28 = tpu.strided_load %arg24[%c0_12, %c0_13] {strides = array<i32: 2, 1>} : memref<164x32xf32, #tpu.memory_space<vmem>>, vector<41x32xf32>
    %29 = vector.extract_strided_slice %28 {offsets = [0, 0], sizes = [37, 32], strides = [1, 1]} : vector<41x32xf32> to vector<37x32xf32>
    %30 = vector.extract_strided_slice %28 {offsets = [1, 0], sizes = [37, 32], strides = [1, 1]} : vector<41x32xf32> to vector<37x32xf32>
    %31 = vector.extract_strided_slice %28 {offsets = [2, 0], sizes = [37, 32], strides = [1, 1]} : vector<41x32xf32> to vector<37x32xf32>
    %32 = vector.extract_strided_slice %28 {offsets = [3, 0], sizes = [37, 32], strides = [1, 1]} : vector<41x32xf32> to vector<37x32xf32>
    %33 = vector.extract_strided_slice %28 {offsets = [4, 0], sizes = [37, 32], strides = [1, 1]} : vector<41x32xf32> to vector<37x32xf32>
    %34 = tpu.concatenate %29, %30, %31, %32, %33 in 1 : vector<37x32xf32>, vector<37x32xf32>, vector<37x32xf32>, vector<37x32xf32>, vector<37x32xf32> -> vector<37x160xf32>
    %c82 = arith.constant 82 : index
    %c0_14 = arith.constant 0 : index
    %35 = tpu.strided_load %arg24[%c82, %c0_14] {strides = array<i32: 2, 1>} : memref<164x32xf32, #tpu.memory_space<vmem>>, vector<41x32xf32>
    %36 = vector.extract_strided_slice %35 {offsets = [0, 0], sizes = [37, 32], strides = [1, 1]} : vector<41x32xf32> to vector<37x32xf32>
    %37 = vector.extract_strided_slice %35 {offsets = [1, 0], sizes = [37, 32], strides = [1, 1]} : vector<41x32xf32> to vector<37x32xf32>
    %38 = vector.extract_strided_slice %35 {offsets = [2, 0], sizes = [37, 32], strides = [1, 1]} : vector<41x32xf32> to vector<37x32xf32>
    %39 = vector.extract_strided_slice %35 {offsets = [3, 0], sizes = [37, 32], strides = [1, 1]} : vector<41x32xf32> to vector<37x32xf32>
    %40 = vector.extract_strided_slice %35 {offsets = [4, 0], sizes = [37, 32], strides = [1, 1]} : vector<41x32xf32> to vector<37x32xf32>
    %41 = tpu.concatenate %36, %37, %38, %39, %40 in 1 : vector<37x32xf32>, vector<37x32xf32>, vector<37x32xf32>, vector<37x32xf32>, vector<37x32xf32> -> vector<37x160xf32>
    %42 = tpu.concatenate %34, %41 in 0 : vector<37x160xf32>, vector<37x160xf32> -> vector<74x160xf32>
    %c0_15 = arith.constant 0 : index
    %c0_16 = arith.constant 0 : index
    %43 = vector.load %arg5[%c0_15, %c0_16] : memref<160x64xf32, #tpu.memory_space<vmem>>, vector<160x64xf32>
    %cst_17 = arith.constant dense<0.000000e+00> : vector<74x64xf32>
    %44 = tpu.matmul %42, %43, %cst_17 {dimension_numbers = #tpu.dot_dimension_numbers<[1], [0], [0], [1], [0, 0, 1, 1], [], []>} : vector<74x160xf32>, vector<160x64xf32>, vector<74x64xf32> -> vector<74x64xf32>
    %c0_18 = arith.constant 0 : index
    %c0_19 = arith.constant 0 : index
    %45 = vector.load %arg6[%c0_18, %c0_19] : memref<1x64xf32, #tpu.memory_space<vmem>>, vector<1x64xf32>
    %46 = vector.broadcast %45 : vector<1x64xf32> to vector<74x64xf32>
    %47 = arith.addf %44, %46 : vector<74x64xf32>
    %cst_20 = arith.constant 0.000000e+00 : f32
    %48 = vector.broadcast %cst_20 : f32 to vector<74x64xf32>
    %49 = arith.cmpf ogt, %47, %48 : vector<74x64xf32>
    %cst_21 = arith.constant 0.00999999977 : f32
    %50 = vector.broadcast %cst_21 : f32 to vector<74x64xf32>
    %51 = arith.mulf %50, %47 : vector<74x64xf32>
    %52 = arith.select %49, %47, %51 : vector<74x64xi1>, vector<74x64xf32>
    %c0_22 = arith.constant 0 : index
    %c0_23 = arith.constant 0 : index
    %53 = vector.load %arg25[%c0_22, %c0_23] : memref<74x64xf32, #tpu.memory_space<vmem>>, vector<74x64xf32>
    tpu.vector_store %arg25[%c0_22, %c0_23], %52 {strides = array<i32>} : memref<74x64xf32, #tpu.memory_space<vmem>>, vector<74x64xf32>,
    %c0_24 = arith.constant 0 : index
    %c0_25 = arith.constant 0 : index
    %54 = tpu.strided_load %arg25[%c0_24, %c0_25] {strides = array<i32: 2, 1>} : memref<74x64xf32, #tpu.memory_space<vmem>>, vector<19x64xf32>
    %55 = vector.extract_strided_slice %54 {offsets = [0, 0], sizes = [11, 64], strides = [1, 1]} : vector<19x64xf32> to vector<11x64xf32>
    %56 = vector.extract_strided_slice %54 {offsets = [2, 0], sizes = [11, 64], strides = [1, 1]} : vector<19x64xf32> to vector<11x64xf32>
    %57 = vector.extract_strided_slice %54 {offsets = [4, 0], sizes = [11, 64], strides = [1, 1]} : vector<19x64xf32> to vector<11x64xf32>
    %58 = vector.extract_strided_slice %54 {offsets = [6, 0], sizes = [11, 64], strides = [1, 1]} : vector<19x64xf32> to vector<11x64xf32>
    %59 = vector.extract_strided_slice %54 {offsets = [8, 0], sizes = [11, 64], strides = [1, 1]} : vector<19x64xf32> to vector<11x64xf32>
    %60 = tpu.concatenate %55, %56, %57, %58, %59 in 1 : vector<11x64xf32>, vector<11x64xf32>, vector<11x64xf32>, vector<11x64xf32>, vector<11x64xf32> -> vector<11x320xf32>
    %c37 = arith.constant 37 : index
    %c0_26 = arith.constant 0 : index
    %61 = tpu.strided_load %arg25[%c37, %c0_26] {strides = array<i32: 2, 1>} : memref<74x64xf32, #tpu.memory_space<vmem>>, vector<19x64xf32>
    %62 = vector.extract_strided_slice %61 {offsets = [0, 0], sizes = [11, 64], strides = [1, 1]} : vector<19x64xf32> to vector<11x64xf32>
    %63 = vector.extract_strided_slice %61 {offsets = [2, 0], sizes = [11, 64], strides = [1, 1]} : vector<19x64xf32> to vector<11x64xf32>
    %64 = vector.extract_strided_slice %61 {offsets = [4, 0], sizes = [11, 64], strides = [1, 1]} : vector<19x64xf32> to vector<11x64xf32>
    %65 = vector.extract_strided_slice %61 {offsets = [6, 0], sizes = [11, 64], strides = [1, 1]} : vector<19x64xf32> to vector<11x64xf32>
    %66 = vector.extract_strided_slice %61 {offsets = [8, 0], sizes = [11, 64], strides = [1, 1]} : vector<19x64xf32> to vector<11x64xf32>
    %67 = tpu.concatenate %62, %63, %64, %65, %66 in 1 : vector<11x64xf32>, vector<11x64xf32>, vector<11x64xf32>, vector<11x64xf32>, vector<11x64xf32> -> vector<11x320xf32>
    %68 = tpu.concatenate %60, %67 in 0 : vector<11x320xf32>, vector<11x320xf32> -> vector<22x320xf32>
    %c0_27 = arith.constant 0 : index
    %c0_28 = arith.constant 0 : index
    %69 = vector.load %arg7[%c0_27, %c0_28] : memref<320x64xf32, #tpu.memory_space<vmem>>, vector<320x64xf32>
    %cst_29 = arith.constant dense<0.000000e+00> : vector<22x64xf32>
    %70 = tpu.matmul %68, %69, %cst_29 {dimension_numbers = #tpu.dot_dimension_numbers<[1], [0], [0], [1], [0, 0, 1, 1], [], []>} : vector<22x320xf32>, vector<320x64xf32>, vector<22x64xf32> -> vector<22x64xf32>
    %c0_30 = arith.constant 0 : index
    %c0_31 = arith.constant 0 : index
    %71 = vector.load %arg8[%c0_30, %c0_31] : memref<1x64xf32, #tpu.memory_space<vmem>>, vector<1x64xf32>
    %72 = vector.broadcast %71 : vector<1x64xf32> to vector<22x64xf32>
    %73 = arith.addf %70, %72 : vector<22x64xf32>
    %cst_32 = arith.constant 0.000000e+00 : f32
    %74 = vector.broadcast %cst_32 : f32 to vector<22x64xf32>
    %75 = arith.cmpf ogt, %73, %74 : vector<22x64xf32>
    %cst_33 = arith.constant 0.00999999977 : f32
    %76 = vector.broadcast %cst_33 : f32 to vector<22x64xf32>
    %77 = arith.mulf %76, %73 : vector<22x64xf32>
    %78 = arith.select %75, %73, %77 : vector<22x64xi1>, vector<22x64xf32>
    %79 = vector.extract_strided_slice %78 {offsets = [0, 0], sizes = [1, 64], strides = [1, 1]} : vector<22x64xf32> to vector<1x64xf32>
    %80 = vector.extract_strided_slice %78 {offsets = [1, 0], sizes = [1, 64], strides = [1, 1]} : vector<22x64xf32> to vector<1x64xf32>
    %81 = vector.extract_strided_slice %78 {offsets = [2, 0], sizes = [1, 64], strides = [1, 1]} : vector<22x64xf32> to vector<1x64xf32>
    %82 = vector.extract_strided_slice %78 {offsets = [3, 0], sizes = [1, 64], strides = [1, 1]} : vector<22x64xf32> to vector<1x64xf32>
    %83 = vector.extract_strided_slice %78 {offsets = [4, 0], sizes = [1, 64], strides = [1, 1]} : vector<22x64xf32> to vector<1x64xf32>
    %84 = vector.extract_strided_slice %78 {offsets = [5, 0], sizes = [1, 64], strides = [1, 1]} : vector<22x64xf32> to vector<1x64xf32>
    %85 = vector.extract_strided_slice %78 {offsets = [6, 0], sizes = [1, 64], strides = [1, 1]} : vector<22x64xf32> to vector<1x64xf32>
    %86 = vector.extract_strided_slice %78 {offsets = [7, 0], sizes = [1, 64], strides = [1, 1]} : vector<22x64xf32> to vector<1x64xf32>
    %87 = vector.extract_strided_slice %78 {offsets = [8, 0], sizes = [1, 64], strides = [1, 1]} : vector<22x64xf32> to vector<1x64xf32>
    %88 = vector.extract_strided_slice %78 {offsets = [9, 0], sizes = [1, 64], strides = [1, 1]} : vector<22x64xf32> to vector<1x64xf32>
    %89 = vector.extract_strided_slice %78 {offsets = [10, 0], sizes = [1, 64], strides = [1, 1]} : vector<22x64xf32> to vector<1x64xf32>
    %90 = tpu.concatenate %79, %80, %81, %82, %83, %84, %85, %86, %87, %88, %89 in 1 : vector<1x64xf32>, vector<1x64xf32>, vector<1x64xf32>, vector<1x64xf32>, vector<1x64xf32>, vector<1x64xf32>, vector<1x64xf32>, vector<1x64xf32>, vector<1x64xf32>, vector<1x64xf32>, vector<1x64xf32> -> vector<1x704xf32>
    %91 = vector.extract_strided_slice %78 {offsets = [11, 0], sizes = [1, 64], strides = [1, 1]} : vector<22x64xf32> to vector<1x64xf32>
    %92 = vector.extract_strided_slice %78 {offsets = [12, 0], sizes = [1, 64], strides = [1, 1]} : vector<22x64xf32> to vector<1x64xf32>
    %93 = vector.extract_strided_slice %78 {offsets = [13, 0], sizes = [1, 64], strides = [1, 1]} : vector<22x64xf32> to vector<1x64xf32>
    %94 = vector.extract_strided_slice %78 {offsets = [14, 0], sizes = [1, 64], strides = [1, 1]} : vector<22x64xf32> to vector<1x64xf32>
    %95 = vector.extract_strided_slice %78 {offsets = [15, 0], sizes = [1, 64], strides = [1, 1]} : vector<22x64xf32> to vector<1x64xf32>
    %96 = vector.extract_strided_slice %78 {offsets = [16, 0], sizes = [1, 64], strides = [1, 1]} : vector<22x64xf32> to vector<1x64xf32>
    %97 = vector.extract_strided_slice %78 {offsets = [17, 0], sizes = [1, 64], strides = [1, 1]} : vector<22x64xf32> to vector<1x64xf32>
    %98 = vector.extract_strided_slice %78 {offsets = [18, 0], sizes = [1, 64], strides = [1, 1]} : vector<22x64xf32> to vector<1x64xf32>
    %99 = vector.extract_strided_slice %78 {offsets = [19, 0], sizes = [1, 64], strides = [1, 1]} : vector<22x64xf32> to vector<1x64xf32>
    %100 = vector.extract_strided_slice %78 {offsets = [20, 0], sizes = [1, 64], strides = [1, 1]} : vector<22x64xf32> to vector<1x64xf32>
    %101 = vector.extract_strided_slice %78 {offsets = [21, 0], sizes = [1, 64], strides = [1, 1]} : vector<22x64xf32> to vector<1x64xf32>
    %102 = tpu.concatenate %91, %92, %93, %94, %95, %96, %97, %98, %99, %100, %101 in 1 : vector<1x64xf32>, vector<1x64xf32>, vector<1x64xf32>, vector<1x64xf32>, vector<1x64xf32>, vector<1x64xf32>, vector<1x64xf32>, vector<1x64xf32>, vector<1x64xf32>, vector<1x64xf32>, vector<1x64xf32> -> vector<1x704xf32>
    %103 = tpu.concatenate %90, %102 in 0 : vector<1x704xf32>, vector<1x704xf32> -> vector<2x704xf32>
    %c0_34 = arith.constant 0 : index
    %c0_35 = arith.constant 0 : index
    %104 = vector.load %arg9[%c0_34, %c0_35] : memref<704x128xf32, #tpu.memory_space<vmem>>, vector<704x128xf32>
    %cst_36 = arith.constant dense<0.000000e+00> : vector<2x128xf32>
    %105 = tpu.matmul %103, %104, %cst_36 {dimension_numbers = #tpu.dot_dimension_numbers<[1], [0], [0], [1], [0, 0, 1, 1], [], []>} : vector<2x704xf32>, vector<704x128xf32>, vector<2x128xf32> -> vector<2x128xf32>
    %c0_37 = arith.constant 0 : index
    %c0_38 = arith.constant 0 : index
    %106 = vector.load %arg10[%c0_37, %c0_38] : memref<1x128xf32, #tpu.memory_space<vmem>>, vector<1x128xf32>
    %107 = vector.broadcast %106 : vector<1x128xf32> to vector<2x128xf32>
    %108 = arith.addf %105, %107 : vector<2x128xf32>
    %c0_39 = arith.constant 0 : index
    %c0_40 = arith.constant 0 : index
    %109 = vector.load %arg23[%c0_39, %c0_40] : memref<2x128xf32, #tpu.memory_space<vmem>>, vector<2x128xf32>
    tpu.vector_store %arg23[%c0_39, %c0_40], %108 {strides = array<i32>} : memref<2x128xf32, #tpu.memory_space<vmem>>, vector<2x128xf32>,
    %110 = vector.extract_strided_slice %108 {offsets = [0, 0], sizes = [2, 64], strides = [1, 1]} : vector<2x128xf32> to vector<2x64xf32>
    %111 = vector.extract_strided_slice %108 {offsets = [0, 64], sizes = [2, 64], strides = [1, 1]} : vector<2x128xf32> to vector<2x64xf32>
    %c0_41 = arith.constant 0 : index
    %c0_42 = arith.constant 0 : index
    %112 = vector.load %arg2[%c0_41, %c0_42] : memref<2x64xf32, #tpu.memory_space<vmem>>, vector<2x64xf32>
    %cst_43 = arith.constant 5.000000e-01 : f32
    %113 = vector.broadcast %cst_43 : f32 to vector<2x64xf32>
    %114 = arith.mulf %113, %111 : vector<2x64xf32>
    %115 = math.exp %114 : vector<2x64xf32>
    %116 = arith.mulf %112, %115 : vector<2x64xf32>
    %117 = arith.addf %110, %116 : vector<2x64xf32>
    %c0_44 = arith.constant 0 : index
    %c0_45 = arith.constant 0 : index
    %118 = vector.load %arg11[%c0_44, %c0_45] : memref<64x704xf32, #tpu.memory_space<vmem>>, vector<64x704xf32>
    %cst_46 = arith.constant dense<0.000000e+00> : vector<2x704xf32>
    %119 = tpu.matmul %117, %118, %cst_46 {dimension_numbers = #tpu.dot_dimension_numbers<[1], [0], [0], [1], [0, 0, 1, 1], [], []>} : vector<2x64xf32>, vector<64x704xf32>, vector<2x704xf32> -> vector<2x704xf32>
    %c0_47 = arith.constant 0 : index
    %c0_48 = arith.constant 0 : index
    %120 = vector.load %arg12[%c0_47, %c0_48] : memref<1x704xf32, #tpu.memory_space<vmem>>, vector<1x704xf32>
    %121 = vector.broadcast %120 : vector<1x704xf32> to vector<2x704xf32>
    %122 = arith.addf %119, %121 : vector<2x704xf32>
    %123 = vector.extract_strided_slice %122 {offsets = [0, 0], sizes = [1, 64], strides = [1, 1]} : vector<2x704xf32> to vector<1x64xf32>
    %124 = vector.extract_strided_slice %122 {offsets = [0, 64], sizes = [1, 64], strides = [1, 1]} : vector<2x704xf32> to vector<1x64xf32>
    %125 = vector.extract_strided_slice %122 {offsets = [0, 128], sizes = [1, 64], strides = [1, 1]} : vector<2x704xf32> to vector<1x64xf32>
    %126 = vector.extract_strided_slice %122 {offsets = [0, 192], sizes = [1, 64], strides = [1, 1]} : vector<2x704xf32> to vector<1x64xf32>
    %127 = vector.extract_strided_slice %122 {offsets = [0, 256], sizes = [1, 64], strides = [1, 1]} : vector<2x704xf32> to vector<1x64xf32>
    %128 = vector.extract_strided_slice %122 {offsets = [0, 320], sizes = [1, 64], strides = [1, 1]} : vector<2x704xf32> to vector<1x64xf32>
    %129 = vector.extract_strided_slice %122 {offsets = [0, 384], sizes = [1, 64], strides = [1, 1]} : vector<2x704xf32> to vector<1x64xf32>
    %130 = vector.extract_strided_slice %122 {offsets = [0, 448], sizes = [1, 64], strides = [1, 1]} : vector<2x704xf32> to vector<1x64xf32>
    %131 = vector.extract_strided_slice %122 {offsets = [0, 512], sizes = [1, 64], strides = [1, 1]} : vector<2x704xf32> to vector<1x64xf32>
    %132 = vector.extract_strided_slice %122 {offsets = [0, 576], sizes = [1, 64], strides = [1, 1]} : vector<2x704xf32> to vector<1x64xf32>
    %133 = vector.extract_strided_slice %122 {offsets = [0, 640], sizes = [1, 64], strides = [1, 1]} : vector<2x704xf32> to vector<1x64xf32>
    %134 = tpu.concatenate %123, %124, %125, %126, %127, %128, %129, %130, %131, %132, %133 in 0 : vector<1x64xf32>, vector<1x64xf32>, vector<1x64xf32>, vector<1x64xf32>, vector<1x64xf32>, vector<1x64xf32>, vector<1x64xf32>, vector<1x64xf32>, vector<1x64xf32>, vector<1x64xf32>, vector<1x64xf32> -> vector<11x64xf32>
    %135 = vector.extract_strided_slice %122 {offsets = [1, 0], sizes = [1, 64], strides = [1, 1]} : vector<2x704xf32> to vector<1x64xf32>
    %136 = vector.extract_strided_slice %122 {offsets = [1, 64], sizes = [1, 64], strides = [1, 1]} : vector<2x704xf32> to vector<1x64xf32>
    %137 = vector.extract_strided_slice %122 {offsets = [1, 128], sizes = [1, 64], strides = [1, 1]} : vector<2x704xf32> to vector<1x64xf32>
    %138 = vector.extract_strided_slice %122 {offsets = [1, 192], sizes = [1, 64], strides = [1, 1]} : vector<2x704xf32> to vector<1x64xf32>
    %139 = vector.extract_strided_slice %122 {offsets = [1, 256], sizes = [1, 64], strides = [1, 1]} : vector<2x704xf32> to vector<1x64xf32>
    %140 = vector.extract_strided_slice %122 {offsets = [1, 320], sizes = [1, 64], strides = [1, 1]} : vector<2x704xf32> to vector<1x64xf32>
    %141 = vector.extract_strided_slice %122 {offsets = [1, 384], sizes = [1, 64], strides = [1, 1]} : vector<2x704xf32> to vector<1x64xf32>
    %142 = vector.extract_strided_slice %122 {offsets = [1, 448], sizes = [1, 64], strides = [1, 1]} : vector<2x704xf32> to vector<1x64xf32>
    %143 = vector.extract_strided_slice %122 {offsets = [1, 512], sizes = [1, 64], strides = [1, 1]} : vector<2x704xf32> to vector<1x64xf32>
    %144 = vector.extract_strided_slice %122 {offsets = [1, 576], sizes = [1, 64], strides = [1, 1]} : vector<2x704xf32> to vector<1x64xf32>
    %145 = vector.extract_strided_slice %122 {offsets = [1, 640], sizes = [1, 64], strides = [1, 1]} : vector<2x704xf32> to vector<1x64xf32>
    %146 = tpu.concatenate %135, %136, %137, %138, %139, %140, %141, %142, %143, %144, %145 in 0 : vector<1x64xf32>, vector<1x64xf32>, vector<1x64xf32>, vector<1x64xf32>, vector<1x64xf32>, vector<1x64xf32>, vector<1x64xf32>, vector<1x64xf32>, vector<1x64xf32>, vector<1x64xf32>, vector<1x64xf32> -> vector<11x64xf32>
    %147 = tpu.concatenate %134, %146 in 0 : vector<11x64xf32>, vector<11x64xf32> -> vector<22x64xf32>
    %c0_49 = arith.constant 0 : index
    %c0_50 = arith.constant 0 : index
    %148 = vector.load %arg13[%c0_49, %c0_50] : memref<64x320xf32, #tpu.memory_space<vmem>>, vector<64x320xf32>
    %cst_51 = arith.constant dense<0.000000e+00> : vector<22x320xf32>
    %149 = tpu.matmul %147, %148, %cst_51 {dimension_numbers = #tpu.dot_dimension_numbers<[1], [0], [0], [1], [0, 0, 1, 1], [], []>} : vector<22x64xf32>, vector<64x320xf32>, vector<22x320xf32> -> vector<22x320xf32>
    %150 = vector.extract_strided_slice %149 {offsets = [0, 0], sizes = [11, 64], strides = [1, 1]} : vector<22x320xf32> to vector<11x64xf32>
    %151 = vector.extract_strided_slice %149 {offsets = [11, 0], sizes = [11, 64], strides = [1, 1]} : vector<22x320xf32> to vector<11x64xf32>
    %152 = tpu.concatenate %150, %151 in 1 : vector<11x64xf32>, vector<11x64xf32> -> vector<11x128xf32>
    %c0_52 = arith.constant 0 : index
    %c0_53 = arith.constant 0 : index
    %c0_54 = arith.constant 0 : index
    %153 = vector.load %arg15[%c0_52, %c0_53, %c0_54] : memref<5x37x11xbf16, #tpu.memory_space<vmem>>, vector<1x37x11xbf16>
    %154 = vector.shape_cast %153 : vector<1x37x11xbf16> to vector<37x11xbf16>
    %155 = arith.extf %154 : vector<37x11xbf16> to vector<37x11xf32>
    %cst_55 = arith.constant dense<0.000000e+00> : vector<37x128xf32>
    %156 = tpu.matmul %155, %152, %cst_55 {dimension_numbers = #tpu.dot_dimension_numbers<[1], [0], [0], [1], [0, 0, 1, 1], [], []>} : vector<37x11xf32>, vector<11x128xf32>, vector<37x128xf32> -> vector<37x128xf32>
    %157 = vector.extract_strided_slice %149 {offsets = [0, 64], sizes = [11, 64], strides = [1, 1]} : vector<22x320xf32> to vector<11x64xf32>
    %158 = vector.extract_strided_slice %149 {offsets = [11, 64], sizes = [11, 64], strides = [1, 1]} : vector<22x320xf32> to vector<11x64xf32>
    %159 = tpu.concatenate %157, %158 in 1 : vector<11x64xf32>, vector<11x64xf32> -> vector<11x128xf32>
    %c1_56 = arith.constant 1 : index
    %c0_57 = arith.constant 0 : index
    %c0_58 = arith.constant 0 : index
    %160 = vector.load %arg15[%c1_56, %c0_57, %c0_58] : memref<5x37x11xbf16, #tpu.memory_space<vmem>>, vector<1x37x11xbf16>
    %161 = vector.shape_cast %160 : vector<1x37x11xbf16> to vector<37x11xbf16>
    %162 = arith.extf %161 : vector<37x11xbf16> to vector<37x11xf32>
    %cst_59 = arith.constant dense<0.000000e+00> : vector<37x128xf32>
    %163 = tpu.matmul %162, %159, %cst_59 {dimension_numbers = #tpu.dot_dimension_numbers<[1], [0], [0], [1], [0, 0, 1, 1], [], []>} : vector<37x11xf32>, vector<11x128xf32>, vector<37x128xf32> -> vector<37x128xf32>
    %164 = arith.addf %156, %163 : vector<37x128xf32>
    %165 = vector.extract_strided_slice %149 {offsets = [0, 128], sizes = [11, 64], strides = [1, 1]} : vector<22x320xf32> to vector<11x64xf32>
    %166 = vector.extract_strided_slice %149 {offsets = [11, 128], sizes = [11, 64], strides = [1, 1]} : vector<22x320xf32> to vector<11x64xf32>
    %167 = tpu.concatenate %165, %166 in 1 : vector<11x64xf32>, vector<11x64xf32> -> vector<11x128xf32>
    %c2 = arith.constant 2 : index
    %c0_60 = arith.constant 0 : index
    %c0_61 = arith.constant 0 : index
    %168 = vector.load %arg15[%c2, %c0_60, %c0_61] : memref<5x37x11xbf16, #tpu.memory_space<vmem>>, vector<1x37x11xbf16>
    %169 = vector.shape_cast %168 : vector<1x37x11xbf16> to vector<37x11xbf16>
    %170 = arith.extf %169 : vector<37x11xbf16> to vector<37x11xf32>
    %cst_62 = arith.constant dense<0.000000e+00> : vector<37x128xf32>
    %171 = tpu.matmul %170, %167, %cst_62 {dimension_numbers = #tpu.dot_dimension_numbers<[1], [0], [0], [1], [0, 0, 1, 1], [], []>} : vector<37x11xf32>, vector<11x128xf32>, vector<37x128xf32> -> vector<37x128xf32>
    %172 = arith.addf %164, %171 : vector<37x128xf32>
    %173 = vector.extract_strided_slice %149 {offsets = [0, 192], sizes = [11, 64], strides = [1, 1]} : vector<22x320xf32> to vector<11x64xf32>
    %174 = vector.extract_strided_slice %149 {offsets = [11, 192], sizes = [11, 64], strides = [1, 1]} : vector<22x320xf32> to vector<11x64xf32>
    %175 = tpu.concatenate %173, %174 in 1 : vector<11x64xf32>, vector<11x64xf32> -> vector<11x128xf32>
    %c3 = arith.constant 3 : index
    %c0_63 = arith.constant 0 : index
    %c0_64 = arith.constant 0 : index
    %176 = vector.load %arg15[%c3, %c0_63, %c0_64] : memref<5x37x11xbf16, #tpu.memory_space<vmem>>, vector<1x37x11xbf16>
    %177 = vector.shape_cast %176 : vector<1x37x11xbf16> to vector<37x11xbf16>
    %178 = arith.extf %177 : vector<37x11xbf16> to vector<37x11xf32>
    %cst_65 = arith.constant dense<0.000000e+00> : vector<37x128xf32>
    %179 = tpu.matmul %178, %175, %cst_65 {dimension_numbers = #tpu.dot_dimension_numbers<[1], [0], [0], [1], [0, 0, 1, 1], [], []>} : vector<37x11xf32>, vector<11x128xf32>, vector<37x128xf32> -> vector<37x128xf32>
    %180 = arith.addf %172, %179 : vector<37x128xf32>
    %181 = vector.extract_strided_slice %149 {offsets = [0, 256], sizes = [11, 64], strides = [1, 1]} : vector<22x320xf32> to vector<11x64xf32>
    %182 = vector.extract_strided_slice %149 {offsets = [11, 256], sizes = [11, 64], strides = [1, 1]} : vector<22x320xf32> to vector<11x64xf32>
    %183 = tpu.concatenate %181, %182 in 1 : vector<11x64xf32>, vector<11x64xf32> -> vector<11x128xf32>
    %c4 = arith.constant 4 : index
    %c0_66 = arith.constant 0 : index
    %c0_67 = arith.constant 0 : index
    %184 = vector.load %arg15[%c4, %c0_66, %c0_67] : memref<5x37x11xbf16, #tpu.memory_space<vmem>>, vector<1x37x11xbf16>
    %185 = vector.shape_cast %184 : vector<1x37x11xbf16> to vector<37x11xbf16>
    %186 = arith.extf %185 : vector<37x11xbf16> to vector<37x11xf32>
    %cst_68 = arith.constant dense<0.000000e+00> : vector<37x128xf32>
    %187 = tpu.matmul %186, %183, %cst_68 {dimension_numbers = #tpu.dot_dimension_numbers<[1], [0], [0], [1], [0, 0, 1, 1], [], []>} : vector<37x11xf32>, vector<11x128xf32>, vector<37x128xf32> -> vector<37x128xf32>
    %188 = arith.addf %180, %187 : vector<37x128xf32>
    %189 = vector.extract_strided_slice %188 {offsets = [0, 0], sizes = [37, 64], strides = [1, 1]} : vector<37x128xf32> to vector<37x64xf32>
    %190 = vector.extract_strided_slice %188 {offsets = [0, 64], sizes = [37, 64], strides = [1, 1]} : vector<37x128xf32> to vector<37x64xf32>
    %191 = tpu.concatenate %189, %190 in 0 : vector<37x64xf32>, vector<37x64xf32> -> vector<74x64xf32>
    %c0_69 = arith.constant 0 : index
    %c0_70 = arith.constant 0 : index
    %192 = vector.load %arg14[%c0_69, %c0_70] : memref<1x64xf32, #tpu.memory_space<vmem>>, vector<1x64xf32>
    %193 = vector.broadcast %192 : vector<1x64xf32> to vector<74x64xf32>
    %194 = arith.addf %191, %193 : vector<74x64xf32>
    %cst_71 = arith.constant 0.000000e+00 : f32
    %195 = vector.broadcast %cst_71 : f32 to vector<74x64xf32>
    %196 = arith.cmpf ogt, %194, %195 : vector<74x64xf32>
    %cst_72 = arith.constant 0.00999999977 : f32
    %197 = vector.broadcast %cst_72 : f32 to vector<74x64xf32>
    %198 = arith.mulf %197, %194 : vector<74x64xf32>
    %199 = arith.select %196, %194, %198 : vector<74x64xi1>, vector<74x64xf32>
    %c0_73 = arith.constant 0 : index
    %c0_74 = arith.constant 0 : index
    %200 = vector.load %arg16[%c0_73, %c0_74] : memref<64x160xf32, #tpu.memory_space<vmem>>, vector<64x160xf32>
    %cst_75 = arith.constant dense<0.000000e+00> : vector<74x160xf32>
    %201 = tpu.matmul %199, %200, %cst_75 {dimension_numbers = #tpu.dot_dimension_numbers<[1], [0], [0], [1], [0, 0, 1, 1], [], []>} : vector<74x64xf32>, vector<64x160xf32>, vector<74x160xf32> -> vector<74x160xf32>
    %202 = vector.extract_strided_slice %201 {offsets = [0, 0], sizes = [37, 32], strides = [1, 1]} : vector<74x160xf32> to vector<37x32xf32>
    %203 = vector.extract_strided_slice %201 {offsets = [37, 0], sizes = [37, 32], strides = [1, 1]} : vector<74x160xf32> to vector<37x32xf32>
    %204 = tpu.concatenate %202, %203 in 1 : vector<37x32xf32>, vector<37x32xf32> -> vector<37x64xf32>
    %c0_76 = arith.constant 0 : index
    %c0_77 = arith.constant 0 : index
    %c0_78 = arith.constant 0 : index
    %205 = vector.load %arg18[%c0_76, %c0_77, %c0_78] : memref<5x82x37xbf16, #tpu.memory_space<vmem>>, vector<1x82x37xbf16>
    %206 = vector.shape_cast %205 : vector<1x82x37xbf16> to vector<82x37xbf16>
    %207 = arith.extf %206 : vector<82x37xbf16> to vector<82x37xf32>
    %cst_79 = arith.constant dense<0.000000e+00> : vector<82x64xf32>
    %208 = tpu.matmul %207, %204, %cst_79 {dimension_numbers = #tpu.dot_dimension_numbers<[1], [0], [0], [1], [0, 0, 1, 1], [], []>} : vector<82x37xf32>, vector<37x64xf32>, vector<82x64xf32> -> vector<82x64xf32>
    %209 = vector.extract_strided_slice %201 {offsets = [0, 32], sizes = [37, 32], strides = [1, 1]} : vector<74x160xf32> to vector<37x32xf32>
    %210 = vector.extract_strided_slice %201 {offsets = [37, 32], sizes = [37, 32], strides = [1, 1]} : vector<74x160xf32> to vector<37x32xf32>
    %211 = tpu.concatenate %209, %210 in 1 : vector<37x32xf32>, vector<37x32xf32> -> vector<37x64xf32>
    %c1_80 = arith.constant 1 : index
    %c0_81 = arith.constant 0 : index
    %c0_82 = arith.constant 0 : index
    %212 = vector.load %arg18[%c1_80, %c0_81, %c0_82] : memref<5x82x37xbf16, #tpu.memory_space<vmem>>, vector<1x82x37xbf16>
    %213 = vector.shape_cast %212 : vector<1x82x37xbf16> to vector<82x37xbf16>
    %214 = arith.extf %213 : vector<82x37xbf16> to vector<82x37xf32>
    %cst_83 = arith.constant dense<0.000000e+00> : vector<82x64xf32>
    %215 = tpu.matmul %214, %211, %cst_83 {dimension_numbers = #tpu.dot_dimension_numbers<[1], [0], [0], [1], [0, 0, 1, 1], [], []>} : vector<82x37xf32>, vector<37x64xf32>, vector<82x64xf32> -> vector<82x64xf32>
    %216 = arith.addf %208, %215 : vector<82x64xf32>
    %217 = vector.extract_strided_slice %201 {offsets = [0, 64], sizes = [37, 32], strides = [1, 1]} : vector<74x160xf32> to vector<37x32xf32>
    %218 = vector.extract_strided_slice %201 {offsets = [37, 64], sizes = [37, 32], strides = [1, 1]} : vector<74x160xf32> to vector<37x32xf32>
    %219 = tpu.concatenate %217, %218 in 1 : vector<37x32xf32>, vector<37x32xf32> -> vector<37x64xf32>
    %c2_84 = arith.constant 2 : index
    %c0_85 = arith.constant 0 : index
    %c0_86 = arith.constant 0 : index
    %220 = vector.load %arg18[%c2_84, %c0_85, %c0_86] : memref<5x82x37xbf16, #tpu.memory_space<vmem>>, vector<1x82x37xbf16>
    %221 = vector.shape_cast %220 : vector<1x82x37xbf16> to vector<82x37xbf16>
    %222 = arith.extf %221 : vector<82x37xbf16> to vector<82x37xf32>
    %cst_87 = arith.constant dense<0.000000e+00> : vector<82x64xf32>
    %223 = tpu.matmul %222, %219, %cst_87 {dimension_numbers = #tpu.dot_dimension_numbers<[1], [0], [0], [1], [0, 0, 1, 1], [], []>} : vector<82x37xf32>, vector<37x64xf32>, vector<82x64xf32> -> vector<82x64xf32>
    %224 = arith.addf %216, %223 : vector<82x64xf32>
    %225 = vector.extract_strided_slice %201 {offsets = [0, 96], sizes = [37, 32], strides = [1, 1]} : vector<74x160xf32> to vector<37x32xf32>
    %226 = vector.extract_strided_slice %201 {offsets = [37, 96], sizes = [37, 32], strides = [1, 1]} : vector<74x160xf32> to vector<37x32xf32>
    %227 = tpu.concatenate %225, %226 in 1 : vector<37x32xf32>, vector<37x32xf32> -> vector<37x64xf32>
    %c3_88 = arith.constant 3 : index
    %c0_89 = arith.constant 0 : index
    %c0_90 = arith.constant 0 : index
    %228 = vector.load %arg18[%c3_88, %c0_89, %c0_90] : memref<5x82x37xbf16, #tpu.memory_space<vmem>>, vector<1x82x37xbf16>
    %229 = vector.shape_cast %228 : vector<1x82x37xbf16> to vector<82x37xbf16>
    %230 = arith.extf %229 : vector<82x37xbf16> to vector<82x37xf32>
    %cst_91 = arith.constant dense<0.000000e+00> : vector<82x64xf32>
    %231 = tpu.matmul %230, %227, %cst_91 {dimension_numbers = #tpu.dot_dimension_numbers<[1], [0], [0], [1], [0, 0, 1, 1], [], []>} : vector<82x37xf32>, vector<37x64xf32>, vector<82x64xf32> -> vector<82x64xf32>
    %232 = arith.addf %224, %231 : vector<82x64xf32>
    %233 = vector.extract_strided_slice %201 {offsets = [0, 128], sizes = [37, 32], strides = [1, 1]} : vector<74x160xf32> to vector<37x32xf32>
    %234 = vector.extract_strided_slice %201 {offsets = [37, 128], sizes = [37, 32], strides = [1, 1]} : vector<74x160xf32> to vector<37x32xf32>
    %235 = tpu.concatenate %233, %234 in 1 : vector<37x32xf32>, vector<37x32xf32> -> vector<37x64xf32>
    %c4_92 = arith.constant 4 : index
    %c0_93 = arith.constant 0 : index
    %c0_94 = arith.constant 0 : index
    %236 = vector.load %arg18[%c4_92, %c0_93, %c0_94] : memref<5x82x37xbf16, #tpu.memory_space<vmem>>, vector<1x82x37xbf16>
    %237 = vector.shape_cast %236 : vector<1x82x37xbf16> to vector<82x37xbf16>
    %238 = arith.extf %237 : vector<82x37xbf16> to vector<82x37xf32>
    %cst_95 = arith.constant dense<0.000000e+00> : vector<82x64xf32>
    %239 = tpu.matmul %238, %235, %cst_95 {dimension_numbers = #tpu.dot_dimension_numbers<[1], [0], [0], [1], [0, 0, 1, 1], [], []>} : vector<82x37xf32>, vector<37x64xf32>, vector<82x64xf32> -> vector<82x64xf32>
    %240 = arith.addf %232, %239 : vector<82x64xf32>
    %241 = vector.extract_strided_slice %240 {offsets = [0, 0], sizes = [82, 32], strides = [1, 1]} : vector<82x64xf32> to vector<82x32xf32>
    %242 = vector.extract_strided_slice %240 {offsets = [0, 32], sizes = [82, 32], strides = [1, 1]} : vector<82x64xf32> to vector<82x32xf32>
    %243 = tpu.concatenate %241, %242 in 0 : vector<82x32xf32>, vector<82x32xf32> -> vector<164x32xf32>
    %c0_96 = arith.constant 0 : index
    %c0_97 = arith.constant 0 : index
    %244 = vector.load %arg17[%c0_96, %c0_97] : memref<1x32xf32, #tpu.memory_space<vmem>>, vector<1x32xf32>
    %245 = vector.broadcast %244 : vector<1x32xf32> to vector<164x32xf32>
    %246 = arith.addf %243, %245 : vector<164x32xf32>
    %cst_98 = arith.constant 0.000000e+00 : f32
    %247 = vector.broadcast %cst_98 : f32 to vector<164x32xf32>
    %248 = arith.cmpf ogt, %246, %247 : vector<164x32xf32>
    %cst_99 = arith.constant 0.00999999977 : f32
    %249 = vector.broadcast %cst_99 : f32 to vector<164x32xf32>
    %250 = arith.mulf %249, %246 : vector<164x32xf32>
    %251 = arith.select %248, %246, %250 : vector<164x32xi1>, vector<164x32xf32>
    %c0_100 = arith.constant 0 : index
    %c0_101 = arith.constant 0 : index
    %252 = vector.load %arg19[%c0_100, %c0_101] : memref<5x32xf32, #tpu.memory_space<vmem>>, vector<5x32xf32>
    %cst_102 = arith.constant dense<0.000000e+00> : vector<5x164xf32>
    %253 = tpu.matmul %252, %251, %cst_102 {dimension_numbers = #tpu.dot_dimension_numbers<[1], [1], [0], [0], [0, 0, 1, 0], [], []>} : vector<5x32xf32>, vector<164x32xf32>, vector<5x164xf32> -> vector<5x164xf32>
    %254 = vector.extract_strided_slice %253 {offsets = [0, 0], sizes = [1, 82], strides = [1, 1]} : vector<5x164xf32> to vector<1x82xf32>
    %255 = vector.extract_strided_slice %253 {offsets = [0, 82], sizes = [1, 82], strides = [1, 1]} : vector<5x164xf32> to vector<1x82xf32>
    %256 = tpu.concatenate %254, %255 in 0 : vector<1x82xf32>, vector<1x82xf32> -> vector<2x82xf32>
    %c0_103 = arith.constant 0 : index
    %c0_104 = arith.constant 0 : index
    %c0_105 = arith.constant 0 : index
    %257 = vector.load %arg21[%c0_103, %c0_104, %c0_105] : memref<5x82x168xbf16, #tpu.memory_space<vmem>>, vector<1x82x168xbf16>
    %258 = vector.shape_cast %257 : vector<1x82x168xbf16> to vector<82x168xbf16>
    %259 = arith.extf %258 : vector<82x168xbf16> to vector<82x168xf32>
    %cst_106 = arith.constant dense<0.000000e+00> : vector<2x168xf32>
    %260 = tpu.matmul %256, %259, %cst_106 {dimension_numbers = #tpu.dot_dimension_numbers<[1], [0], [0], [1], [0, 0, 1, 1], [], []>} : vector<2x82xf32>, vector<82x168xf32>, vector<2x168xf32> -> vector<2x168xf32>
    %261 = vector.extract_strided_slice %253 {offsets = [1, 0], sizes = [1, 82], strides = [1, 1]} : vector<5x164xf32> to vector<1x82xf32>
    %262 = vector.extract_strided_slice %253 {offsets = [1, 82], sizes = [1, 82], strides = [1, 1]} : vector<5x164xf32> to vector<1x82xf32>
    %263 = tpu.concatenate %261, %262 in 0 : vector<1x82xf32>, vector<1x82xf32> -> vector<2x82xf32>
    %c1_107 = arith.constant 1 : index
    %c0_108 = arith.constant 0 : index
    %c0_109 = arith.constant 0 : index
    %264 = vector.load %arg21[%c1_107, %c0_108, %c0_109] : memref<5x82x168xbf16, #tpu.memory_space<vmem>>, vector<1x82x168xbf16>
    %265 = vector.shape_cast %264 : vector<1x82x168xbf16> to vector<82x168xbf16>
    %266 = arith.extf %265 : vector<82x168xbf16> to vector<82x168xf32>
    %cst_110 = arith.constant dense<0.000000e+00> : vector<2x168xf32>
    %267 = tpu.matmul %263, %266, %cst_110 {dimension_numbers = #tpu.dot_dimension_numbers<[1], [0], [0], [1], [0, 0, 1, 1], [], []>} : vector<2x82xf32>, vector<82x168xf32>, vector<2x168xf32> -> vector<2x168xf32>
    %268 = arith.addf %260, %267 : vector<2x168xf32>
    %269 = vector.extract_strided_slice %253 {offsets = [2, 0], sizes = [1, 82], strides = [1, 1]} : vector<5x164xf32> to vector<1x82xf32>
    %270 = vector.extract_strided_slice %253 {offsets = [2, 82], sizes = [1, 82], strides = [1, 1]} : vector<5x164xf32> to vector<1x82xf32>
    %271 = tpu.concatenate %269, %270 in 0 : vector<1x82xf32>, vector<1x82xf32> -> vector<2x82xf32>
    %c2_111 = arith.constant 2 : index
    %c0_112 = arith.constant 0 : index
    %c0_113 = arith.constant 0 : index
    %272 = vector.load %arg21[%c2_111, %c0_112, %c0_113] : memref<5x82x168xbf16, #tpu.memory_space<vmem>>, vector<1x82x168xbf16>
    %273 = vector.shape_cast %272 : vector<1x82x168xbf16> to vector<82x168xbf16>
    %274 = arith.extf %273 : vector<82x168xbf16> to vector<82x168xf32>
    %cst_114 = arith.constant dense<0.000000e+00> : vector<2x168xf32>
    %275 = tpu.matmul %271, %274, %cst_114 {dimension_numbers = #tpu.dot_dimension_numbers<[1], [0], [0], [1], [0, 0, 1, 1], [], []>} : vector<2x82xf32>, vector<82x168xf32>, vector<2x168xf32> -> vector<2x168xf32>
    %276 = arith.addf %268, %275 : vector<2x168xf32>
    %277 = vector.extract_strided_slice %253 {offsets = [3, 0], sizes = [1, 82], strides = [1, 1]} : vector<5x164xf32> to vector<1x82xf32>
    %278 = vector.extract_strided_slice %253 {offsets = [3, 82], sizes = [1, 82], strides = [1, 1]} : vector<5x164xf32> to vector<1x82xf32>
    %279 = tpu.concatenate %277, %278 in 0 : vector<1x82xf32>, vector<1x82xf32> -> vector<2x82xf32>
    %c3_115 = arith.constant 3 : index
    %c0_116 = arith.constant 0 : index
    %c0_117 = arith.constant 0 : index
    %280 = vector.load %arg21[%c3_115, %c0_116, %c0_117] : memref<5x82x168xbf16, #tpu.memory_space<vmem>>, vector<1x82x168xbf16>
    %281 = vector.shape_cast %280 : vector<1x82x168xbf16> to vector<82x168xbf16>
    %282 = arith.extf %281 : vector<82x168xbf16> to vector<82x168xf32>
    %cst_118 = arith.constant dense<0.000000e+00> : vector<2x168xf32>
    %283 = tpu.matmul %279, %282, %cst_118 {dimension_numbers = #tpu.dot_dimension_numbers<[1], [0], [0], [1], [0, 0, 1, 1], [], []>} : vector<2x82xf32>, vector<82x168xf32>, vector<2x168xf32> -> vector<2x168xf32>
    %284 = arith.addf %276, %283 : vector<2x168xf32>
    %285 = vector.extract_strided_slice %253 {offsets = [4, 0], sizes = [1, 82], strides = [1, 1]} : vector<5x164xf32> to vector<1x82xf32>
    %286 = vector.extract_strided_slice %253 {offsets = [4, 82], sizes = [1, 82], strides = [1, 1]} : vector<5x164xf32> to vector<1x82xf32>
    %287 = tpu.concatenate %285, %286 in 0 : vector<1x82xf32>, vector<1x82xf32> -> vector<2x82xf32>
    %c4_119 = arith.constant 4 : index
    %c0_120 = arith.constant 0 : index
    %c0_121 = arith.constant 0 : index
    %288 = vector.load %arg21[%c4_119, %c0_120, %c0_121] : memref<5x82x168xbf16, #tpu.memory_space<vmem>>, vector<1x82x168xbf16>
    %289 = vector.shape_cast %288 : vector<1x82x168xbf16> to vector<82x168xbf16>
    %290 = arith.extf %289 : vector<82x168xbf16> to vector<82x168xf32>
    %cst_122 = arith.constant dense<0.000000e+00> : vector<2x168xf32>
    %291 = tpu.matmul %287, %290, %cst_122 {dimension_numbers = #tpu.dot_dimension_numbers<[1], [0], [0], [1], [0, 0, 1, 1], [], []>} : vector<2x82xf32>, vector<82x168xf32>, vector<2x168xf32> -> vector<2x168xf32>
    %292 = arith.addf %284, %291 : vector<2x168xf32>
    %c0_123 = arith.constant 0 : index
    %c0_124 = arith.constant 0 : index
    %293 = vector.load %arg20[%c0_123, %c0_124] : memref<1x1xf32, #tpu.memory_space<vmem>>, vector<1x1xf32>
    %294 = vector.broadcast %293 : vector<1x1xf32> to vector<2x168xf32>
    %295 = arith.addf %292, %294 : vector<2x168xf32>
    %cst_125 = arith.constant 0.000000e+00 : f32
    %296 = vector.broadcast %cst_125 : f32 to vector<2x168xf32>
    %297 = arith.cmpf ogt, %295, %296 : vector<2x168xf32>
    %cst_126 = arith.constant 0.00999999977 : f32
    %298 = vector.broadcast %cst_126 : f32 to vector<2x168xf32>
    %299 = arith.mulf %298, %295 : vector<2x168xf32>
    %300 = arith.select %297, %295, %299 : vector<2x168xi1>, vector<2x168xf32>
    %c0_127 = arith.constant 0 : index
    %c0_128 = arith.constant 0 : index
    %301 = vector.load %arg22[%c0_127, %c0_128] : memref<2x168xf32, #tpu.memory_space<vmem>>, vector<2x168xf32>
    tpu.vector_store %arg22[%c0_127, %c0_128], %300 {strides = array<i32>} : memref<2x168xf32, #tpu.memory_space<vmem>>, vector<2x168xf32>,
    return
  }
  func.func @transform_0(%arg0: i32) -> (i32, i32) {
    %c0_i32 = arith.constant 0 : i32
    %c0_i32_0 = arith.constant 0 : i32
    return %arg0, %c0_i32 : i32, i32
  }
  func.func @transform_1(%arg0: i32) -> (i32, i32) {
    %c0_i32 = arith.constant 0 : i32
    %c0_i32_0 = arith.constant 0 : i32
    return %arg0, %c0_i32 : i32, i32
  }
  func.func @transform_2(%arg0: i32) -> (i32, i32) {
    %c0_i32 = arith.constant 0 : i32
    %c0_i32_0 = arith.constant 0 : i32
    %c0_i32_1 = arith.constant 0 : i32
    return %c0_i32, %c0_i32_0 : i32, i32
  }
  func.func @transform_3(%arg0: i32) -> (i32, i32) {
    %c0_i32 = arith.constant 0 : i32
    %c0_i32_0 = arith.constant 0 : i32
    %c0_i32_1 = arith.constant 0 : i32
    return %c0_i32, %c0_i32_0 : i32, i32
  }
  func.func @transform_4(%arg0: i32) -> (i32, i32) {
    %c0_i32 = arith.constant 0 : i32
    %c0_i32_0 = arith.constant 0 : i32
    %c0_i32_1 = arith.constant 0 : i32
    return %c0_i32, %c0_i32_0 : i32, i32
  }
  func.func @transform_5(%arg0: i32) -> (i32, i32) {
    %c0_i32 = arith.constant 0 : i32
    %c0_i32_0 = arith.constant 0 : i32
    %c0_i32_1 = arith.constant 0 : i32
    return %c0_i32, %c0_i32_0 : i32, i32
  }
  func.func @transform_6(%arg0: i32) -> (i32, i32) {
    %c0_i32 = arith.constant 0 : i32
    %c0_i32_0 = arith.constant 0 : i32
    %c0_i32_1 = arith.constant 0 : i32
    return %c0_i32, %c0_i32_0 : i32, i32
  }
  func.func @transform_7(%arg0: i32) -> (i32, i32) {
    %c0_i32 = arith.constant 0 : i32
    %c0_i32_0 = arith.constant 0 : i32
    %c0_i32_1 = arith.constant 0 : i32
    return %c0_i32, %c0_i32_0 : i32, i32
  }
  func.func @transform_8(%arg0: i32) -> (i32, i32) {
    %c0_i32 = arith.constant 0 : i32
    %c0_i32_0 = arith.constant 0 : i32
    %c0_i32_1 = arith.constant 0 : i32
    return %c0_i32, %c0_i32_0 : i32, i32
  }
  func.func @transform_9(%arg0: i32) -> (i32, i32) {
    %c0_i32 = arith.constant 0 : i32
    %c0_i32_0 = arith.constant 0 : i32
    %c0_i32_1 = arith.constant 0 : i32
    return %c0_i32, %c0_i32_0 : i32, i32
  }
  func.func @transform_10(%arg0: i32) -> (i32, i32) {
    %c0_i32 = arith.constant 0 : i32
    %c0_i32_0 = arith.constant 0 : i32
    %c0_i32_1 = arith.constant 0 : i32
    return %c0_i32, %c0_i32_0 : i32, i32
  }
  func.func @transform_11(%arg0: i32) -> (i32, i32) {
    %c0_i32 = arith.constant 0 : i32
    %c0_i32_0 = arith.constant 0 : i32
    %c0_i32_1 = arith.constant 0 : i32
    return %c0_i32, %c0_i32_0 : i32, i32
  }
  func.func @transform_12(%arg0: i32) -> (i32, i32) {
    %c0_i32 = arith.constant 0 : i32
    %c0_i32_0 = arith.constant 0 : i32
    %c0_i32_1 = arith.constant 0 : i32
    return %c0_i32, %c0_i32_0 : i32, i32
  }
  func.func @transform_13(%arg0: i32) -> (i32, i32) {
    %c0_i32 = arith.constant 0 : i32
    %c0_i32_0 = arith.constant 0 : i32
    %c0_i32_1 = arith.constant 0 : i32
    return %c0_i32, %c0_i32_0 : i32, i32
  }
  func.func @transform_14(%arg0: i32) -> (i32, i32, i32) {
    %c0_i32 = arith.constant 0 : i32
    %c0_i32_0 = arith.constant 0 : i32
    %c0_i32_1 = arith.constant 0 : i32
    %c0_i32_2 = arith.constant 0 : i32
    return %c0_i32, %c0_i32_0, %c0_i32_1 : i32, i32, i32
  }
  func.func @transform_15(%arg0: i32) -> (i32, i32) {
    %c0_i32 = arith.constant 0 : i32
    %c0_i32_0 = arith.constant 0 : i32
    %c0_i32_1 = arith.constant 0 : i32
    return %c0_i32, %c0_i32_0 : i32, i32
  }
  func.func @transform_16(%arg0: i32) -> (i32, i32) {
    %c0_i32 = arith.constant 0 : i32
    %c0_i32_0 = arith.constant 0 : i32
    %c0_i32_1 = arith.constant 0 : i32
    return %c0_i32, %c0_i32_0 : i32, i32
  }
  func.func @transform_17(%arg0: i32) -> (i32, i32, i32) {
    %c0_i32 = arith.constant 0 : i32
    %c0_i32_0 = arith.constant 0 : i32
    %c0_i32_1 = arith.constant 0 : i32
    %c0_i32_2 = arith.constant 0 : i32
    return %c0_i32, %c0_i32_0, %c0_i32_1 : i32, i32, i32
  }
  func.func @transform_18(%arg0: i32) -> (i32, i32) {
    %c0_i32 = arith.constant 0 : i32
    %c0_i32_0 = arith.constant 0 : i32
    %c0_i32_1 = arith.constant 0 : i32
    return %c0_i32, %c0_i32_0 : i32, i32
  }
  func.func @transform_19(%arg0: i32) -> (i32, i32) {
    %c0_i32 = arith.constant 0 : i32
    %c0_i32_0 = arith.constant 0 : i32
    %c0_i32_1 = arith.constant 0 : i32
    return %c0_i32, %c0_i32_0 : i32, i32
  }
  func.func @transform_20(%arg0: i32) -> (i32, i32, i32) {
    %c0_i32 = arith.constant 0 : i32
    %c0_i32_0 = arith.constant 0 : i32
    %c0_i32_1 = arith.constant 0 : i32
    %c0_i32_2 = arith.constant 0 : i32
    return %c0_i32, %c0_i32_0, %c0_i32_1 : i32, i32, i32
  }
  func.func @transform_21(%arg0: i32) -> (i32, i32) {
    %c0_i32 = arith.constant 0 : i32
    %c0_i32_0 = arith.constant 0 : i32
    return %arg0, %c0_i32 : i32, i32
  }
  func.func @transform_22(%arg0: i32) -> (i32, i32) {
    %c0_i32 = arith.constant 0 : i32
    %c0_i32_0 = arith.constant 0 : i32
    return %arg0, %c0_i32 : i32, i32
  }
}

</mosaic_0001>

<llo_original>
// kernel: vae_forward.1
$region0: #{vae_forward.1}
  #allocation0 [shape = 'u32[]', space=smem, size = 0x4, offset = 0x4, fixed_abs, tag = 'smem constant byte address 0x4 - core index']
  #allocation1 [shape = 'u32[144,128]{1,0:T(1,128)}', space=vmem, size = 0x12000, scoped, tag = 'internal scratch']
  #allocation2 [shape = 'f32[164,32]{1,0:T(8,128)}', space=vmem, size = 0x15000, scoped, tag = 'scratch operand']
  #allocation3 [shape = 'f32[74,64]{1,0:T(8,128)}', space=vmem, size = 0xa000, scoped, tag = 'scratch operand']
  #allocation4 [shape = 'f32[1,1]{1,0:T(1,128)S(1)}', space=vmem, size = 0x200, scoped, tag = 'scoped memory for vae_forward.1']
  %s0 = inlined_call_operand.vmem [shape: f32[336,8], index: 0, kind: input, shape index: {}]
  %s1 = inlined_call_operand.vmem [shape: f32[2,64], index: 1, kind: input, shape index: {}]
  %s2 = inlined_call_operand.vmem [shape: f32[40,32], index: 2, kind: input, shape index: {}]
  %s3 = inlined_call_operand.vmem [shape: f32[1,32], index: 3, kind: input, shape index: {}]
  %s4 = inlined_call_operand.vmem [shape: f32[160,64], index: 4, kind: input, shape index: {}]
  %s5 = inlined_call_operand.vmem [shape: f32[1,64], index: 5, kind: input, shape index: {}]
  %s6 = inlined_call_operand.vmem [shape: f32[320,64], index: 6, kind: input, shape index: {}]
  %s7 = inlined_call_operand.vmem [shape: f32[1,64], index: 7, kind: input, shape index: {}]
  %s8 = inlined_call_operand.vmem [shape: f32[704,128], index: 8, kind: input, shape index: {}]
  %s9 = inlined_call_operand.vmem [shape: f32[1,128], index: 9, kind: input, shape index: {}]
  %s10 = inlined_call_operand.vmem [shape: f32[64,704], index: 10, kind: input, shape index: {}]
  %s11 = inlined_call_operand.vmem [shape: f32[1,704], index: 11, kind: input, shape index: {}]
  %s12 = inlined_call_operand.vmem [shape: f32[64,320], index: 12, kind: input, shape index: {}]
  %s13 = inlined_call_operand.vmem [shape: f32[1,64], index: 13, kind: input, shape index: {}]
  %s14 = inlined_call_operand.vmem [shape: bf16[5,37,11], index: 14, kind: input, shape index: {}]
  %s15 = inlined_call_operand.vmem [shape: f32[64,160], index: 15, kind: input, shape index: {}]
  %s16 = inlined_call_operand.vmem [shape: f32[1,32], index: 16, kind: input, shape index: {}]
  %s17 = inlined_call_operand.vmem [shape: bf16[5,82,37], index: 17, kind: input, shape index: {}]
  %s18 = inlined_call_operand.vmem [shape: f32[5,32], index: 18, kind: input, shape index: {}]
  %s19 = inlined_call_operand.<no memory space> [shape: f32[1,1], index: 19, kind: input, shape index: {}]
  %s20 = inlined_call_operand.vmem [shape: bf16[5,82,168], index: 20, kind: input, shape index: {}]
  %s21 = inlined_call_operand.vmem [shape: f32[2,168], index: 21, kind: output, shape index: {0}]
  %s22 = inlined_call_operand.vmem [shape: f32[2,128], index: 22, kind: output, shape index: {1}]
  %23 = xla_tuple %s21, %s22
  %s24 = sld [smem:[#allocation0]]
  $region102: #{vae_forward.1} parent=0
    _
  %s26 = ssub.s32 1, %s24
  %s27 = scalar_select 0, %s26, %s24
  %v28 = vstv %s19
  %29 = vst [vmem:[#allocation4] sm:$0x1] %v28
  // Predicated region
  $region2: #{vae_forward.1} parent=0 // pred_check
    _
  $region3: #{vae_forward.1} parent=0 // pred_check_branch
    %31 = sbr.rel (0) target = $region5
  $region4: #{vae_forward.1} parent=0 // pred_region
    _
  $region5: #{vae_forward.1} parent=0 // pred_fallthru
    _
  // Predicated region
  $region6: #{vae_forward.1} parent=0 // pred_check
    _
  $region7: #{vae_forward.1} parent=0 // pred_check_branch
    %33 = sbr.rel (0) target = $region9
  $region8: #{vae_forward.1} parent=0 // pred_region
    _
  $region9: #{vae_forward.1} parent=0 // pred_fallthru
    _
  // Predicated region
  $region10: #{vae_forward.1} parent=0 // pred_check
    _
  $region11: #{vae_forward.1} parent=0 // pred_check_branch
    %35 = sbr.rel (0) target = $region13
  $region12: #{vae_forward.1} parent=0 // pred_region
    _
  $region13: #{vae_forward.1} parent=0 // pred_fallthru
    _
  // Predicated region
  $region14: #{vae_forward.1} parent=0 // pred_check
    _
  $region15: #{vae_forward.1} parent=0 // pred_check_branch
    %37 = sbr.rel (0) target = $region17
  $region16: #{vae_forward.1} parent=0 // pred_region
    _
  $region17: #{vae_forward.1} parent=0 // pred_fallthru
    _
  // Predicated region
  $region18: #{vae_forward.1} parent=0 // pred_check
    _
  $region19: #{vae_forward.1} parent=0 // pred_check_branch
    %39 = sbr.rel (0) target = $region21
  $region20: #{vae_forward.1} parent=0 // pred_region
    _
  $region21: #{vae_forward.1} parent=0 // pred_fallthru
    _
  // Predicated region
  $region22: #{vae_forward.1} parent=0 // pred_check
    _
  $region23: #{vae_forward.1} parent=0 // pred_check_branch
    %41 = sbr.rel (0) target = $region25
  $region24: #{vae_forward.1} parent=0 // pred_region
    _
  $region25: #{vae_forward.1} parent=0 // pred_fallthru
    _
  // Predicated region
  $region26: #{vae_forward.1} parent=0 // pred_check
    _
  $region27: #{vae_forward.1} parent=0 // pred_check_branch
    %43 = sbr.rel (0) target = $region29
  $region28: #{vae_forward.1} parent=0 // pred_region
    _
  $region29: #{vae_forward.1} parent=0 // pred_fallthru
    _
  // Predicated region
  $region30: #{vae_forward.1} parent=0 // pred_check
    _
  $region31: #{vae_forward.1} parent=0 // pred_check_branch
    %45 = sbr.rel (0) target = $region33
  $region32: #{vae_forward.1} parent=0 // pred_region
    _
  $region33: #{vae_forward.1} parent=0 // pred_fallthru
    _
  // Predicated region
  $region34: #{vae_forward.1} parent=0 // pred_check
    _
  $region35: #{vae_forward.1} parent=0 // pred_check_branch
    %47 = sbr.rel (0) target = $region37
  $region36: #{vae_forward.1} parent=0 // pred_region
    _
  $region37: #{vae_forward.1} parent=0 // pred_fallthru
    _
  // Predicated region
  $region38: #{vae_forward.1} parent=0 // pred_check
    _
  $region39: #{vae_forward.1} parent=0 // pred_check_branch
    %49 = sbr.rel (0) target = $region41
  $region40: #{vae_forward.1} parent=0 // pred_region
    _
  $region41: #{vae_forward.1} parent=0 // pred_fallthru
    _
  // Predicated region
  $region42: #{vae_forward.1} parent=0 // pred_check
    _
  $region43: #{vae_forward.1} parent=0 // pred_check_branch
    %51 = sbr.rel (0) target = $region45
  $region44: #{vae_forward.1} parent=0 // pred_region
    _
  $region45: #{vae_forward.1} parent=0 // pred_fallthru
    _
  // Predicated region
  $region46: #{vae_forward.1} parent=0 // pred_check
    _
  $region47: #{vae_forward.1} parent=0 // pred_check_branch
    %53 = sbr.rel (0) target = $region49
  $region48: #{vae_forward.1} parent=0 // pred_region
    _
  $region49: #{vae_forward.1} parent=0 // pred_fallthru
    _
  // Predicated region
  $region50: #{vae_forward.1} parent=0 // pred_check
    _
  $region51: #{vae_forward.1} parent=0 // pred_check_branch
    %55 = sbr.rel (0) target = $region53
  $region52: #{vae_forward.1} parent=0 // pred_region
    _
  $region53: #{vae_forward.1} parent=0 // pred_fallthru
    _
  // Predicated region
  $region54: #{vae_forward.1} parent=0 // pred_check
    _
  $region55: #{vae_forward.1} parent=0 // pred_check_branch
    %57 = sbr.rel (0) target = $region57
  $region56: #{vae_forward.1} parent=0 // pred_region
    _
  $region57: #{vae_forward.1} parent=0 // pred_fallthru
    _
  // Predicated region
  $region58: #{vae_forward.1} parent=0 // pred_check
    _
  $region59: #{vae_forward.1} parent=0 // pred_check_branch
    %59 = sbr.rel (0) target = $region61
  $region60: #{vae_forward.1} parent=0 // pred_region
    _
  $region61: #{vae_forward.1} parent=0 // pred_fallthru
    _
  // Predicated region
  $region62: #{vae_forward.1} parent=0 // pred_check
    _
  $region63: #{vae_forward.1} parent=0 // pred_check_branch
    %61 = sbr.rel (0) target = $region65
  $region64: #{vae_forward.1} parent=0 // pred_region
    _
  $region65: #{vae_forward.1} parent=0 // pred_fallthru
    _
  // Predicated region
  $region66: #{vae_forward.1} parent=0 // pred_check
    _
  $region67: #{vae_forward.1} parent=0 // pred_check_branch
    %63 = sbr.rel (0) target = $region69
  $region68: #{vae_forward.1} parent=0 // pred_region
    _
  $region69: #{vae_forward.1} parent=0 // pred_fallthru
    _
  // Predicated region
  $region70: #{vae_forward.1} parent=0 // pred_check
    _
  $region71: #{vae_forward.1} parent=0 // pred_check_branch
    %65 = sbr.rel (0) target = $region73
  $region72: #{vae_forward.1} parent=0 // pred_region
    _
  $region73: #{vae_forward.1} parent=0 // pred_fallthru
    _
  // Predicated region
  $region74: #{vae_forward.1} parent=0 // pred_check
    _
  $region75: #{vae_forward.1} parent=0 // pred_check_branch
    %67 = sbr.rel (0) target = $region77
  $region76: #{vae_forward.1} parent=0 // pred_region
    _
  $region77: #{vae_forward.1} parent=0 // pred_fallthru
    _
  // Predicated region
  $region78: #{vae_forward.1} parent=0 // pred_check
    _
  $region79: #{vae_forward.1} parent=0 // pred_check_branch
    %69 = sbr.rel (0) target = $region81
  $region80: #{vae_forward.1} parent=0 // pred_region
    _
  $region81: #{vae_forward.1} parent=0 // pred_fallthru
    _
  // Predicated region
  $region82: #{vae_forward.1} parent=0 // pred_check
    _
  $region83: #{vae_forward.1} parent=0 // pred_check_branch
    %71 = sbr.rel (0) target = $region85
  $region84: #{vae_forward.1} parent=0 // pred_region
    _
  $region85: #{vae_forward.1} parent=0 // pred_fallthru
    _
  %v72 = vld [vmem:[%s0] ss:$2 sm:$0xff]
  %s73 = scalar_lea.vmem %s0, 16
  %v74 = vld [vmem:[%s73] ss:$2 sm:$0xff]
  %s75 = scalar_lea.vmem %s0, 32
  %v76 = vld [vmem:[%s75] ss:$2 sm:$0xff]
  %s77 = scalar_lea.vmem %s0, 48
  %v78 = vld [vmem:[%s77] ss:$2 sm:$0xff]
  %s79 = scalar_lea.vmem %s0, 64
  %v80 = vld [vmem:[%s79] ss:$2 sm:$0xff]
  %s81 = scalar_lea.vmem %s0, 80
  %v82 = vld [vmem:[%s81] ss:$2 sm:$0xff]
  %s83 = scalar_lea.vmem %s0, 96
  %v84 = vld [vmem:[%s83] ss:$2 sm:$0xff]
  %s85 = scalar_lea.vmem %s0, 112
  %v86 = vld [vmem:[%s85] ss:$2 sm:$0xff]
  %s87 = scalar_lea.vmem %s0, 128
  %v88 = vld [vmem:[%s87] ss:$2 sm:$0xff]
  %s89 = scalar_lea.vmem %s0, 144
  %v90 = vld [vmem:[%s89] ss:$2 sm:$0xff]
  %s91 = scalar_lea.vmem %s0, 160
  %v92 = vld [vmem:[%s91] ss:$2 sm:$0xf]
  %s93 = scalar_lea.vmem %s0, 1
  %v94 = vld [vmem:[%s93] ss:$2 sm:$0xff]
  %s95 = scalar_lea.vmem %s0, 17
  %v96 = vld [vmem:[%s95] ss:$2 sm:$0xff]
  %s97 = scalar_lea.vmem %s0, 33
  %v98 = vld [vmem:[%s97] ss:$2 sm:$0xff]
  %s99 = scalar_lea.vmem %s0, 49
  %v100 = vld [vmem:[%s99] ss:$2 sm:$0xff]
  %s101 = scalar_lea.vmem %s0, 65
  %v102 = vld [vmem:[%s101] ss:$2 sm:$0xff]
  %s103 = scalar_lea.vmem %s0, 81
  %v104 = vld [vmem:[%s103] ss:$2 sm:$0xff]
  %s105 = scalar_lea.vmem %s0, 97
  %v106 = vld [vmem:[%s105] ss:$2 sm:$0xff]
  %s107 = scalar_lea.vmem %s0, 113
  %v108 = vld [vmem:[%s107] ss:$2 sm:$0xff]
  %s109 = scalar_lea.vmem %s0, 129
  %v110 = vld [vmem:[%s109] ss:$2 sm:$0xff]
  %s111 = scalar_lea.vmem %s0, 145
  %v112 = vld [vmem:[%s111] ss:$2 sm:$0xff]
  %s113 = scalar_lea.vmem %s0, 161
  %v114 = vld [vmem:[%s113] ss:$2 sm:$0xf]
  %126 = vrot.lane.b32.xlu0 %v94, 8
  %v127 = vpop.permute.xlu0 %126
  %128 = vrot.lane.b32.xlu0 %v96, 8
  %v129 = vpop.permute.xlu0 %128
  %130 = vrot.lane.b32.xlu0 %v98, 8
  %v131 = vpop.permute.xlu0 %130
  %132 = vrot.lane.b32.xlu0 %v100, 8
  %v133 = vpop.permute.xlu0 %132
  %134 = vrot.lane.b32.xlu0 %v102, 8
  %v135 = vpop.permute.xlu0 %134
  %136 = vrot.lane.b32.xlu0 %v104, 8
  %v137 = vpop.permute.xlu0 %136
  %138 = vrot.lane.b32.xlu0 %v106, 8
  %v139 = vpop.permute.xlu0 %138
  %140 = vrot.lane.b32.xlu0 %v108, 8
  %v141 = vpop.permute.xlu0 %140
  %142 = vrot.lane.b32.xlu0 %v110, 8
  %v143 = vpop.permute.xlu0 %142
  %144 = vrot.lane.b32.xlu0 %v112, 8
  %v145 = vpop.permute.xlu0 %144
  %146 = vrot.lane.b32.xlu0 %v114, 8
  %v147 = vpop.permute.xlu0 %146
  %vm170 = vcmask 1046528
  %v171 = vrot.slane %v72, 1
  %v172 = vrot.slane %v74, 1
  %v173 = vsel %vm170, %v171, %v172
  %v174 = vrot.slane %v76, 1
  %v175 = vsel %vm170, %v172, %v174
  %v176 = vrot.slane %v78, 1
  %v177 = vsel %vm170, %v174, %v176
  %v178 = vrot.slane %v80, 1
  %v179 = vsel %vm170, %v176, %v178
  %v180 = vrot.slane %v82, 1
  %v181 = vsel %vm170, %v178, %v180
  %v182 = vrot.slane %v84, 1
  %v183 = vsel %vm170, %v180, %v182
  %v184 = vrot.slane %v86, 1
  %v185 = vsel %vm170, %v182, %v184
  %v186 = vrot.slane %v88, 1
  %v187 = vsel %vm170, %v184, %v186
  %v188 = vrot.slane %v90, 1
  %v189 = vsel %vm170, %v186, %v188
  %v190 = vrot.slane %v92, 1
  %v191 = vsel %vm170, %v188, %v190
  %192 = vrot.lane.b32.xlu0 %v173, 16
  %v193 = vpop.permute.xlu0 %192
  %194 = vrot.lane.b32.xlu0 %v175, 16
  %v195 = vpop.permute.xlu0 %194
  %196 = vrot.lane.b32.xlu0 %v177, 16
  %v197 = vpop.permute.xlu0 %196
  %198 = vrot.lane.b32.xlu0 %v179, 16
  %v199 = vpop.permute.xlu0 %198
  %200 = vrot.lane.b32.xlu0 %v181, 16
  %v201 = vpop.permute.xlu0 %200
  %202 = vrot.lane.b32.xlu0 %v183, 16
  %v203 = vpop.permute.xlu0 %202
  %204 = vrot.lane.b32.xlu0 %v185, 16
  %v205 = vpop.permute.xlu0 %204
  %206 = vrot.lane.b32.xlu0 %v187, 16
  %v207 = vpop.permute.xlu0 %206
  %208 = vrot.lane.b32.xlu0 %v189, 16
  %v209 = vpop.permute.xlu0 %208
  %210 = vrot.lane.b32.xlu0 %v191, 16
  %v211 = vpop.permute.xlu0 %210
  %212 = vrot.lane.b32.xlu0 %v190, 16
  %v213 = vpop.permute.xlu0 %212
  %v225 = vrot.slane %v94, 1
  %v226 = vrot.slane %v96, 1
  %v227 = vsel %vm170, %v225, %v226
  %v228 = vrot.slane %v98, 1
  %v229 = vsel %vm170, %v226, %v228
  %v230 = vrot.slane %v100, 1
  %v231 = vsel %vm170, %v228, %v230
  %v232 = vrot.slane %v102, 1
  %v233 = vsel %vm170, %v230, %v232
  %v234 = vrot.slane %v104, 1
  %v235 = vsel %vm170, %v232, %v234
  %v236 = vrot.slane %v106, 1
  %v237 = vsel %vm170, %v234, %v236
  %v238 = vrot.slane %v108, 1
  %v239 = vsel %vm170, %v236, %v238
  %v240 = vrot.slane %v110, 1
  %v241 = vsel %vm170, %v238, %v240
  %v242 = vrot.slane %v112, 1
  %v243 = vsel %vm170, %v240, %v242
  %v244 = vrot.slane %v114, 1
  %v245 = vsel %vm170, %v242, %v244
  %246 = vrot.lane.b32.xlu0 %v227, 24
  %v247 = vpop.permute.xlu0 %246
  %248 = vrot.lane.b32.xlu0 %v229, 24
  %v249 = vpop.permute.xlu0 %248
  %250 = vrot.lane.b32.xlu0 %v231, 24
  %v251 = vpop.permute.xlu0 %250
  %252 = vrot.lane.b32.xlu0 %v233, 24
  %v253 = vpop.permute.xlu0 %252
  %254 = vrot.lane.b32.xlu0 %v235, 24
  %v255 = vpop.permute.xlu0 %254
  %256 = vrot.lane.b32.xlu0 %v237, 24
  %v257 = vpop.permute.xlu0 %256
  %258 = vrot.lane.b32.xlu0 %v239, 24
  %v259 = vpop.permute.xlu0 %258
  %260 = vrot.lane.b32.xlu0 %v241, 24
  %v261 = vpop.permute.xlu0 %260
  %262 = vrot.lane.b32.xlu0 %v243, 24
  %v263 = vpop.permute.xlu0 %262
  %264 = vrot.lane.b32.xlu0 %v245, 24
  %v265 = vpop.permute.xlu0 %264
  %266 = vrot.lane.b32.xlu0 %v244, 24
  %v267 = vpop.permute.xlu0 %266
  %vm279 = vcmask 1045504
  %v280 = vrot.slane %v72, 2
  %v281 = vrot.slane %v74, 2
  %v282 = vsel %vm279, %v280, %v281
  %v283 = vrot.slane %v76, 2
  %v284 = vsel %vm279, %v281, %v283
  %v285 = vrot.slane %v78, 2
  %v286 = vsel %vm279, %v283, %v285
  %v287 = vrot.slane %v80, 2
  %v288 = vsel %vm279, %v285, %v287
  %v289 = vrot.slane %v82, 2
  %v290 = vsel %vm279, %v287, %v289
  %v291 = vrot.slane %v84, 2
  %v292 = vsel %vm279, %v289, %v291
  %v293 = vrot.slane %v86, 2
  %v294 = vsel %vm279, %v291, %v293
  %v295 = vrot.slane %v88, 2
  %v296 = vsel %vm279, %v293, %v295
  %v297 = vrot.slane %v90, 2
  %v298 = vsel %vm279, %v295, %v297
  %v299 = vrot.slane %v92, 2
  %v300 = vsel %vm279, %v297, %v299
  %301 = vrot.lane.b32.xlu0 %v282, 32
  %v302 = vpop.permute.xlu0 %301
  %303 = vrot.lane.b32.xlu0 %v284, 32
  %v304 = vpop.permute.xlu0 %303
  %305 = vrot.lane.b32.xlu0 %v286, 32
  %v306 = vpop.permute.xlu0 %305
  %307 = vrot.lane.b32.xlu0 %v288, 32
  %v308 = vpop.permute.xlu0 %307
  %309 = vrot.lane.b32.xlu0 %v290, 32
  %v310 = vpop.permute.xlu0 %309
  %311 = vrot.lane.b32.xlu0 %v292, 32
  %v312 = vpop.permute.xlu0 %311
  %313 = vrot.lane.b32.xlu0 %v294, 32
  %v314 = vpop.permute.xlu0 %313
  %315 = vrot.lane.b32.xlu0 %v296, 32
  %v316 = vpop.permute.xlu0 %315
  %317 = vrot.lane.b32.xlu0 %v298, 32
  %v318 = vpop.permute.xlu0 %317
  %319 = vrot.lane.b32.xlu0 %v300, 32
  %v320 = vpop.permute.xlu0 %319
  %321 = vrot.lane.b32.xlu0 %v299, 32
  %v322 = vpop.permute.xlu0 %321
  %vm334 = vcmask 64512
  %v335 = vsel %vm334, %v72, %v127
  %v336 = vsel %vm334, %v74, %v129
  %v337 = vsel %vm334, %v76, %v131
  %v338 = vsel %vm334, %v78, %v133
  %v339 = vsel %vm334, %v80, %v135
  %v340 = vsel %vm334, %v82, %v137
  %v341 = vsel %vm334, %v84, %v139
  %v342 = vsel %vm334, %v86, %v141
  %v343 = vsel %vm334, %v88, %v143
  %v344 = vsel %vm334, %v90, %v145
  %v345 = vsel %vm334, %v92, %v147
  %vm346 = vcmask 130048
  %v347 = vsel %vm346, %v335, %v193
  %v348 = vsel %vm346, %v336, %v195
  %v349 = vsel %vm346, %v337, %v197
  %v350 = vsel %vm346, %v338, %v199
  %v351 = vsel %vm346, %v339, %v201
  %v352 = vsel %vm346, %v340, %v203
  %v353 = vsel %vm346, %v341, %v205
  %v354 = vsel %vm346, %v342, %v207
  %v355 = vsel %vm346, %v343, %v209
  %v356 = vsel %vm346, %v344, %v211
  %v357 = vsel %vm346, %v345, %v213
  %vm358 = vcmask 195584
  %v359 = vsel %vm358, %v347, %v247
  %v360 = vsel %vm358, %v348, %v249
  %v361 = vsel %vm358, %v349, %v251
  %v362 = vsel %vm358, %v350, %v253
  %v363 = vsel %vm358, %v351, %v255
  %v364 = vsel %vm358, %v352, %v257
  %v365 = vsel %vm358, %v353, %v259
  %v366 = vsel %vm358, %v354, %v261
  %v367 = vsel %vm358, %v355, %v263
  %v368 = vsel %vm358, %v356, %v265
  %v369 = vsel %vm358, %v357, %v267
  %vm370 = vcmask 261120
  %v371 = vsel %vm370, %v359, %v302
  %v372 = vsel %vm370, %v360, %v304
  %v373 = vsel %vm370, %v361, %v306
  %v374 = vsel %vm370, %v362, %v308
  %v375 = vsel %vm370, %v363, %v310
  %v376 = vsel %vm370, %v364, %v312
  %v377 = vsel %vm370, %v365, %v314
  %v378 = vsel %vm370, %v366, %v316
  %v379 = vsel %vm370, %v367, %v318
  %v380 = vsel %vm370, %v368, %v320
  %v381 = vsel %vm370, %v369, %v322
  %s382 = scalar_lea.vmem %s0, 168
  %v383 = vld [vmem:[%s382] ss:$2 sm:$0xff]
  %s384 = scalar_lea.vmem %s0, 184
  %v385 = vld [vmem:[%s384] ss:$2 sm:$0xff]
  %s386 = scalar_lea.vmem %s0, 200
  %v387 = vld [vmem:[%s386] ss:$2 sm:$0xff]
  %s388 = scalar_lea.vmem %s0, 216
  %v389 = vld [vmem:[%s388] ss:$2 sm:$0xff]
  %s390 = scalar_lea.vmem %s0, 232
  %v391 = vld [vmem:[%s390] ss:$2 sm:$0xff]
  %s392 = scalar_lea.vmem %s0, 248
  %v393 = vld [vmem:[%s392] ss:$2 sm:$0xff]
  %s394 = scalar_lea.vmem %s0, 264
  %v395 = vld [vmem:[%s394] ss:$2 sm:$0xff]
  %s396 = scalar_lea.vmem %s0, 280
  %v397 = vld [vmem:[%s396] ss:$2 sm:$0xff]
  %s398 = scalar_lea.vmem %s0, 296
  %v399 = vld [vmem:[%s398] ss:$2 sm:$0xff]
  %s400 = scalar_lea.vmem %s0, 312
  %v401 = vld [vmem:[%s400] ss:$2 sm:$0xff]
  %s402 = scalar_lea.vmem %s0, 328
  %v403 = vld [vmem:[%s402] ss:$2 sm:$0xf]
  %s404 = scalar_lea.vmem %s0, 169
  %v405 = vld [vmem:[%s404] ss:$2 sm:$0xff]
  %s406 = scalar_lea.vmem %s0, 185
  %v407 = vld [vmem:[%s406] ss:$2 sm:$0xff]
  %s408 = scalar_lea.vmem %s0, 201
  %v409 = vld [vmem:[%s408] ss:$2 sm:$0xff]
  %s410 = scalar_lea.vmem %s0, 217
  %v411 = vld [vmem:[%s410] ss:$2 sm:$0xff]
  %s412 = scalar_lea.vmem %s0, 233
  %v413 = vld [vmem:[%s412] ss:$2 sm:$0xff]
  %s414 = scalar_lea.vmem %s0, 249
  %v415 = vld [vmem:[%s414] ss:$2 sm:$0xff]
  %s416 = scalar_lea.vmem %s0, 265
  %v417 = vld [vmem:[%s416] ss:$2 sm:$0xff]
  %s418 = scalar_lea.vmem %s0, 281
  %v419 = vld [vmem:[%s418] ss:$2 sm:$0xff]
  %s420 = scalar_lea.vmem %s0, 297
  %v421 = vld [vmem:[%s420] ss:$2 sm:$0xff]
  %s422 = scalar_lea.vmem %s0, 313
  %v423 = vld [vmem:[%s422] ss:$2 sm:$0xff]
  %s424 = scalar_lea.vmem %s0, 329
  %v425 = vld [vmem:[%s424] ss:$2 sm:$0xf]
  %437 = vrot.lane.b32.xlu0 %v405, 8
  %v438 = vpop.permute.xlu0 %437
  %439 = vrot.lane.b32.xlu0 %v407, 8
  %v440 = vpop.permute.xlu0 %439
  %441 = vrot.lane.b32.xlu0 %v409, 8
  %v442 = vpop.permute.xlu0 %441
  %443 = vrot.lane.b32.xlu0 %v411, 8
  %v444 = vpop.permute.xlu0 %443
  %445 = vrot.lane.b32.xlu0 %v413, 8
  %v446 = vpop.permute.xlu0 %445
  %447 = vrot.lane.b32.xlu0 %v415, 8
  %v448 = vpop.permute.xlu0 %447
  %449 = vrot.lane.b32.xlu0 %v417, 8
  %v450 = vpop.permute.xlu0 %449
  %451 = vrot.lane.b32.xlu0 %v419, 8
  %v452 = vpop.permute.xlu0 %451
  %453 = vrot.lane.b32.xlu0 %v421, 8
  %v454 = vpop.permute.xlu0 %453
  %455 = vrot.lane.b32.xlu0 %v423, 8
  %v456 = vpop.permute.xlu0 %455
  %457 = vrot.lane.b32.xlu0 %v425, 8
  %v458 = vpop.permute.xlu0 %457
  %v481 = vrot.slane %v383, 1
  %v482 = vrot.slane %v385, 1
  %v483 = vsel %vm170, %v481, %v482
  %v484 = vrot.slane %v387, 1
  %v485 = vsel %vm170, %v482, %v484
  %v486 = vrot.slane %v389, 1
  %v487 = vsel %vm170, %v484, %v486
  %v488 = vrot.slane %v391, 1
  %v489 = vsel %vm170, %v486, %v488
  %v490 = vrot.slane %v393, 1
  %v491 = vsel %vm170, %v488, %v490
  %v492 = vrot.slane %v395, 1
  %v493 = vsel %vm170, %v490, %v492
  %v494 = vrot.slane %v397, 1
  %v495 = vsel %vm170, %v492, %v494
  %v496 = vrot.slane %v399, 1
  %v497 = vsel %vm170, %v494, %v496
  %v498 = vrot.slane %v401, 1
  %v499 = vsel %vm170, %v496, %v498
  %v500 = vrot.slane %v403, 1
  %v501 = vsel %vm170, %v498, %v500
  %502 = vrot.lane.b32.xlu0 %v483, 16
  %v503 = vpop.permute.xlu0 %502
  %504 = vrot.lane.b32.xlu0 %v485, 16
  %v505 = vpop.permute.xlu0 %504
  %506 = vrot.lane.b32.xlu0 %v487, 16
  %v507 = vpop.permute.xlu0 %506
  %508 = vrot.lane.b32.xlu0 %v489, 16
  %v509 = vpop.permute.xlu0 %508
  %510 = vrot.lane.b32.xlu0 %v491, 16
  %v511 = vpop.permute.xlu0 %510
  %512 = vrot.lane.b32.xlu0 %v493, 16
  %v513 = vpop.permute.xlu0 %512
  %514 = vrot.lane.b32.xlu0 %v495, 16
  %v515 = vpop.permute.xlu0 %514
  %516 = vrot.lane.b32.xlu0 %v497, 16
  %v517 = vpop.permute.xlu0 %516
  %518 = vrot.lane.b32.xlu0 %v499, 16
  %v519 = vpop.permute.xlu0 %518
  %520 = vrot.lane.b32.xlu0 %v501, 16
  %v521 = vpop.permute.xlu0 %520
  %522 = vrot.lane.b32.xlu0 %v500, 16
  %v523 = vpop.permute.xlu0 %522
  %v535 = vrot.slane %v405, 1
  %v536 = vrot.slane %v407, 1
  %v537 = vsel %vm170, %v535, %v536
  %v538 = vrot.slane %v409, 1
  %v539 = vsel %vm170, %v536, %v538
  %v540 = vrot.slane %v411, 1
  %v541 = vsel %vm170, %v538, %v540
  %v542 = vrot.slane %v413, 1
  %v543 = vsel %vm170, %v540, %v542
  %v544 = vrot.slane %v415, 1
  %v545 = vsel %vm170, %v542, %v544
  %v546 = vrot.slane %v417, 1
  %v547 = vsel %vm170, %v544, %v546
  %v548 = vrot.slane %v419, 1
  %v549 = vsel %vm170, %v546, %v548
  %v550 = vrot.slane %v421, 1
  %v551 = vsel %vm170, %v548, %v550
  %v552 = vrot.slane %v423, 1
  %v553 = vsel %vm170, %v550, %v552
  %v554 = vrot.slane %v425, 1
  %v555 = vsel %vm170, %v552, %v554
  %556 = vrot.lane.b32.xlu0 %v537, 24
  %v557 = vpop.permute.xlu0 %556
  %558 = vrot.lane.b32.xlu0 %v539, 24
  %v559 = vpop.permute.xlu0 %558
  %560 = vrot.lane.b32.xlu0 %v541, 24
  %v561 = vpop.permute.xlu0 %560
  %562 = vrot.lane.b32.xlu0 %v543, 24
  %v563 = vpop.permute.xlu0 %562
  %564 = vrot.lane.b32.xlu0 %v545, 24
  %v565 = vpop.permute.xlu0 %564
  %566 = vrot.lane.b32.xlu0 %v547, 24
  %v567 = vpop.permute.xlu0 %566
  %568 = vrot.lane.b32.xlu0 %v549, 24
  %v569 = vpop.permute.xlu0 %568
  %570 = vrot.lane.b32.xlu0 %v551, 24
  %v571 = vpop.permute.xlu0 %570
  %572 = vrot.lane.b32.xlu0 %v553, 24
  %v573 = vpop.permute.xlu0 %572
  %574 = vrot.lane.b32.xlu0 %v555, 24
  %v575 = vpop.permute.xlu0 %574
  %576 = vrot.lane.b32.xlu0 %v554, 24
  %v577 = vpop.permute.xlu0 %576
  %v589 = vrot.slane %v383, 2
  %v590 = vrot.slane %v385, 2
  %v591 = vsel %vm279, %v589, %v590
  %v592 = vrot.slane %v387, 2
  %v593 = vsel %vm279, %v590, %v592
  %v594 = vrot.slane %v389, 2
  %v595 = vsel %vm279, %v592, %v594
  %v596 = vrot.slane %v391, 2
  %v597 = vsel %vm279, %v594, %v596
  %v598 = vrot.slane %v393, 2
  %v599 = vsel %vm279, %v596, %v598
  %v600 = vrot.slane %v395, 2
  %v601 = vsel %vm279, %v598, %v600
  %v602 = vrot.slane %v397, 2
  %v603 = vsel %vm279, %v600, %v602
  %v604 = vrot.slane %v399, 2
  %v605 = vsel %vm279, %v602, %v604
  %v606 = vrot.slane %v401, 2
  %v607 = vsel %vm279, %v604, %v606
  %v608 = vrot.slane %v403, 2
  %v609 = vsel %vm279, %v606, %v608
  %610 = vrot.lane.b32.xlu0 %v591, 32
  %v611 = vpop.permute.xlu0 %610
  %612 = vrot.lane.b32.xlu0 %v593, 32
  %v613 = vpop.permute.xlu0 %612
  %614 = vrot.lane.b32.xlu0 %v595, 32
  %v615 = vpop.permute.xlu0 %614
  %616 = vrot.lane.b32.xlu0 %v597, 32
  %v617 = vpop.permute.xlu0 %616
  %618 = vrot.lane.b32.xlu0 %v599, 32
  %v619 = vpop.permute.xlu0 %618
  %620 = vrot.lane.b32.xlu0 %v601, 32
  %v621 = vpop.permute.xlu0 %620
  %622 = vrot.lane.b32.xlu0 %v603, 32
  %v623 = vpop.permute.xlu0 %622
  %624 = vrot.lane.b32.xlu0 %v605, 32
  %v625 = vpop.permute.xlu0 %624
  %626 = vrot.lane.b32.xlu0 %v607, 32
  %v627 = vpop.permute.xlu0 %626
  %628 = vrot.lane.b32.xlu0 %v609, 32
  %v629 = vpop.permute.xlu0 %628
  %630 = vrot.lane.b32.xlu0 %v608, 32
  %v631 = vpop.permute.xlu0 %630
  %v643 = vsel %vm334, %v383, %v438
  %v644 = vsel %vm334, %v385, %v440
  %v645 = vsel %vm334, %v387, %v442
  %v646 = vsel %vm334, %v389, %v444
  %v647 = vsel %vm334, %v391, %v446
  %v648 = vsel %vm334, %v393, %v448
  %v649 = vsel %vm334, %v395, %v450
  %v650 = vsel %vm334, %v397, %v452
  %v651 = vsel %vm334, %v399, %v454
  %v652 = vsel %vm334, %v401, %v456
  %v653 = vsel %vm334, %v403, %v458
  %v654 = vsel %vm346, %v643, %v503
  %v655 = vsel %vm346, %v644, %v505
  %v656 = vsel %vm346, %v645, %v507
  %v657 = vsel %vm346, %v646, %v509
  %v658 = vsel %vm346, %v647, %v511
  %v659 = vsel %vm346, %v648, %v513
  %v660 = vsel %vm346, %v649, %v515
  %v661 = vsel %vm346, %v650, %v517
  %v662 = vsel %vm346, %v651, %v519
  %v663 = vsel %vm346, %v652, %v521
  %v664 = vsel %vm346, %v653, %v523
  %v665 = vsel %vm358, %v654, %v557
  %v666 = vsel %vm358, %v655, %v559
  %v667 = vsel %vm358, %v656, %v561
  %v668 = vsel %vm358, %v657, %v563
  %v669 = vsel %vm358, %v658, %v565
  %v670 = vsel %vm358, %v659, %v567
  %v671 = vsel %vm358, %v660, %v569
  %v672 = vsel %vm358, %v661, %v571
  %v673 = vsel %vm358, %v662, %v573
  %v674 = vsel %vm358, %v663, %v575
  %v675 = vsel %vm358, %v664, %v577
  %v676 = vsel %vm370, %v665, %v611
  %v677 = vsel %vm370, %v666, %v613
  %v678 = vsel %vm370, %v667, %v615
  %v679 = vsel %vm370, %v668, %v617
  %v680 = vsel %vm370, %v669, %v619
  %v681 = vsel %vm370, %v670, %v621
  %v682 = vsel %vm370, %v671, %v623
  %v683 = vsel %vm370, %v672, %v625
  %v684 = vsel %vm370, %v673, %v627
  %v685 = vsel %vm370, %v674, %v629
  %v686 = vsel %vm370, %v675, %v631
  %vm698 = vcmask 1041408
  %v699 = vrot.slane %v676, 6
  %v700 = vrot.slane %v677, 6
  %v701 = vsel %vm698, %v699, %v700
  %v702 = vrot.slane %v678, 6
  %v703 = vsel %vm698, %v700, %v702
  %v704 = vrot.slane %v679, 6
  %v705 = vsel %vm698, %v702, %v704
  %v706 = vrot.slane %v680, 6
  %v707 = vsel %vm698, %v704, %v706
  %v708 = vrot.slane %v681, 6
  %v709 = vsel %vm698, %v706, %v708
  %v710 = vrot.slane %v682, 6
  %v711 = vsel %vm698, %v708, %v710
  %v712 = vrot.slane %v683, 6
  %v713 = vsel %vm698, %v710, %v712
  %v714 = vrot.slane %v684, 6
  %v715 = vsel %vm698, %v712, %v714
  %v716 = vrot.slane %v685, 6
  %v717 = vsel %vm698, %v714, %v716
  %v718 = vrot.slane %v686, 6
  %v719 = vsel %vm698, %v716, %v718
  %v721 = vsel %vm698, %v381, %v699
  %v722 = vld [vmem:[%s2] sm:$0xff]
  %v723 = vld [vmem:[%s2 + $0x8] sm:$0xff]
  %v724 = vld [vmem:[%s2 + $0x10] sm:$0xff]
  %v725 = vld [vmem:[%s2 + $0x18] sm:$0xff]
  %v726 = vld [vmem:[%s2 + $0x20] sm:$0xff]
  %v727 = vld [vmem:[%s3] sm:$0x1]
  %v729 = vlaneseq
  %v730 = vshrl.u32 %v729, 7
  %v731 = vsub.s32 0, %v730
  %v732 = vrot.slane %v727, %v731
  %vm734 = vcmask 326656
  %v736 = vsel %vm734, %v371, 0
  %v739 = vsel %vm734, %v372, 0
  %v742 = vsel %vm734, %v373, 0
  %v745 = vsel %vm734, %v374, 0
  %v748 = vsel %vm734, %v375, 0
  %v751 = vsel %vm734, %v376, 0
  %v754 = vsel %vm734, %v377, 0
  %v757 = vsel %vm734, %v378, 0
  %v760 = vsel %vm734, %v379, 0
  %v763 = vsel %vm734, %v380, 0
  %v766 = vsel %vm734, %v721, 0
  %v768 = vsel %vm734, %v701, 0
  %v770 = vsel %vm734, %v703, 0
  %v772 = vsel %vm734, %v705, 0
  %v774 = vsel %vm734, %v707, 0
  %v776 = vsel %vm734, %v709, 0
  %v778 = vsel %vm734, %v711, 0
  %v780 = vsel %vm734, %v713, 0
  %v782 = vsel %vm734, %v715, 0
  %v784 = vsel %vm734, %v717, 0
  %v786 = vsel %vm734, %v719, 0
  %788 = vmatprep.subr.mxu0 0.0
  %789 = vmatpush1.msra.mxu0 %v722
  %790 = vmatprep.subr.mxu0 0.0
  %791 = vmatpush1.msra.mxu0 %v723
  %792 = vmatprep.subr.mxu0 0.0
  %793 = vmatpush1.msra.mxu0 %v724
  %794 = vmatprep.subr.mxu0 0.0
  %795 = vmatpush1.msra.mxu0 %v725
  %796 = vmatprep.subr.mxu0 0.0
  %797 = vmatpush1.msra.mxu0 %v726
  %798 = vmatprep.subr.mxu0 0.0
  %799 = vmatpush1.msra.mxu0 0.0
  %800 = vmatprep.subr.mxu0 0.0
  %801 = vmatpush1.msra.mxu0 0.0
  %802 = vmatprep.subr.mxu0 0.0
  %803 = vmatpush1.msra.mxu0 0.0
  %804 = vmatprep.subr.mxu0 0.0
  %805 = vmatpush1.msra.mxu0 0.0
  %806 = vmatprep.subr.mxu0 0.0
  %807 = vmatpush1.msra.mxu0 0.0
  %808 = vmatprep.subr.mxu0 0.0
  %809 = vmatpush1.msra.mxu0 0.0
  %810 = vmatprep.subr.mxu0 0.0
  %811 = vmatpush1.msra.mxu0 0.0
  %812 = vmatprep.subr.mxu0 0.0
  %813 = vmatpush1.msra.mxu0 0.0
  %814 = vmatprep.subr.mxu0 0.0
  %815 = vmatpush1.msra.mxu0 0.0
  %816 = vmatprep.subr.mxu0 0.0
  %817 = vmatpush1.msra.mxu0 0.0
  %818 = vmatprep.subr.mxu0 0.0
  %819 = vmatpush1.msra.mxu0 0.0
  %820 = vmatprep.subr.mxu0 0.0
  %821 = vmatpush1.msra.mxu0 0.0
  %822 = vmatprep.subr.mxu0 0.0
  %823 = vmatpush1.msra.mxu0 0.0
  %824 = vmatprep.subr.mxu0 0.0
  %825 = vmatpush1.msra.mxu0 0.0
  %826 = vmatprep.subr.mxu0 0.0
  %827 = vmatpush1.msra.mxu0 0.0
  %828 = vmatprep.subr.mxu0 0.0
  %829 = vmatpush1.msra.mxu0 0.0
  %830 = vmatprep.subr.mxu0 0.0
  %831 = vmatpush1.msra.mxu0 0.0
  %832 = vmatprep.subr.mxu0 0.0
  %833 = vmatpush1.msra.mxu0 0.0
  %834 = vmatprep.subr.mxu0 0.0
  %835 = vmatpush1.msra.mxu0 0.0
  %836 = vmatprep.subr.mxu0 0.0
  %837 = vmatpush1.msra.mxu0 0.0
  %838 = vmatprep.subr.mxu0 0.0
  %839 = vmatpush1.msra.mxu0 0.0
  %840 = vmatprep.subr.mxu0 0.0
  %841 = vmatpush1.msra.mxu0 0.0
  %842 = vmatprep.subr.mxu0 0.0
  %843 = vmatpush1.msra.mxu0 0.0
  %844 = vmatprep.subr.mxu0 0.0
  %845 = vmatpush1.msra.mxu0 0.0
  %846 = vmatprep.subr.mxu0 0.0
  %847 = vmatpush1.msra.mxu0 0.0
  %848 = vmatprep.subr.mxu0 0.0
  %849 = vmatpush1.msra.mxu0 0.0
  %850 = vmatprep.subr.mxu0 0.0
  %851 = vmatpush1.msra.mxu0 0.0
  %852 = vmatprep.mubr.f32.mxu0 0.0
  %853 = vmatmul.mubr.f32.gmra.mrb[0].mxu0 %v736
  %v854 = vpop.f32.mrb[0].mxu0
  %v855 = vadd.f32 %v732, %v854
  %v856 = vpop.f32.mrb[0].mxu0
  %857 = vmatprep.mubr.f32.mxu0 0.0
  %858 = vmatmul.mubr.f32.gmra.mrb[0].mxu0 %v739
  %v859 = vpop.f32.mrb[0].mxu0
  %v860 = vadd.f32 %v732, %v859
  %v861 = vpop.f32.mrb[0].mxu0
  %862 = vmatprep.mubr.f32.mxu0 0.0
  %863 = vmatmul.mubr.f32.gmra.mrb[0].mxu0 %v742
  %v864 = vpop.f32.mrb[0].mxu0
  %v865 = vadd.f32 %v732, %v864
  %v866 = vpop.f32.mrb[0].mxu0
  %867 = vmatprep.mubr.f32.mxu0 0.0
  %868 = vmatmul.mubr.f32.gmra.mrb[0].mxu0 %v745
  %v869 = vpop.f32.mrb[0].mxu0
  %v870 = vadd.f32 %v732, %v869
  %v871 = vpop.f32.mrb[0].mxu0
  %872 = vmatprep.mubr.f32.mxu0 0.0
  %873 = vmatmul.mubr.f32.gmra.mrb[0].mxu0 %v748
  %v874 = vpop.f32.mrb[0].mxu0
  %v875 = vadd.f32 %v732, %v874
  %v876 = vpop.f32.mrb[0].mxu0
  %877 = vmatprep.mubr.f32.mxu0 0.0
  %878 = vmatmul.mubr.f32.gmra.mrb[0].mxu0 %v751
  %v879 = vpop.f32.mrb[0].mxu0
  %v880 = vadd.f32 %v732, %v879
  %v881 = vpop.f32.mrb[0].mxu0
  %882 = vmatprep.mubr.f32.mxu0 0.0
  %883 = vmatmul.mubr.f32.gmra.mrb[0].mxu0 %v754
  %v884 = vpop.f32.mrb[0].mxu0
  %v885 = vadd.f32 %v732, %v884
  %v886 = vpop.f32.mrb[0].mxu0
  %887 = vmatprep.mubr.f32.mxu0 0.0
  %888 = vmatmul.mubr.f32.gmra.mrb[0].mxu0 %v757
  %v889 = vpop.f32.mrb[0].mxu0
  %v890 = vadd.f32 %v732, %v889
  %v891 = vpop.f32.mrb[0].mxu0
  %892 = vmatprep.mubr.f32.mxu0 0.0
  %893 = vmatmul.mubr.f32.gmra.mrb[0].mxu0 %v760
  %v894 = vpop.f32.mrb[0].mxu0
  %v895 = vadd.f32 %v732, %v894
  %v896 = vpop.f32.mrb[0].mxu0
  %897 = vmatprep.mubr.f32.mxu0 0.0
  %898 = vmatmul.mubr.f32.gmra.mrb[0].mxu0 %v763
  %v899 = vpop.f32.mrb[0].mxu0
  %v900 = vadd.f32 %v732, %v899
  %v901 = vpop.f32.mrb[0].mxu0
  %902 = vmatprep.mubr.f32.mxu0 0.0
  %903 = vmatmul.mubr.f32.gmra.mrb[0].mxu0 %v766
  %v904 = vpop.f32.mrb[0].mxu0
  %v905 = vadd.f32 %v732, %v904
  %v906 = vpop.f32.mrb[0].mxu0
  %907 = vmatprep.mubr.f32.mxu0 0.0
  %908 = vmatmul.mubr.f32.gmra.mrb[0].mxu0 %v768
  %v909 = vpop.f32.mrb[0].mxu0
  %v910 = vadd.f32 %v732, %v909
  %v911 = vpop.f32.mrb[0].mxu0
  %912 = vmatprep.mubr.f32.mxu0 0.0
  %913 = vmatmul.mubr.f32.gmra.mrb[0].mxu0 %v770
  %v914 = vpop.f32.mrb[0].mxu0
  %v915 = vadd.f32 %v732, %v914
  %v916 = vpop.f32.mrb[0].mxu0
  %917 = vmatprep.mubr.f32.mxu0 0.0
  %918 = vmatmul.mubr.f32.gmra.mrb[0].mxu0 %v772
  %v919 = vpop.f32.mrb[0].mxu0
  %v920 = vadd.f32 %v732, %v919
  %v921 = vpop.f32.mrb[0].mxu0
  %922 = vmatprep.mubr.f32.mxu0 0.0
  %923 = vmatmul.mubr.f32.gmra.mrb[0].mxu0 %v774
  %v924 = vpop.f32.mrb[0].mxu0
  %v925 = vadd.f32 %v732, %v924
  %v926 = vpop.f32.mrb[0].mxu0
  %927 = vmatprep.mubr.f32.mxu0 0.0
  %928 = vmatmul.mubr.f32.gmra.mrb[0].mxu0 %v776
  %v929 = vpop.f32.mrb[0].mxu0
  %v930 = vadd.f32 %v732, %v929
  %v931 = vpop.f32.mrb[0].mxu0
  %932 = vmatprep.mubr.f32.mxu0 0.0
  %933 = vmatmul.mubr.f32.gmra.mrb[0].mxu0 %v778
  %v934 = vpop.f32.mrb[0].mxu0
  %v935 = vadd.f32 %v732, %v934
  %v936 = vpop.f32.mrb[0].mxu0
  %937 = vmatprep.mubr.f32.mxu0 0.0
  %938 = vmatmul.mubr.f32.gmra.mrb[0].mxu0 %v780
  %v939 = vpop.f32.mrb[0].mxu0
  %v940 = vadd.f32 %v732, %v939
  %v941 = vpop.f32.mrb[0].mxu0
  %942 = vmatprep.mubr.f32.mxu0 0.0
  %943 = vmatmul.mubr.f32.gmra.mrb[0].mxu0 %v782
  %v944 = vpop.f32.mrb[0].mxu0
  %v945 = vadd.f32 %v732, %v944
  %v946 = vpop.f32.mrb[0].mxu0
  %947 = vmatprep.mubr.f32.mxu0 0.0
  %948 = vmatmul.mubr.f32.gmra.mrb[0].mxu0 %v784
  %v949 = vpop.f32.mrb[0].mxu0
  %v950 = vadd.f32 %v732, %v949
  %v951 = vpop.f32.mrb[0].mxu0
  %952 = vmatprep.mubr.f32.mxu0 0.0
  %953 = vmatmul.mubr.f32.gmra.mrb[0].mxu0 %v786
  %v954 = vpop.f32.mrb[0].mxu0
  %v955 = vadd.f32 %v732, %v954
  %v956 = vpop.f32.mrb[0].mxu0
  %957 = vdwg.mxu0
  %vm958 = vcmp.gt.f32.partialorder %v855, 0.0
  %vm959 = vcmp.gt.f32.partialorder %v860, 0.0
  %vm960 = vcmp.gt.f32.partialorder %v865, 0.0
  %vm961 = vcmp.gt.f32.partialorder %v870, 0.0
  %vm962 = vcmp.gt.f32.partialorder %v875, 0.0
  %vm963 = vcmp.gt.f32.partialorder %v880, 0.0
  %vm964 = vcmp.gt.f32.partialorder %v885, 0.0
  %vm965 = vcmp.gt.f32.partialorder %v890, 0.0
  %vm966 = vcmp.gt.f32.partialorder %v895, 0.0
  %vm967 = vcmp.gt.f32.partialorder %v900, 0.0
  %vm968 = vcmp.gt.f32.partialorder %v905, 0.0
  %vm969 = vcmp.gt.f32.partialorder %v910, 0.0
  %vm970 = vcmp.gt.f32.partialorder %v915, 0.0
  %vm971 = vcmp.gt.f32.partialorder %v920, 0.0
  %vm972 = vcmp.gt.f32.partialorder %v925, 0.0
  %vm973 = vcmp.gt.f32.partialorder %v930, 0.0
  %vm974 = vcmp.gt.f32.partialorder %v935, 0.0
  %vm975 = vcmp.gt.f32.partialorder %v940, 0.0
  %vm976 = vcmp.gt.f32.partialorder %v945, 0.0
  %vm977 = vcmp.gt.f32.partialorder %v950, 0.0
  %vm978 = vcmp.gt.f32.partialorder %v955, 0.0
  %v979 = vmul.f32 %v855, 0.01
  %v980 = vmul.f32 %v860, 0.01
  %v981 = vmul.f32 %v865, 0.01
  %v982 = vmul.f32 %v870, 0.01
  %v983 = vmul.f32 %v875, 0.01
  %v984 = vmul.f32 %v880, 0.01
  %v985 = vmul.f32 %v885, 0.01
  %v986 = vmul.f32 %v890, 0.01
  %v987 = vmul.f32 %v895, 0.01
  %v988 = vmul.f32 %v900, 0.01
  %v989 = vmul.f32 %v905, 0.01
  %v990 = vmul.f32 %v910, 0.01
  %v991 = vmul.f32 %v915, 0.01
  %v992 = vmul.f32 %v920, 0.01
  %v993 = vmul.f32 %v925, 0.01
  %v994 = vmul.f32 %v930, 0.01
  %v995 = vmul.f32 %v935, 0.01
  %v996 = vmul.f32 %v940, 0.01
  %v997 = vmul.f32 %v945, 0.01
  %v998 = vmul.f32 %v950, 0.01
  %v999 = vmul.f32 %v955, 0.01
  %v1000 = vsel %vm958, %v855, %v979
  %v1001 = vsel %vm959, %v860, %v980
  %v1002 = vsel %vm960, %v865, %v981
  %v1003 = vsel %vm961, %v870, %v982
  %v1004 = vsel %vm962, %v875, %v983
  %v1005 = vsel %vm963, %v880, %v984
  %v1006 = vsel %vm964, %v885, %v985
  %v1007 = vsel %vm965, %v890, %v986
  %v1008 = vsel %vm966, %v895, %v987
  %v1009 = vsel %vm967, %v900, %v988
  %v1010 = vsel %vm968, %v905, %v989
  %v1011 = vsel %vm969, %v910, %v990
  %v1012 = vsel %vm970, %v915, %v991
  %v1013 = vsel %vm971, %v920, %v992
  %v1014 = vsel %vm972, %v925, %v993
  %v1015 = vsel %vm973, %v930, %v994
  %v1016 = vsel %vm974, %v935, %v995
  %v1017 = vsel %vm975, %v940, %v996
  %v1018 = vsel %vm976, %v945, %v997
  %v1019 = vsel %vm977, %v950, %v998
  %v1020 = vsel %vm978, %v955, %v999
  %1021 = vst.msk [vmem:[#allocation2] sm:$0xff] %vm370, %v1000
  %1022 = vst.msk [vmem:[#allocation2 + $0x8] sm:$0xff] %vm370, %v1001
  %1023 = vst.msk [vmem:[#allocation2 + $0x10] sm:$0xff] %vm370, %v1002
  %1024 = vst.msk [vmem:[#allocation2 + $0x18] sm:$0xff] %vm370, %v1003
  %1025 = vst.msk [vmem:[#allocation2 + $0x20] sm:$0xff] %vm370, %v1004
  %1026 = vst.msk [vmem:[#allocation2 + $0x28] sm:$0xff] %vm370, %v1005
  %1027 = vst.msk [vmem:[#allocation2 + $0x30] sm:$0xff] %vm370, %v1006
  %1028 = vst.msk [vmem:[#allocation2 + $0x38] sm:$0xff] %vm370, %v1007
  %1029 = vst.msk [vmem:[#allocation2 + $0x40] sm:$0xff] %vm370, %v1008
  %1030 = vst.msk [vmem:[#allocation2 + $0x48] sm:$0xff] %vm370, %v1009
  %1031 = vst.msk [vmem:[#allocation2 + $0x50] sm:$0xff] %vm370, %v1010
  %1032 = vst.msk [vmem:[#allocation2 + $0x58] sm:$0xff] %vm370, %v1011
  %1033 = vst.msk [vmem:[#allocation2 + $0x60] sm:$0xff] %vm370, %v1012
  %1034 = vst.msk [vmem:[#allocation2 + $0x68] sm:$0xff] %vm370, %v1013
  %1035 = vst.msk [vmem:[#allocation2 + $0x70] sm:$0xff] %vm370, %v1014
  %1036 = vst.msk [vmem:[#allocation2 + $0x78] sm:$0xff] %vm370, %v1015
  %1037 = vst.msk [vmem:[#allocation2 + $0x80] sm:$0xff] %vm370, %v1016
  %1038 = vst.msk [vmem:[#allocation2 + $0x88] sm:$0xff] %vm370, %v1017
  %1039 = vst.msk [vmem:[#allocation2 + $0x90] sm:$0xff] %vm370, %v1018
  %1040 = vst.msk [vmem:[#allocation2 + $0x98] sm:$0xff] %vm370, %v1019
  %vm1041 = vcmask 257024
  %1042 = vst.msk [vmem:[#allocation2 + $0xa0] sm:$0xf] %vm1041, %v1020
  %v1043 = vld [vmem:[#allocation2] ss:$2 sm:$0xff]
  %s1044 = scalar_lea.vmem [#allocation2], 16
  %v1045 = vld [vmem:[%s1044] ss:$2 sm:$0xff]
  %s1046 = scalar_lea.vmem [#allocation2], 32
  %v1047 = vld [vmem:[%s1046] ss:$2 sm:$0xff]
  %s1048 = scalar_lea.vmem [#allocation2], 48
  %v1049 = vld [vmem:[%s1048] ss:$2 sm:$0xff]
  %s1050 = scalar_lea.vmem [#allocation2], 64
  %v1051 = vld [vmem:[%s1050] ss:$2 sm:$0xff]
  %s1052 = scalar_lea.vmem [#allocation2], 80
  %v1053 = vld [vmem:[%s1052] ss:$2 sm:$0x1]
  %v1059 = vrot.slane %v1043, 1
  %v1060 = vrot.slane %v1045, 1
  %v1061 = vsel %vm170, %v1059, %v1060
  %v1062 = vrot.slane %v1047, 1
  %v1063 = vsel %vm170, %v1060, %v1062
  %v1064 = vrot.slane %v1049, 1
  %v1065 = vsel %vm170, %v1062, %v1064
  %v1066 = vrot.slane %v1051, 1
  %v1067 = vsel %vm170, %v1064, %v1066
  %1068 = vrot.lane.b32.xlu0 %v1061, 32
  %v1069 = vpop.permute.xlu0 %1068
  %1070 = vrot.lane.b32.xlu0 %v1063, 32
  %v1071 = vpop.permute.xlu0 %1070
  %1072 = vrot.lane.b32.xlu0 %v1065, 32
  %v1073 = vpop.permute.xlu0 %1072
  %1074 = vrot.lane.b32.xlu0 %v1067, 32
  %v1075 = vpop.permute.xlu0 %1074
  %1076 = vrot.lane.b32.xlu0 %v1066, 32
  %v1077 = vpop.permute.xlu0 %1076
  %v1083 = vrot.slane %v1043, 2
  %v1084 = vrot.slane %v1045, 2
  %v1085 = vsel %vm279, %v1083, %v1084
  %v1086 = vrot.slane %v1047, 2
  %v1087 = vsel %vm279, %v1084, %v1086
  %v1088 = vrot.slane %v1049, 2
  %v1089 = vsel %vm279, %v1086, %v1088
  %v1090 = vrot.slane %v1051, 2
  %v1091 = vsel %vm279, %v1088, %v1090
  %1092 = vrot.lane.b32.xlu0 %v1085, 64
  %v1093 = vpop.permute.xlu0 %1092
  %1094 = vrot.lane.b32.xlu0 %v1087, 64
  %v1095 = vpop.permute.xlu0 %1094
  %1096 = vrot.lane.b32.xlu0 %v1089, 64
  %v1097 = vpop.permute.xlu0 %1096
  %1098 = vrot.lane.b32.xlu0 %v1091, 64
  %v1099 = vpop.permute.xlu0 %1098
  %1100 = vrot.lane.b32.xlu0 %v1090, 64
  %v1101 = vpop.permute.xlu0 %1100
  %vm1107 = vcmask 1044480
  %v1108 = vrot.slane %v1043, 3
  %v1109 = vrot.slane %v1045, 3
  %v1110 = vsel %vm1107, %v1108, %v1109
  %v1111 = vrot.slane %v1047, 3
  %v1112 = vsel %vm1107, %v1109, %v1111
  %v1113 = vrot.slane %v1049, 3
  %v1114 = vsel %vm1107, %v1111, %v1113
  %v1115 = vrot.slane %v1051, 3
  %v1116 = vsel %vm1107, %v1113, %v1115
  %1117 = vrot.lane.b32.xlu0 %v1110, 96
  %v1118 = vpop.permute.xlu0 %1117
  %1119 = vrot.lane.b32.xlu0 %v1112, 96
  %v1120 = vpop.permute.xlu0 %1119
  %1121 = vrot.lane.b32.xlu0 %v1114, 96
  %v1122 = vpop.permute.xlu0 %1121
  %1123 = vrot.lane.b32.xlu0 %v1116, 96
  %v1124 = vpop.permute.xlu0 %1123
  %1125 = vrot.lane.b32.xlu0 %v1115, 96
  %v1126 = vpop.permute.xlu0 %1125
  %vm1133 = vcmask 1043456
  %v1134 = vrot.slane %v1043, 4
  %v1135 = vrot.slane %v1045, 4
  %v1136 = vsel %vm1133, %v1134, %v1135
  %v1137 = vrot.slane %v1047, 4
  %v1138 = vsel %vm1133, %v1135, %v1137
  %v1139 = vrot.slane %v1049, 4
  %v1140 = vsel %vm1133, %v1137, %v1139
  %v1141 = vrot.slane %v1051, 4
  %v1142 = vsel %vm1133, %v1139, %v1141
  %v1143 = vrot.slane %v1053, 4
  %v1144 = vsel %vm1133, %v1141, %v1143
  %v1146 = vsel %vm370, %v1043, %v1069
  %v1147 = vsel %vm370, %v1045, %v1071
  %v1148 = vsel %vm370, %v1047, %v1073
  %v1149 = vsel %vm370, %v1049, %v1075
  %v1150 = vsel %vm370, %v1051, %v1077
  %vm1151 = vcmask 523264
  %v1152 = vsel %vm1151, %v1146, %v1093
  %v1153 = vsel %vm1151, %v1147, %v1095
  %v1154 = vsel %vm1151, %v1148, %v1097
  %v1155 = vsel %vm1151, %v1149, %v1099
  %v1156 = vsel %vm1151, %v1150, %v1101
  %vm1157 = vcmask 785408
  %v1158 = vsel %vm1157, %v1152, %v1118
  %v1159 = vsel %vm1157, %v1153, %v1120
  %v1160 = vsel %vm1157, %v1154, %v1122
  %v1161 = vsel %vm1157, %v1155, %v1124
  %v1162 = vsel %vm1157, %v1156, %v1126
  %s1163 = scalar_lea.vmem [#allocation2], 82
  %v1164 = vld [vmem:[%s1163] ss:$2 sm:$0xff]
  %s1165 = scalar_lea.vmem [#allocation2], 98
  %v1166 = vld [vmem:[%s1165] ss:$2 sm:$0xff]
  %s1167 = scalar_lea.vmem [#allocation2], 114
  %v1168 = vld [vmem:[%s1167] ss:$2 sm:$0xff]
  %s1169 = scalar_lea.vmem [#allocation2], 130
  %v1170 = vld [vmem:[%s1169] ss:$2 sm:$0xff]
  %s1171 = scalar_lea.vmem [#allocation2], 146
  %v1172 = vld [vmem:[%s1171] ss:$2 sm:$0xff]
  %s1173 = scalar_lea.vmem [#allocation2], 162
  %v1174 = vld [vmem:[%s1173] ss:$2 sm:$0x1]
  %v1180 = vrot.slane %v1164, 1
  %v1181 = vrot.slane %v1166, 1
  %v1182 = vsel %vm170, %v1180, %v1181
  %v1183 = vrot.slane %v1168, 1
  %v1184 = vsel %vm170, %v1181, %v1183
  %v1185 = vrot.slane %v1170, 1
  %v1186 = vsel %vm170, %v1183, %v1185
  %v1187 = vrot.slane %v1172, 1
  %v1188 = vsel %vm170, %v1185, %v1187
  %1189 = vrot.lane.b32.xlu0 %v1182, 32
  %v1190 = vpop.permute.xlu0 %1189
  %1191 = vrot.lane.b32.xlu0 %v1184, 32
  %v1192 = vpop.permute.xlu0 %1191
  %1193 = vrot.lane.b32.xlu0 %v1186, 32
  %v1194 = vpop.permute.xlu0 %1193
  %1195 = vrot.lane.b32.xlu0 %v1188, 32
  %v1196 = vpop.permute.xlu0 %1195
  %1197 = vrot.lane.b32.xlu0 %v1187, 32
  %v1198 = vpop.permute.xlu0 %1197
  %v1204 = vrot.slane %v1164, 2
  %v1205 = vrot.slane %v1166, 2
  %v1206 = vsel %vm279, %v1204, %v1205
  %v1207 = vrot.slane %v1168, 2
  %v1208 = vsel %vm279, %v1205, %v1207
  %v1209 = vrot.slane %v1170, 2
  %v1210 = vsel %vm279, %v1207, %v1209
  %v1211 = vrot.slane %v1172, 2
  %v1212 = vsel %vm279, %v1209, %v1211
  %1213 = vrot.lane.b32.xlu0 %v1206, 64
  %v1214 = vpop.permute.xlu0 %1213
  %1215 = vrot.lane.b32.xlu0 %v1208, 64
  %v1216 = vpop.permute.xlu0 %1215
  %1217 = vrot.lane.b32.xlu0 %v1210, 64
  %v1218 = vpop.permute.xlu0 %1217
  %1219 = vrot.lane.b32.xlu0 %v1212, 64
  %v1220 = vpop.permute.xlu0 %1219
  %1221 = vrot.lane.b32.xlu0 %v1211, 64
  %v1222 = vpop.permute.xlu0 %1221
  %v1228 = vrot.slane %v1164, 3
  %v1229 = vrot.slane %v1166, 3
  %v1230 = vsel %vm1107, %v1228, %v1229
  %v1231 = vrot.slane %v1168, 3
  %v1232 = vsel %vm1107, %v1229, %v1231
  %v1233 = vrot.slane %v1170, 3
  %v1234 = vsel %vm1107, %v1231, %v1233
  %v1235 = vrot.slane %v1172, 3
  %v1236 = vsel %vm1107, %v1233, %v1235
  %1237 = vrot.lane.b32.xlu0 %v1230, 96
  %v1238 = vpop.permute.xlu0 %1237
  %1239 = vrot.lane.b32.xlu0 %v1232, 96
  %v1240 = vpop.permute.xlu0 %1239
  %1241 = vrot.lane.b32.xlu0 %v1234, 96
  %v1242 = vpop.permute.xlu0 %1241
  %1243 = vrot.lane.b32.xlu0 %v1236, 96
  %v1244 = vpop.permute.xlu0 %1243
  %1245 = vrot.lane.b32.xlu0 %v1235, 96
  %v1246 = vpop.permute.xlu0 %1245
  %v1253 = vrot.slane %v1164, 4
  %v1254 = vrot.slane %v1166, 4
  %v1255 = vsel %vm1133, %v1253, %v1254
  %v1256 = vrot.slane %v1168, 4
  %v1257 = vsel %vm1133, %v1254, %v1256
  %v1258 = vrot.slane %v1170, 4
  %v1259 = vsel %vm1133, %v1256, %v1258
  %v1260 = vrot.slane %v1172, 4
  %v1261 = vsel %vm1133, %v1258, %v1260
  %v1262 = vrot.slane %v1174, 4
  %v1263 = vsel %vm1133, %v1260, %v1262
  %v1264 = vsel %vm370, %v1164, %v1190
  %v1265 = vsel %vm370, %v1166, %v1192
  %v1266 = vsel %vm370, %v1168, %v1194
  %v1267 = vsel %vm370, %v1170, %v1196
  %v1268 = vsel %vm370, %v1172, %v1198
  %v1269 = vsel %vm1151, %v1264, %v1214
  %v1270 = vsel %vm1151, %v1265, %v1216
  %v1271 = vsel %vm1151, %v1266, %v1218
  %v1272 = vsel %vm1151, %v1267, %v1220
  %v1273 = vsel %vm1151, %v1268, %v1222
  %v1274 = vsel %vm1157, %v1269, %v1238
  %v1275 = vsel %vm1157, %v1270, %v1240
  %v1276 = vsel %vm1157, %v1271, %v1242
  %v1277 = vsel %vm1157, %v1272, %v1244
  %v1278 = vsel %vm1157, %v1273, %v1246
  %v1284 = vrot.slane %v1274, 3
  %v1285 = vrot.slane %v1255, 3
  %v1286 = vrot.slane %v1275, 3
  %v1287 = vsel %vm1107, %v1284, %v1286
  %v1288 = vrot.slane %v1257, 3
  %v1289 = vsel %vm1107, %v1285, %v1288
  %v1290 = vrot.slane %v1276, 3
  %v1291 = vsel %vm1107, %v1286, %v1290
  %v1292 = vrot.slane %v1259, 3
  %v1293 = vsel %vm1107, %v1288, %v1292
  %v1294 = vrot.slane %v1277, 3
  %v1295 = vsel %vm1107, %v1290, %v1294
  %v1296 = vrot.slane %v1261, 3
  %v1297 = vsel %vm1107, %v1292, %v1296
  %v1298 = vrot.slane %v1278, 3
  %v1299 = vsel %vm1107, %v1294, %v1298
  %v1300 = vrot.slane %v1263, 3
  %v1301 = vsel %vm1107, %v1296, %v1300
  %v1309 = vsel %vm1107, %v1162, %v1284
  %v1310 = vsel %vm1107, %v1144, %v1285
  %v1311 = vld [vmem:[%s4] sm:$0xff]
  %v1312 = vld [vmem:[%s4 + $0x8] sm:$0xff]
  %v1313 = vld [vmem:[%s4 + $0x10] sm:$0xff]
  %v1314 = vld [vmem:[%s4 + $0x18] sm:$0xff]
  %v1315 = vld [vmem:[%s4 + $0x20] sm:$0xff]
  %v1316 = vld [vmem:[%s4 + $0x28] sm:$0xff]
  %v1317 = vld [vmem:[%s4 + $0x30] sm:$0xff]
  %v1318 = vld [vmem:[%s4 + $0x38] sm:$0xff]
  %v1319 = vld [vmem:[%s4 + $0x40] sm:$0xff]
  %v1320 = vld [vmem:[%s4 + $0x48] sm:$0xff]
  %v1321 = vld [vmem:[%s4 + $0x50] sm:$0xff]
  %v1322 = vld [vmem:[%s4 + $0x58] sm:$0xff]
  %v1323 = vld [vmem:[%s4 + $0x60] sm:$0xff]
  %v1324 = vld [vmem:[%s4 + $0x68] sm:$0xff]
  %v1325 = vld [vmem:[%s4 + $0x70] sm:$0xff]
  %v1326 = vld [vmem:[%s4 + $0x78] sm:$0xff]
  %v1327 = vld [vmem:[%s4 + $0x80] sm:$0xff]
  %v1328 = vld [vmem:[%s4 + $0x88] sm:$0xff]
  %v1329 = vld [vmem:[%s4 + $0x90] sm:$0xff]
  %v1330 = vld [vmem:[%s4 + $0x98] sm:$0xff]
  %v1331 = vld [vmem:[%s5] sm:$0x1]
  %v1333 = vlaneseq
  %v1334 = vshrl.u32 %v1333, 7
  %v1335 = vsub.s32 0, %v1334
  %v1336 = vrot.slane %v1331, %v1335
  %v1338 = vsel %vm370, %v1136, 0
  %v1340 = vsel %vm370, %v1138, 0
  %v1342 = vsel %vm370, %v1140, 0
  %v1344 = vsel %vm370, %v1142, 0
  %v1347 = vsel %vm370, %v1310, 0
  %v1349 = vsel %vm370, %v1289, 0
  %v1351 = vsel %vm370, %v1293, 0
  %v1353 = vsel %vm370, %v1297, 0
  %v1355 = vsel %vm370, %v1301, 0
  %v1357 = vsel %vm370, %v1300, 0
  %1359 = vmatprep.subr.mxu0 0.0
  %1360 = vmatpush1.msra.mxu0 %v1311
  %1361 = vmatprep.subr.mxu0 0.0
  %1362 = vmatpush1.msra.mxu0 %v1312
  %1363 = vmatprep.subr.mxu0 0.0
  %1364 = vmatpush1.msra.mxu0 %v1313
  %1365 = vmatprep.subr.mxu0 0.0
  %1366 = vmatpush1.msra.mxu0 %v1314
  %1367 = vmatprep.subr.mxu0 0.0
  %1368 = vmatpush1.msra.mxu0 %v1315
  %1369 = vmatprep.subr.mxu0 0.0
  %1370 = vmatpush1.msra.mxu0 %v1316
  %1371 = vmatprep.subr.mxu0 0.0
  %1372 = vmatpush1.msra.mxu0 %v1317
  %1373 = vmatprep.subr.mxu0 0.0
  %1374 = vmatpush1.msra.mxu0 %v1318
  %1375 = vmatprep.subr.mxu0 0.0
  %1376 = vmatpush1.msra.mxu0 %v1319
  %1377 = vmatprep.subr.mxu0 0.0
  %1378 = vmatpush1.msra.mxu0 %v1320
  %1379 = vmatprep.subr.mxu0 0.0
  %1380 = vmatpush1.msra.mxu0 %v1321
  %1381 = vmatprep.subr.mxu0 0.0
  %1382 = vmatpush1.msra.mxu0 %v1322
  %1383 = vmatprep.subr.mxu0 0.0
  %1384 = vmatpush1.msra.mxu0 %v1323
  %1385 = vmatprep.subr.mxu0 0.0
  %1386 = vmatpush1.msra.mxu0 %v1324
  %1387 = vmatprep.subr.mxu0 0.0
  %1388 = vmatpush1.msra.mxu0 %v1325
  %1389 = vmatprep.subr.mxu0 0.0
  %1390 = vmatpush1.msra.mxu0 %v1326
  %1391 = vmatprep.subr.mxu0 0.0
  %1392 = vmatpush1.msra.mxu0 %v1327
  %1393 = vmatprep.subr.mxu0 0.0
  %1394 = vmatpush1.msra.mxu0 %v1328
  %1395 = vmatprep.subr.mxu0 0.0
  %1396 = vmatpush1.msra.mxu0 %v1329
  %1397 = vmatprep.subr.mxu0 0.0
  %1398 = vmatpush1.msra.mxu0 %v1330
  %1399 = vmatprep.subr.mxu0 0.0
  %1400 = vmatpush1.msra.mxu0 0.0
  %1401 = vmatprep.subr.mxu0 0.0
  %1402 = vmatpush1.msra.mxu0 0.0
  %1403 = vmatprep.subr.mxu0 0.0
  %1404 = vmatpush1.msra.mxu0 0.0
  %1405 = vmatprep.subr.mxu0 0.0
  %1406 = vmatpush1.msra.mxu0 0.0
  %1407 = vmatprep.subr.mxu0 0.0
  %1408 = vmatpush1.msra.mxu0 0.0
  %1409 = vmatprep.subr.mxu0 0.0
  %1410 = vmatpush1.msra.mxu0 0.0
  %1411 = vmatprep.subr.mxu0 0.0
  %1412 = vmatpush1.msra.mxu0 0.0
  %1413 = vmatprep.subr.mxu0 0.0
  %1414 = vmatpush1.msra.mxu0 0.0
  %1415 = vmatprep.subr.mxu0 0.0
  %1416 = vmatpush1.msra.mxu0 0.0
  %1417 = vmatprep.subr.mxu0 0.0
  %1418 = vmatpush1.msra.mxu0 0.0
  %1419 = vmatprep.subr.mxu0 0.0
  %1420 = vmatpush1.msra.mxu0 0.0
  %1421 = vmatprep.subr.mxu0 0.0
  %1422 = vmatpush1.msra.mxu0 0.0
  %1423 = vmatprep.mubr.f32.mxu0 %v1338
  %1424 = vmatmul.mubr.f32.gmra.mrb[0].mxu0 %v1158
  %v1425 = vpop.f32.mrb[0].mxu0
  %v1426 = vadd.f32 %v1336, %v1425
  %v1427 = vpop.f32.mrb[0].mxu0
  %1428 = vmatprep.mubr.f32.mxu0 %v1340
  %1429 = vmatmul.mubr.f32.gmra.mrb[0].mxu0 %v1159
  %v1430 = vpop.f32.mrb[0].mxu0
  %v1431 = vadd.f32 %v1336, %v1430
  %v1432 = vpop.f32.mrb[0].mxu0
  %1433 = vmatprep.mubr.f32.mxu0 %v1342
  %1434 = vmatmul.mubr.f32.gmra.mrb[0].mxu0 %v1160
  %v1435 = vpop.f32.mrb[0].mxu0
  %v1436 = vadd.f32 %v1336, %v1435
  %v1437 = vpop.f32.mrb[0].mxu0
  %1438 = vmatprep.mubr.f32.mxu0 %v1344
  %1439 = vmatmul.mubr.f32.gmra.mrb[0].mxu0 %v1161
  %v1440 = vpop.f32.mrb[0].mxu0
  %v1441 = vadd.f32 %v1336, %v1440
  %v1442 = vpop.f32.mrb[0].mxu0
  %1443 = vmatprep.mubr.f32.mxu0 %v1347
  %1444 = vmatmul.mubr.f32.gmra.mrb[0].mxu0 %v1309
  %v1445 = vpop.f32.mrb[0].mxu0
  %v1446 = vadd.f32 %v1336, %v1445
  %v1447 = vpop.f32.mrb[0].mxu0
  %1448 = vmatprep.mubr.f32.mxu0 %v1349
  %1449 = vmatmul.mubr.f32.gmra.mrb[0].mxu0 %v1287
  %v1450 = vpop.f32.mrb[0].mxu0
  %v1451 = vadd.f32 %v1336, %v1450
  %v1452 = vpop.f32.mrb[0].mxu0
  %1453 = vmatprep.mubr.f32.mxu0 %v1351
  %1454 = vmatmul.mubr.f32.gmra.mrb[0].mxu0 %v1291
  %v1455 = vpop.f32.mrb[0].mxu0
  %v1456 = vadd.f32 %v1336, %v1455
  %v1457 = vpop.f32.mrb[0].mxu0
  %1458 = vmatprep.mubr.f32.mxu0 %v1353
  %1459 = vmatmul.mubr.f32.gmra.mrb[0].mxu0 %v1295
  %v1460 = vpop.f32.mrb[0].mxu0
  %v1461 = vadd.f32 %v1336, %v1460
  %v1462 = vpop.f32.mrb[0].mxu0
  %1463 = vmatprep.mubr.f32.mxu0 %v1355
  %1464 = vmatmul.mubr.f32.gmra.mrb[0].mxu0 %v1299
  %v1465 = vpop.f32.mrb[0].mxu0
  %v1466 = vadd.f32 %v1336, %v1465
  %v1467 = vpop.f32.mrb[0].mxu0
  %1468 = vmatprep.mubr.f32.mxu0 %v1357
  %1469 = vmatmul.mubr.f32.gmra.mrb[0].mxu0 %v1298
  %v1470 = vpop.f32.mrb[0].mxu0
  %v1471 = vadd.f32 %v1336, %v1470
  %v1472 = vpop.f32.mrb[0].mxu0
  %1473 = vdwg.mxu0
  %vm1474 = vcmp.gt.f32.partialorder %v1426, 0.0
  %vm1475 = vcmp.gt.f32.partialorder %v1431, 0.0
  %vm1476 = vcmp.gt.f32.partialorder %v1436, 0.0
  %vm1477 = vcmp.gt.f32.partialorder %v1441, 0.0
  %vm1478 = vcmp.gt.f32.partialorder %v1446, 0.0
  %vm1479 = vcmp.gt.f32.partialorder %v1451, 0.0
  %vm1480 = vcmp.gt.f32.partialorder %v1456, 0.0
  %vm1481 = vcmp.gt.f32.partialorder %v1461, 0.0
  %vm1482 = vcmp.gt.f32.partialorder %v1466, 0.0
  %vm1483 = vcmp.gt.f32.partialorder %v1471, 0.0
  %v1484 = vmul.f32 %v1426, 0.01
  %v1485 = vmul.f32 %v1431, 0.01
  %v1486 = vmul.f32 %v1436, 0.01
  %v1487 = vmul.f32 %v1441, 0.01
  %v1488 = vmul.f32 %v1446, 0.01
  %v1489 = vmul.f32 %v1451, 0.01
  %v1490 = vmul.f32 %v1456, 0.01
  %v1491 = vmul.f32 %v1461, 0.01
  %v1492 = vmul.f32 %v1466, 0.01
  %v1493 = vmul.f32 %v1471, 0.01
  %v1494 = vsel %vm1474, %v1426, %v1484
  %v1495 = vsel %vm1475, %v1431, %v1485
  %v1496 = vsel %vm1476, %v1436, %v1486
  %v1497 = vsel %vm1477, %v1441, %v1487
  %v1498 = vsel %vm1478, %v1446, %v1488
  %v1499 = vsel %vm1479, %v1451, %v1489
  %v1500 = vsel %vm1480, %v1456, %v1490
  %v1501 = vsel %vm1481, %v1461, %v1491
  %v1502 = vsel %vm1482, %v1466, %v1492
  %v1503 = vsel %vm1483, %v1471, %v1493
  %1504 = vst.msk [vmem:[#allocation3] sm:$0xff] %vm1151, %v1494
  %1505 = vst.msk [vmem:[#allocation3 + $0x8] sm:$0xff] %vm1151, %v1495
  %1506 = vst.msk [vmem:[#allocation3 + $0x10] sm:$0xff] %vm1151, %v1496
  %1507 = vst.msk [vmem:[#allocation3 + $0x18] sm:$0xff] %vm1151, %v1497
  %1508 = vst.msk [vmem:[#allocation3 + $0x20] sm:$0xff] %vm1151, %v1498
  %1509 = vst.msk [vmem:[#allocation3 + $0x28] sm:$0xff] %vm1151, %v1499
  %1510 = vst.msk [vmem:[#allocation3 + $0x30] sm:$0xff] %vm1151, %v1500
  %1511 = vst.msk [vmem:[#allocation3 + $0x38] sm:$0xff] %vm1151, %v1501
  %1512 = vst.msk [vmem:[#allocation3 + $0x40] sm:$0xff] %vm1151, %v1502
  %vm1513 = vcmask 517120
  %1514 = vst.msk [vmem:[#allocation3 + $0x48] sm:$0x3] %vm1513, %v1503
  %v1515 = vld [vmem:[#allocation3] ss:$2 sm:$0xff]
  %s1516 = scalar_lea.vmem [#allocation3], 16
  %v1517 = vld [vmem:[%s1516] ss:$2 sm:$0xff]
  %s1518 = scalar_lea.vmem [#allocation3], 32
  %v1519 = vld [vmem:[%s1518] ss:$2 sm:$0x7]
  %v1522 = vrot.slane %v1515, 2
  %v1523 = vrot.slane %v1517, 2
  %v1524 = vsel %vm279, %v1522, %v1523
  %1525 = vrot.lane.b32.xlu0 %v1524, 64
  %v1526 = vpop.permute.xlu0 %1525
  %1527 = vrot.lane.b32.xlu0 %v1523, 64
  %v1528 = vpop.permute.xlu0 %1527
  %v1531 = vrot.slane %v1515, 4
  %v1532 = vrot.slane %v1517, 4
  %v1533 = vsel %vm1133, %v1531, %v1532
  %v1537 = vrot.slane %v1515, 6
  %v1538 = vrot.slane %v1517, 6
  %v1539 = vsel %vm698, %v1537, %v1538
  %v1540 = vrot.slane %v1519, 6
  %v1541 = vsel %vm698, %v1538, %v1540
  %1542 = vrot.lane.b32.xlu0 %v1539, 64
  %v1543 = vpop.permute.xlu0 %1542
  %1544 = vrot.lane.b32.xlu0 %v1541, 64
  %v1545 = vpop.permute.xlu0 %1544
  %v1548 = vsel %vm1151, %v1515, %v1526
  %v1549 = vsel %vm1151, %v1517, %v1528
  %v1550 = vsel %vm1151, %v1533, %v1543
  %v1551 = vsel %vm1151, %v1532, %v1545
  %s1552 = scalar_lea.vmem [#allocation3], 37
  %v1553 = vld [vmem:[%s1552] ss:$2 sm:$0xff]
  %s1554 = scalar_lea.vmem [#allocation3], 53
  %v1555 = vld [vmem:[%s1554] ss:$2 sm:$0xff]
  %s1556 = scalar_lea.vmem [#allocation3], 69
  %v1557 = vld [vmem:[%s1556] ss:$2 sm:$0x7]
  %v1560 = vrot.slane %v1553, 2
  %v1561 = vrot.slane %v1555, 2
  %v1562 = vsel %vm279, %v1560, %v1561
  %1563 = vrot.lane.b32.xlu0 %v1562, 64
  %v1564 = vpop.permute.xlu0 %1563
  %1565 = vrot.lane.b32.xlu0 %v1561, 64
  %v1566 = vpop.permute.xlu0 %1565
  %v1569 = vrot.slane %v1553, 4
  %v1570 = vrot.slane %v1555, 4
  %v1571 = vsel %vm1133, %v1569, %v1570
  %v1575 = vrot.slane %v1553, 6
  %v1576 = vrot.slane %v1555, 6
  %v1577 = vsel %vm698, %v1575, %v1576
  %v1578 = vrot.slane %v1557, 6
  %v1579 = vsel %vm698, %v1576, %v1578
  %1580 = vrot.lane.b32.xlu0 %v1577, 64
  %v1581 = vpop.permute.xlu0 %1580
  %1582 = vrot.lane.b32.xlu0 %v1579, 64
  %v1583 = vpop.permute.xlu0 %1582
  %v1586 = vsel %vm1151, %v1553, %v1564
  %v1587 = vsel %vm1151, %v1555, %v1566
  %v1588 = vsel %vm1151, %v1571, %v1581
  %v1589 = vsel %vm1151, %v1570, %v1583
  %vm1594 = vcmask 1042432
  %v1595 = vrot.slane %v1586, 5
  %v1596 = vrot.slane %v1588, 5
  %v1597 = vrot.slane %v1555, 5
  %v1598 = vrot.slane %v1587, 5
  %v1599 = vsel %vm1594, %v1595, %v1598
  %v1600 = vrot.slane %v1589, 5
  %v1601 = vsel %vm1594, %v1596, %v1600
  %v1602 = vrot.slane %v1557, 5
  %v1603 = vsel %vm1594, %v1597, %v1602
  %v1609 = vsel %vm1594, %v1549, %v1595
  %v1610 = vsel %vm1594, %v1551, %v1596
  %v1611 = vsel %vm1594, %v1519, %v1597
  %v1612 = vld [vmem:[%s6] sm:$0xff]
  %v1613 = vld [vmem:[%s6 + $0x8] sm:$0xff]
  %v1614 = vld [vmem:[%s6 + $0x10] sm:$0xff]
  %v1615 = vld [vmem:[%s6 + $0x18] sm:$0xff]
  %v1616 = vld [vmem:[%s6 + $0x20] sm:$0xff]
  %v1617 = vld [vmem:[%s6 + $0x28] sm:$0xff]
  %v1618 = vld [vmem:[%s6 + $0x30] sm:$0xff]
  %v1619 = vld [vmem:[%s6 + $0x38] sm:$0xff]
  %v1620 = vld [vmem:[%s6 + $0x40] sm:$0xff]
  %v1621 = vld [vmem:[%s6 + $0x48] sm:$0xff]
  %v1622 = vld [vmem:[%s6 + $0x50] sm:$0xff]
  %v1623 = vld [vmem:[%s6 + $0x58] sm:$0xff]
  %v1624 = vld [vmem:[%s6 + $0x60] sm:$0xff]
  %v1625 = vld [vmem:[%s6 + $0x68] sm:$0xff]
  %v1626 = vld [vmem:[%s6 + $0x70] sm:$0xff]
  %v1627 = vld [vmem:[%s6 + $0x78] sm:$0xff]
  %v1628 = vld [vmem:[%s6 + $0x80] sm:$0xff]
  %v1629 = vld [vmem:[%s6 + $0x88] sm:$0xff]
  %v1630 = vld [vmem:[%s6 + $0x90] sm:$0xff]
  %v1631 = vld [vmem:[%s6 + $0x98] sm:$0xff]
  %v1632 = vld [vmem:[%s6 + $0xa0] sm:$0xff]
  %v1633 = vld [vmem:[%s6 + $0xa8] sm:$0xff]
  %v1634 = vld [vmem:[%s6 + $0xb0] sm:$0xff]
  %v1635 = vld [vmem:[%s6 + $0xb8] sm:$0xff]
  %v1636 = vld [vmem:[%s6 + $0xc0] sm:$0xff]
  %v1637 = vld [vmem:[%s6 + $0xc8] sm:$0xff]
  %v1638 = vld [vmem:[%s6 + $0xd0] sm:$0xff]
  %v1639 = vld [vmem:[%s6 + $0xd8] sm:$0xff]
  %v1640 = vld [vmem:[%s6 + $0xe0] sm:$0xff]
  %v1641 = vld [vmem:[%s6 + $0xe8] sm:$0xff]
  %v1642 = vld [vmem:[%s6 + $0xf0] sm:$0xff]
  %v1643 = vld [vmem:[%s6 + $0xf8] sm:$0xff]
  %v1644 = vld [vmem:[%s6 + $0x100] sm:$0xff]
  %v1645 = vld [vmem:[%s6 + $0x108] sm:$0xff]
  %v1646 = vld [vmem:[%s6 + $0x110] sm:$0xff]
  %v1647 = vld [vmem:[%s6 + $0x118] sm:$0xff]
  %v1648 = vld [vmem:[%s6 + $0x120] sm:$0xff]
  %v1649 = vld [vmem:[%s6 + $0x128] sm:$0xff]
  %v1650 = vld [vmem:[%s6 + $0x130] sm:$0xff]
  %v1651 = vld [vmem:[%s6 + $0x138] sm:$0xff]
  %v1652 = vld [vmem:[%s7] sm:$0x1]
  %v1654 = vlaneseq
  %v1655 = vshrl.u32 %v1654, 7
  %v1656 = vsub.s32 0, %v1655
  %v1657 = vrot.slane %v1652, %v1656
  %v1659 = vsel %vm1151, %v1517, 0
  %v1662 = vsel %vm1151, %v1611, 0
  %v1664 = vsel %vm1151, %v1603, 0
  %1666 = vmatprep.subr.mxu0 0.0
  %1667 = vmatpush1.msra.mxu0 %v1612
  %1668 = vmatprep.subr.mxu0 0.0
  %1669 = vmatpush1.msra.mxu0 %v1613
  %1670 = vmatprep.subr.mxu0 0.0
  %1671 = vmatpush1.msra.mxu0 %v1614
  %1672 = vmatprep.subr.mxu0 0.0
  %1673 = vmatpush1.msra.mxu0 %v1615
  %1674 = vmatprep.subr.mxu0 0.0
  %1675 = vmatpush1.msra.mxu0 %v1616
  %1676 = vmatprep.subr.mxu0 0.0
  %1677 = vmatpush1.msra.mxu0 %v1617
  %1678 = vmatprep.subr.mxu0 0.0
  %1679 = vmatpush1.msra.mxu0 %v1618
  %1680 = vmatprep.subr.mxu0 0.0
  %1681 = vmatpush1.msra.mxu0 %v1619
  %1682 = vmatprep.subr.mxu0 0.0
  %1683 = vmatpush1.msra.mxu0 %v1620
  %1684 = vmatprep.subr.mxu0 0.0
  %1685 = vmatpush1.msra.mxu0 %v1621
  %1686 = vmatprep.subr.mxu0 0.0
  %1687 = vmatpush1.msra.mxu0 %v1622
  %1688 = vmatprep.subr.mxu0 0.0
  %1689 = vmatpush1.msra.mxu0 %v1623
  %1690 = vmatprep.subr.mxu0 0.0
  %1691 = vmatpush1.msra.mxu0 %v1624
  %1692 = vmatprep.subr.mxu0 0.0
  %1693 = vmatpush1.msra.mxu0 %v1625
  %1694 = vmatprep.subr.mxu0 0.0
  %1695 = vmatpush1.msra.mxu0 %v1626
  %1696 = vmatprep.subr.mxu0 0.0
  %1697 = vmatpush1.msra.mxu0 %v1627
  %1698 = vmatprep.subr.mxu0 0.0
  %1699 = vmatpush1.msra.mxu0 %v1628
  %1700 = vmatprep.subr.mxu0 0.0
  %1701 = vmatpush1.msra.mxu0 %v1629
  %1702 = vmatprep.subr.mxu0 0.0
  %1703 = vmatpush1.msra.mxu0 %v1630
  %1704 = vmatprep.subr.mxu0 0.0
  %1705 = vmatpush1.msra.mxu0 %v1631
  %1706 = vmatprep.subr.mxu0 0.0
  %1707 = vmatpush1.msra.mxu0 %v1632
  %1708 = vmatprep.subr.mxu0 0.0
  %1709 = vmatpush1.msra.mxu0 %v1633
  %1710 = vmatprep.subr.mxu0 0.0
  %1711 = vmatpush1.msra.mxu0 %v1634
  %1712 = vmatprep.subr.mxu0 0.0
  %1713 = vmatpush1.msra.mxu0 %v1635
  %1714 = vmatprep.subr.mxu0 0.0
  %1715 = vmatpush1.msra.mxu0 %v1636
  %1716 = vmatprep.subr.mxu0 0.0
  %1717 = vmatpush1.msra.mxu0 %v1637
  %1718 = vmatprep.subr.mxu0 0.0
  %1719 = vmatpush1.msra.mxu0 %v1638
  %1720 = vmatprep.subr.mxu0 0.0
  %1721 = vmatpush1.msra.mxu0 %v1639
  %1722 = vmatprep.subr.mxu0 0.0
  %1723 = vmatpush1.msra.mxu0 %v1640
  %1724 = vmatprep.subr.mxu0 0.0
  %1725 = vmatpush1.msra.mxu0 %v1641
  %1726 = vmatprep.subr.mxu0 0.0
  %1727 = vmatpush1.msra.mxu0 %v1642
  %1728 = vmatprep.subr.mxu0 0.0
  %1729 = vmatpush1.msra.mxu0 %v1643
  %1730 = vmatprep.mubr.f32.mxu0 %v1550
  %1731 = vmatmul.mubr.f32.gmra.mrb[0].mxu0 %v1548
  %v1732 = vpop.f32.mrb[0].mxu0
  %v1733 = vadd.f32 %v1657, %v1732
  %v1734 = vpop.f32.mrb[0].mxu0
  %1735 = vmatprep.mubr.f32.mxu0 %v1610
  %1736 = vmatmul.mubr.f32.gmra.mrb[0].mxu0 %v1609
  %v1737 = vpop.f32.mrb[0].mxu0
  %v1738 = vadd.f32 %v1657, %v1737
  %v1739 = vpop.f32.mrb[0].mxu0
  %1740 = vmatprep.mubr.f32.mxu0 %v1601
  %1741 = vmatmul.mubr.f32.gmra.mrb[0].mxu0 %v1599
  %v1742 = vpop.f32.mrb[0].mxu0
  %v1743 = vadd.f32 %v1657, %v1742
  %v1744 = vpop.f32.mrb[0].mxu0
  %1745 = vdwg.mxu0
  %1746 = vmatprep.subr.mxu0 0.0
  %1747 = vmatpush1.msra.mxu0 %v1644
  %1748 = vmatprep.subr.mxu0 0.0
  %1749 = vmatpush1.msra.mxu0 %v1645
  %1750 = vmatprep.subr.mxu0 0.0
  %1751 = vmatpush1.msra.mxu0 %v1646
  %1752 = vmatprep.subr.mxu0 0.0
  %1753 = vmatpush1.msra.mxu0 %v1647
  %1754 = vmatprep.subr.mxu0 0.0
  %1755 = vmatpush1.msra.mxu0 %v1648
  %1756 = vmatprep.subr.mxu0 0.0
  %1757 = vmatpush1.msra.mxu0 %v1649
  %1758 = vmatprep.subr.mxu0 0.0
  %1759 = vmatpush1.msra.mxu0 %v1650
  %1760 = vmatprep.subr.mxu0 0.0
  %1761 = vmatpush1.msra.mxu0 %v1651
  %1762 = vmatprep.subr.mxu0 0.0
  %1763 = vmatpush1.msra.mxu0 0.0
  %1764 = vmatprep.subr.mxu0 0.0
  %1765 = vmatpush1.msra.mxu0 0.0
  %1766 = vmatprep.subr.mxu0 0.0
  %1767 = vmatpush1.msra.mxu0 0.0
  %1768 = vmatprep.subr.mxu0 0.0
  %1769 = vmatpush1.msra.mxu0 0.0
  %1770 = vmatprep.subr.mxu0 0.0
  %1771 = vmatpush1.msra.mxu0 0.0
  %1772 = vmatprep.subr.mxu0 0.0
  %1773 = vmatpush1.msra.mxu0 0.0
  %1774 = vmatprep.subr.mxu0 0.0
  %1775 = vmatpush1.msra.mxu0 0.0
  %1776 = vmatprep.subr.mxu0 0.0
  %1777 = vmatpush1.msra.mxu0 0.0
  %1778 = vmatprep.subr.mxu0 0.0
  %1779 = vmatpush1.msra.mxu0 0.0
  %1780 = vmatprep.subr.mxu0 0.0
  %1781 = vmatpush1.msra.mxu0 0.0
  %1782 = vmatprep.subr.mxu0 0.0
  %1783 = vmatpush1.msra.mxu0 0.0
  %1784 = vmatprep.subr.mxu0 0.0
  %1785 = vmatpush1.msra.mxu0 0.0
  %1786 = vmatprep.subr.mxu0 0.0
  %1787 = vmatpush1.msra.mxu0 0.0
  %1788 = vmatprep.subr.mxu0 0.0
  %1789 = vmatpush1.msra.mxu0 0.0
  %1790 = vmatprep.subr.mxu0 0.0
  %1791 = vmatpush1.msra.mxu0 0.0
  %1792 = vmatprep.subr.mxu0 0.0
  %1793 = vmatpush1.msra.mxu0 0.0
  %1794 = vmatprep.subr.mxu0 0.0
  %1795 = vmatpush1.msra.mxu0 0.0
  %1796 = vmatprep.subr.mxu0 0.0
  %1797 = vmatpush1.msra.mxu0 0.0
  %1798 = vmatprep.subr.mxu0 0.0
  %1799 = vmatpush1.msra.mxu0 0.0
  %1800 = vmatprep.subr.mxu0 0.0
  %1801 = vmatpush1.msra.mxu0 0.0
  %1802 = vmatprep.subr.mxu0 0.0
  %1803 = vmatpush1.msra.mxu0 0.0
  %1804 = vmatprep.subr.mxu0 0.0
  %1805 = vmatpush1.msra.mxu0 0.0
  %1806 = vmatprep.subr.mxu0 0.0
  %1807 = vmatpush1.msra.mxu0 0.0
  %1808 = vmatprep.subr.mxu0 0.0
  %1809 = vmatpush1.msra.mxu0 0.0
  %1810 = vmatprep.mubr.f32.mxu0 0.0
  %1811 = vmatmul.mubr.f32.gmra.mrb[0].mxu0 %v1659
  %v1812 = vpop.f32.mrb[0].mxu0
  %v1813 = vadd.f32 %v1733, %v1812
  %v1814 = vpop.f32.mrb[0].mxu0
  %1815 = vmatprep.mubr.f32.mxu0 0.0
  %1816 = vmatmul.mubr.f32.gmra.mrb[0].mxu0 %v1662
  %v1817 = vpop.f32.mrb[0].mxu0
  %v1818 = vadd.f32 %v1738, %v1817
  %v1819 = vpop.f32.mrb[0].mxu0
  %1820 = vmatprep.mubr.f32.mxu0 0.0
  %1821 = vmatmul.mubr.f32.gmra.mrb[0].mxu0 %v1664
  %v1822 = vpop.f32.mrb[0].mxu0
  %v1823 = vadd.f32 %v1743, %v1822
  %v1824 = vpop.f32.mrb[0].mxu0
  %1825 = vdwg.mxu0
  %vm1826 = vcmp.gt.f32.partialorder %v1813, 0.0
  %vm1827 = vcmp.gt.f32.partialorder %v1818, 0.0
  %vm1828 = vcmp.gt.f32.partialorder %v1823, 0.0
  %v1829 = vmul.f32 %v1813, 0.01
  %v1830 = vmul.f32 %v1818, 0.01
  %v1831 = vmul.f32 %v1823, 0.01
  %v1832 = vsel %vm1826, %v1813, %v1829
  %v1833 = vsel %vm1827, %v1818, %v1830
  %v1834 = vsel %vm1828, %v1823, %v1831
  %v1836 = vrot.slane %v1832, 1
  %1837 = vrot.lane.b32.xlu0 %v1836, 64
  %v1838 = vpop.permute.xlu0 %1837
  %v1840 = vrot.slane %v1832, 2
  %v1842 = vrot.slane %v1832, 3
  %1843 = vrot.lane.b32.xlu0 %v1842, 64
  %v1844 = vpop.permute.xlu0 %1843
  %v1846 = vrot.slane %v1832, 4
  %v1848 = vrot.slane %v1832, 5
  %1849 = vrot.lane.b32.xlu0 %v1848, 64
  %v1850 = vpop.permute.xlu0 %1849
  %v1852 = vrot.slane %v1832, 6
  %v1854 = vrot.slane %v1832, 7
  %1855 = vrot.lane.b32.xlu0 %v1854, 64
  %v1856 = vpop.permute.xlu0 %1855
  %v1859 = vrot.slane %v1833, 1
  %1860 = vrot.lane.b32.xlu0 %v1859, 64
  %v1861 = vpop.permute.xlu0 %1860
  %v1863 = vrot.slane %v1833, 2
  %v1865 = vsel %vm1151, %v1832, %v1838
  %v1866 = vsel %vm1151, %v1840, %v1844
  %v1867 = vsel %vm1151, %v1846, %v1850
  %v1868 = vsel %vm1151, %v1852, %v1856
  %v1869 = vsel %vm1151, %v1833, %v1861
  %v1870 = vrot.slane %v1833, 3
  %1871 = vrot.lane.b32.xlu0 %v1870, 64
  %v1872 = vpop.permute.xlu0 %1871
  %v1874 = vrot.slane %v1833, 4
  %v1877 = vrot.slane %v1834, 5
  %1878 = vrot.lane.b32.xlu0 %v1877, 64
  %v1879 = vpop.permute.xlu0 %1878
  %v1881 = vrot.slane %v1834, 6
  %v1883 = vrot.slane %v1834, 7
  %1884 = vrot.lane.b32.xlu0 %v1883, 64
  %v1885 = vpop.permute.xlu0 %1884
  %v1887 = vrot.slane %v1834, 1
  %1888 = vrot.lane.b32.xlu0 %v1887, 64
  %v1889 = vpop.permute.xlu0 %1888
  %v1891 = vrot.slane %v1834, 2
  %v1892 = vsel %vm1151, %v1863, %v1872
  %v1893 = vsel %vm1151, %v1874, %v1879
  %v1894 = vsel %vm1151, %v1881, %v1885
  %v1895 = vsel %vm1151, %v1834, %v1889
  %v1901 = vrot.slane %v1869, 2
  %v1902 = vrot.slane %v1892, 2
  %v1903 = vrot.slane %v1893, 2
  %v1904 = vrot.slane %v1894, 2
  %v1905 = vrot.slane %v1895, 2
  %v1906 = vrot.slane %v1891, 2
  %vm1913 = vcmask 1040384
  %v1914 = vsel %vm1913, %v1865, %v1901
  %v1915 = vsel %vm1913, %v1866, %v1902
  %v1916 = vsel %vm1913, %v1867, %v1903
  %v1917 = vsel %vm1913, %v1868, %v1904
  %v1918 = vsel %vm1913, %v1869, %v1905
  %v1919 = vsel %vm1913, %v1863, %v1906
  %v1920 = vld [vmem:[%s8] sm:$0xff]
  %v1921 = vld [vmem:[%s8 + $0x8] sm:$0xff]
  %v1922 = vld [vmem:[%s8 + $0x10] sm:$0xff]
  %v1923 = vld [vmem:[%s8 + $0x18] sm:$0xff]
  %v1924 = vld [vmem:[%s8 + $0x20] sm:$0xff]
  %v1925 = vld [vmem:[%s8 + $0x28] sm:$0xff]
  %v1926 = vld [vmem:[%s8 + $0x30] sm:$0xff]
  %v1927 = vld [vmem:[%s8 + $0x38] sm:$0xff]
  %v1928 = vld [vmem:[%s8 + $0x40] sm:$0xff]
  %v1929 = vld [vmem:[%s8 + $0x48] sm:$0xff]
  %v1930 = vld [vmem:[%s8 + $0x50] sm:$0xff]
  %v1931 = vld [vmem:[%s8 + $0x58] sm:$0xff]
  %v1932 = vld [vmem:[%s8 + $0x60] sm:$0xff]
  %v1933 = vld [vmem:[%s8 + $0x68] sm:$0xff]
  %v1934 = vld [vmem:[%s8 + $0x70] sm:$0xff]
  %v1935 = vld [vmem:[%s8 + $0x78] sm:$0xff]
  %v1936 = vld [vmem:[%s8 + $0x80] sm:$0xff]
  %v1937 = vld [vmem:[%s8 + $0x88] sm:$0xff]
  %v1938 = vld [vmem:[%s8 + $0x90] sm:$0xff]
  %v1939 = vld [vmem:[%s8 + $0x98] sm:$0xff]
  %v1940 = vld [vmem:[%s8 + $0xa0] sm:$0xff]
  %v1941 = vld [vmem:[%s8 + $0xa8] sm:$0xff]
  %v1942 = vld [vmem:[%s8 + $0xb0] sm:$0xff]
  %v1943 = vld [vmem:[%s8 + $0xb8] sm:$0xff]
  %v1944 = vld [vmem:[%s8 + $0xc0] sm:$0xff]
  %v1945 = vld [vmem:[%s8 + $0xc8] sm:$0xff]
  %v1946 = vld [vmem:[%s8 + $0xd0] sm:$0xff]
  %v1947 = vld [vmem:[%s8 + $0xd8] sm:$0xff]
  %v1948 = vld [vmem:[%s8 + $0xe0] sm:$0xff]
  %v1949 = vld [vmem:[%s8 + $0xe8] sm:$0xff]
  %v1950 = vld [vmem:[%s8 + $0xf0] sm:$0xff]
  %v1951 = vld [vmem:[%s8 + $0xf8] sm:$0xff]
  %v1952 = vld [vmem:[%s8 + $0x100] sm:$0xff]
  %v1953 = vld [vmem:[%s8 + $0x108] sm:$0xff]
  %v1954 = vld [vmem:[%s8 + $0x110] sm:$0xff]
  %v1955 = vld [vmem:[%s8 + $0x118] sm:$0xff]
  %v1956 = vld [vmem:[%s8 + $0x120] sm:$0xff]
  %v1957 = vld [vmem:[%s8 + $0x128] sm:$0xff]
  %v1958 = vld [vmem:[%s8 + $0x130] sm:$0xff]
  %v1959 = vld [vmem:[%s8 + $0x138] sm:$0xff]
  %v1960 = vld [vmem:[%s8 + $0x140] sm:$0xff]
  %v1961 = vld [vmem:[%s8 + $0x148] sm:$0xff]
  %v1962 = vld [vmem:[%s8 + $0x150] sm:$0xff]
  %v1963 = vld [vmem:[%s8 + $0x158] sm:$0xff]
  %v1964 = vld [vmem:[%s8 + $0x160] sm:$0xff]
  %v1965 = vld [vmem:[%s8 + $0x168] sm:$0xff]
  %v1966 = vld [vmem:[%s8 + $0x170] sm:$0xff]
  %v1967 = vld [vmem:[%s8 + $0x178] sm:$0xff]
  %v1968 = vld [vmem:[%s8 + $0x180] sm:$0xff]
  %v1969 = vld [vmem:[%s8 + $0x188] sm:$0xff]
  %v1970 = vld [vmem:[%s8 + $0x190] sm:$0xff]
  %v1971 = vld [vmem:[%s8 + $0x198] sm:$0xff]
  %v1972 = vld [vmem:[%s8 + $0x1a0] sm:$0xff]
  %v1973 = vld [vmem:[%s8 + $0x1a8] sm:$0xff]
  %v1974 = vld [vmem:[%s8 + $0x1b0] sm:$0xff]
  %v1975 = vld [vmem:[%s8 + $0x1b8] sm:$0xff]
  %v1976 = vld [vmem:[%s8 + $0x1c0] sm:$0xff]
  %v1977 = vld [vmem:[%s8 + $0x1c8] sm:$0xff]
  %v1978 = vld [vmem:[%s8 + $0x1d0] sm:$0xff]
  %v1979 = vld [vmem:[%s8 + $0x1d8] sm:$0xff]
  %v1980 = vld [vmem:[%s8 + $0x1e0] sm:$0xff]
  %v1981 = vld [vmem:[%s8 + $0x1e8] sm:$0xff]
  %v1982 = vld [vmem:[%s8 + $0x1f0] sm:$0xff]
  %v1983 = vld [vmem:[%s8 + $0x1f8] sm:$0xff]
  %v1984 = vld [vmem:[%s8 + $0x200] sm:$0xff]
  %v1985 = vld [vmem:[%s8 + $0x208] sm:$0xff]
  %v1986 = vld [vmem:[%s8 + $0x210] sm:$0xff]
  %v1987 = vld [vmem:[%s8 + $0x218] sm:$0xff]
  %v1988 = vld [vmem:[%s8 + $0x220] sm:$0xff]
  %v1989 = vld [vmem:[%s8 + $0x228] sm:$0xff]
  %v1990 = vld [vmem:[%s8 + $0x230] sm:$0xff]
  %v1991 = vld [vmem:[%s8 + $0x238] sm:$0xff]
  %v1992 = vld [vmem:[%s8 + $0x240] sm:$0xff]
  %v1993 = vld [vmem:[%s8 + $0x248] sm:$0xff]
  %v1994 = vld [vmem:[%s8 + $0x250] sm:$0xff]
  %v1995 = vld [vmem:[%s8 + $0x258] sm:$0xff]
  %v1996 = vld [vmem:[%s8 + $0x260] sm:$0xff]
  %v1997 = vld [vmem:[%s8 + $0x268] sm:$0xff]
  %v1998 = vld [vmem:[%s8 + $0x270] sm:$0xff]
  %v1999 = vld [vmem:[%s8 + $0x278] sm:$0xff]
  %v2000 = vld [vmem:[%s8 + $0x280] sm:$0xff]
  %v2001 = vld [vmem:[%s8 + $0x288] sm:$0xff]
  %v2002 = vld [vmem:[%s8 + $0x290] sm:$0xff]
  %v2003 = vld [vmem:[%s8 + $0x298] sm:$0xff]
  %v2004 = vld [vmem:[%s8 + $0x2a0] sm:$0xff]
  %v2005 = vld [vmem:[%s8 + $0x2a8] sm:$0xff]
  %v2006 = vld [vmem:[%s8 + $0x2b0] sm:$0xff]
  %v2007 = vld [vmem:[%s8 + $0x2b8] sm:$0xff]
  %v2008 = vld [vmem:[%s9] sm:$0x1]
  %v2010 = vlaneseq
  %v2011 = vshrl.u32 %v2010, 7
  %v2012 = vsub.s32 0, %v2011
  %v2013 = vrot.slane %v2008, %v2012
  %v2016 = vsel %vm1151, %v1919, 0
  %2018 = vmatprep.subr.mxu0 0.0
  %2019 = vmatpush1.msra.mxu0 %v1920
  %2020 = vmatprep.subr.mxu0 0.0
  %2021 = vmatpush1.msra.mxu0 %v1921
  %2022 = vmatprep.subr.mxu0 0.0
  %2023 = vmatpush1.msra.mxu0 %v1922
  %2024 = vmatprep.subr.mxu0 0.0
  %2025 = vmatpush1.msra.mxu0 %v1923
  %2026 = vmatprep.subr.mxu0 0.0
  %2027 = vmatpush1.msra.mxu0 %v1924
  %2028 = vmatprep.subr.mxu0 0.0
  %2029 = vmatpush1.msra.mxu0 %v1925
  %2030 = vmatprep.subr.mxu0 0.0
  %2031 = vmatpush1.msra.mxu0 %v1926
  %2032 = vmatprep.subr.mxu0 0.0
  %2033 = vmatpush1.msra.mxu0 %v1927
  %2034 = vmatprep.subr.mxu0 0.0
  %2035 = vmatpush1.msra.mxu0 %v1928
  %2036 = vmatprep.subr.mxu0 0.0
  %2037 = vmatpush1.msra.mxu0 %v1929
  %2038 = vmatprep.subr.mxu0 0.0
  %2039 = vmatpush1.msra.mxu0 %v1930
  %2040 = vmatprep.subr.mxu0 0.0
  %2041 = vmatpush1.msra.mxu0 %v1931
  %2042 = vmatprep.subr.mxu0 0.0
  %2043 = vmatpush1.msra.mxu0 %v1932
  %2044 = vmatprep.subr.mxu0 0.0
  %2045 = vmatpush1.msra.mxu0 %v1933
  %2046 = vmatprep.subr.mxu0 0.0
  %2047 = vmatpush1.msra.mxu0 %v1934
  %2048 = vmatprep.subr.mxu0 0.0
  %2049 = vmatpush1.msra.mxu0 %v1935
  %2050 = vmatprep.subr.mxu0 0.0
  %2051 = vmatpush1.msra.mxu0 %v1936
  %2052 = vmatprep.subr.mxu0 0.0
  %2053 = vmatpush1.msra.mxu0 %v1937
  %2054 = vmatprep.subr.mxu0 0.0
  %2055 = vmatpush1.msra.mxu0 %v1938
  %2056 = vmatprep.subr.mxu0 0.0
  %2057 = vmatpush1.msra.mxu0 %v1939
  %2058 = vmatprep.subr.mxu0 0.0
  %2059 = vmatpush1.msra.mxu0 %v1940
  %2060 = vmatprep.subr.mxu0 0.0
  %2061 = vmatpush1.msra.mxu0 %v1941
  %2062 = vmatprep.subr.mxu0 0.0
  %2063 = vmatpush1.msra.mxu0 %v1942
  %2064 = vmatprep.subr.mxu0 0.0
  %2065 = vmatpush1.msra.mxu0 %v1943
  %2066 = vmatprep.subr.mxu0 0.0
  %2067 = vmatpush1.msra.mxu0 %v1944
  %2068 = vmatprep.subr.mxu0 0.0
  %2069 = vmatpush1.msra.mxu0 %v1945
  %2070 = vmatprep.subr.mxu0 0.0
  %2071 = vmatpush1.msra.mxu0 %v1946
  %2072 = vmatprep.subr.mxu0 0.0
  %2073 = vmatpush1.msra.mxu0 %v1947
  %2074 = vmatprep.subr.mxu0 0.0
  %2075 = vmatpush1.msra.mxu0 %v1948
  %2076 = vmatprep.subr.mxu0 0.0
  %2077 = vmatpush1.msra.mxu0 %v1949
  %2078 = vmatprep.subr.mxu0 0.0
  %2079 = vmatpush1.msra.mxu0 %v1950
  %2080 = vmatprep.subr.mxu0 0.0
  %2081 = vmatpush1.msra.mxu0 %v1951
  %2082 = vmatprep.mubr.f32.mxu0 %v1915
  %2083 = vmatmul.mubr.f32.gmra.mrb[0].mxu0 %v1914
  %v2084 = vpop.f32.mrb[0].mxu0
  %v2085 = vadd.f32 %v2013, %v2084
  %v2086 = vpop.f32.mrb[0].mxu0
  %2087 = vdwg.mxu0
  %2088 = vmatprep.subr.mxu0 0.0
  %2089 = vmatpush1.msra.mxu0 %v1952
  %2090 = vmatprep.subr.mxu0 0.0
  %2091 = vmatpush1.msra.mxu0 %v1953
  %2092 = vmatprep.subr.mxu0 0.0
  %2093 = vmatpush1.msra.mxu0 %v1954
  %2094 = vmatprep.subr.mxu0 0.0
  %2095 = vmatpush1.msra.mxu0 %v1955
  %2096 = vmatprep.subr.mxu0 0.0
  %2097 = vmatpush1.msra.mxu0 %v1956
  %2098 = vmatprep.subr.mxu0 0.0
  %2099 = vmatpush1.msra.mxu0 %v1957
  %2100 = vmatprep.subr.mxu0 0.0
  %2101 = vmatpush1.msra.mxu0 %v1958
  %2102 = vmatprep.subr.mxu0 0.0
  %2103 = vmatpush1.msra.mxu0 %v1959
  %2104 = vmatprep.subr.mxu0 0.0
  %2105 = vmatpush1.msra.mxu0 %v1960
  %2106 = vmatprep.subr.mxu0 0.0
  %2107 = vmatpush1.msra.mxu0 %v1961
  %2108 = vmatprep.subr.mxu0 0.0
  %2109 = vmatpush1.msra.mxu0 %v1962
  %2110 = vmatprep.subr.mxu0 0.0
  %2111 = vmatpush1.msra.mxu0 %v1963
  %2112 = vmatprep.subr.mxu0 0.0
  %2113 = vmatpush1.msra.mxu0 %v1964
  %2114 = vmatprep.subr.mxu0 0.0
  %2115 = vmatpush1.msra.mxu0 %v1965
  %2116 = vmatprep.subr.mxu0 0.0
  %2117 = vmatpush1.msra.mxu0 %v1966
  %2118 = vmatprep.subr.mxu0 0.0
  %2119 = vmatpush1.msra.mxu0 %v1967
  %2120 = vmatprep.subr.mxu0 0.0
  %2121 = vmatpush1.msra.mxu0 %v1968
  %2122 = vmatprep.subr.mxu0 0.0
  %2123 = vmatpush1.msra.mxu0 %v1969
  %2124 = vmatprep.subr.mxu0 0.0
  %2125 = vmatpush1.msra.mxu0 %v1970
  %2126 = vmatprep.subr.mxu0 0.0
  %2127 = vmatpush1.msra.mxu0 %v1971
  %2128 = vmatprep.subr.mxu0 0.0
  %2129 = vmatpush1.msra.mxu0 %v1972
  %2130 = vmatprep.subr.mxu0 0.0
  %2131 = vmatpush1.msra.mxu0 %v1973
  %2132 = vmatprep.subr.mxu0 0.0
  %2133 = vmatpush1.msra.mxu0 %v1974
  %2134 = vmatprep.subr.mxu0 0.0
  %2135 = vmatpush1.msra.mxu0 %v1975
  %2136 = vmatprep.subr.mxu0 0.0
  %2137 = vmatpush1.msra.mxu0 %v1976
  %2138 = vmatprep.subr.mxu0 0.0
  %2139 = vmatpush1.msra.mxu0 %v1977
  %2140 = vmatprep.subr.mxu0 0.0
  %2141 = vmatpush1.msra.mxu0 %v1978
  %2142 = vmatprep.subr.mxu0 0.0
  %2143 = vmatpush1.msra.mxu0 %v1979
  %2144 = vmatprep.subr.mxu0 0.0
  %2145 = vmatpush1.msra.mxu0 %v1980
  %2146 = vmatprep.subr.mxu0 0.0
  %2147 = vmatpush1.msra.mxu0 %v1981
  %2148 = vmatprep.subr.mxu0 0.0
  %2149 = vmatpush1.msra.mxu0 %v1982
  %2150 = vmatprep.subr.mxu0 0.0
  %2151 = vmatpush1.msra.mxu0 %v1983
  %2152 = vmatprep.mubr.f32.mxu0 %v1917
  %2153 = vmatmul.mubr.f32.gmra.mrb[0].mxu0 %v1916
  %v2154 = vpop.f32.mrb[0].mxu0
  %v2155 = vadd.f32 %v2085, %v2154
  %v2156 = vpop.f32.mrb[0].mxu0
  %2157 = vdwg.mxu0
  %2158 = vmatprep.subr.mxu0 0.0
  %2159 = vmatpush1.msra.mxu0 %v1984
  %2160 = vmatprep.subr.mxu0 0.0
  %2161 = vmatpush1.msra.mxu0 %v1985
  %2162 = vmatprep.subr.mxu0 0.0
  %2163 = vmatpush1.msra.mxu0 %v1986
  %2164 = vmatprep.subr.mxu0 0.0
  %2165 = vmatpush1.msra.mxu0 %v1987
  %2166 = vmatprep.subr.mxu0 0.0
  %2167 = vmatpush1.msra.mxu0 %v1988
  %2168 = vmatprep.subr.mxu0 0.0
  %2169 = vmatpush1.msra.mxu0 %v1989
  %2170 = vmatprep.subr.mxu0 0.0
  %2171 = vmatpush1.msra.mxu0 %v1990
  %2172 = vmatprep.subr.mxu0 0.0
  %2173 = vmatpush1.msra.mxu0 %v1991
  %2174 = vmatprep.subr.mxu0 0.0
  %2175 = vmatpush1.msra.mxu0 %v1992
  %2176 = vmatprep.subr.mxu0 0.0
  %2177 = vmatpush1.msra.mxu0 %v1993
  %2178 = vmatprep.subr.mxu0 0.0
  %2179 = vmatpush1.msra.mxu0 %v1994
  %2180 = vmatprep.subr.mxu0 0.0
  %2181 = vmatpush1.msra.mxu0 %v1995
  %2182 = vmatprep.subr.mxu0 0.0
  %2183 = vmatpush1.msra.mxu0 %v1996
  %2184 = vmatprep.subr.mxu0 0.0
  %2185 = vmatpush1.msra.mxu0 %v1997
  %2186 = vmatprep.subr.mxu0 0.0
  %2187 = vmatpush1.msra.mxu0 %v1998
  %2188 = vmatprep.subr.mxu0 0.0
  %2189 = vmatpush1.msra.mxu0 %v1999
  %2190 = vmatprep.subr.mxu0 0.0
  %2191 = vmatpush1.msra.mxu0 %v2000
  %2192 = vmatprep.subr.mxu0 0.0
  %2193 = vmatpush1.msra.mxu0 %v2001
  %2194 = vmatprep.subr.mxu0 0.0
  %2195 = vmatpush1.msra.mxu0 %v2002
  %2196 = vmatprep.subr.mxu0 0.0
  %2197 = vmatpush1.msra.mxu0 %v2003
  %2198 = vmatprep.subr.mxu0 0.0
  %2199 = vmatpush1.msra.mxu0 %v2004
  %2200 = vmatprep.subr.mxu0 0.0
  %2201 = vmatpush1.msra.mxu0 %v2005
  %2202 = vmatprep.subr.mxu0 0.0
  %2203 = vmatpush1.msra.mxu0 %v2006
  %2204 = vmatprep.subr.mxu0 0.0
  %2205 = vmatpush1.msra.mxu0 %v2007
  %2206 = vmatprep.subr.mxu0 0.0
  %2207 = vmatpush1.msra.mxu0 0.0
  %2208 = vmatprep.subr.mxu0 0.0
  %2209 = vmatpush1.msra.mxu0 0.0
  %2210 = vmatprep.subr.mxu0 0.0
  %2211 = vmatpush1.msra.mxu0 0.0
  %2212 = vmatprep.subr.mxu0 0.0
  %2213 = vmatpush1.msra.mxu0 0.0
  %2214 = vmatprep.subr.mxu0 0.0
  %2215 = vmatpush1.msra.mxu0 0.0
  %2216 = vmatprep.subr.mxu0 0.0
  %2217 = vmatpush1.msra.mxu0 0.0
  %2218 = vmatprep.subr.mxu0 0.0
  %2219 = vmatpush1.msra.mxu0 0.0
  %2220 = vmatprep.subr.mxu0 0.0
  %2221 = vmatpush1.msra.mxu0 0.0
  %2222 = vmatprep.mubr.f32.mxu0 %v2016
  %2223 = vmatmul.mubr.f32.gmra.mrb[0].mxu0 %v1918
  %v2224 = vpop.f32.mrb[0].mxu0
  %v2225 = vadd.f32 %v2155, %v2224
  %v2226 = vpop.f32.mrb[0].mxu0
  %2227 = vdwg.mxu0
  %2228 = vst [vmem:[%s22] sm:$0x3] %v2225
  %v2229 = vld [vmem:[%s1] sm:$0x3]
  %v2230 = vmul.f32 %v2225, 0.5
  %v2231 = vmul.f32 %v2230, 1.442695
  %v2232 = vpow.pop %v2231
  %2234 = vrot.lane.b32.xlu0 %v2232, 64
  %v2235 = vpop.permute.xlu0 %2234
  %v2237 = vmul.f32 %v2229, %v2235
  %v2238 = vadd.f32 %v2225, %v2237
  %v2239 = vld [vmem:[%s10] sm:$0xff]
  %v2240 = vld [vmem:[%s10 + $0x8] sm:$0xff]
  %v2241 = vld [vmem:[%s10 + $0x10] sm:$0xff]
  %v2242 = vld [vmem:[%s10 + $0x18] sm:$0xff]
  %v2243 = vld [vmem:[%s10 + $0x20] sm:$0xff]
  %v2244 = vld [vmem:[%s10 + $0x28] sm:$0xff]
  %v2245 = vld [vmem:[%s10 + $0x30] sm:$0xff]
  %v2246 = vld [vmem:[%s10 + $0x38] sm:$0xff]
  %v2247 = vld [vmem:[%s10 + $0x40] sm:$0xff]
  %v2248 = vld [vmem:[%s10 + $0x48] sm:$0xff]
  %v2249 = vld [vmem:[%s10 + $0x50] sm:$0xff]
  %v2250 = vld [vmem:[%s10 + $0x58] sm:$0xff]
  %v2251 = vld [vmem:[%s10 + $0x60] sm:$0xff]
  %v2252 = vld [vmem:[%s10 + $0x68] sm:$0xff]
  %v2253 = vld [vmem:[%s10 + $0x70] sm:$0xff]
  %v2254 = vld [vmem:[%s10 + $0x78] sm:$0xff]
  %v2255 = vld [vmem:[%s10 + $0x80] sm:$0xff]
  %v2256 = vld [vmem:[%s10 + $0x88] sm:$0xff]
  %v2257 = vld [vmem:[%s10 + $0x90] sm:$0xff]
  %v2258 = vld [vmem:[%s10 + $0x98] sm:$0xff]
  %v2259 = vld [vmem:[%s10 + $0xa0] sm:$0xff]
  %v2260 = vld [vmem:[%s10 + $0xa8] sm:$0xff]
  %v2261 = vld [vmem:[%s10 + $0xb0] sm:$0xff]
  %v2262 = vld [vmem:[%s10 + $0xb8] sm:$0xff]
  %v2263 = vld [vmem:[%s10 + $0xc0] sm:$0xff]
  %v2264 = vld [vmem:[%s10 + $0xc8] sm:$0xff]
  %v2265 = vld [vmem:[%s10 + $0xd0] sm:$0xff]
  %v2266 = vld [vmem:[%s10 + $0xd8] sm:$0xff]
  %v2267 = vld [vmem:[%s10 + $0xe0] sm:$0xff]
  %v2268 = vld [vmem:[%s10 + $0xe8] sm:$0xff]
  %v2269 = vld [vmem:[%s10 + $0xf0] sm:$0xff]
  %v2270 = vld [vmem:[%s10 + $0xf8] sm:$0xff]
  %v2271 = vld [vmem:[%s10 + $0x100] sm:$0xff]
  %v2272 = vld [vmem:[%s10 + $0x108] sm:$0xff]
  %v2273 = vld [vmem:[%s10 + $0x110] sm:$0xff]
  %v2274 = vld [vmem:[%s10 + $0x118] sm:$0xff]
  %v2275 = vld [vmem:[%s10 + $0x120] sm:$0xff]
  %v2276 = vld [vmem:[%s10 + $0x128] sm:$0xff]
  %v2277 = vld [vmem:[%s10 + $0x130] sm:$0xff]
  %v2278 = vld [vmem:[%s10 + $0x138] sm:$0xff]
  %v2279 = vld [vmem:[%s10 + $0x140] sm:$0xff]
  %v2280 = vld [vmem:[%s10 + $0x148] sm:$0xff]
  %v2281 = vld [vmem:[%s10 + $0x150] sm:$0xff]
  %v2282 = vld [vmem:[%s10 + $0x158] sm:$0xff]
  %v2283 = vld [vmem:[%s10 + $0x160] sm:$0xff]
  %v2284 = vld [vmem:[%s10 + $0x168] sm:$0xff]
  %v2285 = vld [vmem:[%s10 + $0x170] sm:$0xff]
  %v2286 = vld [vmem:[%s10 + $0x178] sm:$0xff]
  %v2287 = vld [vmem:[%s11] sm:$0x3f]
  %v2289 = vlaneseq
  %v2290 = vshrl.u32 %v2289, 7
  %v2291 = vsub.s32 0, %v2290
  %v2292 = vrot.slane %v2287, %v2291
  %v2293 = vlaneseq
  %v2294 = vshrl.u32 %v2293, 7
  %v2295 = vsub.s32 1, %v2294
  %v2296 = vrot.slane %v2287, %v2295
  %v2297 = vlaneseq
  %v2298 = vshrl.u32 %v2297, 7
  %v2299 = vsub.s32 2, %v2298
  %v2300 = vrot.slane %v2287, %v2299
  %v2301 = vlaneseq
  %v2302 = vshrl.u32 %v2301, 7
  %v2303 = vsub.s32 3, %v2302
  %v2304 = vrot.slane %v2287, %v2303
  %v2305 = vlaneseq
  %v2306 = vshrl.u32 %v2305, 7
  %v2307 = vsub.s32 4, %v2306
  %v2308 = vrot.slane %v2287, %v2307
  %v2309 = vlaneseq
  %v2310 = vshrl.u32 %v2309, 7
  %v2311 = vsub.s32 5, %v2310
  %v2312 = vrot.slane %v2287, %v2311
  %v2320 = vsel %vm1151, %v2238, 0
  %2322 = vmatprep.subr.mxu0 %v2240
  %2323 = vmatpush1.msra.mxu0 %v2239
  %2324 = vmatprep.subr.mxu0 %v2246
  %2325 = vmatpush1.msra.mxu0 %v2245
  %2326 = vmatprep.subr.mxu0 %v2252
  %2327 = vmatpush1.msra.mxu0 %v2251
  %2328 = vmatprep.subr.mxu0 %v2258
  %2329 = vmatpush1.msra.mxu0 %v2257
  %2330 = vmatprep.subr.mxu0 %v2264
  %2331 = vmatpush1.msra.mxu0 %v2263
  %2332 = vmatprep.subr.mxu0 %v2270
  %2333 = vmatpush1.msra.mxu0 %v2269
  %2334 = vmatprep.subr.mxu0 %v2276
  %2335 = vmatpush1.msra.mxu0 %v2275
  %2336 = vmatprep.subr.mxu0 %v2282
  %2337 = vmatpush1.msra.mxu0 %v2281
  %2338 = vmatprep.subr.mxu0 0.0
  %2339 = vmatpush1.msra.mxu0 0.0
  %2340 = vmatprep.subr.mxu0 0.0
  %2341 = vmatpush1.msra.mxu0 0.0
  %2342 = vmatprep.subr.mxu0 0.0
  %2343 = vmatpush1.msra.mxu0 0.0
  %2344 = vmatprep.subr.mxu0 0.0
  %2345 = vmatpush1.msra.mxu0 0.0
  %2346 = vmatprep.subr.mxu0 0.0
  %2347 = vmatpush1.msra.mxu0 0.0
  %2348 = vmatprep.subr.mxu0 0.0
  %2349 = vmatpush1.msra.mxu0 0.0
  %2350 = vmatprep.subr.mxu0 0.0
  %2351 = vmatpush1.msra.mxu0 0.0
  %2352 = vmatprep.subr.mxu0 0.0
  %2353 = vmatpush1.msra.mxu0 0.0
  %2354 = vmatprep.subr.mxu0 0.0
  %2355 = vmatpush1.msra.mxu0 0.0
  %2356 = vmatprep.subr.mxu0 0.0
  %2357 = vmatpush1.msra.mxu0 0.0
  %2358 = vmatprep.subr.mxu0 0.0
  %2359 = vmatpush1.msra.mxu0 0.0
  %2360 = vmatprep.subr.mxu0 0.0
  %2361 = vmatpush1.msra.mxu0 0.0
  %2362 = vmatprep.subr.mxu0 0.0
  %2363 = vmatpush1.msra.mxu0 0.0
  %2364 = vmatprep.subr.mxu0 0.0
  %2365 = vmatpush1.msra.mxu0 0.0
  %2366 = vmatprep.subr.mxu0 0.0
  %2367 = vmatpush1.msra.mxu0 0.0
  %2368 = vmatprep.subr.mxu0 0.0
  %2369 = vmatpush1.msra.mxu0 0.0
  %2370 = vmatprep.subr.mxu0 0.0
  %2371 = vmatpush1.msra.mxu0 0.0
  %2372 = vmatprep.subr.mxu0 0.0
  %2373 = vmatpush1.msra.mxu0 0.0
  %2374 = vmatprep.subr.mxu0 0.0
  %2375 = vmatpush1.msra.mxu0 0.0
  %2376 = vmatprep.subr.mxu0 0.0
  %2377 = vmatpush1.msra.mxu0 0.0
  %2378 = vmatprep.subr.mxu0 0.0
  %2379 = vmatpush1.msra.mxu0 0.0
  %2380 = vmatprep.subr.mxu0 0.0
  %2381 = vmatpush1.msra.mxu0 0.0
  %2382 = vmatprep.subr.mxu0 0.0
  %2383 = vmatpush1.msra.mxu0 0.0
  %2384 = vmatprep.subr.mxu0 0.0
  %2385 = vmatpush1.msra.mxu0 0.0
  %2386 = vmatprep.mubr.f32.mxu0 0.0
  %2387 = vmatmul.mubr.f32.gmra.mrb[0].mxu0 %v2320
  %v2388 = vpop.f32.mrb[0].mxu0
  %v2389 = vadd.f32 %v2292, %v2388
  %v2390 = vpop.f32.mrb[0].mxu0
  %v2391 = vadd.f32 %v2296, %v2390
  %2392 = vdwg.mxu0
  %2393 = vmatprep.subr.mxu0 %v2242
  %2394 = vmatpush1.msra.mxu0 %v2241
  %2395 = vmatprep.subr.mxu0 %v2248
  %2396 = vmatpush1.msra.mxu0 %v2247
  %2397 = vmatprep.subr.mxu0 %v2254
  %2398 = vmatpush1.msra.mxu0 %v2253
  %2399 = vmatprep.subr.mxu0 %v2260
  %2400 = vmatpush1.msra.mxu0 %v2259
  %2401 = vmatprep.subr.mxu0 %v2266
  %2402 = vmatpush1.msra.mxu0 %v2265
  %2403 = vmatprep.subr.mxu0 %v2272
  %2404 = vmatpush1.msra.mxu0 %v2271
  %2405 = vmatprep.subr.mxu0 %v2278
  %2406 = vmatpush1.msra.mxu0 %v2277
  %2407 = vmatprep.subr.mxu0 %v2284
  %2408 = vmatpush1.msra.mxu0 %v2283
  %2409 = vmatprep.subr.mxu0 0.0
  %2410 = vmatpush1.msra.mxu0 0.0
  %2411 = vmatprep.subr.mxu0 0.0
  %2412 = vmatpush1.msra.mxu0 0.0
  %2413 = vmatprep.subr.mxu0 0.0
  %2414 = vmatpush1.msra.mxu0 0.0
  %2415 = vmatprep.subr.mxu0 0.0
  %2416 = vmatpush1.msra.mxu0 0.0
  %2417 = vmatprep.subr.mxu0 0.0
  %2418 = vmatpush1.msra.mxu0 0.0
  %2419 = vmatprep.subr.mxu0 0.0
  %2420 = vmatpush1.msra.mxu0 0.0
  %2421 = vmatprep.subr.mxu0 0.0
  %2422 = vmatpush1.msra.mxu0 0.0
  %2423 = vmatprep.subr.mxu0 0.0
  %2424 = vmatpush1.msra.mxu0 0.0
  %2425 = vmatprep.subr.mxu0 0.0
  %2426 = vmatpush1.msra.mxu0 0.0
  %2427 = vmatprep.subr.mxu0 0.0
  %2428 = vmatpush1.msra.mxu0 0.0
  %2429 = vmatprep.subr.mxu0 0.0
  %2430 = vmatpush1.msra.mxu0 0.0
  %2431 = vmatprep.subr.mxu0 0.0
  %2432 = vmatpush1.msra.mxu0 0.0
  %2433 = vmatprep.subr.mxu0 0.0
  %2434 = vmatpush1.msra.mxu0 0.0
  %2435 = vmatprep.subr.mxu0 0.0
  %2436 = vmatpush1.msra.mxu0 0.0
  %2437 = vmatprep.subr.mxu0 0.0
  %2438 = vmatpush1.msra.mxu0 0.0
  %2439 = vmatprep.subr.mxu0 0.0
  %2440 = vmatpush1.msra.mxu0 0.0
  %2441 = vmatprep.subr.mxu0 0.0
  %2442 = vmatpush1.msra.mxu0 0.0
  %2443 = vmatprep.subr.mxu0 0.0
  %2444 = vmatpush1.msra.mxu0 0.0
  %2445 = vmatprep.subr.mxu0 0.0
  %2446 = vmatpush1.msra.mxu0 0.0
  %2447 = vmatprep.subr.mxu0 0.0
  %2448 = vmatpush1.msra.mxu0 0.0
  %2449 = vmatprep.subr.mxu0 0.0
  %2450 = vmatpush1.msra.mxu0 0.0
  %2451 = vmatprep.subr.mxu0 0.0
  %2452 = vmatpush1.msra.mxu0 0.0
  %2453 = vmatprep.subr.mxu0 0.0
  %2454 = vmatpush1.msra.mxu0 0.0
  %2455 = vmatprep.subr.mxu0 0.0
  %2456 = vmatpush1.msra.mxu0 0.0
  %2457 = vmatprep.mubr.f32.mxu0 0.0
  %2458 = vmatmul.mubr.f32.gmra.mrb[0].mxu0 %v2320
  %v2459 = vpop.f32.mrb[0].mxu0
  %v2460 = vadd.f32 %v2300, %v2459
  %v2461 = vpop.f32.mrb[0].mxu0
  %v2462 = vadd.f32 %v2304, %v2461
  %2463 = vdwg.mxu0
  %2464 = vmatprep.subr.mxu0 %v2244
  %2465 = vmatpush1.msra.mxu0 %v2243
  %2466 = vmatprep.subr.mxu0 %v2250
  %2467 = vmatpush1.msra.mxu0 %v2249
  %2468 = vmatprep.subr.mxu0 %v2256
  %2469 = vmatpush1.msra.mxu0 %v2255
  %2470 = vmatprep.subr.mxu0 %v2262
  %2471 = vmatpush1.msra.mxu0 %v2261
  %2472 = vmatprep.subr.mxu0 %v2268
  %2473 = vmatpush1.msra.mxu0 %v2267
  %2474 = vmatprep.subr.mxu0 %v2274
  %2475 = vmatpush1.msra.mxu0 %v2273
  %2476 = vmatprep.subr.mxu0 %v2280
  %2477 = vmatpush1.msra.mxu0 %v2279
  %2478 = vmatprep.subr.mxu0 %v2286
  %2479 = vmatpush1.msra.mxu0 %v2285
  %2480 = vmatprep.subr.mxu0 0.0
  %2481 = vmatpush1.msra.mxu0 0.0
  %2482 = vmatprep.subr.mxu0 0.0
  %2483 = vmatpush1.msra.mxu0 0.0
  %2484 = vmatprep.subr.mxu0 0.0
  %2485 = vmatpush1.msra.mxu0 0.0
  %2486 = vmatprep.subr.mxu0 0.0
  %2487 = vmatpush1.msra.mxu0 0.0
  %2488 = vmatprep.subr.mxu0 0.0
  %2489 = vmatpush1.msra.mxu0 0.0
  %2490 = vmatprep.subr.mxu0 0.0
  %2491 = vmatpush1.msra.mxu0 0.0
  %2492 = vmatprep.subr.mxu0 0.0
  %2493 = vmatpush1.msra.mxu0 0.0
  %2494 = vmatprep.subr.mxu0 0.0
  %2495 = vmatpush1.msra.mxu0 0.0
  %2496 = vmatprep.subr.mxu0 0.0
  %2497 = vmatpush1.msra.mxu0 0.0
  %2498 = vmatprep.subr.mxu0 0.0
  %2499 = vmatpush1.msra.mxu0 0.0
  %2500 = vmatprep.subr.mxu0 0.0
  %2501 = vmatpush1.msra.mxu0 0.0
  %2502 = vmatprep.subr.mxu0 0.0
  %2503 = vmatpush1.msra.mxu0 0.0
  %2504 = vmatprep.subr.mxu0 0.0
  %2505 = vmatpush1.msra.mxu0 0.0
  %2506 = vmatprep.subr.mxu0 0.0
  %2507 = vmatpush1.msra.mxu0 0.0
  %2508 = vmatprep.subr.mxu0 0.0
  %2509 = vmatpush1.msra.mxu0 0.0
  %2510 = vmatprep.subr.mxu0 0.0
  %2511 = vmatpush1.msra.mxu0 0.0
  %2512 = vmatprep.subr.mxu0 0.0
  %2513 = vmatpush1.msra.mxu0 0.0
  %2514 = vmatprep.subr.mxu0 0.0
  %2515 = vmatpush1.msra.mxu0 0.0
  %2516 = vmatprep.subr.mxu0 0.0
  %2517 = vmatpush1.msra.mxu0 0.0
  %2518 = vmatprep.subr.mxu0 0.0
  %2519 = vmatpush1.msra.mxu0 0.0
  %2520 = vmatprep.subr.mxu0 0.0
  %2521 = vmatpush1.msra.mxu0 0.0
  %2522 = vmatprep.subr.mxu0 0.0
  %2523 = vmatpush1.msra.mxu0 0.0
  %2524 = vmatprep.subr.mxu0 0.0
  %2525 = vmatpush1.msra.mxu0 0.0
  %2526 = vmatprep.subr.mxu0 0.0
  %2527 = vmatpush1.msra.mxu0 0.0
  %2528 = vmatprep.mubr.f32.mxu0 0.0
  %2529 = vmatmul.mubr.f32.gmra.mrb[0].mxu0 %v2320
  %v2530 = vpop.f32.mrb[0].mxu0
  %v2531 = vadd.f32 %v2308, %v2530
  %v2532 = vpop.f32.mrb[0].mxu0
  %v2533 = vadd.f32 %v2312, %v2532
  %2534 = vdwg.mxu0
  %v2536 = vrot.slane %v2389, 7
  %2537 = vrot.lane.b32.xlu0 %v2536, 64
  %v2538 = vpop.permute.xlu0 %2537
  %v2541 = vrot.slane %v2391, 6
  %v2543 = vrot.slane %v2391, 5
  %2544 = vrot.lane.b32.xlu0 %v2543, 64
  %v2545 = vpop.permute.xlu0 %2544
  %v2548 = vrot.slane %v2460, 4
  %v2550 = vrot.slane %v2460, 3
  %2551 = vrot.lane.b32.xlu0 %v2550, 64
  %v2552 = vpop.permute.xlu0 %2551
  %v2555 = vrot.slane %v2462, 2
  %v2557 = vrot.slane %v2462, 1
  %2558 = vrot.lane.b32.xlu0 %v2557, 64
  %v2559 = vpop.permute.xlu0 %2558
  %v2562 = vrot.slane %v2531, 7
  %2563 = vrot.lane.b32.xlu0 %v2562, 64
  %v2564 = vpop.permute.xlu0 %2563
  %v2567 = vrot.slane %v2533, 6
  %v2569 = vsel %vm1913, %v2389, %v2538
  %v2570 = vsel %vm698, %v2569, %v2541
  %v2571 = vsel %vm1594, %v2570, %v2545
  %v2572 = vsel %vm1133, %v2571, %v2548
  %v2573 = vsel %vm1107, %v2572, %v2552
  %v2574 = vsel %vm279, %v2573, %v2555
  %v2575 = vsel %vm170, %v2574, %v2559
  %v2576 = vsel %vm1913, %v2531, %v2564
  %v2577 = vsel %vm698, %v2576, %v2567
  %v2578 = vrot.slane %v2389, 1
  %2580 = vrot.lane.b32.xlu0 %v2389, 64
  %v2581 = vpop.permute.xlu0 %2580
  %v2583 = vrot.slane %v2391, 7
  %2585 = vrot.lane.b32.xlu0 %v2541, 64
  %v2586 = vpop.permute.xlu0 %2585
  %v2588 = vrot.slane %v2460, 5
  %2590 = vrot.lane.b32.xlu0 %v2548, 64
  %v2591 = vpop.permute.xlu0 %2590
  %v2593 = vrot.slane %v2462, 3
  %2595 = vrot.lane.b32.xlu0 %v2555, 64
  %v2596 = vpop.permute.xlu0 %2595
  %v2598 = vrot.slane %v2531, 1
  %2600 = vrot.lane.b32.xlu0 %v2531, 64
  %v2601 = vpop.permute.xlu0 %2600
  %v2603 = vrot.slane %v2533, 7
  %v2605 = vsel %vm1913, %v2578, %v2581
  %v2606 = vsel %vm698, %v2605, %v2583
  %v2607 = vsel %vm1594, %v2606, %v2586
  %v2608 = vsel %vm1133, %v2607, %v2588
  %v2609 = vsel %vm1107, %v2608, %v2591
  %v2610 = vsel %vm279, %v2609, %v2593
  %v2611 = vsel %vm170, %v2610, %v2596
  %v2612 = vsel %vm1913, %v2598, %v2601
  %v2613 = vsel %vm698, %v2612, %v2603
  %v2616 = vrot.slane %v2611, 5
  %v2617 = vrot.slane %v2613, 5
  %v2618 = vsel %vm1594, %v2616, %v2617
  %v2620 = vsel %vm1594, %v2577, %v2616
  %v2621 = vld [vmem:[%s12] sm:$0xff]
  %v2622 = vld [vmem:[%s12 + $0x8] sm:$0xff]
  %v2623 = vld [vmem:[%s12 + $0x10] sm:$0xff]
  %v2624 = vld [vmem:[%s12 + $0x18] sm:$0xff]
  %v2625 = vld [vmem:[%s12 + $0x20] sm:$0xff]
  %v2626 = vld [vmem:[%s12 + $0x28] sm:$0xff]
  %v2627 = vld [vmem:[%s12 + $0x30] sm:$0xff]
  %v2628 = vld [vmem:[%s12 + $0x38] sm:$0xff]
  %v2629 = vld [vmem:[%s12 + $0x40] sm:$0xff]
  %v2630 = vld [vmem:[%s12 + $0x48] sm:$0xff]
  %v2631 = vld [vmem:[%s12 + $0x50] sm:$0xff]
  %v2632 = vld [vmem:[%s12 + $0x58] sm:$0xff]
  %v2633 = vld [vmem:[%s12 + $0x60] sm:$0xff]
  %v2634 = vld [vmem:[%s12 + $0x68] sm:$0xff]
  %v2635 = vld [vmem:[%s12 + $0x70] sm:$0xff]
  %v2636 = vld [vmem:[%s12 + $0x78] sm:$0xff]
  %v2637 = vld [vmem:[%s12 + $0x80] sm:$0xff]
  %v2638 = vld [vmem:[%s12 + $0x88] sm:$0xff]
  %v2639 = vld [vmem:[%s12 + $0x90] sm:$0xff]
  %v2640 = vld [vmem:[%s12 + $0x98] sm:$0xff]
  %v2641 = vld [vmem:[%s12 + $0xa0] sm:$0xff]
  %v2642 = vld [vmem:[%s12 + $0xa8] sm:$0xff]
  %v2643 = vld [vmem:[%s12 + $0xb0] sm:$0xff]
  %v2644 = vld [vmem:[%s12 + $0xb8] sm:$0xff]
  %v2646 = vsel %vm1151, %v2575, 0
  %v2649 = vsel %vm1151, %v2620, 0
  %v2651 = vsel %vm1151, %v2618, 0
  %2653 = vmatprep.subr.mxu0 %v2622
  %2654 = vmatpush1.msra.mxu0 %v2621
  %2655 = vmatprep.subr.mxu0 %v2625
  %2656 = vmatpush1.msra.mxu0 %v2624
  %2657 = vmatprep.subr.mxu0 %v2628
  %2658 = vmatpush1.msra.mxu0 %v2627
  %2659 = vmatprep.subr.mxu0 %v2631
  %2660 = vmatpush1.msra.mxu0 %v2630
  %2661 = vmatprep.subr.mxu0 %v2634
  %2662 = vmatpush1.msra.mxu0 %v2633
  %2663 = vmatprep.subr.mxu0 %v2637
  %2664 = vmatpush1.msra.mxu0 %v2636
  %2665 = vmatprep.subr.mxu0 %v2640
  %2666 = vmatpush1.msra.mxu0 %v2639
  %2667 = vmatprep.subr.mxu0 %v2643
  %2668 = vmatpush1.msra.mxu0 %v2642
  %2669 = vmatprep.subr.mxu0 0.0
  %2670 = vmatpush1.msra.mxu0 0.0
  %2671 = vmatprep.subr.mxu0 0.0
  %2672 = vmatpush1.msra.mxu0 0.0
  %2673 = vmatprep.subr.mxu0 0.0
  %2674 = vmatpush1.msra.mxu0 0.0
  %2675 = vmatprep.subr.mxu0 0.0
  %2676 = vmatpush1.msra.mxu0 0.0
  %2677 = vmatprep.subr.mxu0 0.0
  %2678 = vmatpush1.msra.mxu0 0.0
  %2679 = vmatprep.subr.mxu0 0.0
  %2680 = vmatpush1.msra.mxu0 0.0
  %2681 = vmatprep.subr.mxu0 0.0
  %2682 = vmatpush1.msra.mxu0 0.0
  %2683 = vmatprep.subr.mxu0 0.0
  %2684 = vmatpush1.msra.mxu0 0.0
  %2685 = vmatprep.subr.mxu0 0.0
  %2686 = vmatpush1.msra.mxu0 0.0
  %2687 = vmatprep.subr.mxu0 0.0
  %2688 = vmatpush1.msra.mxu0 0.0
  %2689 = vmatprep.subr.mxu0 0.0
  %2690 = vmatpush1.msra.mxu0 0.0
  %2691 = vmatprep.subr.mxu0 0.0
  %2692 = vmatpush1.msra.mxu0 0.0
  %2693 = vmatprep.subr.mxu0 0.0
  %2694 = vmatpush1.msra.mxu0 0.0
  %2695 = vmatprep.subr.mxu0 0.0
  %2696 = vmatpush1.msra.mxu0 0.0
  %2697 = vmatprep.subr.mxu0 0.0
  %2698 = vmatpush1.msra.mxu0 0.0
  %2699 = vmatprep.subr.mxu0 0.0
  %2700 = vmatpush1.msra.mxu0 0.0
  %2701 = vmatprep.subr.mxu0 0.0
  %2702 = vmatpush1.msra.mxu0 0.0
  %2703 = vmatprep.subr.mxu0 0.0
  %2704 = vmatpush1.msra.mxu0 0.0
  %2705 = vmatprep.subr.mxu0 0.0
  %2706 = vmatpush1.msra.mxu0 0.0
  %2707 = vmatprep.subr.mxu0 0.0
  %2708 = vmatpush1.msra.mxu0 0.0
  %2709 = vmatprep.subr.mxu0 0.0
  %2710 = vmatpush1.msra.mxu0 0.0
  %2711 = vmatprep.subr.mxu0 0.0
  %2712 = vmatpush1.msra.mxu0 0.0
  %2713 = vmatprep.subr.mxu0 0.0
  %2714 = vmatpush1.msra.mxu0 0.0
  %2715 = vmatprep.subr.mxu0 0.0
  %2716 = vmatpush1.msra.mxu0 0.0
  %2717 = vmatprep.mubr.f32.mxu0 0.0
  %2718 = vmatmul.mubr.f32.gmra.mrb[0].mxu0 %v2646
  %v2719 = vpop.f32.mrb[0].mxu0
  %v2720 = vadd.f32 0.0, %v2719
  %v2721 = vpop.f32.mrb[0].mxu0
  %v2722 = vadd.f32 0.0, %v2721
  %2723 = vmatprep.mubr.f32.mxu0 0.0
  %2724 = vmatmul.mubr.f32.gmra.mrb[0].mxu0 %v2649
  %v2725 = vpop.f32.mrb[0].mxu0
  %v2726 = vadd.f32 0.0, %v2725
  %v2727 = vpop.f32.mrb[0].mxu0
  %v2728 = vadd.f32 0.0, %v2727
  %2729 = vmatprep.mubr.f32.mxu0 0.0
  %2730 = vmatmul.mubr.f32.gmra.mrb[0].mxu0 %v2651
  %v2731 = vpop.f32.mrb[0].mxu0
  %v2732 = vadd.f32 0.0, %v2731
  %v2733 = vpop.f32.mrb[0].mxu0
  %v2734 = vadd.f32 0.0, %v2733
  %2735 = vdwg.mxu0
  %2736 = vmatprep.subr.mxu0 0.0
  %2737 = vmatpush1.msra.mxu0 %v2623
  %2738 = vmatprep.subr.mxu0 0.0
  %2739 = vmatpush1.msra.mxu0 %v2626
  %2740 = vmatprep.subr.mxu0 0.0
  %2741 = vmatpush1.msra.mxu0 %v2629
  %2742 = vmatprep.subr.mxu0 0.0
  %2743 = vmatpush1.msra.mxu0 %v2632
  %2744 = vmatprep.subr.mxu0 0.0
  %2745 = vmatpush1.msra.mxu0 %v2635
  %2746 = vmatprep.subr.mxu0 0.0
  %2747 = vmatpush1.msra.mxu0 %v2638
  %2748 = vmatprep.subr.mxu0 0.0
  %2749 = vmatpush1.msra.mxu0 %v2641
  %2750 = vmatprep.subr.mxu0 0.0
  %2751 = vmatpush1.msra.mxu0 %v2644
  %2752 = vmatprep.subr.mxu0 0.0
  %2753 = vmatpush1.msra.mxu0 0.0
  %2754 = vmatprep.subr.mxu0 0.0
  %2755 = vmatpush1.msra.mxu0 0.0
  %2756 = vmatprep.subr.mxu0 0.0
  %2757 = vmatpush1.msra.mxu0 0.0
  %2758 = vmatprep.subr.mxu0 0.0
  %2759 = vmatpush1.msra.mxu0 0.0
  %2760 = vmatprep.subr.mxu0 0.0
  %2761 = vmatpush1.msra.mxu0 0.0
  %2762 = vmatprep.subr.mxu0 0.0
  %2763 = vmatpush1.msra.mxu0 0.0
  %2764 = vmatprep.subr.mxu0 0.0
  %2765 = vmatpush1.msra.mxu0 0.0
  %2766 = vmatprep.subr.mxu0 0.0
  %2767 = vmatpush1.msra.mxu0 0.0
  %2768 = vmatprep.subr.mxu0 0.0
  %2769 = vmatpush1.msra.mxu0 0.0
  %2770 = vmatprep.subr.mxu0 0.0
  %2771 = vmatpush1.msra.mxu0 0.0
  %2772 = vmatprep.subr.mxu0 0.0
  %2773 = vmatpush1.msra.mxu0 0.0
  %2774 = vmatprep.subr.mxu0 0.0
  %2775 = vmatpush1.msra.mxu0 0.0
  %2776 = vmatprep.subr.mxu0 0.0
  %2777 = vmatpush1.msra.mxu0 0.0
  %2778 = vmatprep.subr.mxu0 0.0
  %2779 = vmatpush1.msra.mxu0 0.0
  %2780 = vmatprep.subr.mxu0 0.0
  %2781 = vmatpush1.msra.mxu0 0.0
  %2782 = vmatprep.subr.mxu0 0.0
  %2783 = vmatpush1.msra.mxu0 0.0
  %2784 = vmatprep.subr.mxu0 0.0
  %2785 = vmatpush1.msra.mxu0 0.0
  %2786 = vmatprep.subr.mxu0 0.0
  %2787 = vmatpush1.msra.mxu0 0.0
  %2788 = vmatprep.subr.mxu0 0.0
  %2789 = vmatpush1.msra.mxu0 0.0
  %2790 = vmatprep.subr.mxu0 0.0
  %2791 = vmatpush1.msra.mxu0 0.0
  %2792 = vmatprep.subr.mxu0 0.0
  %2793 = vmatpush1.msra.mxu0 0.0
  %2794 = vmatprep.subr.mxu0 0.0
  %2795 = vmatpush1.msra.mxu0 0.0
  %2796 = vmatprep.subr.mxu0 0.0
  %2797 = vmatpush1.msra.mxu0 0.0
  %2798 = vmatprep.subr.mxu0 0.0
  %2799 = vmatpush1.msra.mxu0 0.0
  %2800 = vmatprep.mubr.f32.mxu0 0.0
  %2801 = vmatmul.mubr.f32.gmra.mrb[0].mxu0 %v2646
  %v2802 = vpop.f32.mrb[0].mxu0
  %v2803 = vadd.f32 0.0, %v2802
  %v2804 = vpop.f32.mrb[0].mxu0
  %2805 = vmatprep.mubr.f32.mxu0 0.0
  %2806 = vmatmul.mubr.f32.gmra.mrb[0].mxu0 %v2649
  %v2807 = vpop.f32.mrb[0].mxu0
  %v2808 = vadd.f32 0.0, %v2807
  %v2809 = vpop.f32.mrb[0].mxu0
  %2810 = vmatprep.mubr.f32.mxu0 0.0
  %2811 = vmatmul.mubr.f32.gmra.mrb[0].mxu0 %v2651
  %v2812 = vpop.f32.mrb[0].mxu0
  %v2813 = vadd.f32 0.0, %v2812
  %v2814 = vpop.f32.mrb[0].mxu0
  %2815 = vdwg.mxu0
  %v2818 = vrot.slane %v2726, 3
  %v2819 = vrot.slane %v2732, 3
  %v2820 = vsel %vm1107, %v2818, %v2819
  %2821 = vrot.lane.b32.xlu0 %v2820, 64
  %v2822 = vpop.permute.xlu0 %2821
  %2823 = vrot.lane.b32.xlu0 %v2819, 64
  %v2824 = vpop.permute.xlu0 %2823
  %v2827 = vsel %vm1151, %v2720, %v2822
  %v2828 = vsel %vm1151, %v2726, %v2824
  %v2829 = vld [vmem:[%s14] sm:$0xf]
  %v2830 = vld [vmem:[%s14 + $0x4] sm:$0xf]
  %v2831 = vld [vmem:[%s14 + $0x8] sm:$0xf]
  %v2832 = vld [vmem:[%s14 + $0xc] sm:$0xf]
  %v2833 = vld [vmem:[%s14 + $0x10] sm:$0x7]
  %v2834 = vunpack.c.l.bf16 %v2829
  %v2835 = vunpack.c.l.bf16 %v2830
  %v2836 = vunpack.c.l.bf16 %v2831
  %v2837 = vunpack.c.l.bf16 %v2832
  %v2838 = vunpack.c.l.bf16 %v2833
  %2840 = vrot.lane.b32.xlu0 %v2720, 64
  %v2841 = vpop.permute.xlu0 %2840
  %2842 = vrot.lane.b32.xlu0 %v2726, 64
  %v2843 = vpop.permute.xlu0 %2842
  %v2848 = vsel %vm1151, %v2841, %v2820
  %v2849 = vsel %vm1151, %v2843, %v2819
  %s2850 = scalar_lea.vmem %s14, 20
  %v2851 = vld [vmem:[%s2850] sm:$0xf]
  %v2852 = vld [vmem:[%s2850 + $0x4] sm:$0xf]
  %v2853 = vld [vmem:[%s2850 + $0x8] sm:$0xf]
  %v2854 = vld [vmem:[%s2850 + $0xc] sm:$0xf]
  %v2855 = vld [vmem:[%s2850 + $0x10] sm:$0x7]
  %v2856 = vunpack.c.l.bf16 %v2851
  %v2857 = vunpack.c.l.bf16 %v2852
  %v2858 = vunpack.c.l.bf16 %v2853
  %v2859 = vunpack.c.l.bf16 %v2854
  %v2860 = vunpack.c.l.bf16 %v2855
  %vm2861 = vcmask 89088
  %v2863 = vsel %vm2861, %v2856, 0
  %v2866 = vsel %vm2861, %v2857, 0
  %v2869 = vsel %vm2861, %v2858, 0
  %v2872 = vsel %vm2861, %v2859, 0
  %v2875 = vsel %vm2861, %v2860, 0
  %v2878 = vsel %vm1594, %v2849, 0
  %2880 = vmatprep.subr.mxu0 0.0
  %2881 = vmatpush1.msra.mxu0 %v2848
  %2882 = vmatprep.subr.mxu0 0.0
  %2883 = vmatpush1.msra.mxu0 %v2878
  %2884 = vmatprep.subr.mxu0 0.0
  %2885 = vmatpush1.msra.mxu0 0.0
  %2886 = vmatprep.subr.mxu0 0.0
  %2887 = vmatpush1.msra.mxu0 0.0
  %2888 = vmatprep.subr.mxu0 0.0
  %2889 = vmatpush1.msra.mxu0 0.0
  %2890 = vmatprep.subr.mxu0 0.0
  %2891 = vmatpush1.msra.mxu0 0.0
  %2892 = vmatprep.subr.mxu0 0.0
  %2893 = vmatpush1.msra.mxu0 0.0
  %2894 = vmatprep.subr.mxu0 0.0
  %2895 = vmatpush1.msra.mxu0 0.0
  %2896 = vmatprep.subr.mxu0 0.0
  %2897 = vmatpush1.msra.mxu0 0.0
  %2898 = vmatprep.subr.mxu0 0.0
  %2899 = vmatpush1.msra.mxu0 0.0
  %2900 = vmatprep.subr.mxu0 0.0
  %2901 = vmatpush1.msra.mxu0 0.0
  %2902 = vmatprep.subr.mxu0 0.0
  %2903 = vmatpush1.msra.mxu0 0.0
  %2904 = vmatprep.subr.mxu0 0.0
  %2905 = vmatpush1.msra.mxu0 0.0
  %2906 = vmatprep.subr.mxu0 0.0
  %2907 = vmatpush1.msra.mxu0 0.0
  %2908 = vmatprep.subr.mxu0 0.0
  %2909 = vmatpush1.msra.mxu0 0.0
  %2910 = vmatprep.subr.mxu0 0.0
  %2911 = vmatpush1.msra.mxu0 0.0
  %2912 = vmatprep.subr.mxu0 0.0
  %2913 = vmatpush1.msra.mxu0 0.0
  %2914 = vmatprep.subr.mxu0 0.0
  %2915 = vmatpush1.msra.mxu0 0.0
  %2916 = vmatprep.subr.mxu0 0.0
  %2917 = vmatpush1.msra.mxu0 0.0
  %2918 = vmatprep.subr.mxu0 0.0
  %2919 = vmatpush1.msra.mxu0 0.0
  %2920 = vmatprep.subr.mxu0 0.0
  %2921 = vmatpush1.msra.mxu0 0.0
  %2922 = vmatprep.subr.mxu0 0.0
  %2923 = vmatpush1.msra.mxu0 0.0
  %2924 = vmatprep.subr.mxu0 0.0
  %2925 = vmatpush1.msra.mxu0 0.0
  %2926 = vmatprep.subr.mxu0 0.0
  %2927 = vmatpush1.msra.mxu0 0.0
  %2928 = vmatprep.subr.mxu0 0.0
  %2929 = vmatpush1.msra.mxu0 0.0
  %2930 = vmatprep.subr.mxu0 0.0
  %2931 = vmatpush1.msra.mxu0 0.0
  %2932 = vmatprep.subr.mxu0 0.0
  %2933 = vmatpush1.msra.mxu0 0.0
  %2934 = vmatprep.subr.mxu0 0.0
  %2935 = vmatpush1.msra.mxu0 0.0
  %2936 = vmatprep.subr.mxu0 0.0
  %2937 = vmatpush1.msra.mxu0 0.0
  %2938 = vmatprep.subr.mxu0 0.0
  %2939 = vmatpush1.msra.mxu0 0.0
  %2940 = vmatprep.subr.mxu0 0.0
  %2941 = vmatpush1.msra.mxu0 0.0
  %2942 = vmatprep.subr.mxu0 0.0
  %2943 = vmatpush1.msra.mxu0 0.0
  %2944 = vmatprep.mubr.f32.mxu0 0.0
  %2945 = vmatmul.mubr.f32.gmra.mrb[0].mxu0 %v2863
  %v2946 = vpop.f32.mrb[0].mxu0
  %v2947 = vadd.f32 0.0, %v2946
  %v2948 = vpop.f32.mrb[0].mxu0
  %2949 = vmatprep.mubr.f32.mxu0 0.0
  %2950 = vmatmul.mubr.f32.gmra.mrb[0].mxu0 %v2866
  %v2951 = vpop.f32.mrb[0].mxu0
  %v2952 = vadd.f32 0.0, %v2951
  %v2953 = vpop.f32.mrb[0].mxu0
  %2954 = vmatprep.mubr.f32.mxu0 0.0
  %2955 = vmatmul.mubr.f32.gmra.mrb[0].mxu0 %v2869
  %v2956 = vpop.f32.mrb[0].mxu0
  %v2957 = vadd.f32 0.0, %v2956
  %v2958 = vpop.f32.mrb[0].mxu0
  %2959 = vmatprep.mubr.f32.mxu0 0.0
  %2960 = vmatmul.mubr.f32.gmra.mrb[0].mxu0 %v2872
  %v2961 = vpop.f32.mrb[0].mxu0
  %v2962 = vadd.f32 0.0, %v2961
  %v2963 = vpop.f32.mrb[0].mxu0
  %2964 = vmatprep.mubr.f32.mxu0 0.0
  %2965 = vmatmul.mubr.f32.gmra.mrb[0].mxu0 %v2875
  %v2966 = vpop.f32.mrb[0].mxu0
  %v2967 = vadd.f32 0.0, %v2966
  %v2968 = vpop.f32.mrb[0].mxu0
  %2969 = vdwg.mxu0
  %v2971 = vsel %vm2861, %v2834, 0
  %v2974 = vsel %vm2861, %v2835, 0
  %v2977 = vsel %vm2861, %v2836, 0
  %v2980 = vsel %vm2861, %v2837, 0
  %v2983 = vsel %vm2861, %v2838, 0
  %v2986 = vsel %vm1594, %v2828, 0
  %2988 = vmatprep.subr.mxu0 0.0
  %2989 = vmatpush1.msra.mxu0 %v2827
  %2990 = vmatprep.subr.mxu0 0.0
  %2991 = vmatpush1.msra.mxu0 %v2986
  %2992 = vmatprep.subr.mxu0 0.0
  %2993 = vmatpush1.msra.mxu0 0.0
  %2994 = vmatprep.subr.mxu0 0.0
  %2995 = vmatpush1.msra.mxu0 0.0
  %2996 = vmatprep.subr.mxu0 0.0
  %2997 = vmatpush1.msra.mxu0 0.0
  %2998 = vmatprep.subr.mxu0 0.0
  %2999 = vmatpush1.msra.mxu0 0.0
  %3000 = vmatprep.subr.mxu0 0.0
  %3001 = vmatpush1.msra.mxu0 0.0
  %3002 = vmatprep.subr.mxu0 0.0
  %3003 = vmatpush1.msra.mxu0 0.0
  %3004 = vmatprep.subr.mxu0 0.0
  %3005 = vmatpush1.msra.mxu0 0.0
  %3006 = vmatprep.subr.mxu0 0.0
  %3007 = vmatpush1.msra.mxu0 0.0
  %3008 = vmatprep.subr.mxu0 0.0
  %3009 = vmatpush1.msra.mxu0 0.0
  %3010 = vmatprep.subr.mxu0 0.0
  %3011 = vmatpush1.msra.mxu0 0.0
  %3012 = vmatprep.subr.mxu0 0.0
  %3013 = vmatpush1.msra.mxu0 0.0
  %3014 = vmatprep.subr.mxu0 0.0
  %3015 = vmatpush1.msra.mxu0 0.0
  %3016 = vmatprep.subr.mxu0 0.0
  %3017 = vmatpush1.msra.mxu0 0.0
  %3018 = vmatprep.subr.mxu0 0.0
  %3019 = vmatpush1.msra.mxu0 0.0
  %3020 = vmatprep.subr.mxu0 0.0
  %3021 = vmatpush1.msra.mxu0 0.0
  %3022 = vmatprep.subr.mxu0 0.0
  %3023 = vmatpush1.msra.mxu0 0.0
  %3024 = vmatprep.subr.mxu0 0.0
  %3025 = vmatpush1.msra.mxu0 0.0
  %3026 = vmatprep.subr.mxu0 0.0
  %3027 = vmatpush1.msra.mxu0 0.0
  %3028 = vmatprep.subr.mxu0 0.0
  %3029 = vmatpush1.msra.mxu0 0.0
  %3030 = vmatprep.subr.mxu0 0.0
  %3031 = vmatpush1.msra.mxu0 0.0
  %3032 = vmatprep.subr.mxu0 0.0
  %3033 = vmatpush1.msra.mxu0 0.0
  %3034 = vmatprep.subr.mxu0 0.0
  %3035 = vmatpush1.msra.mxu0 0.0
  %3036 = vmatprep.subr.mxu0 0.0
  %3037 = vmatpush1.msra.mxu0 0.0
  %3038 = vmatprep.subr.mxu0 0.0
  %3039 = vmatpush1.msra.mxu0 0.0
  %3040 = vmatprep.subr.mxu0 0.0
  %3041 = vmatpush1.msra.mxu0 0.0
  %3042 = vmatprep.subr.mxu0 0.0
  %3043 = vmatpush1.msra.mxu0 0.0
  %3044 = vmatprep.subr.mxu0 0.0
  %3045 = vmatpush1.msra.mxu0 0.0
  %3046 = vmatprep.subr.mxu0 0.0
  %3047 = vmatpush1.msra.mxu0 0.0
  %3048 = vmatprep.subr.mxu0 0.0
  %3049 = vmatpush1.msra.mxu0 0.0
  %3050 = vmatprep.subr.mxu0 0.0
  %3051 = vmatpush1.msra.mxu0 0.0
  %3052 = vmatprep.mubr.f32.mxu0 0.0
  %3053 = vmatmul.mubr.f32.gmra.mrb[0].mxu0 %v2971
  %v3054 = vpop.f32.mrb[0].mxu0
  %v3055 = vadd.f32 %v2947, %v3054
  %v3056 = vpop.f32.mrb[0].mxu0
  %3057 = vmatprep.mubr.f32.mxu0 0.0
  %3058 = vmatmul.mubr.f32.gmra.mrb[0].mxu0 %v2974
  %v3059 = vpop.f32.mrb[0].mxu0
  %v3060 = vadd.f32 %v2952, %v3059
  %v3061 = vpop.f32.mrb[0].mxu0
  %3062 = vmatprep.mubr.f32.mxu0 0.0
  %3063 = vmatmul.mubr.f32.gmra.mrb[0].mxu0 %v2977
  %v3064 = vpop.f32.mrb[0].mxu0
  %v3065 = vadd.f32 %v2957, %v3064
  %v3066 = vpop.f32.mrb[0].mxu0
  %3067 = vmatprep.mubr.f32.mxu0 0.0
  %3068 = vmatmul.mubr.f32.gmra.mrb[0].mxu0 %v2980
  %v3069 = vpop.f32.mrb[0].mxu0
  %v3070 = vadd.f32 %v2962, %v3069
  %v3071 = vpop.f32.mrb[0].mxu0
  %3072 = vmatprep.mubr.f32.mxu0 0.0
  %3073 = vmatmul.mubr.f32.gmra.mrb[0].mxu0 %v2983
  %v3074 = vpop.f32.mrb[0].mxu0
  %v3075 = vadd.f32 %v2967, %v3074
  %v3076 = vpop.f32.mrb[0].mxu0
  %3077 = vdwg.mxu0
  %v3080 = vrot.slane %v2728, 3
  %v3081 = vrot.slane %v2734, 3
  %v3082 = vsel %vm1107, %v3080, %v3081
  %3083 = vrot.lane.b32.xlu0 %v3082, 64
  %v3084 = vpop.permute.xlu0 %3083
  %3085 = vrot.lane.b32.xlu0 %v3081, 64
  %v3086 = vpop.permute.xlu0 %3085
  %v3089 = vsel %vm1151, %v2722, %v3084
  %v3090 = vsel %vm1151, %v2728, %v3086
  %s3091 = scalar_lea.vmem %s14, 40
  %v3092 = vld [vmem:[%s3091] sm:$0xf]
  %v3093 = vld [vmem:[%s3091 + $0x4] sm:$0xf]
  %v3094 = vld [vmem:[%s3091 + $0x8] sm:$0xf]
  %v3095 = vld [vmem:[%s3091 + $0xc] sm:$0xf]
  %v3096 = vld [vmem:[%s3091 + $0x10] sm:$0x7]
  %v3097 = vunpack.c.l.bf16 %v3092
  %v3098 = vunpack.c.l.bf16 %v3093
  %v3099 = vunpack.c.l.bf16 %v3094
  %v3100 = vunpack.c.l.bf16 %v3095
  %v3101 = vunpack.c.l.bf16 %v3096
  %v3103 = vsel %vm2861, %v3097, 0
  %v3106 = vsel %vm2861, %v3098, 0
  %v3109 = vsel %vm2861, %v3099, 0
  %v3112 = vsel %vm2861, %v3100, 0
  %v3115 = vsel %vm2861, %v3101, 0
  %v3118 = vsel %vm1594, %v3090, 0
  %3120 = vmatprep.subr.mxu0 0.0
  %3121 = vmatpush1.msra.mxu0 %v3089
  %3122 = vmatprep.subr.mxu0 0.0
  %3123 = vmatpush1.msra.mxu0 %v3118
  %3124 = vmatprep.subr.mxu0 0.0
  %3125 = vmatpush1.msra.mxu0 0.0
  %3126 = vmatprep.subr.mxu0 0.0
  %3127 = vmatpush1.msra.mxu0 0.0
  %3128 = vmatprep.subr.mxu0 0.0
  %3129 = vmatpush1.msra.mxu0 0.0
  %3130 = vmatprep.subr.mxu0 0.0
  %3131 = vmatpush1.msra.mxu0 0.0
  %3132 = vmatprep.subr.mxu0 0.0
  %3133 = vmatpush1.msra.mxu0 0.0
  %3134 = vmatprep.subr.mxu0 0.0
  %3135 = vmatpush1.msra.mxu0 0.0
  %3136 = vmatprep.subr.mxu0 0.0
  %3137 = vmatpush1.msra.mxu0 0.0
  %3138 = vmatprep.subr.mxu0 0.0
  %3139 = vmatpush1.msra.mxu0 0.0
  %3140 = vmatprep.subr.mxu0 0.0
  %3141 = vmatpush1.msra.mxu0 0.0
  %3142 = vmatprep.subr.mxu0 0.0
  %3143 = vmatpush1.msra.mxu0 0.0
  %3144 = vmatprep.subr.mxu0 0.0
  %3145 = vmatpush1.msra.mxu0 0.0
  %3146 = vmatprep.subr.mxu0 0.0
  %3147 = vmatpush1.msra.mxu0 0.0
  %3148 = vmatprep.subr.mxu0 0.0
  %3149 = vmatpush1.msra.mxu0 0.0
  %3150 = vmatprep.subr.mxu0 0.0
  %3151 = vmatpush1.msra.mxu0 0.0
  %3152 = vmatprep.subr.mxu0 0.0
  %3153 = vmatpush1.msra.mxu0 0.0
  %3154 = vmatprep.subr.mxu0 0.0
  %3155 = vmatpush1.msra.mxu0 0.0
  %3156 = vmatprep.subr.mxu0 0.0
  %3157 = vmatpush1.msra.mxu0 0.0
  %3158 = vmatprep.subr.mxu0 0.0
  %3159 = vmatpush1.msra.mxu0 0.0
  %3160 = vmatprep.subr.mxu0 0.0
  %3161 = vmatpush1.msra.mxu0 0.0
  %3162 = vmatprep.subr.mxu0 0.0
  %3163 = vmatpush1.msra.mxu0 0.0
  %3164 = vmatprep.subr.mxu0 0.0
  %3165 = vmatpush1.msra.mxu0 0.0
  %3166 = vmatprep.subr.mxu0 0.0
  %3167 = vmatpush1.msra.mxu0 0.0
  %3168 = vmatprep.subr.mxu0 0.0
  %3169 = vmatpush1.msra.mxu0 0.0
  %3170 = vmatprep.subr.mxu0 0.0
  %3171 = vmatpush1.msra.mxu0 0.0
  %3172 = vmatprep.subr.mxu0 0.0
  %3173 = vmatpush1.msra.mxu0 0.0
  %3174 = vmatprep.subr.mxu0 0.0
  %3175 = vmatpush1.msra.mxu0 0.0
  %3176 = vmatprep.subr.mxu0 0.0
  %3177 = vmatpush1.msra.mxu0 0.0
  %3178 = vmatprep.subr.mxu0 0.0
  %3179 = vmatpush1.msra.mxu0 0.0
  %3180 = vmatprep.subr.mxu0 0.0
  %3181 = vmatpush1.msra.mxu0 0.0
  %3182 = vmatprep.subr.mxu0 0.0
  %3183 = vmatpush1.msra.mxu0 0.0
  %3184 = vmatprep.mubr.f32.mxu0 0.0
  %3185 = vmatmul.mubr.f32.gmra.mrb[0].mxu0 %v3103
  %v3186 = vpop.f32.mrb[0].mxu0
  %v3187 = vadd.f32 0.0, %v3186
  %v3188 = vpop.f32.mrb[0].mxu0
  %3189 = vmatprep.mubr.f32.mxu0 0.0
  %3190 = vmatmul.mubr.f32.gmra.mrb[0].mxu0 %v3106
  %v3191 = vpop.f32.mrb[0].mxu0
  %v3192 = vadd.f32 0.0, %v3191
  %v3193 = vpop.f32.mrb[0].mxu0
  %3194 = vmatprep.mubr.f32.mxu0 0.0
  %3195 = vmatmul.mubr.f32.gmra.mrb[0].mxu0 %v3109
  %v3196 = vpop.f32.mrb[0].mxu0
  %v3197 = vadd.f32 0.0, %v3196
  %v3198 = vpop.f32.mrb[0].mxu0
  %3199 = vmatprep.mubr.f32.mxu0 0.0
  %3200 = vmatmul.mubr.f32.gmra.mrb[0].mxu0 %v3112
  %v3201 = vpop.f32.mrb[0].mxu0
  %v3202 = vadd.f32 0.0, %v3201
  %v3203 = vpop.f32.mrb[0].mxu0
  %3204 = vmatprep.mubr.f32.mxu0 0.0
  %3205 = vmatmul.mubr.f32.gmra.mrb[0].mxu0 %v3115
  %v3206 = vpop.f32.mrb[0].mxu0
  %v3207 = vadd.f32 0.0, %v3206
  %v3208 = vpop.f32.mrb[0].mxu0
  %3209 = vdwg.mxu0
  %v3210 = vadd.f32 %v3055, %v3187
  %v3211 = vadd.f32 %v3060, %v3192
  %v3212 = vadd.f32 %v3065, %v3197
  %v3213 = vadd.f32 %v3070, %v3202
  %v3214 = vadd.f32 %v3075, %v3207
  %3216 = vrot.lane.b32.xlu0 %v2722, 64
  %v3217 = vpop.permute.xlu0 %3216
  %3218 = vrot.lane.b32.xlu0 %v2728, 64
  %v3219 = vpop.permute.xlu0 %3218
  %v3224 = vsel %vm1151, %v3217, %v3082
  %v3225 = vsel %vm1151, %v3219, %v3081
  %s3226 = scalar_lea.vmem %s14, 60
  %v3227 = vld [vmem:[%s3226] sm:$0xf]
  %v3228 = vld [vmem:[%s3226 + $0x4] sm:$0xf]
  %v3229 = vld [vmem:[%s3226 + $0x8] sm:$0xf]
  %v3230 = vld [vmem:[%s3226 + $0xc] sm:$0xf]
  %v3231 = vld [vmem:[%s3226 + $0x10] sm:$0x7]
  %v3232 = vunpack.c.l.bf16 %v3227
  %v3233 = vunpack.c.l.bf16 %v3228
  %v3234 = vunpack.c.l.bf16 %v3229
  %v3235 = vunpack.c.l.bf16 %v3230
  %v3236 = vunpack.c.l.bf16 %v3231
  %v3238 = vsel %vm2861, %v3232, 0
  %v3241 = vsel %vm2861, %v3233, 0
  %v3244 = vsel %vm2861, %v3234, 0
  %v3247 = vsel %vm2861, %v3235, 0
  %v3250 = vsel %vm2861, %v3236, 0
  %v3253 = vsel %vm1594, %v3225, 0
  %3255 = vmatprep.subr.mxu0 0.0
  %3256 = vmatpush1.msra.mxu0 %v3224
  %3257 = vmatprep.subr.mxu0 0.0
  %3258 = vmatpush1.msra.mxu0 %v3253
  %3259 = vmatprep.subr.mxu0 0.0
  %3260 = vmatpush1.msra.mxu0 0.0
  %3261 = vmatprep.subr.mxu0 0.0
  %3262 = vmatpush1.msra.mxu0 0.0
  %3263 = vmatprep.subr.mxu0 0.0
  %3264 = vmatpush1.msra.mxu0 0.0
  %3265 = vmatprep.subr.mxu0 0.0
  %3266 = vmatpush1.msra.mxu0 0.0
  %3267 = vmatprep.subr.mxu0 0.0
  %3268 = vmatpush1.msra.mxu0 0.0
  %3269 = vmatprep.subr.mxu0 0.0
  %3270 = vmatpush1.msra.mxu0 0.0
  %3271 = vmatprep.subr.mxu0 0.0
  %3272 = vmatpush1.msra.mxu0 0.0
  %3273 = vmatprep.subr.mxu0 0.0
  %3274 = vmatpush1.msra.mxu0 0.0
  %3275 = vmatprep.subr.mxu0 0.0
  %3276 = vmatpush1.msra.mxu0 0.0
  %3277 = vmatprep.subr.mxu0 0.0
  %3278 = vmatpush1.msra.mxu0 0.0
  %3279 = vmatprep.subr.mxu0 0.0
  %3280 = vmatpush1.msra.mxu0 0.0
  %3281 = vmatprep.subr.mxu0 0.0
  %3282 = vmatpush1.msra.mxu0 0.0
  %3283 = vmatprep.subr.mxu0 0.0
  %3284 = vmatpush1.msra.mxu0 0.0
  %3285 = vmatprep.subr.mxu0 0.0
  %3286 = vmatpush1.msra.mxu0 0.0
  %3287 = vmatprep.subr.mxu0 0.0
  %3288 = vmatpush1.msra.mxu0 0.0
  %3289 = vmatprep.subr.mxu0 0.0
  %3290 = vmatpush1.msra.mxu0 0.0
  %3291 = vmatprep.subr.mxu0 0.0
  %3292 = vmatpush1.msra.mxu0 0.0
  %3293 = vmatprep.subr.mxu0 0.0
  %3294 = vmatpush1.msra.mxu0 0.0
  %3295 = vmatprep.subr.mxu0 0.0
  %3296 = vmatpush1.msra.mxu0 0.0
  %3297 = vmatprep.subr.mxu0 0.0
  %3298 = vmatpush1.msra.mxu0 0.0
  %3299 = vmatprep.subr.mxu0 0.0
  %3300 = vmatpush1.msra.mxu0 0.0
  %3301 = vmatprep.subr.mxu0 0.0
  %3302 = vmatpush1.msra.mxu0 0.0
  %3303 = vmatprep.subr.mxu0 0.0
  %3304 = vmatpush1.msra.mxu0 0.0
  %3305 = vmatprep.subr.mxu0 0.0
  %3306 = vmatpush1.msra.mxu0 0.0
  %3307 = vmatprep.subr.mxu0 0.0
  %3308 = vmatpush1.msra.mxu0 0.0
  %3309 = vmatprep.subr.mxu0 0.0
  %3310 = vmatpush1.msra.mxu0 0.0
  %3311 = vmatprep.subr.mxu0 0.0
  %3312 = vmatpush1.msra.mxu0 0.0
  %3313 = vmatprep.subr.mxu0 0.0
  %3314 = vmatpush1.msra.mxu0 0.0
  %3315 = vmatprep.subr.mxu0 0.0
  %3316 = vmatpush1.msra.mxu0 0.0
  %3317 = vmatprep.subr.mxu0 0.0
  %3318 = vmatpush1.msra.mxu0 0.0
  %3319 = vmatprep.mubr.f32.mxu0 0.0
  %3320 = vmatmul.mubr.f32.gmra.mrb[0].mxu0 %v3238
  %v3321 = vpop.f32.mrb[0].mxu0
  %v3322 = vadd.f32 0.0, %v3321
  %v3323 = vpop.f32.mrb[0].mxu0
  %3324 = vmatprep.mubr.f32.mxu0 0.0
  %3325 = vmatmul.mubr.f32.gmra.mrb[0].mxu0 %v3241
  %v3326 = vpop.f32.mrb[0].mxu0
  %v3327 = vadd.f32 0.0, %v3326
  %v3328 = vpop.f32.mrb[0].mxu0
  %3329 = vmatprep.mubr.f32.mxu0 0.0
  %3330 = vmatmul.mubr.f32.gmra.mrb[0].mxu0 %v3244
  %v3331 = vpop.f32.mrb[0].mxu0
  %v3332 = vadd.f32 0.0, %v3331
  %v3333 = vpop.f32.mrb[0].mxu0
  %3334 = vmatprep.mubr.f32.mxu0 0.0
  %3335 = vmatmul.mubr.f32.gmra.mrb[0].mxu0 %v3247
  %v3336 = vpop.f32.mrb[0].mxu0
  %v3337 = vadd.f32 0.0, %v3336
  %v3338 = vpop.f32.mrb[0].mxu0
  %3339 = vmatprep.mubr.f32.mxu0 0.0
  %3340 = vmatmul.mubr.f32.gmra.mrb[0].mxu0 %v3250
  %v3341 = vpop.f32.mrb[0].mxu0
  %v3342 = vadd.f32 0.0, %v3341
  %v3343 = vpop.f32.mrb[0].mxu0
  %3344 = vdwg.mxu0
  %v3345 = vadd.f32 %v3210, %v3322
  %v3346 = vadd.f32 %v3211, %v3327
  %v3347 = vadd.f32 %v3212, %v3332
  %v3348 = vadd.f32 %v3213, %v3337
  %v3349 = vadd.f32 %v3214, %v3342
  %v3352 = vrot.slane %v2808, 3
  %v3353 = vrot.slane %v2813, 3
  %v3354 = vsel %vm1107, %v3352, %v3353
  %3355 = vrot.lane.b32.xlu0 %v3354, 64
  %v3356 = vpop.permute.xlu0 %3355
  %3357 = vrot.lane.b32.xlu0 %v3353, 64
  %v3358 = vpop.permute.xlu0 %3357
  %v3361 = vsel %vm1151, %v2803, %v3356
  %v3362 = vsel %vm1151, %v2808, %v3358
  %s3363 = scalar_lea.vmem %s14, 80
  %v3364 = vld [vmem:[%s3363] sm:$0xf]
  %v3365 = vld [vmem:[%s3363 + $0x4] sm:$0xf]
  %v3366 = vld [vmem:[%s3363 + $0x8] sm:$0xf]
  %v3367 = vld [vmem:[%s3363 + $0xc] sm:$0xf]
  %v3368 = vld [vmem:[%s3363 + $0x10] sm:$0x7]
  %v3369 = vunpack.c.l.bf16 %v3364
  %v3370 = vunpack.c.l.bf16 %v3365
  %v3371 = vunpack.c.l.bf16 %v3366
  %v3372 = vunpack.c.l.bf16 %v3367
  %v3373 = vunpack.c.l.bf16 %v3368
  %v3375 = vsel %vm2861, %v3369, 0
  %v3378 = vsel %vm2861, %v3370, 0
  %v3381 = vsel %vm2861, %v3371, 0
  %v3384 = vsel %vm2861, %v3372, 0
  %v3387 = vsel %vm2861, %v3373, 0
  %v3390 = vsel %vm1594, %v3362, 0
  %3392 = vmatprep.subr.mxu0 0.0
  %3393 = vmatpush1.msra.mxu0 %v3361
  %3394 = vmatprep.subr.mxu0 0.0
  %3395 = vmatpush1.msra.mxu0 %v3390
  %3396 = vmatprep.subr.mxu0 0.0
  %3397 = vmatpush1.msra.mxu0 0.0
  %3398 = vmatprep.subr.mxu0 0.0
  %3399 = vmatpush1.msra.mxu0 0.0
  %3400 = vmatprep.subr.mxu0 0.0
  %3401 = vmatpush1.msra.mxu0 0.0
  %3402 = vmatprep.subr.mxu0 0.0
  %3403 = vmatpush1.msra.mxu0 0.0
  %3404 = vmatprep.subr.mxu0 0.0
  %3405 = vmatpush1.msra.mxu0 0.0
  %3406 = vmatprep.subr.mxu0 0.0
  %3407 = vmatpush1.msra.mxu0 0.0
  %3408 = vmatprep.subr.mxu0 0.0
  %3409 = vmatpush1.msra.mxu0 0.0
  %3410 = vmatprep.subr.mxu0 0.0
  %3411 = vmatpush1.msra.mxu0 0.0
  %3412 = vmatprep.subr.mxu0 0.0
  %3413 = vmatpush1.msra.mxu0 0.0
  %3414 = vmatprep.subr.mxu0 0.0
  %3415 = vmatpush1.msra.mxu0 0.0
  %3416 = vmatprep.subr.mxu0 0.0
  %3417 = vmatpush1.msra.mxu0 0.0
  %3418 = vmatprep.subr.mxu0 0.0
  %3419 = vmatpush1.msra.mxu0 0.0
  %3420 = vmatprep.subr.mxu0 0.0
  %3421 = vmatpush1.msra.mxu0 0.0
  %3422 = vmatprep.subr.mxu0 0.0
  %3423 = vmatpush1.msra.mxu0 0.0
  %3424 = vmatprep.subr.mxu0 0.0
  %3425 = vmatpush1.msra.mxu0 0.0
  %3426 = vmatprep.subr.mxu0 0.0
  %3427 = vmatpush1.msra.mxu0 0.0
  %3428 = vmatprep.subr.mxu0 0.0
  %3429 = vmatpush1.msra.mxu0 0.0
  %3430 = vmatprep.subr.mxu0 0.0
  %3431 = vmatpush1.msra.mxu0 0.0
  %3432 = vmatprep.subr.mxu0 0.0
  %3433 = vmatpush1.msra.mxu0 0.0
  %3434 = vmatprep.subr.mxu0 0.0
  %3435 = vmatpush1.msra.mxu0 0.0
  %3436 = vmatprep.subr.mxu0 0.0
  %3437 = vmatpush1.msra.mxu0 0.0
  %3438 = vmatprep.subr.mxu0 0.0
  %3439 = vmatpush1.msra.mxu0 0.0
  %3440 = vmatprep.subr.mxu0 0.0
  %3441 = vmatpush1.msra.mxu0 0.0
  %3442 = vmatprep.subr.mxu0 0.0
  %3443 = vmatpush1.msra.mxu0 0.0
  %3444 = vmatprep.subr.mxu0 0.0
  %3445 = vmatpush1.msra.mxu0 0.0
  %3446 = vmatprep.subr.mxu0 0.0
  %3447 = vmatpush1.msra.mxu0 0.0
  %3448 = vmatprep.subr.mxu0 0.0
  %3449 = vmatpush1.msra.mxu0 0.0
  %3450 = vmatprep.subr.mxu0 0.0
  %3451 = vmatpush1.msra.mxu0 0.0
  %3452 = vmatprep.subr.mxu0 0.0
  %3453 = vmatpush1.msra.mxu0 0.0
  %3454 = vmatprep.subr.mxu0 0.0
  %3455 = vmatpush1.msra.mxu0 0.0
  %3456 = vmatprep.mubr.f32.mxu0 0.0
  %3457 = vmatmul.mubr.f32.gmra.mrb[0].mxu0 %v3375
  %v3458 = vpop.f32.mrb[0].mxu0
  %v3459 = vadd.f32 0.0, %v3458
  %v3460 = vpop.f32.mrb[0].mxu0
  %3461 = vmatprep.mubr.f32.mxu0 0.0
  %3462 = vmatmul.mubr.f32.gmra.mrb[0].mxu0 %v3378
  %v3463 = vpop.f32.mrb[0].mxu0
  %v3464 = vadd.f32 0.0, %v3463
  %v3465 = vpop.f32.mrb[0].mxu0
  %3466 = vmatprep.mubr.f32.mxu0 0.0
  %3467 = vmatmul.mubr.f32.gmra.mrb[0].mxu0 %v3381
  %v3468 = vpop.f32.mrb[0].mxu0
  %v3469 = vadd.f32 0.0, %v3468
  %v3470 = vpop.f32.mrb[0].mxu0
  %3471 = vmatprep.mubr.f32.mxu0 0.0
  %3472 = vmatmul.mubr.f32.gmra.mrb[0].mxu0 %v3384
  %v3473 = vpop.f32.mrb[0].mxu0
  %v3474 = vadd.f32 0.0, %v3473
  %v3475 = vpop.f32.mrb[0].mxu0
  %3476 = vmatprep.mubr.f32.mxu0 0.0
  %3477 = vmatmul.mubr.f32.gmra.mrb[0].mxu0 %v3387
  %v3478 = vpop.f32.mrb[0].mxu0
  %v3479 = vadd.f32 0.0, %v3478
  %v3480 = vpop.f32.mrb[0].mxu0
  %3481 = vdwg.mxu0
  %v3482 = vadd.f32 %v3345, %v3459
  %v3483 = vadd.f32 %v3346, %v3464
  %v3484 = vadd.f32 %v3347, %v3469
  %v3485 = vadd.f32 %v3348, %v3474
  %v3486 = vadd.f32 %v3349, %v3479
  %v3492 = vrot.slane %v3482, 3
  %v3493 = vrot.slane %v3483, 3
  %v3494 = vsel %vm1107, %v3492, %v3493
  %v3495 = vrot.slane %v3484, 3
  %v3496 = vsel %vm1107, %v3493, %v3495
  %v3497 = vrot.slane %v3485, 3
  %v3498 = vsel %vm1107, %v3495, %v3497
  %v3499 = vrot.slane %v3486, 3
  %v3500 = vsel %vm1107, %v3497, %v3499
  %3501 = vrot.lane.b32.xlu0 %v3492, 64
  %v3502 = vpop.permute.xlu0 %3501
  %3503 = vrot.lane.b32.xlu0 %v3494, 64
  %v3504 = vpop.permute.xlu0 %3503
  %3505 = vrot.lane.b32.xlu0 %v3496, 64
  %v3506 = vpop.permute.xlu0 %3505
  %3507 = vrot.lane.b32.xlu0 %v3498, 64
  %v3508 = vpop.permute.xlu0 %3507
  %3509 = vrot.lane.b32.xlu0 %v3500, 64
  %v3510 = vpop.permute.xlu0 %3509
  %3511 = vrot.lane.b32.xlu0 %v3499, 64
  %v3512 = vpop.permute.xlu0 %3511
  %v3519 = vsel %vm1107, %v3486, %v3502
  %v3520 = vld [vmem:[%s13] sm:$0x1]
  %v3522 = vlaneseq
  %v3523 = vshrl.u32 %v3522, 7
  %v3524 = vsub.s32 0, %v3523
  %v3525 = vrot.slane %v3520, %v3524
  %v3527 = vadd.f32 %v3482, %v3525
  %v3528 = vadd.f32 %v3483, %v3525
  %v3529 = vadd.f32 %v3484, %v3525
  %v3530 = vadd.f32 %v3485, %v3525
  %v3531 = vadd.f32 %v3519, %v3525
  %v3532 = vadd.f32 %v3504, %v3525
  %v3533 = vadd.f32 %v3506, %v3525
  %v3534 = vadd.f32 %v3508, %v3525
  %v3535 = vadd.f32 %v3510, %v3525
  %v3536 = vadd.f32 %v3512, %v3525
  %vm3537 = vcmp.gt.f32.partialorder %v3527, 0.0
  %vm3538 = vcmp.gt.f32.partialorder %v3528, 0.0
  %vm3539 = vcmp.gt.f32.partialorder %v3529, 0.0
  %vm3540 = vcmp.gt.f32.partialorder %v3530, 0.0
  %vm3541 = vcmp.gt.f32.partialorder %v3531, 0.0
  %vm3542 = vcmp.gt.f32.partialorder %v3532, 0.0
  %vm3543 = vcmp.gt.f32.partialorder %v3533, 0.0
  %vm3544 = vcmp.gt.f32.partialorder %v3534, 0.0
  %vm3545 = vcmp.gt.f32.partialorder %v3535, 0.0
  %vm3546 = vcmp.gt.f32.partialorder %v3536, 0.0
  %v3547 = vmul.f32 %v3527, 0.01
  %v3548 = vmul.f32 %v3528, 0.01
  %v3549 = vmul.f32 %v3529, 0.01
  %v3550 = vmul.f32 %v3530, 0.01
  %v3551 = vmul.f32 %v3531, 0.01
  %v3552 = vmul.f32 %v3532, 0.01
  %v3553 = vmul.f32 %v3533, 0.01
  %v3554 = vmul.f32 %v3534, 0.01
  %v3555 = vmul.f32 %v3535, 0.01
  %v3556 = vmul.f32 %v3536, 0.01
  %v3557 = vsel %vm3537, %v3527, %v3547
  %v3558 = vsel %vm3538, %v3528, %v3548
  %v3559 = vsel %vm3539, %v3529, %v3549
  %v3560 = vsel %vm3540, %v3530, %v3550
  %v3561 = vsel %vm3541, %v3531, %v3551
  %v3562 = vsel %vm3542, %v3532, %v3552
  %v3563 = vsel %vm3543, %v3533, %v3553
  %v3564 = vsel %vm3544, %v3534, %v3554
  %v3565 = vsel %vm3545, %v3535, %v3555
  %v3566 = vsel %vm3546, %v3536, %v3556
  %v3567 = vld [vmem:[%s15] sm:$0xff]
  %v3568 = vld [vmem:[%s15 + $0x8] sm:$0xff]
  %v3569 = vld [vmem:[%s15 + $0x10] sm:$0xff]
  %v3570 = vld [vmem:[%s15 + $0x18] sm:$0xff]
  %v3571 = vld [vmem:[%s15 + $0x20] sm:$0xff]
  %v3572 = vld [vmem:[%s15 + $0x28] sm:$0xff]
  %v3573 = vld [vmem:[%s15 + $0x30] sm:$0xff]
  %v3574 = vld [vmem:[%s15 + $0x38] sm:$0xff]
  %v3575 = vld [vmem:[%s15 + $0x40] sm:$0xff]
  %v3576 = vld [vmem:[%s15 + $0x48] sm:$0xff]
  %v3577 = vld [vmem:[%s15 + $0x50] sm:$0xff]
  %v3578 = vld [vmem:[%s15 + $0x58] sm:$0xff]
  %v3579 = vld [vmem:[%s15 + $0x60] sm:$0xff]
  %v3580 = vld [vmem:[%s15 + $0x68] sm:$0xff]
  %v3581 = vld [vmem:[%s15 + $0x70] sm:$0xff]
  %v3582 = vld [vmem:[%s15 + $0x78] sm:$0xff]
  %v3584 = vsel %vm1151, %v3557, 0
  %v3587 = vsel %vm1151, %v3558, 0
  %v3590 = vsel %vm1151, %v3559, 0
  %v3593 = vsel %vm1151, %v3560, 0
  %v3596 = vsel %vm1151, %v3561, 0
  %v3599 = vsel %vm1151, %v3562, 0
  %v3602 = vsel %vm1151, %v3563, 0
  %v3605 = vsel %vm1151, %v3564, 0
  %v3608 = vsel %vm1151, %v3565, 0
  %v3611 = vsel %vm1151, %v3566, 0
  %3613 = vmatprep.subr.mxu0 %v3568
  %3614 = vmatpush1.msra.mxu0 %v3567
  %3615 = vmatprep.subr.mxu0 %v3570
  %3616 = vmatpush1.msra.mxu0 %v3569
  %3617 = vmatprep.subr.mxu0 %v3572
  %3618 = vmatpush1.msra.mxu0 %v3571
  %3619 = vmatprep.subr.mxu0 %v3574
  %3620 = vmatpush1.msra.mxu0 %v3573
  %3621 = vmatprep.subr.mxu0 %v3576
  %3622 = vmatpush1.msra.mxu0 %v3575
  %3623 = vmatprep.subr.mxu0 %v3578
  %3624 = vmatpush1.msra.mxu0 %v3577
  %3625 = vmatprep.subr.mxu0 %v3580
  %3626 = vmatpush1.msra.mxu0 %v3579
  %3627 = vmatprep.subr.mxu0 %v3582
  %3628 = vmatpush1.msra.mxu0 %v3581
  %3629 = vmatprep.subr.mxu0 0.0
  %3630 = vmatpush1.msra.mxu0 0.0
  %3631 = vmatprep.subr.mxu0 0.0
  %3632 = vmatpush1.msra.mxu0 0.0
  %3633 = vmatprep.subr.mxu0 0.0
  %3634 = vmatpush1.msra.mxu0 0.0
  %3635 = vmatprep.subr.mxu0 0.0
  %3636 = vmatpush1.msra.mxu0 0.0
  %3637 = vmatprep.subr.mxu0 0.0
  %3638 = vmatpush1.msra.mxu0 0.0
  %3639 = vmatprep.subr.mxu0 0.0
  %3640 = vmatpush1.msra.mxu0 0.0
  %3641 = vmatprep.subr.mxu0 0.0
  %3642 = vmatpush1.msra.mxu0 0.0
  %3643 = vmatprep.subr.mxu0 0.0
  %3644 = vmatpush1.msra.mxu0 0.0
  %3645 = vmatprep.subr.mxu0 0.0
  %3646 = vmatpush1.msra.mxu0 0.0
  %3647 = vmatprep.subr.mxu0 0.0
  %3648 = vmatpush1.msra.mxu0 0.0
  %3649 = vmatprep.subr.mxu0 0.0
  %3650 = vmatpush1.msra.mxu0 0.0
  %3651 = vmatprep.subr.mxu0 0.0
  %3652 = vmatpush1.msra.mxu0 0.0
  %3653 = vmatprep.subr.mxu0 0.0
  %3654 = vmatpush1.msra.mxu0 0.0
  %3655 = vmatprep.subr.mxu0 0.0
  %3656 = vmatpush1.msra.mxu0 0.0
  %3657 = vmatprep.subr.mxu0 0.0
  %3658 = vmatpush1.msra.mxu0 0.0
  %3659 = vmatprep.subr.mxu0 0.0
  %3660 = vmatpush1.msra.mxu0 0.0
  %3661 = vmatprep.subr.mxu0 0.0
  %3662 = vmatpush1.msra.mxu0 0.0
  %3663 = vmatprep.subr.mxu0 0.0
  %3664 = vmatpush1.msra.mxu0 0.0
  %3665 = vmatprep.subr.mxu0 0.0
  %3666 = vmatpush1.msra.mxu0 0.0
  %3667 = vmatprep.subr.mxu0 0.0
  %3668 = vmatpush1.msra.mxu0 0.0
  %3669 = vmatprep.subr.mxu0 0.0
  %3670 = vmatpush1.msra.mxu0 0.0
  %3671 = vmatprep.subr.mxu0 0.0
  %3672 = vmatpush1.msra.mxu0 0.0
  %3673 = vmatprep.subr.mxu0 0.0
  %3674 = vmatpush1.msra.mxu0 0.0
  %3675 = vmatprep.subr.mxu0 0.0
  %3676 = vmatpush1.msra.mxu0 0.0
  %3677 = vmatprep.mubr.f32.mxu0 0.0
  %3678 = vmatmul.mubr.f32.gmra.mrb[0].mxu0 %v3584
  %v3679 = vpop.f32.mrb[0].mxu0
  %v3680 = vadd.f32 0.0, %v3679
  %v3681 = vpop.f32.mrb[0].mxu0
  %v3682 = vadd.f32 0.0, %v3681
  %3683 = vmatprep.mubr.f32.mxu0 0.0
  %3684 = vmatmul.mubr.f32.gmra.mrb[0].mxu0 %v3587
  %v3685 = vpop.f32.mrb[0].mxu0
  %v3686 = vadd.f32 0.0, %v3685
  %v3687 = vpop.f32.mrb[0].mxu0
  %v3688 = vadd.f32 0.0, %v3687
  %3689 = vmatprep.mubr.f32.mxu0 0.0
  %3690 = vmatmul.mubr.f32.gmra.mrb[0].mxu0 %v3590
  %v3691 = vpop.f32.mrb[0].mxu0
  %v3692 = vadd.f32 0.0, %v3691
  %v3693 = vpop.f32.mrb[0].mxu0
  %v3694 = vadd.f32 0.0, %v3693
  %3695 = vmatprep.mubr.f32.mxu0 0.0
  %3696 = vmatmul.mubr.f32.gmra.mrb[0].mxu0 %v3593
  %v3697 = vpop.f32.mrb[0].mxu0
  %v3698 = vadd.f32 0.0, %v3697
  %v3699 = vpop.f32.mrb[0].mxu0
  %v3700 = vadd.f32 0.0, %v3699
  %3701 = vmatprep.mubr.f32.mxu0 0.0
  %3702 = vmatmul.mubr.f32.gmra.mrb[0].mxu0 %v3596
  %v3703 = vpop.f32.mrb[0].mxu0
  %v3704 = vadd.f32 0.0, %v3703
  %v3705 = vpop.f32.mrb[0].mxu0
  %v3706 = vadd.f32 0.0, %v3705
  %3707 = vmatprep.mubr.f32.mxu0 0.0
  %3708 = vmatmul.mubr.f32.gmra.mrb[0].mxu0 %v3599
  %v3709 = vpop.f32.mrb[0].mxu0
  %v3710 = vadd.f32 0.0, %v3709
  %v3711 = vpop.f32.mrb[0].mxu0
  %v3712 = vadd.f32 0.0, %v3711
  %3713 = vmatprep.mubr.f32.mxu0 0.0
  %3714 = vmatmul.mubr.f32.gmra.mrb[0].mxu0 %v3602
  %v3715 = vpop.f32.mrb[0].mxu0
  %v3716 = vadd.f32 0.0, %v3715
  %v3717 = vpop.f32.mrb[0].mxu0
  %v3718 = vadd.f32 0.0, %v3717
  %3719 = vmatprep.mubr.f32.mxu0 0.0
  %3720 = vmatmul.mubr.f32.gmra.mrb[0].mxu0 %v3605
  %v3721 = vpop.f32.mrb[0].mxu0
  %v3722 = vadd.f32 0.0, %v3721
  %v3723 = vpop.f32.mrb[0].mxu0
  %v3724 = vadd.f32 0.0, %v3723
  %3725 = vmatprep.mubr.f32.mxu0 0.0
  %3726 = vmatmul.mubr.f32.gmra.mrb[0].mxu0 %v3608
  %v3727 = vpop.f32.mrb[0].mxu0
  %v3728 = vadd.f32 0.0, %v3727
  %v3729 = vpop.f32.mrb[0].mxu0
  %v3730 = vadd.f32 0.0, %v3729
  %3731 = vmatprep.mubr.f32.mxu0 0.0
  %3732 = vmatmul.mubr.f32.gmra.mrb[0].mxu0 %v3611
  %v3733 = vpop.f32.mrb[0].mxu0
  %v3734 = vadd.f32 0.0, %v3733
  %v3735 = vpop.f32.mrb[0].mxu0
  %v3736 = vadd.f32 0.0, %v3735
  %3737 = vdwg.mxu0
  %v3744 = vrot.slane %v3704, 5
  %v3745 = vrot.slane %v3710, 5
  %v3746 = vsel %vm1594, %v3744, %v3745
  %v3747 = vrot.slane %v3716, 5
  %v3748 = vsel %vm1594, %v3745, %v3747
  %v3749 = vrot.slane %v3722, 5
  %v3750 = vsel %vm1594, %v3747, %v3749
  %v3751 = vrot.slane %v3728, 5
  %v3752 = vsel %vm1594, %v3749, %v3751
  %v3753 = vrot.slane %v3734, 5
  %v3754 = vsel %vm1594, %v3751, %v3753
  %3755 = vrot.lane.b32.xlu0 %v3746, 32
  %v3756 = vpop.permute.xlu0 %3755
  %3757 = vrot.lane.b32.xlu0 %v3748, 32
  %v3758 = vpop.permute.xlu0 %3757
  %3759 = vrot.lane.b32.xlu0 %v3750, 32
  %v3760 = vpop.permute.xlu0 %3759
  %3761 = vrot.lane.b32.xlu0 %v3752, 32
  %v3762 = vpop.permute.xlu0 %3761
  %3763 = vrot.lane.b32.xlu0 %v3754, 32
  %v3764 = vpop.permute.xlu0 %3763
  %v3770 = vsel %vm370, %v3680, %v3756
  %v3771 = vsel %vm370, %v3686, %v3758
  %v3772 = vsel %vm370, %v3692, %v3760
  %v3773 = vsel %vm370, %v3698, %v3762
  %v3774 = vsel %vm370, %v3704, %v3764
  %v3775 = vld [vmem:[%s17] sm:$0xf]
  %v3776 = vld [vmem:[%s17 + $0x4] sm:$0xf]
  %v3777 = vld [vmem:[%s17 + $0x8] sm:$0xf]
  %v3778 = vld [vmem:[%s17 + $0xc] sm:$0xf]
  %v3779 = vld [vmem:[%s17 + $0x10] sm:$0xf]
  %v3780 = vld [vmem:[%s17 + $0x14] sm:$0xf]
  %v3781 = vld [vmem:[%s17 + $0x18] sm:$0xf]
  %v3782 = vld [vmem:[%s17 + $0x1c] sm:$0xf]
  %v3783 = vld [vmem:[%s17 + $0x20] sm:$0xf]
  %v3784 = vld [vmem:[%s17 + $0x24] sm:$0xf]
  %v3785 = vld [vmem:[%s17 + $0x28] sm:$0x1]
  %v3786 = vunpack.c.l.bf16 %v3775
  %v3787 = vunpack.c.l.bf16 %v3776
  %v3788 = vunpack.c.l.bf16 %v3777
  %v3789 = vunpack.c.l.bf16 %v3778
  %v3790 = vunpack.c.l.bf16 %v3779
  %v3791 = vunpack.c.l.bf16 %v3780
  %v3792 = vunpack.c.l.bf16 %v3781
  %v3793 = vunpack.c.l.bf16 %v3782
  %v3794 = vunpack.c.l.bf16 %v3783
  %v3795 = vunpack.c.l.bf16 %v3784
  %v3796 = vunpack.c.l.bf16 %v3785
  %3801 = vrot.lane.b32.xlu0 %v3680, 96
  %v3802 = vpop.permute.xlu0 %3801
  %3803 = vrot.lane.b32.xlu0 %v3686, 96
  %v3804 = vpop.permute.xlu0 %3803
  %3805 = vrot.lane.b32.xlu0 %v3692, 96
  %v3806 = vpop.permute.xlu0 %3805
  %3807 = vrot.lane.b32.xlu0 %v3698, 96
  %v3808 = vpop.permute.xlu0 %3807
  %3809 = vrot.lane.b32.xlu0 %v3704, 96
  %v3810 = vpop.permute.xlu0 %3809
  %v3821 = vsel %vm370, %v3802, %v3746
  %v3822 = vsel %vm370, %v3804, %v3748
  %v3823 = vsel %vm370, %v3806, %v3750
  %v3824 = vsel %vm370, %v3808, %v3752
  %v3825 = vsel %vm370, %v3810, %v3754
  %s3826 = scalar_lea.vmem %s17, 44
  %v3827 = vld [vmem:[%s3826] sm:$0xf]
  %v3828 = vld [vmem:[%s3826 + $0x4] sm:$0xf]
  %v3829 = vld [vmem:[%s3826 + $0x8] sm:$0xf]
  %v3830 = vld [vmem:[%s3826 + $0xc] sm:$0xf]
  %v3831 = vld [vmem:[%s3826 + $0x10] sm:$0xf]
  %v3832 = vld [vmem:[%s3826 + $0x14] sm:$0xf]
  %v3833 = vld [vmem:[%s3826 + $0x18] sm:$0xf]
  %v3834 = vld [vmem:[%s3826 + $0x1c] sm:$0xf]
  %v3835 = vld [vmem:[%s3826 + $0x20] sm:$0xf]
  %v3836 = vld [vmem:[%s3826 + $0x24] sm:$0xf]
  %v3837 = vld [vmem:[%s3826 + $0x28] sm:$0x1]
  %v3838 = vunpack.c.l.bf16 %v3827
  %v3839 = vunpack.c.l.bf16 %v3828
  %v3840 = vunpack.c.l.bf16 %v3829
  %v3841 = vunpack.c.l.bf16 %v3830
  %v3842 = vunpack.c.l.bf16 %v3831
  %v3843 = vunpack.c.l.bf16 %v3832
  %v3844 = vunpack.c.l.bf16 %v3833
  %v3845 = vunpack.c.l.bf16 %v3834
  %v3846 = vunpack.c.l.bf16 %v3835
  %v3847 = vunpack.c.l.bf16 %v3836
  %v3848 = vunpack.c.l.bf16 %v3837
  %vm3849 = vcmask 302080
  %v3851 = vsel %vm3849, %v3838, 0
  %v3854 = vsel %vm3849, %v3839, 0
  %v3857 = vsel %vm3849, %v3840, 0
  %v3860 = vsel %vm3849, %v3841, 0
  %v3863 = vsel %vm3849, %v3842, 0
  %v3866 = vsel %vm3849, %v3843, 0
  %v3869 = vsel %vm3849, %v3844, 0
  %v3872 = vsel %vm3849, %v3845, 0
  %v3875 = vsel %vm3849, %v3846, 0
  %v3878 = vsel %vm3849, %v3847, 0
  %v3881 = vsel %vm3849, %v3848, 0
  %v3884 = vsel %vm1107, %v3825, 0
  %3886 = vmatprep.subr.mxu0 0.0
  %3887 = vmatpush1.msra.mxu0 %v3821
  %3888 = vmatprep.subr.mxu0 0.0
  %3889 = vmatpush1.msra.mxu0 %v3822
  %3890 = vmatprep.subr.mxu0 0.0
  %3891 = vmatpush1.msra.mxu0 %v3823
  %3892 = vmatprep.subr.mxu0 0.0
  %3893 = vmatpush1.msra.mxu0 %v3824
  %3894 = vmatprep.subr.mxu0 0.0
  %3895 = vmatpush1.msra.mxu0 %v3884
  %3896 = vmatprep.subr.mxu0 0.0
  %3897 = vmatpush1.msra.mxu0 0.0
  %3898 = vmatprep.subr.mxu0 0.0
  %3899 = vmatpush1.msra.mxu0 0.0
  %3900 = vmatprep.subr.mxu0 0.0
  %3901 = vmatpush1.msra.mxu0 0.0
  %3902 = vmatprep.subr.mxu0 0.0
  %3903 = vmatpush1.msra.mxu0 0.0
  %3904 = vmatprep.subr.mxu0 0.0
  %3905 = vmatpush1.msra.mxu0 0.0
  %3906 = vmatprep.subr.mxu0 0.0
  %3907 = vmatpush1.msra.mxu0 0.0
  %3908 = vmatprep.subr.mxu0 0.0
  %3909 = vmatpush1.msra.mxu0 0.0
  %3910 = vmatprep.subr.mxu0 0.0
  %3911 = vmatpush1.msra.mxu0 0.0
  %3912 = vmatprep.subr.mxu0 0.0
  %3913 = vmatpush1.msra.mxu0 0.0
  %3914 = vmatprep.subr.mxu0 0.0
  %3915 = vmatpush1.msra.mxu0 0.0
  %3916 = vmatprep.subr.mxu0 0.0
  %3917 = vmatpush1.msra.mxu0 0.0
  %3918 = vmatprep.subr.mxu0 0.0
  %3919 = vmatpush1.msra.mxu0 0.0
  %3920 = vmatprep.subr.mxu0 0.0
  %3921 = vmatpush1.msra.mxu0 0.0
  %3922 = vmatprep.subr.mxu0 0.0
  %3923 = vmatpush1.msra.mxu0 0.0
  %3924 = vmatprep.subr.mxu0 0.0
  %3925 = vmatpush1.msra.mxu0 0.0
  %3926 = vmatprep.subr.mxu0 0.0
  %3927 = vmatpush1.msra.mxu0 0.0
  %3928 = vmatprep.subr.mxu0 0.0
  %3929 = vmatpush1.msra.mxu0 0.0
  %3930 = vmatprep.subr.mxu0 0.0
  %3931 = vmatpush1.msra.mxu0 0.0
  %3932 = vmatprep.subr.mxu0 0.0
  %3933 = vmatpush1.msra.mxu0 0.0
  %3934 = vmatprep.subr.mxu0 0.0
  %3935 = vmatpush1.msra.mxu0 0.0
  %3936 = vmatprep.subr.mxu0 0.0
  %3937 = vmatpush1.msra.mxu0 0.0
  %3938 = vmatprep.subr.mxu0 0.0
  %3939 = vmatpush1.msra.mxu0 0.0
  %3940 = vmatprep.subr.mxu0 0.0
  %3941 = vmatpush1.msra.mxu0 0.0
  %3942 = vmatprep.subr.mxu0 0.0
  %3943 = vmatpush1.msra.mxu0 0.0
  %3944 = vmatprep.subr.mxu0 0.0
  %3945 = vmatpush1.msra.mxu0 0.0
  %3946 = vmatprep.subr.mxu0 0.0
  %3947 = vmatpush1.msra.mxu0 0.0
  %3948 = vmatprep.subr.mxu0 0.0
  %3949 = vmatpush1.msra.mxu0 0.0
  %3950 = vmatprep.mubr.f32.mxu0 0.0
  %3951 = vmatmul.mubr.f32.gmra.mrb[0].mxu0 %v3851
  %v3952 = vpop.f32.mrb[0].mxu0
  %v3953 = vadd.f32 0.0, %v3952
  %v3954 = vpop.f32.mrb[0].mxu0
  %3955 = vmatprep.mubr.f32.mxu0 0.0
  %3956 = vmatmul.mubr.f32.gmra.mrb[0].mxu0 %v3854
  %v3957 = vpop.f32.mrb[0].mxu0
  %v3958 = vadd.f32 0.0, %v3957
  %v3959 = vpop.f32.mrb[0].mxu0
  %3960 = vmatprep.mubr.f32.mxu0 0.0
  %3961 = vmatmul.mubr.f32.gmra.mrb[0].mxu0 %v3857
  %v3962 = vpop.f32.mrb[0].mxu0
  %v3963 = vadd.f32 0.0, %v3962
  %v3964 = vpop.f32.mrb[0].mxu0
  %3965 = vmatprep.mubr.f32.mxu0 0.0
  %3966 = vmatmul.mubr.f32.gmra.mrb[0].mxu0 %v3860
  %v3967 = vpop.f32.mrb[0].mxu0
  %v3968 = vadd.f32 0.0, %v3967
  %v3969 = vpop.f32.mrb[0].mxu0
  %3970 = vmatprep.mubr.f32.mxu0 0.0
  %3971 = vmatmul.mubr.f32.gmra.mrb[0].mxu0 %v3863
  %v3972 = vpop.f32.mrb[0].mxu0
  %v3973 = vadd.f32 0.0, %v3972
  %v3974 = vpop.f32.mrb[0].mxu0
  %3975 = vmatprep.mubr.f32.mxu0 0.0
  %3976 = vmatmul.mubr.f32.gmra.mrb[0].mxu0 %v3866
  %v3977 = vpop.f32.mrb[0].mxu0
  %v3978 = vadd.f32 0.0, %v3977
  %v3979 = vpop.f32.mrb[0].mxu0
  %3980 = vmatprep.mubr.f32.mxu0 0.0
  %3981 = vmatmul.mubr.f32.gmra.mrb[0].mxu0 %v3869
  %v3982 = vpop.f32.mrb[0].mxu0
  %v3983 = vadd.f32 0.0, %v3982
  %v3984 = vpop.f32.mrb[0].mxu0
  %3985 = vmatprep.mubr.f32.mxu0 0.0
  %3986 = vmatmul.mubr.f32.gmra.mrb[0].mxu0 %v3872
  %v3987 = vpop.f32.mrb[0].mxu0
  %v3988 = vadd.f32 0.0, %v3987
  %v3989 = vpop.f32.mrb[0].mxu0
  %3990 = vmatprep.mubr.f32.mxu0 0.0
  %3991 = vmatmul.mubr.f32.gmra.mrb[0].mxu0 %v3875
  %v3992 = vpop.f32.mrb[0].mxu0
  %v3993 = vadd.f32 0.0, %v3992
  %v3994 = vpop.f32.mrb[0].mxu0
  %3995 = vmatprep.mubr.f32.mxu0 0.0
  %3996 = vmatmul.mubr.f32.gmra.mrb[0].mxu0 %v3878
  %v3997 = vpop.f32.mrb[0].mxu0
  %v3998 = vadd.f32 0.0, %v3997
  %v3999 = vpop.f32.mrb[0].mxu0
  %4000 = vmatprep.mubr.f32.mxu0 0.0
  %4001 = vmatmul.mubr.f32.gmra.mrb[0].mxu0 %v3881
  %v4002 = vpop.f32.mrb[0].mxu0
  %v4003 = vadd.f32 0.0, %v4002
  %v4004 = vpop.f32.mrb[0].mxu0
  %4005 = vdwg.mxu0
  %v4007 = vsel %vm3849, %v3786, 0
  %v4010 = vsel %vm3849, %v3787, 0
  %v4013 = vsel %vm3849, %v3788, 0
  %v4016 = vsel %vm3849, %v3789, 0
  %v4019 = vsel %vm3849, %v3790, 0
  %v4022 = vsel %vm3849, %v3791, 0
  %v4025 = vsel %vm3849, %v3792, 0
  %v4028 = vsel %vm3849, %v3793, 0
  %v4031 = vsel %vm3849, %v3794, 0
  %v4034 = vsel %vm3849, %v3795, 0
  %v4037 = vsel %vm3849, %v3796, 0
  %v4040 = vsel %vm1107, %v3774, 0
  %4042 = vmatprep.subr.mxu0 0.0
  %4043 = vmatpush1.msra.mxu0 %v3770
  %4044 = vmatprep.subr.mxu0 0.0
  %4045 = vmatpush1.msra.mxu0 %v3771
  %4046 = vmatprep.subr.mxu0 0.0
  %4047 = vmatpush1.msra.mxu0 %v3772
  %4048 = vmatprep.subr.mxu0 0.0
  %4049 = vmatpush1.msra.mxu0 %v3773
  %4050 = vmatprep.subr.mxu0 0.0
  %4051 = vmatpush1.msra.mxu0 %v4040
  %4052 = vmatprep.subr.mxu0 0.0
  %4053 = vmatpush1.msra.mxu0 0.0
  %4054 = vmatprep.subr.mxu0 0.0
  %4055 = vmatpush1.msra.mxu0 0.0
  %4056 = vmatprep.subr.mxu0 0.0
  %4057 = vmatpush1.msra.mxu0 0.0
  %4058 = vmatprep.subr.mxu0 0.0
  %4059 = vmatpush1.msra.mxu0 0.0
  %4060 = vmatprep.subr.mxu0 0.0
  %4061 = vmatpush1.msra.mxu0 0.0
  %4062 = vmatprep.subr.mxu0 0.0
  %4063 = vmatpush1.msra.mxu0 0.0
  %4064 = vmatprep.subr.mxu0 0.0
  %4065 = vmatpush1.msra.mxu0 0.0
  %4066 = vmatprep.subr.mxu0 0.0
  %4067 = vmatpush1.msra.mxu0 0.0
  %4068 = vmatprep.subr.mxu0 0.0
  %4069 = vmatpush1.msra.mxu0 0.0
  %4070 = vmatprep.subr.mxu0 0.0
  %4071 = vmatpush1.msra.mxu0 0.0
  %4072 = vmatprep.subr.mxu0 0.0
  %4073 = vmatpush1.msra.mxu0 0.0
  %4074 = vmatprep.subr.mxu0 0.0
  %4075 = vmatpush1.msra.mxu0 0.0
  %4076 = vmatprep.subr.mxu0 0.0
  %4077 = vmatpush1.msra.mxu0 0.0
  %4078 = vmatprep.subr.mxu0 0.0
  %4079 = vmatpush1.msra.mxu0 0.0
  %4080 = vmatprep.subr.mxu0 0.0
  %4081 = vmatpush1.msra.mxu0 0.0
  %4082 = vmatprep.subr.mxu0 0.0
  %4083 = vmatpush1.msra.mxu0 0.0
  %4084 = vmatprep.subr.mxu0 0.0
  %4085 = vmatpush1.msra.mxu0 0.0
  %4086 = vmatprep.subr.mxu0 0.0
  %4087 = vmatpush1.msra.mxu0 0.0
  %4088 = vmatprep.subr.mxu0 0.0
  %4089 = vmatpush1.msra.mxu0 0.0
  %4090 = vmatprep.subr.mxu0 0.0
  %4091 = vmatpush1.msra.mxu0 0.0
  %4092 = vmatprep.subr.mxu0 0.0
  %4093 = vmatpush1.msra.mxu0 0.0
  %4094 = vmatprep.subr.mxu0 0.0
  %4095 = vmatpush1.msra.mxu0 0.0
  %4096 = vmatprep.subr.mxu0 0.0
  %4097 = vmatpush1.msra.mxu0 0.0
  %4098 = vmatprep.subr.mxu0 0.0
  %4099 = vmatpush1.msra.mxu0 0.0
  %4100 = vmatprep.subr.mxu0 0.0
  %4101 = vmatpush1.msra.mxu0 0.0
  %4102 = vmatprep.subr.mxu0 0.0
  %4103 = vmatpush1.msra.mxu0 0.0
  %4104 = vmatprep.subr.mxu0 0.0
  %4105 = vmatpush1.msra.mxu0 0.0
  %4106 = vmatprep.mubr.f32.mxu0 0.0
  %4107 = vmatmul.mubr.f32.gmra.mrb[0].mxu0 %v4007
  %v4108 = vpop.f32.mrb[0].mxu0
  %v4109 = vadd.f32 %v3953, %v4108
  %v4110 = vpop.f32.mrb[0].mxu0
  %4111 = vmatprep.mubr.f32.mxu0 0.0
  %4112 = vmatmul.mubr.f32.gmra.mrb[0].mxu0 %v4010
  %v4113 = vpop.f32.mrb[0].mxu0
  %v4114 = vadd.f32 %v3958, %v4113
  %v4115 = vpop.f32.mrb[0].mxu0
  %4116 = vmatprep.mubr.f32.mxu0 0.0
  %4117 = vmatmul.mubr.f32.gmra.mrb[0].mxu0 %v4013
  %v4118 = vpop.f32.mrb[0].mxu0
  %v4119 = vadd.f32 %v3963, %v4118
  %v4120 = vpop.f32.mrb[0].mxu0
  %4121 = vmatprep.mubr.f32.mxu0 0.0
  %4122 = vmatmul.mubr.f32.gmra.mrb[0].mxu0 %v4016
  %v4123 = vpop.f32.mrb[0].mxu0
  %v4124 = vadd.f32 %v3968, %v4123
  %v4125 = vpop.f32.mrb[0].mxu0
  %4126 = vmatprep.mubr.f32.mxu0 0.0
  %4127 = vmatmul.mubr.f32.gmra.mrb[0].mxu0 %v4019
  %v4128 = vpop.f32.mrb[0].mxu0
  %v4129 = vadd.f32 %v3973, %v4128
  %v4130 = vpop.f32.mrb[0].mxu0
  %4131 = vmatprep.mubr.f32.mxu0 0.0
  %4132 = vmatmul.mubr.f32.gmra.mrb[0].mxu0 %v4022
  %v4133 = vpop.f32.mrb[0].mxu0
  %v4134 = vadd.f32 %v3978, %v4133
  %v4135 = vpop.f32.mrb[0].mxu0
  %4136 = vmatprep.mubr.f32.mxu0 0.0
  %4137 = vmatmul.mubr.f32.gmra.mrb[0].mxu0 %v4025
  %v4138 = vpop.f32.mrb[0].mxu0
  %v4139 = vadd.f32 %v3983, %v4138
  %v4140 = vpop.f32.mrb[0].mxu0
  %4141 = vmatprep.mubr.f32.mxu0 0.0
  %4142 = vmatmul.mubr.f32.gmra.mrb[0].mxu0 %v4028
  %v4143 = vpop.f32.mrb[0].mxu0
  %v4144 = vadd.f32 %v3988, %v4143
  %v4145 = vpop.f32.mrb[0].mxu0
  %4146 = vmatprep.mubr.f32.mxu0 0.0
  %4147 = vmatmul.mubr.f32.gmra.mrb[0].mxu0 %v4031
  %v4148 = vpop.f32.mrb[0].mxu0
  %v4149 = vadd.f32 %v3993, %v4148
  %v4150 = vpop.f32.mrb[0].mxu0
  %4151 = vmatprep.mubr.f32.mxu0 0.0
  %4152 = vmatmul.mubr.f32.gmra.mrb[0].mxu0 %v4034
  %v4153 = vpop.f32.mrb[0].mxu0
  %v4154 = vadd.f32 %v3998, %v4153
  %v4155 = vpop.f32.mrb[0].mxu0
  %4156 = vmatprep.mubr.f32.mxu0 0.0
  %4157 = vmatmul.mubr.f32.gmra.mrb[0].mxu0 %v4037
  %v4158 = vpop.f32.mrb[0].mxu0
  %v4159 = vadd.f32 %v4003, %v4158
  %v4160 = vpop.f32.mrb[0].mxu0
  %4161 = vdwg.mxu0
  %4162 = vrot.lane.b32.xlu0 %v3680, 64
  %v4163 = vpop.permute.xlu0 %4162
  %4164 = vrot.lane.b32.xlu0 %v3686, 64
  %v4165 = vpop.permute.xlu0 %4164
  %4166 = vrot.lane.b32.xlu0 %v3692, 64
  %v4167 = vpop.permute.xlu0 %4166
  %4168 = vrot.lane.b32.xlu0 %v3698, 64
  %v4169 = vpop.permute.xlu0 %4168
  %4170 = vrot.lane.b32.xlu0 %v3704, 64
  %v4171 = vpop.permute.xlu0 %4170
  %4177 = vrot.lane.b32.xlu0 %v3746, 96
  %v4178 = vpop.permute.xlu0 %4177
  %4179 = vrot.lane.b32.xlu0 %v3748, 96
  %v4180 = vpop.permute.xlu0 %4179
  %4181 = vrot.lane.b32.xlu0 %v3750, 96
  %v4182 = vpop.permute.xlu0 %4181
  %4183 = vrot.lane.b32.xlu0 %v3752, 96
  %v4184 = vpop.permute.xlu0 %4183
  %4185 = vrot.lane.b32.xlu0 %v3754, 96
  %v4186 = vpop.permute.xlu0 %4185
  %v4192 = vsel %vm370, %v4163, %v4178
  %v4193 = vsel %vm370, %v4165, %v4180
  %v4194 = vsel %vm370, %v4167, %v4182
  %v4195 = vsel %vm370, %v4169, %v4184
  %v4196 = vsel %vm370, %v4171, %v4186
  %s4197 = scalar_lea.vmem %s17, 88
  %v4198 = vld [vmem:[%s4197] sm:$0xf]
  %v4199 = vld [vmem:[%s4197 + $0x4] sm:$0xf]
  %v4200 = vld [vmem:[%s4197 + $0x8] sm:$0xf]
  %v4201 = vld [vmem:[%s4197 + $0xc] sm:$0xf]
  %v4202 = vld [vmem:[%s4197 + $0x10] sm:$0xf]
  %v4203 = vld [vmem:[%s4197 + $0x14] sm:$0xf]
  %v4204 = vld [vmem:[%s4197 + $0x18] sm:$0xf]
  %v4205 = vld [vmem:[%s4197 + $0x1c] sm:$0xf]
  %v4206 = vld [vmem:[%s4197 + $0x20] sm:$0xf]
  %v4207 = vld [vmem:[%s4197 + $0x24] sm:$0xf]
  %v4208 = vld [vmem:[%s4197 + $0x28] sm:$0x1]
  %v4209 = vunpack.c.l.bf16 %v4198
  %v4210 = vunpack.c.l.bf16 %v4199
  %v4211 = vunpack.c.l.bf16 %v4200
  %v4212 = vunpack.c.l.bf16 %v4201
  %v4213 = vunpack.c.l.bf16 %v4202
  %v4214 = vunpack.c.l.bf16 %v4203
  %v4215 = vunpack.c.l.bf16 %v4204
  %v4216 = vunpack.c.l.bf16 %v4205
  %v4217 = vunpack.c.l.bf16 %v4206
  %v4218 = vunpack.c.l.bf16 %v4207
  %v4219 = vunpack.c.l.bf16 %v4208
  %v4221 = vsel %vm3849, %v4209, 0
  %v4224 = vsel %vm3849, %v4210, 0
  %v4227 = vsel %vm3849, %v4211, 0
  %v4230 = vsel %vm3849, %v4212, 0
  %v4233 = vsel %vm3849, %v4213, 0
  %v4236 = vsel %vm3849, %v4214, 0
  %v4239 = vsel %vm3849, %v4215, 0
  %v4242 = vsel %vm3849, %v4216, 0
  %v4245 = vsel %vm3849, %v4217, 0
  %v4248 = vsel %vm3849, %v4218, 0
  %v4251 = vsel %vm3849, %v4219, 0
  %v4254 = vsel %vm1107, %v4196, 0
  %4256 = vmatprep.subr.mxu0 0.0
  %4257 = vmatpush1.msra.mxu0 %v4192
  %4258 = vmatprep.subr.mxu0 0.0
  %4259 = vmatpush1.msra.mxu0 %v4193
  %4260 = vmatprep.subr.mxu0 0.0
  %4261 = vmatpush1.msra.mxu0 %v4194
  %4262 = vmatprep.subr.mxu0 0.0
  %4263 = vmatpush1.msra.mxu0 %v4195
  %4264 = vmatprep.subr.mxu0 0.0
  %4265 = vmatpush1.msra.mxu0 %v4254
  %4266 = vmatprep.subr.mxu0 0.0
  %4267 = vmatpush1.msra.mxu0 0.0
  %4268 = vmatprep.subr.mxu0 0.0
  %4269 = vmatpush1.msra.mxu0 0.0
  %4270 = vmatprep.subr.mxu0 0.0
  %4271 = vmatpush1.msra.mxu0 0.0
  %4272 = vmatprep.subr.mxu0 0.0
  %4273 = vmatpush1.msra.mxu0 0.0
  %4274 = vmatprep.subr.mxu0 0.0
  %4275 = vmatpush1.msra.mxu0 0.0
  %4276 = vmatprep.subr.mxu0 0.0
  %4277 = vmatpush1.msra.mxu0 0.0
  %4278 = vmatprep.subr.mxu0 0.0
  %4279 = vmatpush1.msra.mxu0 0.0
  %4280 = vmatprep.subr.mxu0 0.0
  %4281 = vmatpush1.msra.mxu0 0.0
  %4282 = vmatprep.subr.mxu0 0.0
  %4283 = vmatpush1.msra.mxu0 0.0
  %4284 = vmatprep.subr.mxu0 0.0
  %4285 = vmatpush1.msra.mxu0 0.0
  %4286 = vmatprep.subr.mxu0 0.0
  %4287 = vmatpush1.msra.mxu0 0.0
  %4288 = vmatprep.subr.mxu0 0.0
  %4289 = vmatpush1.msra.mxu0 0.0
  %4290 = vmatprep.subr.mxu0 0.0
  %4291 = vmatpush1.msra.mxu0 0.0
  %4292 = vmatprep.subr.mxu0 0.0
  %4293 = vmatpush1.msra.mxu0 0.0
  %4294 = vmatprep.subr.mxu0 0.0
  %4295 = vmatpush1.msra.mxu0 0.0
  %4296 = vmatprep.subr.mxu0 0.0
  %4297 = vmatpush1.msra.mxu0 0.0
  %4298 = vmatprep.subr.mxu0 0.0
  %4299 = vmatpush1.msra.mxu0 0.0
  %4300 = vmatprep.subr.mxu0 0.0
  %4301 = vmatpush1.msra.mxu0 0.0
  %4302 = vmatprep.subr.mxu0 0.0
  %4303 = vmatpush1.msra.mxu0 0.0
  %4304 = vmatprep.subr.mxu0 0.0
  %4305 = vmatpush1.msra.mxu0 0.0
  %4306 = vmatprep.subr.mxu0 0.0
  %4307 = vmatpush1.msra.mxu0 0.0
  %4308 = vmatprep.subr.mxu0 0.0
  %4309 = vmatpush1.msra.mxu0 0.0
  %4310 = vmatprep.subr.mxu0 0.0
  %4311 = vmatpush1.msra.mxu0 0.0
  %4312 = vmatprep.subr.mxu0 0.0
  %4313 = vmatpush1.msra.mxu0 0.0
  %4314 = vmatprep.subr.mxu0 0.0
  %4315 = vmatpush1.msra.mxu0 0.0
  %4316 = vmatprep.subr.mxu0 0.0
  %4317 = vmatpush1.msra.mxu0 0.0
  %4318 = vmatprep.subr.mxu0 0.0
  %4319 = vmatpush1.msra.mxu0 0.0
  %4320 = vmatprep.mubr.f32.mxu0 0.0
  %4321 = vmatmul.mubr.f32.gmra.mrb[0].mxu0 %v4221
  %v4322 = vpop.f32.mrb[0].mxu0
  %v4323 = vadd.f32 0.0, %v4322
  %v4324 = vpop.f32.mrb[0].mxu0
  %4325 = vmatprep.mubr.f32.mxu0 0.0
  %4326 = vmatmul.mubr.f32.gmra.mrb[0].mxu0 %v4224
  %v4327 = vpop.f32.mrb[0].mxu0
  %v4328 = vadd.f32 0.0, %v4327
  %v4329 = vpop.f32.mrb[0].mxu0
  %4330 = vmatprep.mubr.f32.mxu0 0.0
  %4331 = vmatmul.mubr.f32.gmra.mrb[0].mxu0 %v4227
  %v4332 = vpop.f32.mrb[0].mxu0
  %v4333 = vadd.f32 0.0, %v4332
  %v4334 = vpop.f32.mrb[0].mxu0
  %4335 = vmatprep.mubr.f32.mxu0 0.0
  %4336 = vmatmul.mubr.f32.gmra.mrb[0].mxu0 %v4230
  %v4337 = vpop.f32.mrb[0].mxu0
  %v4338 = vadd.f32 0.0, %v4337
  %v4339 = vpop.f32.mrb[0].mxu0
  %4340 = vmatprep.mubr.f32.mxu0 0.0
  %4341 = vmatmul.mubr.f32.gmra.mrb[0].mxu0 %v4233
  %v4342 = vpop.f32.mrb[0].mxu0
  %v4343 = vadd.f32 0.0, %v4342
  %v4344 = vpop.f32.mrb[0].mxu0
  %4345 = vmatprep.mubr.f32.mxu0 0.0
  %4346 = vmatmul.mubr.f32.gmra.mrb[0].mxu0 %v4236
  %v4347 = vpop.f32.mrb[0].mxu0
  %v4348 = vadd.f32 0.0, %v4347
  %v4349 = vpop.f32.mrb[0].mxu0
  %4350 = vmatprep.mubr.f32.mxu0 0.0
  %4351 = vmatmul.mubr.f32.gmra.mrb[0].mxu0 %v4239
  %v4352 = vpop.f32.mrb[0].mxu0
  %v4353 = vadd.f32 0.0, %v4352
  %v4354 = vpop.f32.mrb[0].mxu0
  %4355 = vmatprep.mubr.f32.mxu0 0.0
  %4356 = vmatmul.mubr.f32.gmra.mrb[0].mxu0 %v4242
  %v4357 = vpop.f32.mrb[0].mxu0
  %v4358 = vadd.f32 0.0, %v4357
  %v4359 = vpop.f32.mrb[0].mxu0
  %4360 = vmatprep.mubr.f32.mxu0 0.0
  %4361 = vmatmul.mubr.f32.gmra.mrb[0].mxu0 %v4245
  %v4362 = vpop.f32.mrb[0].mxu0
  %v4363 = vadd.f32 0.0, %v4362
  %v4364 = vpop.f32.mrb[0].mxu0
  %4365 = vmatprep.mubr.f32.mxu0 0.0
  %4366 = vmatmul.mubr.f32.gmra.mrb[0].mxu0 %v4248
  %v4367 = vpop.f32.mrb[0].mxu0
  %v4368 = vadd.f32 0.0, %v4367
  %v4369 = vpop.f32.mrb[0].mxu0
  %4370 = vmatprep.mubr.f32.mxu0 0.0
  %4371 = vmatmul.mubr.f32.gmra.mrb[0].mxu0 %v4251
  %v4372 = vpop.f32.mrb[0].mxu0
  %v4373 = vadd.f32 0.0, %v4372
  %v4374 = vpop.f32.mrb[0].mxu0
  %4375 = vdwg.mxu0
  %v4376 = vadd.f32 %v4109, %v4323
  %v4377 = vadd.f32 %v4114, %v4328
  %v4378 = vadd.f32 %v4119, %v4333
  %v4379 = vadd.f32 %v4124, %v4338
  %v4380 = vadd.f32 %v4129, %v4343
  %v4381 = vadd.f32 %v4134, %v4348
  %v4382 = vadd.f32 %v4139, %v4353
  %v4383 = vadd.f32 %v4144, %v4358
  %v4384 = vadd.f32 %v4149, %v4363
  %v4385 = vadd.f32 %v4154, %v4368
  %v4386 = vadd.f32 %v4159, %v4373
  %4387 = vrot.lane.b32.xlu0 %v3680, 32
  %v4388 = vpop.permute.xlu0 %4387
  %4389 = vrot.lane.b32.xlu0 %v3686, 32
  %v4390 = vpop.permute.xlu0 %4389
  %4391 = vrot.lane.b32.xlu0 %v3692, 32
  %v4392 = vpop.permute.xlu0 %4391
  %4393 = vrot.lane.b32.xlu0 %v3698, 32
  %v4394 = vpop.permute.xlu0 %4393
  %4395 = vrot.lane.b32.xlu0 %v3704, 32
  %v4396 = vpop.permute.xlu0 %4395
  %4402 = vrot.lane.b32.xlu0 %v3746, 64
  %v4403 = vpop.permute.xlu0 %4402
  %4404 = vrot.lane.b32.xlu0 %v3748, 64
  %v4405 = vpop.permute.xlu0 %4404
  %4406 = vrot.lane.b32.xlu0 %v3750, 64
  %v4407 = vpop.permute.xlu0 %4406
  %4408 = vrot.lane.b32.xlu0 %v3752, 64
  %v4409 = vpop.permute.xlu0 %4408
  %4410 = vrot.lane.b32.xlu0 %v3754, 64
  %v4411 = vpop.permute.xlu0 %4410
  %v4417 = vsel %vm370, %v4388, %v4403
  %v4418 = vsel %vm370, %v4390, %v4405
  %v4419 = vsel %vm370, %v4392, %v4407
  %v4420 = vsel %vm370, %v4394, %v4409
  %v4421 = vsel %vm370, %v4396, %v4411
  %s4422 = scalar_lea.vmem %s17, 132
  %v4423 = vld [vmem:[%s4422] sm:$0xf]
  %v4424 = vld [vmem:[%s4422 + $0x4] sm:$0xf]
  %v4425 = vld [vmem:[%s4422 + $0x8] sm:$0xf]
  %v4426 = vld [vmem:[%s4422 + $0xc] sm:$0xf]
  %v4427 = vld [vmem:[%s4422 + $0x10] sm:$0xf]
  %v4428 = vld [vmem:[%s4422 + $0x14] sm:$0xf]
  %v4429 = vld [vmem:[%s4422 + $0x18] sm:$0xf]
  %v4430 = vld [vmem:[%s4422 + $0x1c] sm:$0xf]
  %v4431 = vld [vmem:[%s4422 + $0x20] sm:$0xf]
  %v4432 = vld [vmem:[%s4422 + $0x24] sm:$0xf]
  %v4433 = vld [vmem:[%s4422 + $0x28] sm:$0x1]
  %v4434 = vunpack.c.l.bf16 %v4423
  %v4435 = vunpack.c.l.bf16 %v4424
  %v4436 = vunpack.c.l.bf16 %v4425
  %v4437 = vunpack.c.l.bf16 %v4426
  %v4438 = vunpack.c.l.bf16 %v4427
  %v4439 = vunpack.c.l.bf16 %v4428
  %v4440 = vunpack.c.l.bf16 %v4429
  %v4441 = vunpack.c.l.bf16 %v4430
  %v4442 = vunpack.c.l.bf16 %v4431
  %v4443 = vunpack.c.l.bf16 %v4432
  %v4444 = vunpack.c.l.bf16 %v4433
  %v4446 = vsel %vm3849, %v4434, 0
  %v4449 = vsel %vm3849, %v4435, 0
  %v4452 = vsel %vm3849, %v4436, 0
  %v4455 = vsel %vm3849, %v4437, 0
  %v4458 = vsel %vm3849, %v4438, 0
  %v4461 = vsel %vm3849, %v4439, 0
  %v4464 = vsel %vm3849, %v4440, 0
  %v4467 = vsel %vm3849, %v4441, 0
  %v4470 = vsel %vm3849, %v4442, 0
  %v4473 = vsel %vm3849, %v4443, 0
  %v4476 = vsel %vm3849, %v4444, 0
  %v4479 = vsel %vm1107, %v4421, 0
  %4481 = vmatprep.subr.mxu0 0.0
  %4482 = vmatpush1.msra.mxu0 %v4417
  %4483 = vmatprep.subr.mxu0 0.0
  %4484 = vmatpush1.msra.mxu0 %v4418
  %4485 = vmatprep.subr.mxu0 0.0
  %4486 = vmatpush1.msra.mxu0 %v4419
  %4487 = vmatprep.subr.mxu0 0.0
  %4488 = vmatpush1.msra.mxu0 %v4420
  %4489 = vmatprep.subr.mxu0 0.0
  %4490 = vmatpush1.msra.mxu0 %v4479
  %4491 = vmatprep.subr.mxu0 0.0
  %4492 = vmatpush1.msra.mxu0 0.0
  %4493 = vmatprep.subr.mxu0 0.0
  %4494 = vmatpush1.msra.mxu0 0.0
  %4495 = vmatprep.subr.mxu0 0.0
  %4496 = vmatpush1.msra.mxu0 0.0
  %4497 = vmatprep.subr.mxu0 0.0
  %4498 = vmatpush1.msra.mxu0 0.0
  %4499 = vmatprep.subr.mxu0 0.0
  %4500 = vmatpush1.msra.mxu0 0.0
  %4501 = vmatprep.subr.mxu0 0.0
  %4502 = vmatpush1.msra.mxu0 0.0
  %4503 = vmatprep.subr.mxu0 0.0
  %4504 = vmatpush1.msra.mxu0 0.0
  %4505 = vmatprep.subr.mxu0 0.0
  %4506 = vmatpush1.msra.mxu0 0.0
  %4507 = vmatprep.subr.mxu0 0.0
  %4508 = vmatpush1.msra.mxu0 0.0
  %4509 = vmatprep.subr.mxu0 0.0
  %4510 = vmatpush1.msra.mxu0 0.0
  %4511 = vmatprep.subr.mxu0 0.0
  %4512 = vmatpush1.msra.mxu0 0.0
  %4513 = vmatprep.subr.mxu0 0.0
  %4514 = vmatpush1.msra.mxu0 0.0
  %4515 = vmatprep.subr.mxu0 0.0
  %4516 = vmatpush1.msra.mxu0 0.0
  %4517 = vmatprep.subr.mxu0 0.0
  %4518 = vmatpush1.msra.mxu0 0.0
  %4519 = vmatprep.subr.mxu0 0.0
  %4520 = vmatpush1.msra.mxu0 0.0
  %4521 = vmatprep.subr.mxu0 0.0
  %4522 = vmatpush1.msra.mxu0 0.0
  %4523 = vmatprep.subr.mxu0 0.0
  %4524 = vmatpush1.msra.mxu0 0.0
  %4525 = vmatprep.subr.mxu0 0.0
  %4526 = vmatpush1.msra.mxu0 0.0
  %4527 = vmatprep.subr.mxu0 0.0
  %4528 = vmatpush1.msra.mxu0 0.0
  %4529 = vmatprep.subr.mxu0 0.0
  %4530 = vmatpush1.msra.mxu0 0.0
  %4531 = vmatprep.subr.mxu0 0.0
  %4532 = vmatpush1.msra.mxu0 0.0
  %4533 = vmatprep.subr.mxu0 0.0
  %4534 = vmatpush1.msra.mxu0 0.0
  %4535 = vmatprep.subr.mxu0 0.0
  %4536 = vmatpush1.msra.mxu0 0.0
  %4537 = vmatprep.subr.mxu0 0.0
  %4538 = vmatpush1.msra.mxu0 0.0
  %4539 = vmatprep.subr.mxu0 0.0
  %4540 = vmatpush1.msra.mxu0 0.0
  %4541 = vmatprep.subr.mxu0 0.0
  %4542 = vmatpush1.msra.mxu0 0.0
  %4543 = vmatprep.subr.mxu0 0.0
  %4544 = vmatpush1.msra.mxu0 0.0
  %4545 = vmatprep.mubr.f32.mxu0 0.0
  %4546 = vmatmul.mubr.f32.gmra.mrb[0].mxu0 %v4446
  %v4547 = vpop.f32.mrb[0].mxu0
  %v4548 = vadd.f32 0.0, %v4547
  %v4549 = vpop.f32.mrb[0].mxu0
  %4550 = vmatprep.mubr.f32.mxu0 0.0
  %4551 = vmatmul.mubr.f32.gmra.mrb[0].mxu0 %v4449
  %v4552 = vpop.f32.mrb[0].mxu0
  %v4553 = vadd.f32 0.0, %v4552
  %v4554 = vpop.f32.mrb[0].mxu0
  %4555 = vmatprep.mubr.f32.mxu0 0.0
  %4556 = vmatmul.mubr.f32.gmra.mrb[0].mxu0 %v4452
  %v4557 = vpop.f32.mrb[0].mxu0
  %v4558 = vadd.f32 0.0, %v4557
  %v4559 = vpop.f32.mrb[0].mxu0
  %4560 = vmatprep.mubr.f32.mxu0 0.0
  %4561 = vmatmul.mubr.f32.gmra.mrb[0].mxu0 %v4455
  %v4562 = vpop.f32.mrb[0].mxu0
  %v4563 = vadd.f32 0.0, %v4562
  %v4564 = vpop.f32.mrb[0].mxu0
  %4565 = vmatprep.mubr.f32.mxu0 0.0
  %4566 = vmatmul.mubr.f32.gmra.mrb[0].mxu0 %v4458
  %v4567 = vpop.f32.mrb[0].mxu0
  %v4568 = vadd.f32 0.0, %v4567
  %v4569 = vpop.f32.mrb[0].mxu0
  %4570 = vmatprep.mubr.f32.mxu0 0.0
  %4571 = vmatmul.mubr.f32.gmra.mrb[0].mxu0 %v4461
  %v4572 = vpop.f32.mrb[0].mxu0
  %v4573 = vadd.f32 0.0, %v4572
  %v4574 = vpop.f32.mrb[0].mxu0
  %4575 = vmatprep.mubr.f32.mxu0 0.0
  %4576 = vmatmul.mubr.f32.gmra.mrb[0].mxu0 %v4464
  %v4577 = vpop.f32.mrb[0].mxu0
  %v4578 = vadd.f32 0.0, %v4577
  %v4579 = vpop.f32.mrb[0].mxu0
  %4580 = vmatprep.mubr.f32.mxu0 0.0
  %4581 = vmatmul.mubr.f32.gmra.mrb[0].mxu0 %v4467
  %v4582 = vpop.f32.mrb[0].mxu0
  %v4583 = vadd.f32 0.0, %v4582
  %v4584 = vpop.f32.mrb[0].mxu0
  %4585 = vmatprep.mubr.f32.mxu0 0.0
  %4586 = vmatmul.mubr.f32.gmra.mrb[0].mxu0 %v4470
  %v4587 = vpop.f32.mrb[0].mxu0
  %v4588 = vadd.f32 0.0, %v4587
  %v4589 = vpop.f32.mrb[0].mxu0
  %4590 = vmatprep.mubr.f32.mxu0 0.0
  %4591 = vmatmul.mubr.f32.gmra.mrb[0].mxu0 %v4473
  %v4592 = vpop.f32.mrb[0].mxu0
  %v4593 = vadd.f32 0.0, %v4592
  %v4594 = vpop.f32.mrb[0].mxu0
  %4595 = vmatprep.mubr.f32.mxu0 0.0
  %4596 = vmatmul.mubr.f32.gmra.mrb[0].mxu0 %v4476
  %v4597 = vpop.f32.mrb[0].mxu0
  %v4598 = vadd.f32 0.0, %v4597
  %v4599 = vpop.f32.mrb[0].mxu0
  %4600 = vdwg.mxu0
  %v4601 = vadd.f32 %v4376, %v4548
  %v4602 = vadd.f32 %v4377, %v4553
  %v4603 = vadd.f32 %v4378, %v4558
  %v4604 = vadd.f32 %v4379, %v4563
  %v4605 = vadd.f32 %v4380, %v4568
  %v4606 = vadd.f32 %v4381, %v4573
  %v4607 = vadd.f32 %v4382, %v4578
  %v4608 = vadd.f32 %v4383, %v4583
  %v4609 = vadd.f32 %v4384, %v4588
  %v4610 = vadd.f32 %v4385, %v4593
  %v4611 = vadd.f32 %v4386, %v4598
  %v4618 = vrot.slane %v3706, 5
  %v4619 = vrot.slane %v3712, 5
  %v4620 = vsel %vm1594, %v4618, %v4619
  %v4621 = vrot.slane %v3718, 5
  %v4622 = vsel %vm1594, %v4619, %v4621
  %v4623 = vrot.slane %v3724, 5
  %v4624 = vsel %vm1594, %v4621, %v4623
  %v4625 = vrot.slane %v3730, 5
  %v4626 = vsel %vm1594, %v4623, %v4625
  %v4627 = vrot.slane %v3736, 5
  %v4628 = vsel %vm1594, %v4625, %v4627
  %4629 = vrot.lane.b32.xlu0 %v4620, 32
  %v4630 = vpop.permute.xlu0 %4629
  %4631 = vrot.lane.b32.xlu0 %v4622, 32
  %v4632 = vpop.permute.xlu0 %4631
  %4633 = vrot.lane.b32.xlu0 %v4624, 32
  %v4634 = vpop.permute.xlu0 %4633
  %4635 = vrot.lane.b32.xlu0 %v4626, 32
  %v4636 = vpop.permute.xlu0 %4635
  %4637 = vrot.lane.b32.xlu0 %v4628, 32
  %v4638 = vpop.permute.xlu0 %4637
  %v4644 = vsel %vm370, %v3682, %v4630
  %v4645 = vsel %vm370, %v3688, %v4632
  %v4646 = vsel %vm370, %v3694, %v4634
  %v4647 = vsel %vm370, %v3700, %v4636
  %v4648 = vsel %vm370, %v3706, %v4638
  %s4649 = scalar_lea.vmem %s17, 176
  %v4650 = vld [vmem:[%s4649] sm:$0xf]
  %v4651 = vld [vmem:[%s4649 + $0x4] sm:$0xf]
  %v4652 = vld [vmem:[%s4649 + $0x8] sm:$0xf]
  %v4653 = vld [vmem:[%s4649 + $0xc] sm:$0xf]
  %v4654 = vld [vmem:[%s4649 + $0x10] sm:$0xf]
  %v4655 = vld [vmem:[%s4649 + $0x14] sm:$0xf]
  %v4656 = vld [vmem:[%s4649 + $0x18] sm:$0xf]
  %v4657 = vld [vmem:[%s4649 + $0x1c] sm:$0xf]
  %v4658 = vld [vmem:[%s4649 + $0x20] sm:$0xf]
  %v4659 = vld [vmem:[%s4649 + $0x24] sm:$0xf]
  %v4660 = vld [vmem:[%s4649 + $0x28] sm:$0x1]
  %v4661 = vunpack.c.l.bf16 %v4650
  %v4662 = vunpack.c.l.bf16 %v4651
  %v4663 = vunpack.c.l.bf16 %v4652
  %v4664 = vunpack.c.l.bf16 %v4653
  %v4665 = vunpack.c.l.bf16 %v4654
  %v4666 = vunpack.c.l.bf16 %v4655
  %v4667 = vunpack.c.l.bf16 %v4656
  %v4668 = vunpack.c.l.bf16 %v4657
  %v4669 = vunpack.c.l.bf16 %v4658
  %v4670 = vunpack.c.l.bf16 %v4659
  %v4671 = vunpack.c.l.bf16 %v4660
  %v4673 = vsel %vm3849, %v4661, 0
  %v4676 = vsel %vm3849, %v4662, 0
  %v4679 = vsel %vm3849, %v4663, 0
  %v4682 = vsel %vm3849, %v4664, 0
  %v4685 = vsel %vm3849, %v4665, 0
  %v4688 = vsel %vm3849, %v4666, 0
  %v4691 = vsel %vm3849, %v4667, 0
  %v4694 = vsel %vm3849, %v4668, 0
  %v4697 = vsel %vm3849, %v4669, 0
  %v4700 = vsel %vm3849, %v4670, 0
  %v4703 = vsel %vm3849, %v4671, 0
  %v4706 = vsel %vm1107, %v4648, 0
  %4708 = vmatprep.subr.mxu0 0.0
  %4709 = vmatpush1.msra.mxu0 %v4644
  %4710 = vmatprep.subr.mxu0 0.0
  %4711 = vmatpush1.msra.mxu0 %v4645
  %4712 = vmatprep.subr.mxu0 0.0
  %4713 = vmatpush1.msra.mxu0 %v4646
  %4714 = vmatprep.subr.mxu0 0.0
  %4715 = vmatpush1.msra.mxu0 %v4647
  %4716 = vmatprep.subr.mxu0 0.0
  %4717 = vmatpush1.msra.mxu0 %v4706
  %4718 = vmatprep.subr.mxu0 0.0
  %4719 = vmatpush1.msra.mxu0 0.0
  %4720 = vmatprep.subr.mxu0 0.0
  %4721 = vmatpush1.msra.mxu0 0.0
  %4722 = vmatprep.subr.mxu0 0.0
  %4723 = vmatpush1.msra.mxu0 0.0
  %4724 = vmatprep.subr.mxu0 0.0
  %4725 = vmatpush1.msra.mxu0 0.0
  %4726 = vmatprep.subr.mxu0 0.0
  %4727 = vmatpush1.msra.mxu0 0.0
  %4728 = vmatprep.subr.mxu0 0.0
  %4729 = vmatpush1.msra.mxu0 0.0
  %4730 = vmatprep.subr.mxu0 0.0
  %4731 = vmatpush1.msra.mxu0 0.0
  %4732 = vmatprep.subr.mxu0 0.0
  %4733 = vmatpush1.msra.mxu0 0.0
  %4734 = vmatprep.subr.mxu0 0.0
  %4735 = vmatpush1.msra.mxu0 0.0
  %4736 = vmatprep.subr.mxu0 0.0
  %4737 = vmatpush1.msra.mxu0 0.0
  %4738 = vmatprep.subr.mxu0 0.0
  %4739 = vmatpush1.msra.mxu0 0.0
  %4740 = vmatprep.subr.mxu0 0.0
  %4741 = vmatpush1.msra.mxu0 0.0
  %4742 = vmatprep.subr.mxu0 0.0
  %4743 = vmatpush1.msra.mxu0 0.0
  %4744 = vmatprep.subr.mxu0 0.0
  %4745 = vmatpush1.msra.mxu0 0.0
  %4746 = vmatprep.subr.mxu0 0.0
  %4747 = vmatpush1.msra.mxu0 0.0
  %4748 = vmatprep.subr.mxu0 0.0
  %4749 = vmatpush1.msra.mxu0 0.0
  %4750 = vmatprep.subr.mxu0 0.0
  %4751 = vmatpush1.msra.mxu0 0.0
  %4752 = vmatprep.subr.mxu0 0.0
  %4753 = vmatpush1.msra.mxu0 0.0
  %4754 = vmatprep.subr.mxu0 0.0
  %4755 = vmatpush1.msra.mxu0 0.0
  %4756 = vmatprep.subr.mxu0 0.0
  %4757 = vmatpush1.msra.mxu0 0.0
  %4758 = vmatprep.subr.mxu0 0.0
  %4759 = vmatpush1.msra.mxu0 0.0
  %4760 = vmatprep.subr.mxu0 0.0
  %4761 = vmatpush1.msra.mxu0 0.0
  %4762 = vmatprep.subr.mxu0 0.0
  %4763 = vmatpush1.msra.mxu0 0.0
  %4764 = vmatprep.subr.mxu0 0.0
  %4765 = vmatpush1.msra.mxu0 0.0
  %4766 = vmatprep.subr.mxu0 0.0
  %4767 = vmatpush1.msra.mxu0 0.0
  %4768 = vmatprep.subr.mxu0 0.0
  %4769 = vmatpush1.msra.mxu0 0.0
  %4770 = vmatprep.subr.mxu0 0.0
  %4771 = vmatpush1.msra.mxu0 0.0
  %4772 = vmatprep.mubr.f32.mxu0 0.0
  %4773 = vmatmul.mubr.f32.gmra.mrb[0].mxu0 %v4673
  %v4774 = vpop.f32.mrb[0].mxu0
  %v4775 = vadd.f32 0.0, %v4774
  %v4776 = vpop.f32.mrb[0].mxu0
  %4777 = vmatprep.mubr.f32.mxu0 0.0
  %4778 = vmatmul.mubr.f32.gmra.mrb[0].mxu0 %v4676
  %v4779 = vpop.f32.mrb[0].mxu0
  %v4780 = vadd.f32 0.0, %v4779
  %v4781 = vpop.f32.mrb[0].mxu0
  %4782 = vmatprep.mubr.f32.mxu0 0.0
  %4783 = vmatmul.mubr.f32.gmra.mrb[0].mxu0 %v4679
  %v4784 = vpop.f32.mrb[0].mxu0
  %v4785 = vadd.f32 0.0, %v4784
  %v4786 = vpop.f32.mrb[0].mxu0
  %4787 = vmatprep.mubr.f32.mxu0 0.0
  %4788 = vmatmul.mubr.f32.gmra.mrb[0].mxu0 %v4682
  %v4789 = vpop.f32.mrb[0].mxu0
  %v4790 = vadd.f32 0.0, %v4789
  %v4791 = vpop.f32.mrb[0].mxu0
  %4792 = vmatprep.mubr.f32.mxu0 0.0
  %4793 = vmatmul.mubr.f32.gmra.mrb[0].mxu0 %v4685
  %v4794 = vpop.f32.mrb[0].mxu0
  %v4795 = vadd.f32 0.0, %v4794
  %v4796 = vpop.f32.mrb[0].mxu0
  %4797 = vmatprep.mubr.f32.mxu0 0.0
  %4798 = vmatmul.mubr.f32.gmra.mrb[0].mxu0 %v4688
  %v4799 = vpop.f32.mrb[0].mxu0
  %v4800 = vadd.f32 0.0, %v4799
  %v4801 = vpop.f32.mrb[0].mxu0
  %4802 = vmatprep.mubr.f32.mxu0 0.0
  %4803 = vmatmul.mubr.f32.gmra.mrb[0].mxu0 %v4691
  %v4804 = vpop.f32.mrb[0].mxu0
  %v4805 = vadd.f32 0.0, %v4804
  %v4806 = vpop.f32.mrb[0].mxu0
  %4807 = vmatprep.mubr.f32.mxu0 0.0
  %4808 = vmatmul.mubr.f32.gmra.mrb[0].mxu0 %v4694
  %v4809 = vpop.f32.mrb[0].mxu0
  %v4810 = vadd.f32 0.0, %v4809
  %v4811 = vpop.f32.mrb[0].mxu0
  %4812 = vmatprep.mubr.f32.mxu0 0.0
  %4813 = vmatmul.mubr.f32.gmra.mrb[0].mxu0 %v4697
  %v4814 = vpop.f32.mrb[0].mxu0
  %v4815 = vadd.f32 0.0, %v4814
  %v4816 = vpop.f32.mrb[0].mxu0
  %4817 = vmatprep.mubr.f32.mxu0 0.0
  %4818 = vmatmul.mubr.f32.gmra.mrb[0].mxu0 %v4700
  %v4819 = vpop.f32.mrb[0].mxu0
  %v4820 = vadd.f32 0.0, %v4819
  %v4821 = vpop.f32.mrb[0].mxu0
  %4822 = vmatprep.mubr.f32.mxu0 0.0
  %4823 = vmatmul.mubr.f32.gmra.mrb[0].mxu0 %v4703
  %v4824 = vpop.f32.mrb[0].mxu0
  %v4825 = vadd.f32 0.0, %v4824
  %v4826 = vpop.f32.mrb[0].mxu0
  %4827 = vdwg.mxu0
  %v4828 = vadd.f32 %v4601, %v4775
  %v4829 = vadd.f32 %v4602, %v4780
  %v4830 = vadd.f32 %v4603, %v4785
  %v4831 = vadd.f32 %v4604, %v4790
  %v4832 = vadd.f32 %v4605, %v4795
  %v4833 = vadd.f32 %v4606, %v4800
  %v4834 = vadd.f32 %v4607, %v4805
  %v4835 = vadd.f32 %v4608, %v4810
  %v4836 = vadd.f32 %v4609, %v4815
  %v4837 = vadd.f32 %v4610, %v4820
  %v4838 = vadd.f32 %v4611, %v4825
  %v4850 = vrot.slane %v4828, 6
  %v4851 = vrot.slane %v4829, 6
  %v4852 = vsel %vm698, %v4850, %v4851
  %v4853 = vrot.slane %v4830, 6
  %v4854 = vsel %vm698, %v4851, %v4853
  %v4855 = vrot.slane %v4831, 6
  %v4856 = vsel %vm698, %v4853, %v4855
  %v4857 = vrot.slane %v4832, 6
  %v4858 = vsel %vm698, %v4855, %v4857
  %v4859 = vrot.slane %v4833, 6
  %v4860 = vsel %vm698, %v4857, %v4859
  %v4861 = vrot.slane %v4834, 6
  %v4862 = vsel %vm698, %v4859, %v4861
  %v4863 = vrot.slane %v4835, 6
  %v4864 = vsel %vm698, %v4861, %v4863
  %v4865 = vrot.slane %v4836, 6
  %v4866 = vsel %vm698, %v4863, %v4865
  %v4867 = vrot.slane %v4837, 6
  %v4868 = vsel %vm698, %v4865, %v4867
  %v4869 = vrot.slane %v4838, 6
  %v4870 = vsel %vm698, %v4867, %v4869
  %4871 = vrot.lane.b32.xlu0 %v4850, 96
  %v4872 = vpop.permute.xlu0 %4871
  %4873 = vrot.lane.b32.xlu0 %v4852, 96
  %v4874 = vpop.permute.xlu0 %4873
  %4875 = vrot.lane.b32.xlu0 %v4854, 96
  %v4876 = vpop.permute.xlu0 %4875
  %4877 = vrot.lane.b32.xlu0 %v4856, 96
  %v4878 = vpop.permute.xlu0 %4877
  %4879 = vrot.lane.b32.xlu0 %v4858, 96
  %v4880 = vpop.permute.xlu0 %4879
  %4881 = vrot.lane.b32.xlu0 %v4860, 96
  %v4882 = vpop.permute.xlu0 %4881
  %4883 = vrot.lane.b32.xlu0 %v4862, 96
  %v4884 = vpop.permute.xlu0 %4883
  %4885 = vrot.lane.b32.xlu0 %v4864, 96
  %v4886 = vpop.permute.xlu0 %4885
  %4887 = vrot.lane.b32.xlu0 %v4866, 96
  %v4888 = vpop.permute.xlu0 %4887
  %4889 = vrot.lane.b32.xlu0 %v4868, 96
  %v4890 = vpop.permute.xlu0 %4889
  %4891 = vrot.lane.b32.xlu0 %v4870, 96
  %v4892 = vpop.permute.xlu0 %4891
  %v4904 = vsel %vm698, %v4838, %v4872
  %v4905 = vld [vmem:[%s16] sm:$0x1]
  %v4907 = vlaneseq
  %v4908 = vshrl.u32 %v4907, 7
  %v4909 = vsub.s32 0, %v4908
  %v4910 = vrot.slane %v4905, %v4909
  %v4912 = vadd.f32 %v4828, %v4910
  %v4913 = vadd.f32 %v4829, %v4910
  %v4914 = vadd.f32 %v4830, %v4910
  %v4915 = vadd.f32 %v4831, %v4910
  %v4916 = vadd.f32 %v4832, %v4910
  %v4917 = vadd.f32 %v4833, %v4910
  %v4918 = vadd.f32 %v4834, %v4910
  %v4919 = vadd.f32 %v4835, %v4910
  %v4920 = vadd.f32 %v4836, %v4910
  %v4921 = vadd.f32 %v4837, %v4910
  %v4922 = vadd.f32 %v4904, %v4910
  %v4923 = vadd.f32 %v4874, %v4910
  %v4924 = vadd.f32 %v4876, %v4910
  %v4925 = vadd.f32 %v4878, %v4910
  %v4926 = vadd.f32 %v4880, %v4910
  %v4927 = vadd.f32 %v4882, %v4910
  %v4928 = vadd.f32 %v4884, %v4910
  %v4929 = vadd.f32 %v4886, %v4910
  %v4930 = vadd.f32 %v4888, %v4910
  %v4931 = vadd.f32 %v4890, %v4910
  %v4932 = vadd.f32 %v4892, %v4910
  %vm4933 = vcmp.gt.f32.partialorder %v4912, 0.0
  %vm4934 = vcmp.gt.f32.partialorder %v4913, 0.0
  %vm4935 = vcmp.gt.f32.partialorder %v4914, 0.0
  %vm4936 = vcmp.gt.f32.partialorder %v4915, 0.0
  %vm4937 = vcmp.gt.f32.partialorder %v4916, 0.0
  %vm4938 = vcmp.gt.f32.partialorder %v4917, 0.0
  %vm4939 = vcmp.gt.f32.partialorder %v4918, 0.0
  %vm4940 = vcmp.gt.f32.partialorder %v4919, 0.0
  %vm4941 = vcmp.gt.f32.partialorder %v4920, 0.0
  %vm4942 = vcmp.gt.f32.partialorder %v4921, 0.0
  %vm4943 = vcmp.gt.f32.partialorder %v4922, 0.0
  %vm4944 = vcmp.gt.f32.partialorder %v4923, 0.0
  %vm4945 = vcmp.gt.f32.partialorder %v4924, 0.0
  %vm4946 = vcmp.gt.f32.partialorder %v4925, 0.0
  %vm4947 = vcmp.gt.f32.partialorder %v4926, 0.0
  %vm4948 = vcmp.gt.f32.partialorder %v4927, 0.0
  %vm4949 = vcmp.gt.f32.partialorder %v4928, 0.0
  %vm4950 = vcmp.gt.f32.partialorder %v4929, 0.0
  %vm4951 = vcmp.gt.f32.partialorder %v4930, 0.0
  %vm4952 = vcmp.gt.f32.partialorder %v4931, 0.0
  %vm4953 = vcmp.gt.f32.partialorder %v4932, 0.0
  %v4954 = vmul.f32 %v4912, 0.01
  %v4955 = vmul.f32 %v4913, 0.01
  %v4956 = vmul.f32 %v4914, 0.01
  %v4957 = vmul.f32 %v4915, 0.01
  %v4958 = vmul.f32 %v4916, 0.01
  %v4959 = vmul.f32 %v4917, 0.01
  %v4960 = vmul.f32 %v4918, 0.01
  %v4961 = vmul.f32 %v4919, 0.01
  %v4962 = vmul.f32 %v4920, 0.01
  %v4963 = vmul.f32 %v4921, 0.01
  %v4964 = vmul.f32 %v4922, 0.01
  %v4965 = vmul.f32 %v4923, 0.01
  %v4966 = vmul.f32 %v4924, 0.01
  %v4967 = vmul.f32 %v4925, 0.01
  %v4968 = vmul.f32 %v4926, 0.01
  %v4969 = vmul.f32 %v4927, 0.01
  %v4970 = vmul.f32 %v4928, 0.01
  %v4971 = vmul.f32 %v4929, 0.01
  %v4972 = vmul.f32 %v4930, 0.01
  %v4973 = vmul.f32 %v4931, 0.01
  %v4974 = vmul.f32 %v4932, 0.01
  %v4975 = vsel %vm4933, %v4912, %v4954
  %v4976 = vsel %vm4934, %v4913, %v4955
  %v4977 = vsel %vm4935, %v4914, %v4956
  %v4978 = vsel %vm4936, %v4915, %v4957
  %v4979 = vsel %vm4937, %v4916, %v4958
  %v4980 = vsel %vm4938, %v4917, %v4959
  %v4981 = vsel %vm4939, %v4918, %v4960
  %v4982 = vsel %vm4940, %v4919, %v4961
  %v4983 = vsel %vm4941, %v4920, %v4962
  %v4984 = vsel %vm4942, %v4921, %v4963
  %v4985 = vsel %vm4943, %v4922, %v4964
  %v4986 = vsel %vm4944, %v4923, %v4965
  %v4987 = vsel %vm4945, %v4924, %v4966
  %v4988 = vsel %vm4946, %v4925, %v4967
  %v4989 = vsel %vm4947, %v4926, %v4968
  %v4990 = vsel %vm4948, %v4927, %v4969
  %v4991 = vsel %vm4949, %v4928, %v4970
  %v4992 = vsel %vm4950, %v4929, %v4971
  %v4993 = vsel %vm4951, %v4930, %v4972
  %v4994 = vsel %vm4952, %v4931, %v4973
  %v4995 = vsel %vm4953, %v4932, %v4974
  %v4996 = vld [vmem:[%s18] sm:$0x1f]
  %v4998 = vsel %vm370, %v4996, 0
  %v5001 = vsel %vm370, %v4975, 0
  %v5004 = vsel %vm370, %v4976, 0
  %v5007 = vsel %vm370, %v4977, 0
  %v5010 = vsel %vm370, %v4978, 0
  %v5013 = vsel %vm370, %v4979, 0
  %v5016 = vsel %vm370, %v4980, 0
  %v5019 = vsel %vm370, %v4981, 0
  %v5022 = vsel %vm370, %v4982, 0
  %v5025 = vsel %vm370, %v4983, 0
  %v5028 = vsel %vm370, %v4984, 0
  %v5031 = vsel %vm370, %v4985, 0
  %v5034 = vsel %vm370, %v4986, 0
  %v5037 = vsel %vm370, %v4987, 0
  %v5040 = vsel %vm370, %v4988, 0
  %v5043 = vsel %vm370, %v4989, 0
  %v5046 = vsel %vm370, %v4990, 0
  %v5049 = vsel %vm370, %v4991, 0
  %v5052 = vsel %vm370, %v4992, 0
  %v5055 = vsel %vm370, %v4993, 0
  %v5058 = vsel %vm370, %v4994, 0
  %v5061 = vsel %vm370, %v4995, 0
  %5063 = vmatprep.subr.mxu0 0.0
  %5064 = vmatpush1.xpose.msra.mxu0 %v5001
  %5065 = vmatprep.subr.mxu0 0.0
  %5066 = vmatpush1.xpose.msra.mxu0 %v5004
  %5067 = vmatprep.subr.mxu0 0.0
  %5068 = vmatpush1.xpose.msra.mxu0 %v5007
  %5069 = vmatprep.subr.mxu0 0.0
  %5070 = vmatpush1.xpose.msra.mxu0 %v5010
  %5071 = vmatprep.subr.mxu0 0.0
  %5072 = vmatpush1.xpose.msra.mxu0 %v5013
  %5073 = vmatprep.subr.mxu0 0.0
  %5074 = vmatpush1.xpose.msra.mxu0 %v5016
  %5075 = vmatprep.subr.mxu0 0.0
  %5076 = vmatpush1.xpose.msra.mxu0 %v5019
  %5077 = vmatprep.subr.mxu0 0.0
  %5078 = vmatpush1.xpose.msra.mxu0 %v5022
  %5079 = vmatprep.subr.mxu0 0.0
  %5080 = vmatpush1.xpose.msra.mxu0 %v5025
  %5081 = vmatprep.subr.mxu0 0.0
  %5082 = vmatpush1.xpose.msra.mxu0 %v5028
  %5083 = vmatprep.subr.mxu0 0.0
  %5084 = vmatpush1.xpose.msra.mxu0 %v5031
  %5085 = vmatprep.subr.mxu0 0.0
  %5086 = vmatpush1.xpose.msra.mxu0 %v5034
  %5087 = vmatprep.subr.mxu0 0.0
  %5088 = vmatpush1.xpose.msra.mxu0 %v5037
  %5089 = vmatprep.subr.mxu0 0.0
  %5090 = vmatpush1.xpose.msra.mxu0 %v5040
  %5091 = vmatprep.subr.mxu0 0.0
  %5092 = vmatpush1.xpose.msra.mxu0 %v5043
  %5093 = vmatprep.subr.mxu0 0.0
  %5094 = vmatpush1.xpose.msra.mxu0 %v5046
  %5095 = vmatprep.subr.mxu0 0.0
  %5096 = vmatpush1.xpose.msra.mxu0 %v5049
  %5097 = vmatprep.subr.mxu0 0.0
  %5098 = vmatpush1.xpose.msra.mxu0 %v5052
  %5099 = vmatprep.subr.mxu0 0.0
  %5100 = vmatpush1.xpose.msra.mxu0 %v5055
  %5101 = vmatprep.subr.mxu0 0.0
  %5102 = vmatpush1.xpose.msra.mxu0 %v5058
  %5103 = vmatprep.subr.mxu0 0.0
  %5104 = vmatpush1.xpose.msra.mxu0 %v5061
  %5105 = vmatprep.subr.mxu0 0.0
  %5106 = vmatpush1.xpose.msra.mxu0 0.0
  %5107 = vmatprep.subr.mxu0 0.0
  %5108 = vmatpush1.xpose.msra.mxu0 0.0
  %5109 = vmatprep.subr.mxu0 0.0
  %5110 = vmatpush1.xpose.msra.mxu0 0.0
  %5111 = vmatprep.subr.mxu0 0.0
  %5112 = vmatpush1.xpose.msra.mxu0 0.0
  %5113 = vmatprep.subr.mxu0 0.0
  %5114 = vmatpush1.xpose.msra.mxu0 0.0
  %5115 = vmatprep.subr.mxu0 0.0
  %5116 = vmatpush1.xpose.msra.mxu0 0.0
  %5117 = vmatprep.subr.mxu0 0.0
  %5118 = vmatpush1.xpose.msra.mxu0 0.0
  %5119 = vmatprep.subr.mxu0 0.0
  %5120 = vmatpush1.xpose.msra.mxu0 0.0
  %5121 = vmatprep.subr.mxu0 0.0
  %5122 = vmatpush1.xpose.msra.mxu0 0.0
  %5123 = vmatprep.subr.mxu0 0.0
  %5124 = vmatpush1.xpose.msra.mxu0 0.0
  %5125 = vmatprep.subr.mxu0 0.0
  %5126 = vmatpush1.xpose.msra.mxu0 0.0
  %5127 = vmatprep.mubr.f32.mxu0 0.0
  %5128 = vmatmul.mubr.f32.gmra.mrb[0].mxu0 %v4998
  %v5129 = vpop.f32.mrb[0].mxu0
  %v5130 = vadd.f32 0.0, %v5129
  %v5131 = vpop.f32.mrb[0].mxu0
  %v5132 = vadd.f32 0.0, %v5131
  %5133 = vdwg.mxu0
  %v5136 = vrot.slane %v5130, 7
  %v5137 = vrot.slane %v5132, 7
  %5138 = vrot.lane.b32.xlu0 %v5136, 46
  %v5139 = vpop.permute.xlu0 %5138
  %5140 = vrot.lane.b32.xlu0 %v5137, 46
  %v5141 = vpop.permute.xlu0 %5140
  %vm5142 = vcmask 375808
  %v5143 = vsel %vm5142, %v5139, %v5141
  %v5145 = vsel %vm1913, %v5130, %v5143
  %v5146 = vld [vmem:[%s20] sm:$0xff]
  %v5147 = vld [vmem:[%s20 + $0x8] sm:$0xff]
  %v5148 = vld [vmem:[%s20 + $0x10] sm:$0xff]
  %v5149 = vld [vmem:[%s20 + $0x18] sm:$0xff]
  %v5150 = vld [vmem:[%s20 + $0x20] sm:$0xff]
  %v5151 = vld [vmem:[%s20 + $0x28] sm:$0xff]
  %v5152 = vld [vmem:[%s20 + $0x30] sm:$0xff]
  %v5153 = vld [vmem:[%s20 + $0x38] sm:$0xff]
  %v5154 = vld [vmem:[%s20 + $0x40] sm:$0xff]
  %v5155 = vld [vmem:[%s20 + $0x48] sm:$0xff]
  %v5156 = vld [vmem:[%s20 + $0x50] sm:$0x11]
  %v5157 = vunpack.c.l.bf16 %v5146
  %v5158 = vunpack.c.h.bf16 %v5146
  %v5159 = vunpack.c.l.bf16 %v5147
  %v5160 = vunpack.c.h.bf16 %v5147
  %v5161 = vunpack.c.l.bf16 %v5148
  %v5162 = vunpack.c.h.bf16 %v5148
  %v5163 = vunpack.c.l.bf16 %v5149
  %v5164 = vunpack.c.h.bf16 %v5149
  %v5165 = vunpack.c.l.bf16 %v5150
  %v5166 = vunpack.c.h.bf16 %v5150
  %v5167 = vunpack.c.l.bf16 %v5151
  %v5168 = vunpack.c.h.bf16 %v5151
  %v5169 = vunpack.c.l.bf16 %v5152
  %v5170 = vunpack.c.h.bf16 %v5152
  %v5171 = vunpack.c.l.bf16 %v5153
  %v5172 = vunpack.c.h.bf16 %v5153
  %v5173 = vunpack.c.l.bf16 %v5154
  %v5174 = vunpack.c.h.bf16 %v5154
  %v5175 = vunpack.c.l.bf16 %v5155
  %v5176 = vunpack.c.h.bf16 %v5155
  %v5177 = vunpack.c.l.bf16 %v5156
  %v5178 = vunpack.c.h.bf16 %v5156
  %v5179 = vrot.slane %v5130, 1
  %5181 = vrot.lane.b32.xlu0 %v5130, 46
  %v5182 = vpop.permute.xlu0 %5181
  %5183 = vrot.lane.b32.xlu0 %v5132, 46
  %v5184 = vpop.permute.xlu0 %5183
  %v5185 = vsel %vm5142, %v5182, %v5184
  %v5187 = vsel %vm1913, %v5179, %v5185
  %s5188 = scalar_lea.vmem %s20, 88
  %v5189 = vld [vmem:[%s5188] sm:$0xff]
  %v5190 = vld [vmem:[%s5188 + $0x8] sm:$0xff]
  %v5191 = vld [vmem:[%s5188 + $0x10] sm:$0xff]
  %v5192 = vld [vmem:[%s5188 + $0x18] sm:$0xff]
  %v5193 = vld [vmem:[%s5188 + $0x20] sm:$0xff]
  %v5194 = vld [vmem:[%s5188 + $0x28] sm:$0xff]
  %v5195 = vld [vmem:[%s5188 + $0x30] sm:$0xff]
  %v5196 = vld [vmem:[%s5188 + $0x38] sm:$0xff]
  %v5197 = vld [vmem:[%s5188 + $0x40] sm:$0xff]
  %v5198 = vld [vmem:[%s5188 + $0x48] sm:$0xff]
  %v5199 = vld [vmem:[%s5188 + $0x50] sm:$0x11]
  %v5200 = vunpack.c.l.bf16 %v5189
  %v5201 = vunpack.c.h.bf16 %v5189
  %v5202 = vunpack.c.l.bf16 %v5190
  %v5203 = vunpack.c.h.bf16 %v5190
  %v5204 = vunpack.c.l.bf16 %v5191
  %v5205 = vunpack.c.h.bf16 %v5191
  %v5206 = vunpack.c.l.bf16 %v5192
  %v5207 = vunpack.c.h.bf16 %v5192
  %v5208 = vunpack.c.l.bf16 %v5193
  %v5209 = vunpack.c.h.bf16 %v5193
  %v5210 = vunpack.c.l.bf16 %v5194
  %v5211 = vunpack.c.h.bf16 %v5194
  %v5212 = vunpack.c.l.bf16 %v5195
  %v5213 = vunpack.c.h.bf16 %v5195
  %v5214 = vunpack.c.l.bf16 %v5196
  %v5215 = vunpack.c.h.bf16 %v5196
  %v5216 = vunpack.c.l.bf16 %v5197
  %v5217 = vunpack.c.h.bf16 %v5197
  %v5218 = vunpack.c.l.bf16 %v5198
  %v5219 = vunpack.c.h.bf16 %v5198
  %v5220 = vunpack.c.l.bf16 %v5199
  %v5221 = vunpack.c.h.bf16 %v5199
  %vm5222 = vcmask 670720
  %v5224 = vsel %vm5222, %v5187, 0
  %v5227 = vsel %vm698, %v5220, 0
  %v5230 = vsel %vm698, %v5221, 0
  %5232 = vmatprep.subr.mxu0 %v5201
  %5233 = vmatpush1.msra.mxu0 %v5200
  %5234 = vmatprep.subr.mxu0 %v5203
  %5235 = vmatpush1.msra.mxu0 %v5202
  %5236 = vmatprep.subr.mxu0 %v5205
  %5237 = vmatpush1.msra.mxu0 %v5204
  %5238 = vmatprep.subr.mxu0 %v5207
  %5239 = vmatpush1.msra.mxu0 %v5206
  %5240 = vmatprep.subr.mxu0 %v5209
  %5241 = vmatpush1.msra.mxu0 %v5208
  %5242 = vmatprep.subr.mxu0 %v5211
  %5243 = vmatpush1.msra.mxu0 %v5210
  %5244 = vmatprep.subr.mxu0 %v5213
  %5245 = vmatpush1.msra.mxu0 %v5212
  %5246 = vmatprep.subr.mxu0 %v5215
  %5247 = vmatpush1.msra.mxu0 %v5214
  %5248 = vmatprep.subr.mxu0 %v5217
  %5249 = vmatpush1.msra.mxu0 %v5216
  %5250 = vmatprep.subr.mxu0 %v5219
  %5251 = vmatpush1.msra.mxu0 %v5218
  %5252 = vmatprep.subr.mxu0 %v5230
  %5253 = vmatpush1.msra.mxu0 %v5227
  %5254 = vmatprep.subr.mxu0 0.0
  %5255 = vmatpush1.msra.mxu0 0.0
  %5256 = vmatprep.subr.mxu0 0.0
  %5257 = vmatpush1.msra.mxu0 0.0
  %5258 = vmatprep.subr.mxu0 0.0
  %5259 = vmatpush1.msra.mxu0 0.0
  %5260 = vmatprep.subr.mxu0 0.0
  %5261 = vmatpush1.msra.mxu0 0.0
  %5262 = vmatprep.subr.mxu0 0.0
  %5263 = vmatpush1.msra.mxu0 0.0
  %5264 = vmatprep.subr.mxu0 0.0
  %5265 = vmatpush1.msra.mxu0 0.0
  %5266 = vmatprep.subr.mxu0 0.0
  %5267 = vmatpush1.msra.mxu0 0.0
  %5268 = vmatprep.subr.mxu0 0.0
  %5269 = vmatpush1.msra.mxu0 0.0
  %5270 = vmatprep.subr.mxu0 0.0
  %5271 = vmatpush1.msra.mxu0 0.0
  %5272 = vmatprep.subr.mxu0 0.0
  %5273 = vmatpush1.msra.mxu0 0.0
  %5274 = vmatprep.subr.mxu0 0.0
  %5275 = vmatpush1.msra.mxu0 0.0
  %5276 = vmatprep.subr.mxu0 0.0
  %5277 = vmatpush1.msra.mxu0 0.0
  %5278 = vmatprep.subr.mxu0 0.0
  %5279 = vmatpush1.msra.mxu0 0.0
  %5280 = vmatprep.subr.mxu0 0.0
  %5281 = vmatpush1.msra.mxu0 0.0
  %5282 = vmatprep.subr.mxu0 0.0
  %5283 = vmatpush1.msra.mxu0 0.0
  %5284 = vmatprep.subr.mxu0 0.0
  %5285 = vmatpush1.msra.mxu0 0.0
  %5286 = vmatprep.subr.mxu0 0.0
  %5287 = vmatpush1.msra.mxu0 0.0
  %5288 = vmatprep.subr.mxu0 0.0
  %5289 = vmatpush1.msra.mxu0 0.0
  %5290 = vmatprep.subr.mxu0 0.0
  %5291 = vmatpush1.msra.mxu0 0.0
  %5292 = vmatprep.subr.mxu0 0.0
  %5293 = vmatpush1.msra.mxu0 0.0
  %5294 = vmatprep.subr.mxu0 0.0
  %5295 = vmatpush1.msra.mxu0 0.0
  %5296 = vmatprep.mubr.f32.mxu0 0.0
  %5297 = vmatmul.mubr.f32.gmra.mrb[0].mxu0 %v5224
  %v5298 = vpop.f32.mrb[0].mxu0
  %v5299 = vadd.f32 0.0, %v5298
  %v5300 = vpop.f32.mrb[0].mxu0
  %v5301 = vadd.f32 0.0, %v5300
  %5302 = vdwg.mxu0
  %v5304 = vsel %vm5222, %v5145, 0
  %v5307 = vsel %vm698, %v5177, 0
  %v5310 = vsel %vm698, %v5178, 0
  %5312 = vmatprep.subr.mxu0 %v5158
  %5313 = vmatpush1.msra.mxu0 %v5157
  %5314 = vmatprep.subr.mxu0 %v5160
  %5315 = vmatpush1.msra.mxu0 %v5159
  %5316 = vmatprep.subr.mxu0 %v5162
  %5317 = vmatpush1.msra.mxu0 %v5161
  %5318 = vmatprep.subr.mxu0 %v5164
  %5319 = vmatpush1.msra.mxu0 %v5163
  %5320 = vmatprep.subr.mxu0 %v5166
  %5321 = vmatpush1.msra.mxu0 %v5165
  %5322 = vmatprep.subr.mxu0 %v5168
  %5323 = vmatpush1.msra.mxu0 %v5167
  %5324 = vmatprep.subr.mxu0 %v5170
  %5325 = vmatpush1.msra.mxu0 %v5169
  %5326 = vmatprep.subr.mxu0 %v5172
  %5327 = vmatpush1.msra.mxu0 %v5171
  %5328 = vmatprep.subr.mxu0 %v5174
  %5329 = vmatpush1.msra.mxu0 %v5173
  %5330 = vmatprep.subr.mxu0 %v5176
  %5331 = vmatpush1.msra.mxu0 %v5175
  %5332 = vmatprep.subr.mxu0 %v5310
  %5333 = vmatpush1.msra.mxu0 %v5307
  %5334 = vmatprep.subr.mxu0 0.0
  %5335 = vmatpush1.msra.mxu0 0.0
  %5336 = vmatprep.subr.mxu0 0.0
  %5337 = vmatpush1.msra.mxu0 0.0
  %5338 = vmatprep.subr.mxu0 0.0
  %5339 = vmatpush1.msra.mxu0 0.0
  %5340 = vmatprep.subr.mxu0 0.0
  %5341 = vmatpush1.msra.mxu0 0.0
  %5342 = vmatprep.subr.mxu0 0.0
  %5343 = vmatpush1.msra.mxu0 0.0
  %5344 = vmatprep.subr.mxu0 0.0
  %5345 = vmatpush1.msra.mxu0 0.0
  %5346 = vmatprep.subr.mxu0 0.0
  %5347 = vmatpush1.msra.mxu0 0.0
  %5348 = vmatprep.subr.mxu0 0.0
  %5349 = vmatpush1.msra.mxu0 0.0
  %5350 = vmatprep.subr.mxu0 0.0
  %5351 = vmatpush1.msra.mxu0 0.0
  %5352 = vmatprep.subr.mxu0 0.0
  %5353 = vmatpush1.msra.mxu0 0.0
  %5354 = vmatprep.subr.mxu0 0.0
  %5355 = vmatpush1.msra.mxu0 0.0
  %5356 = vmatprep.subr.mxu0 0.0
  %5357 = vmatpush1.msra.mxu0 0.0
  %5358 = vmatprep.subr.mxu0 0.0
  %5359 = vmatpush1.msra.mxu0 0.0
  %5360 = vmatprep.subr.mxu0 0.0
  %5361 = vmatpush1.msra.mxu0 0.0
  %5362 = vmatprep.subr.mxu0 0.0
  %5363 = vmatpush1.msra.mxu0 0.0
  %5364 = vmatprep.subr.mxu0 0.0
  %5365 = vmatpush1.msra.mxu0 0.0
  %5366 = vmatprep.subr.mxu0 0.0
  %5367 = vmatpush1.msra.mxu0 0.0
  %5368 = vmatprep.subr.mxu0 0.0
  %5369 = vmatpush1.msra.mxu0 0.0
  %5370 = vmatprep.subr.mxu0 0.0
  %5371 = vmatpush1.msra.mxu0 0.0
  %5372 = vmatprep.subr.mxu0 0.0
  %5373 = vmatpush1.msra.mxu0 0.0
  %5374 = vmatprep.subr.mxu0 0.0
  %5375 = vmatpush1.msra.mxu0 0.0
  %5376 = vmatprep.mubr.f32.mxu0 0.0
  %5377 = vmatmul.mubr.f32.gmra.mrb[0].mxu0 %v5304
  %v5378 = vpop.f32.mrb[0].mxu0
  %v5379 = vadd.f32 %v5299, %v5378
  %v5380 = vpop.f32.mrb[0].mxu0
  %v5381 = vadd.f32 %v5301, %v5380
  %5382 = vdwg.mxu0
  %v5383 = vrot.slane %v5130, 2
  %v5385 = vrot.slane %v5132, 1
  %5386 = vrot.lane.b32.xlu0 %v5179, 46
  %v5387 = vpop.permute.xlu0 %5386
  %5388 = vrot.lane.b32.xlu0 %v5385, 46
  %v5389 = vpop.permute.xlu0 %5388
  %v5390 = vsel %vm5142, %v5387, %v5389
  %v5392 = vsel %vm1913, %v5383, %v5390
  %s5393 = scalar_lea.vmem %s20, 176
  %v5394 = vld [vmem:[%s5393] sm:$0xff]
  %v5395 = vld [vmem:[%s5393 + $0x8] sm:$0xff]
  %v5396 = vld [vmem:[%s5393 + $0x10] sm:$0xff]
  %v5397 = vld [vmem:[%s5393 + $0x18] sm:$0xff]
  %v5398 = vld [vmem:[%s5393 + $0x20] sm:$0xff]
  %v5399 = vld [vmem:[%s5393 + $0x28] sm:$0xff]
  %v5400 = vld [vmem:[%s5393 + $0x30] sm:$0xff]
  %v5401 = vld [vmem:[%s5393 + $0x38] sm:$0xff]
  %v5402 = vld [vmem:[%s5393 + $0x40] sm:$0xff]
  %v5403 = vld [vmem:[%s5393 + $0x48] sm:$0xff]
  %v5404 = vld [vmem:[%s5393 + $0x50] sm:$0x11]
  %v5405 = vunpack.c.l.bf16 %v5394
  %v5406 = vunpack.c.h.bf16 %v5394
  %v5407 = vunpack.c.l.bf16 %v5395
  %v5408 = vunpack.c.h.bf16 %v5395
  %v5409 = vunpack.c.l.bf16 %v5396
  %v5410 = vunpack.c.h.bf16 %v5396
  %v5411 = vunpack.c.l.bf16 %v5397
  %v5412 = vunpack.c.h.bf16 %v5397
  %v5413 = vunpack.c.l.bf16 %v5398
  %v5414 = vunpack.c.h.bf16 %v5398
  %v5415 = vunpack.c.l.bf16 %v5399
  %v5416 = vunpack.c.h.bf16 %v5399
  %v5417 = vunpack.c.l.bf16 %v5400
  %v5418 = vunpack.c.h.bf16 %v5400
  %v5419 = vunpack.c.l.bf16 %v5401
  %v5420 = vunpack.c.h.bf16 %v5401
  %v5421 = vunpack.c.l.bf16 %v5402
  %v5422 = vunpack.c.h.bf16 %v5402
  %v5423 = vunpack.c.l.bf16 %v5403
  %v5424 = vunpack.c.h.bf16 %v5403
  %v5425 = vunpack.c.l.bf16 %v5404
  %v5426 = vunpack.c.h.bf16 %v5404
  %v5428 = vsel %vm5222, %v5392, 0
  %v5431 = vsel %vm698, %v5425, 0
  %v5434 = vsel %vm698, %v5426, 0
  %5436 = vmatprep.subr.mxu0 %v5406
  %5437 = vmatpush1.msra.mxu0 %v5405
  %5438 = vmatprep.subr.mxu0 %v5408
  %5439 = vmatpush1.msra.mxu0 %v5407
  %5440 = vmatprep.subr.mxu0 %v5410
  %5441 = vmatpush1.msra.mxu0 %v5409
  %5442 = vmatprep.subr.mxu0 %v5412
  %5443 = vmatpush1.msra.mxu0 %v5411
  %5444 = vmatprep.subr.mxu0 %v5414
  %5445 = vmatpush1.msra.mxu0 %v5413
  %5446 = vmatprep.subr.mxu0 %v5416
  %5447 = vmatpush1.msra.mxu0 %v5415
  %5448 = vmatprep.subr.mxu0 %v5418
  %5449 = vmatpush1.msra.mxu0 %v5417
  %5450 = vmatprep.subr.mxu0 %v5420
  %5451 = vmatpush1.msra.mxu0 %v5419
  %5452 = vmatprep.subr.mxu0 %v5422
  %5453 = vmatpush1.msra.mxu0 %v5421
  %5454 = vmatprep.subr.mxu0 %v5424
  %5455 = vmatpush1.msra.mxu0 %v5423
  %5456 = vmatprep.subr.mxu0 %v5434
  %5457 = vmatpush1.msra.mxu0 %v5431
  %5458 = vmatprep.subr.mxu0 0.0
  %5459 = vmatpush1.msra.mxu0 0.0
  %5460 = vmatprep.subr.mxu0 0.0
  %5461 = vmatpush1.msra.mxu0 0.0
  %5462 = vmatprep.subr.mxu0 0.0
  %5463 = vmatpush1.msra.mxu0 0.0
  %5464 = vmatprep.subr.mxu0 0.0
  %5465 = vmatpush1.msra.mxu0 0.0
  %5466 = vmatprep.subr.mxu0 0.0
  %5467 = vmatpush1.msra.mxu0 0.0
  %5468 = vmatprep.subr.mxu0 0.0
  %5469 = vmatpush1.msra.mxu0 0.0
  %5470 = vmatprep.subr.mxu0 0.0
  %5471 = vmatpush1.msra.mxu0 0.0
  %5472 = vmatprep.subr.mxu0 0.0
  %5473 = vmatpush1.msra.mxu0 0.0
  %5474 = vmatprep.subr.mxu0 0.0
  %5475 = vmatpush1.msra.mxu0 0.0
  %5476 = vmatprep.subr.mxu0 0.0
  %5477 = vmatpush1.msra.mxu0 0.0
  %5478 = vmatprep.subr.mxu0 0.0
  %5479 = vmatpush1.msra.mxu0 0.0
  %5480 = vmatprep.subr.mxu0 0.0
  %5481 = vmatpush1.msra.mxu0 0.0
  %5482 = vmatprep.subr.mxu0 0.0
  %5483 = vmatpush1.msra.mxu0 0.0
  %5484 = vmatprep.subr.mxu0 0.0
  %5485 = vmatpush1.msra.mxu0 0.0
  %5486 = vmatprep.subr.mxu0 0.0
  %5487 = vmatpush1.msra.mxu0 0.0
  %5488 = vmatprep.subr.mxu0 0.0
  %5489 = vmatpush1.msra.mxu0 0.0
  %5490 = vmatprep.subr.mxu0 0.0
  %5491 = vmatpush1.msra.mxu0 0.0
  %5492 = vmatprep.subr.mxu0 0.0
  %5493 = vmatpush1.msra.mxu0 0.0
  %5494 = vmatprep.subr.mxu0 0.0
  %5495 = vmatpush1.msra.mxu0 0.0
  %5496 = vmatprep.subr.mxu0 0.0
  %5497 = vmatpush1.msra.mxu0 0.0
  %5498 = vmatprep.subr.mxu0 0.0
  %5499 = vmatpush1.msra.mxu0 0.0
  %5500 = vmatprep.mubr.f32.mxu0 0.0
  %5501 = vmatmul.mubr.f32.gmra.mrb[0].mxu0 %v5428
  %v5502 = vpop.f32.mrb[0].mxu0
  %v5503 = vadd.f32 0.0, %v5502
  %v5504 = vpop.f32.mrb[0].mxu0
  %v5505 = vadd.f32 0.0, %v5504
  %5506 = vdwg.mxu0
  %v5507 = vadd.f32 %v5379, %v5503
  %v5508 = vadd.f32 %v5381, %v5505
  %v5509 = vrot.slane %v5130, 3
  %v5511 = vrot.slane %v5132, 2
  %5512 = vrot.lane.b32.xlu0 %v5383, 46
  %v5513 = vpop.permute.xlu0 %5512
  %5514 = vrot.lane.b32.xlu0 %v5511, 46
  %v5515 = vpop.permute.xlu0 %5514
  %v5516 = vsel %vm5142, %v5513, %v5515
  %v5518 = vsel %vm1913, %v5509, %v5516
  %s5519 = scalar_lea.vmem %s20, 264
  %v5520 = vld [vmem:[%s5519] sm:$0xff]
  %v5521 = vld [vmem:[%s5519 + $0x8] sm:$0xff]
  %v5522 = vld [vmem:[%s5519 + $0x10] sm:$0xff]
  %v5523 = vld [vmem:[%s5519 + $0x18] sm:$0xff]
  %v5524 = vld [vmem:[%s5519 + $0x20] sm:$0xff]
  %v5525 = vld [vmem:[%s5519 + $0x28] sm:$0xff]
  %v5526 = vld [vmem:[%s5519 + $0x30] sm:$0xff]
  %v5527 = vld [vmem:[%s5519 + $0x38] sm:$0xff]
  %v5528 = vld [vmem:[%s5519 + $0x40] sm:$0xff]
  %v5529 = vld [vmem:[%s5519 + $0x48] sm:$0xff]
  %v5530 = vld [vmem:[%s5519 + $0x50] sm:$0x11]
  %v5531 = vunpack.c.l.bf16 %v5520
  %v5532 = vunpack.c.h.bf16 %v5520
  %v5533 = vunpack.c.l.bf16 %v5521
  %v5534 = vunpack.c.h.bf16 %v5521
  %v5535 = vunpack.c.l.bf16 %v5522
  %v5536 = vunpack.c.h.bf16 %v5522
  %v5537 = vunpack.c.l.bf16 %v5523
  %v5538 = vunpack.c.h.bf16 %v5523
  %v5539 = vunpack.c.l.bf16 %v5524
  %v5540 = vunpack.c.h.bf16 %v5524
  %v5541 = vunpack.c.l.bf16 %v5525
  %v5542 = vunpack.c.h.bf16 %v5525
  %v5543 = vunpack.c.l.bf16 %v5526
  %v5544 = vunpack.c.h.bf16 %v5526
  %v5545 = vunpack.c.l.bf16 %v5527
  %v5546 = vunpack.c.h.bf16 %v5527
  %v5547 = vunpack.c.l.bf16 %v5528
  %v5548 = vunpack.c.h.bf16 %v5528
  %v5549 = vunpack.c.l.bf16 %v5529
  %v5550 = vunpack.c.h.bf16 %v5529
  %v5551 = vunpack.c.l.bf16 %v5530
  %v5552 = vunpack.c.h.bf16 %v5530
  %v5554 = vsel %vm5222, %v5518, 0
  %v5557 = vsel %vm698, %v5551, 0
  %v5560 = vsel %vm698, %v5552, 0
  %5562 = vmatprep.subr.mxu0 %v5532
  %5563 = vmatpush1.msra.mxu0 %v5531
  %5564 = vmatprep.subr.mxu0 %v5534
  %5565 = vmatpush1.msra.mxu0 %v5533
  %5566 = vmatprep.subr.mxu0 %v5536
  %5567 = vmatpush1.msra.mxu0 %v5535
  %5568 = vmatprep.subr.mxu0 %v5538
  %5569 = vmatpush1.msra.mxu0 %v5537
  %5570 = vmatprep.subr.mxu0 %v5540
  %5571 = vmatpush1.msra.mxu0 %v5539
  %5572 = vmatprep.subr.mxu0 %v5542
  %5573 = vmatpush1.msra.mxu0 %v5541
  %5574 = vmatprep.subr.mxu0 %v5544
  %5575 = vmatpush1.msra.mxu0 %v5543
  %5576 = vmatprep.subr.mxu0 %v5546
  %5577 = vmatpush1.msra.mxu0 %v5545
  %5578 = vmatprep.subr.mxu0 %v5548
  %5579 = vmatpush1.msra.mxu0 %v5547
  %5580 = vmatprep.subr.mxu0 %v5550
  %5581 = vmatpush1.msra.mxu0 %v5549
  %5582 = vmatprep.subr.mxu0 %v5560
  %5583 = vmatpush1.msra.mxu0 %v5557
  %5584 = vmatprep.subr.mxu0 0.0
  %5585 = vmatpush1.msra.mxu0 0.0
  %5586 = vmatprep.subr.mxu0 0.0
  %5587 = vmatpush1.msra.mxu0 0.0
  %5588 = vmatprep.subr.mxu0 0.0
  %5589 = vmatpush1.msra.mxu0 0.0
  %5590 = vmatprep.subr.mxu0 0.0
  %5591 = vmatpush1.msra.mxu0 0.0
  %5592 = vmatprep.subr.mxu0 0.0
  %5593 = vmatpush1.msra.mxu0 0.0
  %5594 = vmatprep.subr.mxu0 0.0
  %5595 = vmatpush1.msra.mxu0 0.0
  %5596 = vmatprep.subr.mxu0 0.0
  %5597 = vmatpush1.msra.mxu0 0.0
  %5598 = vmatprep.subr.mxu0 0.0
  %5599 = vmatpush1.msra.mxu0 0.0
  %5600 = vmatprep.subr.mxu0 0.0
  %5601 = vmatpush1.msra.mxu0 0.0
  %5602 = vmatprep.subr.mxu0 0.0
  %5603 = vmatpush1.msra.mxu0 0.0
  %5604 = vmatprep.subr.mxu0 0.0
  %5605 = vmatpush1.msra.mxu0 0.0
  %5606 = vmatprep.subr.mxu0 0.0
  %5607 = vmatpush1.msra.mxu0 0.0
  %5608 = vmatprep.subr.mxu0 0.0
  %5609 = vmatpush1.msra.mxu0 0.0
  %5610 = vmatprep.subr.mxu0 0.0
  %5611 = vmatpush1.msra.mxu0 0.0
  %5612 = vmatprep.subr.mxu0 0.0
  %5613 = vmatpush1.msra.mxu0 0.0
  %5614 = vmatprep.subr.mxu0 0.0
  %5615 = vmatpush1.msra.mxu0 0.0
  %5616 = vmatprep.subr.mxu0 0.0
  %5617 = vmatpush1.msra.mxu0 0.0
  %5618 = vmatprep.subr.mxu0 0.0
  %5619 = vmatpush1.msra.mxu0 0.0
  %5620 = vmatprep.subr.mxu0 0.0
  %5621 = vmatpush1.msra.mxu0 0.0
  %5622 = vmatprep.subr.mxu0 0.0
  %5623 = vmatpush1.msra.mxu0 0.0
  %5624 = vmatprep.subr.mxu0 0.0
  %5625 = vmatpush1.msra.mxu0 0.0
  %5626 = vmatprep.mubr.f32.mxu0 0.0
  %5627 = vmatmul.mubr.f32.gmra.mrb[0].mxu0 %v5554
  %v5628 = vpop.f32.mrb[0].mxu0
  %v5629 = vadd.f32 0.0, %v5628
  %v5630 = vpop.f32.mrb[0].mxu0
  %v5631 = vadd.f32 0.0, %v5630
  %5632 = vdwg.mxu0
  %v5633 = vadd.f32 %v5507, %v5629
  %v5634 = vadd.f32 %v5508, %v5631
  %v5635 = vrot.slane %v5130, 4
  %v5637 = vrot.slane %v5132, 3
  %5638 = vrot.lane.b32.xlu0 %v5509, 46
  %v5639 = vpop.permute.xlu0 %5638
  %5640 = vrot.lane.b32.xlu0 %v5637, 46
  %v5641 = vpop.permute.xlu0 %5640
  %v5642 = vsel %vm5142, %v5639, %v5641
  %v5644 = vsel %vm1913, %v5635, %v5642
  %s5645 = scalar_lea.vmem %s20, 352
  %v5646 = vld [vmem:[%s5645] sm:$0xff]
  %v5647 = vld [vmem:[%s5645 + $0x8] sm:$0xff]
  %v5648 = vld [vmem:[%s5645 + $0x10] sm:$0xff]
  %v5649 = vld [vmem:[%s5645 + $0x18] sm:$0xff]
  %v5650 = vld [vmem:[%s5645 + $0x20] sm:$0xff]
  %v5651 = vld [vmem:[%s5645 + $0x28] sm:$0xff]
  %v5652 = vld [vmem:[%s5645 + $0x30] sm:$0xff]
  %v5653 = vld [vmem:[%s5645 + $0x38] sm:$0xff]
  %v5654 = vld [vmem:[%s5645 + $0x40] sm:$0xff]
  %v5655 = vld [vmem:[%s5645 + $0x48] sm:$0xff]
  %v5656 = vld [vmem:[%s5645 + $0x50] sm:$0x11]
  %v5657 = vunpack.c.l.bf16 %v5646
  %v5658 = vunpack.c.h.bf16 %v5646
  %v5659 = vunpack.c.l.bf16 %v5647
  %v5660 = vunpack.c.h.bf16 %v5647
  %v5661 = vunpack.c.l.bf16 %v5648
  %v5662 = vunpack.c.h.bf16 %v5648
  %v5663 = vunpack.c.l.bf16 %v5649
  %v5664 = vunpack.c.h.bf16 %v5649
  %v5665 = vunpack.c.l.bf16 %v5650
  %v5666 = vunpack.c.h.bf16 %v5650
  %v5667 = vunpack.c.l.bf16 %v5651
  %v5668 = vunpack.c.h.bf16 %v5651
  %v5669 = vunpack.c.l.bf16 %v5652
  %v5670 = vunpack.c.h.bf16 %v5652
  %v5671 = vunpack.c.l.bf16 %v5653
  %v5672 = vunpack.c.h.bf16 %v5653
  %v5673 = vunpack.c.l.bf16 %v5654
  %v5674 = vunpack.c.h.bf16 %v5654
  %v5675 = vunpack.c.l.bf16 %v5655
  %v5676 = vunpack.c.h.bf16 %v5655
  %v5677 = vunpack.c.l.bf16 %v5656
  %v5678 = vunpack.c.h.bf16 %v5656
  %v5680 = vsel %vm5222, %v5644, 0
  %v5683 = vsel %vm698, %v5677, 0
  %v5686 = vsel %vm698, %v5678, 0
  %5688 = vmatprep.subr.mxu0 %v5658
  %5689 = vmatpush1.msra.mxu0 %v5657
  %5690 = vmatprep.subr.mxu0 %v5660
  %5691 = vmatpush1.msra.mxu0 %v5659
  %5692 = vmatprep.subr.mxu0 %v5662
  %5693 = vmatpush1.msra.mxu0 %v5661
  %5694 = vmatprep.subr.mxu0 %v5664
  %5695 = vmatpush1.msra.mxu0 %v5663
  %5696 = vmatprep.subr.mxu0 %v5666
  %5697 = vmatpush1.msra.mxu0 %v5665
  %5698 = vmatprep.subr.mxu0 %v5668
  %5699 = vmatpush1.msra.mxu0 %v5667
  %5700 = vmatprep.subr.mxu0 %v5670
  %5701 = vmatpush1.msra.mxu0 %v5669
  %5702 = vmatprep.subr.mxu0 %v5672
  %5703 = vmatpush1.msra.mxu0 %v5671
  %5704 = vmatprep.subr.mxu0 %v5674
  %5705 = vmatpush1.msra.mxu0 %v5673
  %5706 = vmatprep.subr.mxu0 %v5676
  %5707 = vmatpush1.msra.mxu0 %v5675
  %5708 = vmatprep.subr.mxu0 %v5686
  %5709 = vmatpush1.msra.mxu0 %v5683
  %5710 = vmatprep.subr.mxu0 0.0
  %5711 = vmatpush1.msra.mxu0 0.0
  %5712 = vmatprep.subr.mxu0 0.0
  %5713 = vmatpush1.msra.mxu0 0.0
  %5714 = vmatprep.subr.mxu0 0.0
  %5715 = vmatpush1.msra.mxu0 0.0
  %5716 = vmatprep.subr.mxu0 0.0
  %5717 = vmatpush1.msra.mxu0 0.0
  %5718 = vmatprep.subr.mxu0 0.0
  %5719 = vmatpush1.msra.mxu0 0.0
  %5720 = vmatprep.subr.mxu0 0.0
  %5721 = vmatpush1.msra.mxu0 0.0
  %5722 = vmatprep.subr.mxu0 0.0
  %5723 = vmatpush1.msra.mxu0 0.0
  %5724 = vmatprep.subr.mxu0 0.0
  %5725 = vmatpush1.msra.mxu0 0.0
  %5726 = vmatprep.subr.mxu0 0.0
  %5727 = vmatpush1.msra.mxu0 0.0
  %5728 = vmatprep.subr.mxu0 0.0
  %5729 = vmatpush1.msra.mxu0 0.0
  %5730 = vmatprep.subr.mxu0 0.0
  %5731 = vmatpush1.msra.mxu0 0.0
  %5732 = vmatprep.subr.mxu0 0.0
  %5733 = vmatpush1.msra.mxu0 0.0
  %5734 = vmatprep.subr.mxu0 0.0
  %5735 = vmatpush1.msra.mxu0 0.0
  %5736 = vmatprep.subr.mxu0 0.0
  %5737 = vmatpush1.msra.mxu0 0.0
  %5738 = vmatprep.subr.mxu0 0.0
  %5739 = vmatpush1.msra.mxu0 0.0
  %5740 = vmatprep.subr.mxu0 0.0
  %5741 = vmatpush1.msra.mxu0 0.0
  %5742 = vmatprep.subr.mxu0 0.0
  %5743 = vmatpush1.msra.mxu0 0.0
  %5744 = vmatprep.subr.mxu0 0.0
  %5745 = vmatpush1.msra.mxu0 0.0
  %5746 = vmatprep.subr.mxu0 0.0
  %5747 = vmatpush1.msra.mxu0 0.0
  %5748 = vmatprep.subr.mxu0 0.0
  %5749 = vmatpush1.msra.mxu0 0.0
  %5750 = vmatprep.subr.mxu0 0.0
  %5751 = vmatpush1.msra.mxu0 0.0
  %5752 = vmatprep.mubr.f32.mxu0 0.0
  %5753 = vmatmul.mubr.f32.gmra.mrb[0].mxu0 %v5680
  %v5754 = vpop.f32.mrb[0].mxu0
  %v5755 = vadd.f32 0.0, %v5754
  %v5756 = vpop.f32.mrb[0].mxu0
  %v5757 = vadd.f32 0.0, %v5756
  %5758 = vdwg.mxu0
  %v5759 = vadd.f32 %v5633, %v5755
  %v5760 = vadd.f32 %v5634, %v5757
  %v5761 = vld [vmem:[#allocation4] sm:$0x1]
  %v5763 = vlaneseq
  %v5764 = vshrl.u32 %v5763, 7
  %v5765 = vsub.s32 0, %v5764
  %v5766 = vrot.slane %v5761, %v5765
  %5767 = vset.pattern.permute.xlu0 0
  %5768 = vperm.xlu0 %5767, %v5766
  %v5769 = vpop.permute.xlu0 %5768
  %v5771 = vadd.f32 %v5759, %v5769
  %v5772 = vadd.f32 %v5760, %v5769
  %vm5773 = vcmp.gt.f32.partialorder %v5771, 0.0
  %vm5774 = vcmp.gt.f32.partialorder %v5772, 0.0
  %v5775 = vmul.f32 %v5771, 0.01
  %v5776 = vmul.f32 %v5772, 0.01
  %v5777 = vsel %vm5773, %v5771, %v5775
  %v5778 = vsel %vm5774, %v5772, %v5776
  %v5781 = vcombine.low %v5777, %v5778
  %v5783 = vunpack.c.l.s4 1983009808
  %v5784 = vunpack.c.0.s8 %v5783
  %v5785 = vlaneseq
  %v5786 = vshrl.u32 %v5785, 7
  %v5787 = vsub.s32 %v5784, %v5786
  %v5788 = vrot.slane %v5781, %v5787
  %vm5790 = vcmask 322562
  %vm5791 = vmor %vm5790, %vm698
  %5792 = vst.msk [vmem:[%s21] sm:$0xf] %vm5791, %v5788
  // Predicated region
  $region86: #{vae_forward.1} parent=0 // pred_check
    _
  $region87: #{vae_forward.1} parent=0 // pred_check_branch
    %5794 = sbr.rel (0) target = $region89
  $region88: #{vae_forward.1} parent=0 // pred_region
    _
  $region89: #{vae_forward.1} parent=0 // pred_fallthru
    _
  // Predicated region
  $region90: #{vae_forward.1} parent=0 // pred_check
    _
  $region91: #{vae_forward.1} parent=0 // pred_check_branch
    %5796 = sbr.rel (0) target = $region93
  $region92: #{vae_forward.1} parent=0 // pred_region
    _
  $region93: #{vae_forward.1} parent=0 // pred_fallthru
    _
  // Predicated region
  $region94: #{vae_forward.1} parent=0 // pred_check
    _
  $region95: #{vae_forward.1} parent=0 // pred_check_branch
    %5798 = sbr.rel (0) target = $region97
  $region96: #{vae_forward.1} parent=0 // pred_region
    _
  $region97: #{vae_forward.1} parent=0 // pred_fallthru
    _
  // Predicated region
  $region98: #{vae_forward.1} parent=0 // pred_check
    _
  $region99: #{vae_forward.1} parent=0 // pred_check_branch
    %5800 = sbr.rel (0) target = $region101
  $region100: #{vae_forward.1} parent=0 // pred_region
    _
  $region101: #{vae_forward.1} parent=0 // pred_fallthru
    _

</llo_original>
